<compile_context>
chip_gen: v7x
topology: tpu7x:2x2x1
jax: 0.10.0
libtpu: 0.0.40
codegen_flags: <defaults>
</compile_context>

<pallas_src>
import functools

import jax
import jax.numpy as jnp
from jax import lax
from jax.experimental import pallas as pl
from jax.experimental.pallas import tpu as pltpu


# -----------------------------------------------------------------------------
# Fused kernel: 1x1 conv (BN-folded) + bias + SiLU + global average pool
#               + Linear + softmax (finalize branch)
# -----------------------------------------------------------------------------
def _classify_kernel(x_ref, w1_ref, b1_ref, w2_ref, b2_ref,
                     y_ref, logits_ref, acc_ref,
                     *, inv_hw, hw, thw, ragged):
    """Grid = (B, n_s); the spatial axis is a reduction axis.

    x_ref:      (1, c1, THW) NCHW spatial tile (c1 on sublanes, THW on lanes)
    w1_ref:     (c1, c_)     BN-scale-folded 1x1 conv weight, bf16
    b1_ref:     (1, c_)      folded BN bias, f32
    w2_ref:     (c_, c2)     linear weight, bf16
    b2_ref:     (1, c2)      linear bias, f32
    y_ref:      (1, 1, c2)   softmax output block for this batch element
    logits_ref: (1, 1, c2)   logits output block for this batch element
    acc_ref:    (1, c_)      lane-dense f32 pooled-sum accumulator (VMEM scratch)
    """
    s = pl.program_id(1)

    @pl.when(s == 0)
    def _init():
        acc_ref[...] = jnp.zeros_like(acc_ref)

    # 1x1 conv == channel matmul on the MXU, oriented (THW, c_) so the wide c_=1280 axis
    # is lane-dense.  Contracting dim 0 of both operands avoids a materialized transpose
    # of x (the MXU consumes the transposed LHS natively); f32 accumulation.
    x = x_ref[0].astype(jnp.bfloat16)                              # (c1, THW)
    h = lax.dot_general(x, w1_ref[...],
                        dimension_numbers=(((0,), (0,)), ((), ())),
                        preferred_element_type=jnp.float32)        # (THW, c_) f32

    # Folded BN bias + SiLU.  SiLU via tanh identity: one EUP op/element.
    h = h + b1_ref[...]
    act = 0.5 * h * (1.0 + jnp.tanh(0.5 * h))
    # TODO(synk): on v6e/v7x the tanh could run in bf16 for ~2x EUP throughput; kept f32 so
    # the identical kernel also serves v5e and tracks the f32 PyTorch activation closely.

    if ragged:  # static flag: last spatial block extends past HW -> mask padded rows.
        row = lax.broadcasted_iota(jnp.int32, (thw, 1), 0) + s * thw
        act = jnp.where(row < hw, act, 0.0)

    # Partial spatial sum for the global average pool (lane-dense (1, c_) row).
    acc_ref[...] += jnp.sum(act, axis=0, keepdims=True)

    @pl.when(s == pl.num_programs(1) - 1)
    def _finalize():
        # sum -> mean; Dropout(p=0.0) is the identity.
        pooled = acc_ref[...] * inv_hw                             # (1, c_) f32
        logits = jnp.dot(pooled.astype(jnp.bfloat16), w2_ref[...],
                         preferred_element_type=jnp.float32) + b2_ref[...]   # (1, c2)
        m = jnp.max(logits, axis=-1, keepdims=True)
        e = jnp.exp(logits - m)
        y = e / jnp.sum(e, axis=-1, keepdims=True)                 # exact; off the hot path
        logits_ref[0] = logits.astype(logits_ref.dtype)
        y_ref[0] = y.astype(y_ref.dtype)


# -----------------------------------------------------------------------------
# Generation-aware budgeting helpers
# -----------------------------------------------------------------------------
def _vmem_limit_bytes():
    """Scoped-VMEM budget derived from the actual chip (128 MiB v5e/v6e, 64 MiB v7x)."""
    try:
        cap = int(pltpu.get_tpu_info().vmem_capacity_bytes)
    except Exception:
        cap = 64 * 1024 * 1024
    return max(32 * 1024 * 1024, min(cap * 3 // 4, 96 * 1024 * 1024))


def _pick_spatial_tile(hw, cap):
    """Spatial tile: full HW if it fits the element-budget cap, else the largest
    128-multiple <= cap (preferring an exact divisor of HW to avoid a ragged tail)."""
    cap = max(128, int(cap))
    if hw <= cap:
        return hw                       # block == full array dim: always layout-legal
    tile = (cap // 128) * 128
    for t in range(tile, 127, -128):    # prefer a clean divisor near the cap
        if hw % t == 0:
            if 2 * t >= tile:
                return t
            break
    return tile                         # ragged last block; kernel masks the tail


def _const_spec(shape, single_buffer):
    """Constant-index-map BlockSpec; optionally single-buffered (constant operands don't
    need double-buffering, which saves VMEM on v7x / large c1)."""
    idx = lambda b, s: (0,) * len(shape)
    if single_buffer and hasattr(pl, "Buffered"):
        return pl.BlockSpec(shape, idx, pipeline_mode=pl.Buffered(1))
    return pl.BlockSpec(shape, idx)


# -----------------------------------------------------------------------------
# Wrapper
# -----------------------------------------------------------------------------
def classify_forward(x, w1, b1, w2, b2, *, thw=None):
    """Returns (softmax(logits), logits), matching Classify.forward in eval mode."""
    if isinstance(x, (list, tuple)):            # mirrors `torch.cat(x, 1)` in the module
        x = jnp.concatenate(x, axis=1)

    B, c1, H, W = x.shape
    HW = H * W
    assert w1.shape[0] == c1, "folded conv weight / input channel mismatch"
    c_ = w1.shape[1]
    c2 = w2.shape[1]

    x_itemsize = jnp.dtype(x.dtype).itemsize
    vmem_limit = _vmem_limit_bytes()

    # Byte budget -> spatial-tile cap: double-buffered x tile + ~4 f32 copies of the
    # (THW, c_) working set must fit in half the scoped limit next to the constants.
    const_bytes = 2 * (c1 * c_ * 2 + c_ * 4 + c_ * c2 * 2 + c2 * 4)
    bytes_per_thw = 2 * c1 * x_itemsize + 4 * c_ * 4
    cap_thw = min(2048, max(128, (vmem_limit // 2 - const_bytes) // bytes_per_thw))

    if thw is None:
        thw = _pick_spatial_tile(HW, cap_thw)
    if not (thw == HW or thw % 128 == 0) or thw > max(HW, 128):
        raise ValueError(f"invalid spatial tile {thw} for HW={HW}")
    n_s = pl.cdiv(HW, thw)
    ragged = (HW % thw) != 0

    # Free row-major reshape: no NCHW->NHWC transpose, no extra HBM pass over x.
    x_r = x.reshape(B, c1, HW)

    kernel = functools.partial(_classify_kernel, inv_hw=1.0 / HW, hw=HW, thw=thw,
                               ragged=ragged)

    cost = pl.CostEstimate(
        flops=int(2 * B * HW * c1 * c_ + 6 * B * HW * c_ + 2 * B * c_ * c2),
        transcendentals=int(B * HW * c_),          # one tanh per conv output element
        bytes_accessed=int(B * c1 * HW * x_itemsize + c1 * c_ * 2 + c_ * 4
                           + c_ * c2 * 2 + c2 * 4 + 2 * B * c2 * 4),
    )

    def _run(single_buffer_consts):
        in_specs = [
            pl.BlockSpec((1, c1, thw), lambda b, s: (b, 0, s)),        # x spatial tile
            _const_spec((c1, c_), single_buffer_consts),               # folded conv weight
            _const_spec((1, c_), single_buffer_consts),                # folded BN bias
            _const_spec((c_, c2), single_buffer_consts),               # linear weight
            _const_spec((1, c2), single_buffer_consts),                # linear bias
        ]
        out_specs = (pl.BlockSpec((1, 1, c2), lambda b, s: (b, 0, 0)),
                     pl.BlockSpec((1, 1, c2), lambda b, s: (b, 0, 0)))
        call = pl.pallas_call(
            kernel,
            out_shape=(jax.ShapeDtypeStruct((B, 1, c2), jnp.float32),
                       jax.ShapeDtypeStruct((B, 1, c2), jnp.float32)),
            grid=(B, n_s),
            in_specs=in_specs,
            out_specs=out_specs,
            scratch_shapes=[pltpu.VMEM((1, c_), jnp.float32)],
            compiler_params=pltpu.CompilerParams(
                # Batch axis shards across megacore TensorCores (needs B >= 2 for that).
                dimension_semantics=("parallel", "arbitrary"),
                vmem_limit_bytes=int(vmem_limit),
            ),
            cost_estimate=cost,
        )
        return call(x_r, w1, b1, w2, b2)

    try:
        y3, logits3 = _run(True)
    except Exception:
        # pipeline_mode=pl.Buffered(1) not supported by this jax build -> default buffering.
        y3, logits3 = _run(False)

    return y3[:, 0, :], logits3[:, 0, :]          # (B, c2), (B, c2)


# -----------------------------------------------------------------------------
# Parameters (PyTorch-shaped, then folded for the kernel)
# -----------------------------------------------------------------------------
def make_params(key, c1, c2, c_=1280, eps=1e-5):
    ks = jax.random.split(key, 7)
    # Conv2d(c1, c_, k=1, bias=False): weight (c_, c1, 1, 1) -> squeezed to (c_, c1)
    conv_w = jax.random.normal(ks[0], (c_, c1), jnp.float32) * 0.1
    # BatchNorm2d(c_) eval-mode parameters / running stats
    gamma = 1.0 + 0.1 * jax.random.normal(ks[1], (c_,), jnp.float32)
    beta = 0.1 * jax.random.normal(ks[2], (c_,), jnp.float32)
    run_mean = 0.1 * jax.random.normal(ks[3], (c_,), jnp.float32)
    run_var = jnp.abs(1.0 + 0.1 * jax.random.normal(ks[4], (c_,), jnp.float32))
    # Linear(c_, c2)
    lin_w = jax.random.normal(ks[5], (c2, c_), jnp.float32) * 0.05
    lin_b = 0.1 * jax.random.normal(ks[6], (c2,), jnp.float32)

    bn_scale = gamma / jnp.sqrt(run_var + eps)
    # Fold BN scale into the conv weight (one-time constant fold), store (c1, c_) so the
    # kernel's dot_general contracts dim 0 of both operands; MXU weights in bf16.
    w1 = (conv_w * bn_scale[:, None]).T.astype(jnp.bfloat16)      # (c1, c_)
    b1 = (beta - run_mean * bn_scale).reshape(1, c_)              # (1, c_) f32
    w2 = lin_w.T.astype(jnp.bfloat16)                             # (c_, c2)
    b2 = lin_b.reshape(1, c2)                                     # (1, c2) f32
    return w1, b1, w2, b2


# -----------------------------------------------------------------------------
# Pure-JAX reference (same math; matmul_dtype controls MXU input precision)
# -----------------------------------------------------------------------------
def reference_forward(x_nchw, w1, b1, w2, b2, *, matmul_dtype=jnp.bfloat16):
    B, c1, H, W = x_nchw.shape
    c_ = w1.shape[1]
    hi = lax.Precision.HIGHEST
    x = x_nchw.reshape(B, c1, H * W).astype(matmul_dtype)
    h = jnp.einsum("cd,bcs->bds", w1.astype(matmul_dtype), x,
                   preferred_element_type=jnp.float32, precision=hi)   # (B, c_, HW)
    h = h + b1.reshape(1, c_, 1)
    h = h * jax.nn.sigmoid(h)                                          # SiLU
    pooled = jnp.mean(h, axis=-1)                                      # (B, c_)
    logits = jnp.dot(pooled.astype(matmul_dtype), w2.astype(matmul_dtype),
                     preferred_element_type=jnp.float32, precision=hi) + b2
    y = jax.nn.softmax(logits, axis=-1)
    return y, logits


if __name__ == "__main__":
    # Module docstring shape: x(b, c1, 20, 20) -> (b, c2); keep everything small.
    B, c1, H, W = 2, 4, 20, 20
    c2 = 8

    key = jax.random.PRNGKey(0)
    kx, kp = jax.random.split(key)
    x = jax.random.normal(kx, (B, c1, H, W), jnp.float32)
    params = make_params(kp, c1, c2)

    # Default budgeted tiling (single spatial block at this small HW) ...
    y1, logits1 = classify_forward(x, *params)
    # ... and a forced 128-wide tile: 400 = 3*128 + 16 -> exercises the multi-step
    # accumulator AND the ragged-tail masking path.
    y2, logits2 = classify_forward(x, *params, thw=128)
    jax.block_until_ready((y1, logits1, y2, logits2))

    # Tight check vs a reference using the same bf16-matmul convention.
    y_ref, logits_ref = reference_forward(x, *params, matmul_dtype=jnp.bfloat16)
    # Loose check vs a float32 reference (semantic fidelity to the PyTorch module;
    # bf16 MXU inputs are an intentional precision contract).
    y_f32, logits_f32 = reference_forward(x, *params, matmul_dtype=jnp.float32)

    for y, logits in ((y1, logits1), (y2, logits2)):
        assert y.shape == (B, c2) and logits.shape == (B, c2)
        assert jnp.allclose(logits, logits_ref, rtol=2e-3, atol=2e-3), "logits mismatch (tight)"
        assert jnp.allclose(y, y_ref, rtol=2e-3, atol=2e-3), "softmax mismatch (tight)"
        assert jnp.allclose(logits, logits_f32, rtol=1e-2, atol=1e-2), "logits mismatch (f32 ref)"
        assert jnp.allclose(y, y_f32, rtol=1e-2, atol=1e-2), "softmax mismatch (f32 ref)"
        assert jnp.allclose(jnp.sum(y, axis=1), jnp.ones((B,), jnp.float32), atol=1e-3)

    print("KERNEL_OK")
</pallas_src>

<mosaic_0001>
module attributes {stable_mosaic.version = 11 : i64} {
  func.func @_classify_kernel(%arg0: i32, %arg1: i32, %arg2: memref<1x4x400xf32, #tpu.memory_space<vmem>>, %arg3: memref<4x1280xbf16, #tpu.memory_space<vmem>>, %arg4: memref<1x1280xf32, #tpu.memory_space<vmem>>, %arg5: memref<1280x8xbf16, #tpu.memory_space<vmem>>, %arg6: memref<1x8xf32, #tpu.memory_space<vmem>>, %arg7: memref<1x1x8xf32, #tpu.memory_space<vmem>>, %arg8: memref<1x1x8xf32, #tpu.memory_space<vmem>>, %arg9: memref<1x1280xf32, #tpu.memory_space<vmem>>) attributes {dimension_semantics = [#tpu.dimension_semantics<parallel>, #tpu.dimension_semantics<arbitrary>], iteration_bounds = array<i64: 2, 1>, scalar_prefetch = 0 : i64, scratch_operands = 1 : i64, tpu.core_type = #tpu.core_type<tc>, window_params = [{transform_indices = @transform_0, window_bounds = array<i64: 1, 4, 400>}, {pipeline_mode = #tpu.pipeline_mode<synchronous>, transform_indices = @transform_1, window_bounds = array<i64: 4, 1280>}, {pipeline_mode = #tpu.pipeline_mode<synchronous>, transform_indices = @transform_2, window_bounds = array<i64: 1, 1280>}, {pipeline_mode = #tpu.pipeline_mode<synchronous>, transform_indices = @transform_3, window_bounds = array<i64: 1280, 8>}, {pipeline_mode = #tpu.pipeline_mode<synchronous>, transform_indices = @transform_4, window_bounds = array<i64: 1, 8>}, {transform_indices = @transform_5, window_bounds = array<i64: 1, 1, 8>}, {transform_indices = @transform_6, window_bounds = array<i64: 1, 1, 8>}]} {
    %c0_i32 = arith.constant 0 : i32
    %0 = arith.cmpi eq, %arg1, %c0_i32 : i32
    %1 = arith.extui %0 : i1 to i32
    %c0_i32_0 = arith.constant 0 : i32
    %2 = arith.cmpi ne, %1, %c0_i32_0 : i32
    scf.if %2 {
      %cst_17 = arith.constant 0.000000e+00 : f32
      %27 = vector.broadcast %cst_17 : f32 to vector<1x1280xf32>
      %c0_18 = arith.constant 0 : index
      %c0_19 = arith.constant 0 : index
      %28 = vector.load %arg9[%c0_18, %c0_19] : memref<1x1280xf32, #tpu.memory_space<vmem>>, vector<1x1280xf32>
      tpu.vector_store %arg9[%c0_18, %c0_19], %27 {strides = array<i32>} : memref<1x1280xf32, #tpu.memory_space<vmem>>, vector<1x1280xf32>,
    } else {
    }
    %c0 = arith.constant 0 : index
    %c0_1 = arith.constant 0 : index
    %c0_2 = arith.constant 0 : index
    %3 = vector.load %arg2[%c0, %c0_1, %c0_2] : memref<1x4x400xf32, #tpu.memory_space<vmem>>, vector<1x4x400xf32>
    %4 = vector.shape_cast %3 : vector<1x4x400xf32> to vector<4x400xf32>
    %5 = arith.truncf %4 : vector<4x400xf32> to vector<4x400xbf16>
    %c0_3 = arith.constant 0 : index
    %c0_4 = arith.constant 0 : index
    %6 = vector.load %arg3[%c0_3, %c0_4] : memref<4x1280xbf16, #tpu.memory_space<vmem>>, vector<4x1280xbf16>
    %cst = arith.constant dense<0.000000e+00> : vector<400x1280xf32>
    %7 = tpu.matmul %5, %6, %cst {dimension_numbers = #tpu.dot_dimension_numbers<[0], [0], [1], [1], [0, 1, 1, 1], [], []>} : vector<4x400xbf16>, vector<4x1280xbf16>, vector<400x1280xf32> -> vector<400x1280xf32>
    %c0_5 = arith.constant 0 : index
    %c0_6 = arith.constant 0 : index
    %8 = vector.load %arg4[%c0_5, %c0_6] : memref<1x1280xf32, #tpu.memory_space<vmem>>, vector<1x1280xf32>
    %9 = vector.broadcast %8 : vector<1x1280xf32> to vector<400x1280xf32>
    %10 = arith.addf %7, %9 : vector<400x1280xf32>
    %cst_7 = arith.constant 5.000000e-01 : f32
    %11 = vector.broadcast %cst_7 : f32 to vector<400x1280xf32>
    %12 = arith.mulf %11, %10 : vector<400x1280xf32>
    %cst_8 = arith.constant 5.000000e-01 : f32
    %13 = vector.broadcast %cst_8 : f32 to vector<400x1280xf32>
    %14 = arith.mulf %13, %10 : vector<400x1280xf32>
    %15 = math.tanh %14 : vector<400x1280xf32>
    %cst_9 = arith.constant 1.000000e+00 : f32
    %16 = vector.broadcast %cst_9 : f32 to vector<400x1280xf32>
    %17 = arith.addf %16, %15 : vector<400x1280xf32>
    %18 = arith.mulf %12, %17 : vector<400x1280xf32>
    %c0_10 = arith.constant 0 : index
    %c0_11 = arith.constant 0 : index
    %19 = vector.load %arg9[%c0_10, %c0_11] : memref<1x1280xf32, #tpu.memory_space<vmem>>, vector<1x1280xf32>
    %cst_12 = arith.constant dense<0.000000e+00> : vector<1280xf32>
    %20 = vector.multi_reduction <add>, %18, %cst_12 [0] : vector<400x1280xf32> to vector<1280xf32>
    %21 = vector.shape_cast %20 : vector<1280xf32> to vector<1x1280xf32>
    %22 = arith.addf %19, %21 : vector<1x1280xf32>
    %c0_13 = arith.constant 0 : index
    %c0_14 = arith.constant 0 : index
    %23 = vector.load %arg9[%c0_13, %c0_14] : memref<1x1280xf32, #tpu.memory_space<vmem>>, vector<1x1280xf32>
    tpu.vector_store %arg9[%c0_13, %c0_14], %22 {strides = array<i32>} : memref<1x1280xf32, #tpu.memory_space<vmem>>, vector<1x1280xf32>,
    %c0_i32_15 = arith.constant 0 : i32
    %24 = arith.cmpi eq, %arg1, %c0_i32_15 : i32
    %25 = arith.extui %24 : i1 to i32
    %c0_i32_16 = arith.constant 0 : i32
    %26 = arith.cmpi ne, %25, %c0_i32_16 : i32
    scf.if %26 {
      %c0_17 = arith.constant 0 : index
      %c0_18 = arith.constant 0 : index
      %27 = vector.load %arg9[%c0_17, %c0_18] : memref<1x1280xf32, #tpu.memory_space<vmem>>, vector<1x1280xf32>
      %cst_19 = arith.constant 2.500000e-03 : f32
      %28 = vector.broadcast %cst_19 : f32 to vector<1x1280xf32>
      %29 = arith.mulf %27, %28 : vector<1x1280xf32>
      %30 = arith.truncf %29 : vector<1x1280xf32> to vector<1x1280xbf16>
      %c0_20 = arith.constant 0 : index
      %c0_21 = arith.constant 0 : index
      %31 = vector.load %arg5[%c0_20, %c0_21] : memref<1280x8xbf16, #tpu.memory_space<vmem>>, vector<1280x8xbf16>
      %cst_22 = arith.constant dense<0.000000e+00> : vector<1x8xf32>
      %32 = tpu.matmul %30, %31, %cst_22 {dimension_numbers = #tpu.dot_dimension_numbers<[1], [0], [0], [1], [0, 0, 1, 1], [], []>} : vector<1x1280xbf16>, vector<1280x8xbf16>, vector<1x8xf32> -> vector<1x8xf32>
      %c0_23 = arith.constant 0 : index
      %c0_24 = arith.constant 0 : index
      %33 = vector.load %arg6[%c0_23, %c0_24] : memref<1x8xf32, #tpu.memory_space<vmem>>, vector<1x8xf32>
      %34 = arith.addf %32, %33 : vector<1x8xf32>
      %cst_25 = arith.constant dense<0xFF800000> : vector<1xf32>
      %35 = vector.multi_reduction <maximumf>, %34, %cst_25 [1] : vector<1x8xf32> to vector<1xf32>
      %36 = vector.shape_cast %35 : vector<1xf32> to vector<1x1xf32>
      %37 = vector.broadcast %36 : vector<1x1xf32> to vector<1x8xf32>
      %38 = arith.subf %34, %37 : vector<1x8xf32>
      %39 = math.exp %38 : vector<1x8xf32>
      %cst_26 = arith.constant dense<0.000000e+00> : vector<1xf32>
      %40 = vector.multi_reduction <add>, %39, %cst_26 [1] : vector<1x8xf32> to vector<1xf32>
      %41 = vector.shape_cast %40 : vector<1xf32> to vector<1x1xf32>
      %42 = vector.broadcast %41 : vector<1x1xf32> to vector<1x8xf32>
      %43 = arith.divf %39, %42 : vector<1x8xf32>
      %c0_27 = arith.constant 0 : index
      %c0_28 = arith.constant 0 : index
      %c0_29 = arith.constant 0 : index
      %44 = vector.load %arg8[%c0_27, %c0_28, %c0_29] : memref<1x1x8xf32, #tpu.memory_space<vmem>>, vector<1x1x8xf32>
      %45 = vector.shape_cast %44 : vector<1x1x8xf32> to vector<1x8xf32>
      %46 = vector.shape_cast %34 : vector<1x8xf32> to vector<1x1x8xf32>
      tpu.vector_store %arg8[%c0_27, %c0_28, %c0_29], %46 {strides = array<i32>} : memref<1x1x8xf32, #tpu.memory_space<vmem>>, vector<1x1x8xf32>,
      %c0_30 = arith.constant 0 : index
      %c0_31 = arith.constant 0 : index
      %c0_32 = arith.constant 0 : index
      %47 = vector.load %arg7[%c0_30, %c0_31, %c0_32] : memref<1x1x8xf32, #tpu.memory_space<vmem>>, vector<1x1x8xf32>
      %48 = vector.shape_cast %47 : vector<1x1x8xf32> to vector<1x8xf32>
      %49 = vector.shape_cast %43 : vector<1x8xf32> to vector<1x1x8xf32>
      tpu.vector_store %arg7[%c0_30, %c0_31, %c0_32], %49 {strides = array<i32>} : memref<1x1x8xf32, #tpu.memory_space<vmem>>, vector<1x1x8xf32>,
    } else {
    }
    return
  }
  func.func @transform_0(%arg0: i32, %arg1: i32) -> (i32, i32, i32) {
    %c0_i32 = arith.constant 0 : i32
    %c0_i32_0 = arith.constant 0 : i32
    return %arg0, %c0_i32, %arg1 : i32, i32, i32
  }
  func.func @transform_1(%arg0: i32, %arg1: i32) -> (i32, i32) {
    %c0_i32 = arith.constant 0 : i32
    %c0_i32_0 = arith.constant 0 : i32
    %c0_i32_1 = arith.constant 0 : i32
    return %c0_i32, %c0_i32_0 : i32, i32
  }
  func.func @transform_2(%arg0: i32, %arg1: i32) -> (i32, i32) {
    %c0_i32 = arith.constant 0 : i32
    %c0_i32_0 = arith.constant 0 : i32
    %c0_i32_1 = arith.constant 0 : i32
    return %c0_i32, %c0_i32_0 : i32, i32
  }
  func.func @transform_3(%arg0: i32, %arg1: i32) -> (i32, i32) {
    %c0_i32 = arith.constant 0 : i32
    %c0_i32_0 = arith.constant 0 : i32
    %c0_i32_1 = arith.constant 0 : i32
    return %c0_i32, %c0_i32_0 : i32, i32
  }
  func.func @transform_4(%arg0: i32, %arg1: i32) -> (i32, i32) {
    %c0_i32 = arith.constant 0 : i32
    %c0_i32_0 = arith.constant 0 : i32
    %c0_i32_1 = arith.constant 0 : i32
    return %c0_i32, %c0_i32_0 : i32, i32
  }
  func.func @transform_5(%arg0: i32, %arg1: i32) -> (i32, i32, i32) {
    %c0_i32 = arith.constant 0 : i32
    %c0_i32_0 = arith.constant 0 : i32
    %c0_i32_1 = arith.constant 0 : i32
    return %arg0, %c0_i32, %c0_i32_0 : i32, i32, i32
  }
  func.func @transform_6(%arg0: i32, %arg1: i32) -> (i32, i32, i32) {
    %c0_i32 = arith.constant 0 : i32
    %c0_i32_0 = arith.constant 0 : i32
    %c0_i32_1 = arith.constant 0 : i32
    return %arg0, %c0_i32, %c0_i32_0 : i32, i32, i32
  }
}

module attributes {stable_mosaic.version = 11 : i64} {
  func.func @_classify_kernel(%arg0: i32, %arg1: i32, %arg2: memref<1x4x400xf32, #tpu.memory_space<vmem>>, %arg3: memref<4x1280xbf16, #tpu.memory_space<vmem>>, %arg4: memref<1x1280xf32, #tpu.memory_space<vmem>>, %arg5: memref<1280x8xbf16, #tpu.memory_space<vmem>>, %arg6: memref<1x8xf32, #tpu.memory_space<vmem>>, %arg7: memref<1x1x8xf32, #tpu.memory_space<vmem>>, %arg8: memref<1x1x8xf32, #tpu.memory_space<vmem>>, %arg9: memref<1x1280xf32, #tpu.memory_space<vmem>>) attributes {dimension_semantics = [#tpu.dimension_semantics<parallel>, #tpu.dimension_semantics<arbitrary>], iteration_bounds = array<i64: 2, 1>, scalar_prefetch = 0 : i64, scratch_operands = 1 : i64, tpu.core_type = #tpu.core_type<tc>, window_params = [{transform_indices = @transform_0, window_bounds = array<i64: 1, 4, 400>}, {pipeline_mode = #tpu.pipeline_mode<synchronous>, transform_indices = @transform_1, window_bounds = array<i64: 4, 1280>}, {pipeline_mode = #tpu.pipeline_mode<synchronous>, transform_indices = @transform_2, window_bounds = array<i64: 1, 1280>}, {pipeline_mode = #tpu.pipeline_mode<synchronous>, transform_indices = @transform_3, window_bounds = array<i64: 1280, 8>}, {pipeline_mode = #tpu.pipeline_mode<synchronous>, transform_indices = @transform_4, window_bounds = array<i64: 1, 8>}, {transform_indices = @transform_5, window_bounds = array<i64: 1, 1, 8>}, {transform_indices = @transform_6, window_bounds = array<i64: 1, 1, 8>}]} {
    %c0_i32 = arith.constant 0 : i32
    %0 = arith.cmpi eq, %arg1, %c0_i32 : i32
    %1 = arith.extui %0 : i1 to i32
    %c0_i32_0 = arith.constant 0 : i32
    %2 = arith.cmpi ne, %1, %c0_i32_0 : i32
    scf.if %2 {
      %cst_17 = arith.constant 0.000000e+00 : f32
      %27 = vector.broadcast %cst_17 : f32 to vector<1x1280xf32>
      %c0_18 = arith.constant 0 : index
      %c0_19 = arith.constant 0 : index
      %28 = vector.load %arg9[%c0_18, %c0_19] : memref<1x1280xf32, #tpu.memory_space<vmem>>, vector<1x1280xf32>
      tpu.vector_store %arg9[%c0_18, %c0_19], %27 {strides = array<i32>} : memref<1x1280xf32, #tpu.memory_space<vmem>>, vector<1x1280xf32>,
    } else {
    }
    %c0 = arith.constant 0 : index
    %c0_1 = arith.constant 0 : index
    %c0_2 = arith.constant 0 : index
    %3 = vector.load %arg2[%c0, %c0_1, %c0_2] : memref<1x4x400xf32, #tpu.memory_space<vmem>>, vector<1x4x400xf32>
    %4 = vector.shape_cast %3 : vector<1x4x400xf32> to vector<4x400xf32>
    %5 = arith.truncf %4 : vector<4x400xf32> to vector<4x400xbf16>
    %c0_3 = arith.constant 0 : index
    %c0_4 = arith.constant 0 : index
    %6 = vector.load %arg3[%c0_3, %c0_4] : memref<4x1280xbf16, #tpu.memory_space<vmem>>, vector<4x1280xbf16>
    %cst = arith.constant dense<0.000000e+00> : vector<400x1280xf32>
    %7 = tpu.matmul %5, %6, %cst {dimension_numbers = #tpu.dot_dimension_numbers<[0], [0], [1], [1], [0, 1, 1, 1], [], []>} : vector<4x400xbf16>, vector<4x1280xbf16>, vector<400x1280xf32> -> vector<400x1280xf32>
    %c0_5 = arith.constant 0 : index
    %c0_6 = arith.constant 0 : index
    %8 = vector.load %arg4[%c0_5, %c0_6] : memref<1x1280xf32, #tpu.memory_space<vmem>>, vector<1x1280xf32>
    %9 = vector.broadcast %8 : vector<1x1280xf32> to vector<400x1280xf32>
    %10 = arith.addf %7, %9 : vector<400x1280xf32>
    %cst_7 = arith.constant 5.000000e-01 : f32
    %11 = vector.broadcast %cst_7 : f32 to vector<400x1280xf32>
    %12 = arith.mulf %11, %10 : vector<400x1280xf32>
    %cst_8 = arith.constant 5.000000e-01 : f32
    %13 = vector.broadcast %cst_8 : f32 to vector<400x1280xf32>
    %14 = arith.mulf %13, %10 : vector<400x1280xf32>
    %15 = math.tanh %14 : vector<400x1280xf32>
    %cst_9 = arith.constant 1.000000e+00 : f32
    %16 = vector.broadcast %cst_9 : f32 to vector<400x1280xf32>
    %17 = arith.addf %16, %15 : vector<400x1280xf32>
    %18 = arith.mulf %12, %17 : vector<400x1280xf32>
    %c0_10 = arith.constant 0 : index
    %c0_11 = arith.constant 0 : index
    %19 = vector.load %arg9[%c0_10, %c0_11] : memref<1x1280xf32, #tpu.memory_space<vmem>>, vector<1x1280xf32>
    %cst_12 = arith.constant dense<0.000000e+00> : vector<1280xf32>
    %20 = vector.multi_reduction <add>, %18, %cst_12 [0] : vector<400x1280xf32> to vector<1280xf32>
    %21 = vector.shape_cast %20 : vector<1280xf32> to vector<1x1280xf32>
    %22 = arith.addf %19, %21 : vector<1x1280xf32>
    %c0_13 = arith.constant 0 : index
    %c0_14 = arith.constant 0 : index
    %23 = vector.load %arg9[%c0_13, %c0_14] : memref<1x1280xf32, #tpu.memory_space<vmem>>, vector<1x1280xf32>
    tpu.vector_store %arg9[%c0_13, %c0_14], %22 {strides = array<i32>} : memref<1x1280xf32, #tpu.memory_space<vmem>>, vector<1x1280xf32>,
    %c0_i32_15 = arith.constant 0 : i32
    %24 = arith.cmpi eq, %arg1, %c0_i32_15 : i32
    %25 = arith.extui %24 : i1 to i32
    %c0_i32_16 = arith.constant 0 : i32
    %26 = arith.cmpi ne, %25, %c0_i32_16 : i32
    scf.if %26 {
      %c0_17 = arith.constant 0 : index
      %c0_18 = arith.constant 0 : index
      %27 = vector.load %arg9[%c0_17, %c0_18] : memref<1x1280xf32, #tpu.memory_space<vmem>>, vector<1x1280xf32>
      %cst_19 = arith.constant 2.500000e-03 : f32
      %28 = vector.broadcast %cst_19 : f32 to vector<1x1280xf32>
      %29 = arith.mulf %27, %28 : vector<1x1280xf32>
      %30 = arith.truncf %29 : vector<1x1280xf32> to vector<1x1280xbf16>
      %c0_20 = arith.constant 0 : index
      %c0_21 = arith.constant 0 : index
      %31 = vector.load %arg5[%c0_20, %c0_21] : memref<1280x8xbf16, #tpu.memory_space<vmem>>, vector<1280x8xbf16>
      %cst_22 = arith.constant dense<0.000000e+00> : vector<1x8xf32>
      %32 = tpu.matmul %30, %31, %cst_22 {dimension_numbers = #tpu.dot_dimension_numbers<[1], [0], [0], [1], [0, 0, 1, 1], [], []>} : vector<1x1280xbf16>, vector<1280x8xbf16>, vector<1x8xf32> -> vector<1x8xf32>
      %c0_23 = arith.constant 0 : index
      %c0_24 = arith.constant 0 : index
      %33 = vector.load %arg6[%c0_23, %c0_24] : memref<1x8xf32, #tpu.memory_space<vmem>>, vector<1x8xf32>
      %34 = arith.addf %32, %33 : vector<1x8xf32>
      %cst_25 = arith.constant dense<0xFF800000> : vector<1xf32>
      %35 = vector.multi_reduction <maximumf>, %34, %cst_25 [1] : vector<1x8xf32> to vector<1xf32>
      %36 = vector.shape_cast %35 : vector<1xf32> to vector<1x1xf32>
      %37 = vector.broadcast %36 : vector<1x1xf32> to vector<1x8xf32>
      %38 = arith.subf %34, %37 : vector<1x8xf32>
      %39 = math.exp %38 : vector<1x8xf32>
      %cst_26 = arith.constant dense<0.000000e+00> : vector<1xf32>
      %40 = vector.multi_reduction <add>, %39, %cst_26 [1] : vector<1x8xf32> to vector<1xf32>
      %41 = vector.shape_cast %40 : vector<1xf32> to vector<1x1xf32>
      %42 = vector.broadcast %41 : vector<1x1xf32> to vector<1x8xf32>
      %43 = arith.divf %39, %42 : vector<1x8xf32>
      %c0_27 = arith.constant 0 : index
      %c0_28 = arith.constant 0 : index
      %c0_29 = arith.constant 0 : index
      %44 = vector.load %arg8[%c0_27, %c0_28, %c0_29] : memref<1x1x8xf32, #tpu.memory_space<vmem>>, vector<1x1x8xf32>
      %45 = vector.shape_cast %44 : vector<1x1x8xf32> to vector<1x8xf32>
      %46 = vector.shape_cast %34 : vector<1x8xf32> to vector<1x1x8xf32>
      tpu.vector_store %arg8[%c0_27, %c0_28, %c0_29], %46 {strides = array<i32>} : memref<1x1x8xf32, #tpu.memory_space<vmem>>, vector<1x1x8xf32>,
      %c0_30 = arith.constant 0 : index
      %c0_31 = arith.constant 0 : index
      %c0_32 = arith.constant 0 : index
      %47 = vector.load %arg7[%c0_30, %c0_31, %c0_32] : memref<1x1x8xf32, #tpu.memory_space<vmem>>, vector<1x1x8xf32>
      %48 = vector.shape_cast %47 : vector<1x1x8xf32> to vector<1x8xf32>
      %49 = vector.shape_cast %43 : vector<1x8xf32> to vector<1x1x8xf32>
      tpu.vector_store %arg7[%c0_30, %c0_31, %c0_32], %49 {strides = array<i32>} : memref<1x1x8xf32, #tpu.memory_space<vmem>>, vector<1x1x8xf32>,
    } else {
    }
    return
  }
  func.func @transform_0(%arg0: i32, %arg1: i32) -> (i32, i32, i32) {
    %c0_i32 = arith.constant 0 : i32
    %c0_i32_0 = arith.constant 0 : i32
    return %arg0, %c0_i32, %arg1 : i32, i32, i32
  }
  func.func @transform_1(%arg0: i32, %arg1: i32) -> (i32, i32) {
    %c0_i32 = arith.constant 0 : i32
    %c0_i32_0 = arith.constant 0 : i32
    %c0_i32_1 = arith.constant 0 : i32
    return %c0_i32, %c0_i32_0 : i32, i32
  }
  func.func @transform_2(%arg0: i32, %arg1: i32) -> (i32, i32) {
    %c0_i32 = arith.constant 0 : i32
    %c0_i32_0 = arith.constant 0 : i32
    %c0_i32_1 = arith.constant 0 : i32
    return %c0_i32, %c0_i32_0 : i32, i32
  }
  func.func @transform_3(%arg0: i32, %arg1: i32) -> (i32, i32) {
    %c0_i32 = arith.constant 0 : i32
    %c0_i32_0 = arith.constant 0 : i32
    %c0_i32_1 = arith.constant 0 : i32
    return %c0_i32, %c0_i32_0 : i32, i32
  }
  func.func @transform_4(%arg0: i32, %arg1: i32) -> (i32, i32) {
    %c0_i32 = arith.constant 0 : i32
    %c0_i32_0 = arith.constant 0 : i32
    %c0_i32_1 = arith.constant 0 : i32
    return %c0_i32, %c0_i32_0 : i32, i32
  }
  func.func @transform_5(%arg0: i32, %arg1: i32) -> (i32, i32, i32) {
    %c0_i32 = arith.constant 0 : i32
    %c0_i32_0 = arith.constant 0 : i32
    %c0_i32_1 = arith.constant 0 : i32
    return %arg0, %c0_i32, %c0_i32_0 : i32, i32, i32
  }
  func.func @transform_6(%arg0: i32, %arg1: i32) -> (i32, i32, i32) {
    %c0_i32 = arith.constant 0 : i32
    %c0_i32_0 = arith.constant 0 : i32
    %c0_i32_1 = arith.constant 0 : i32
    return %arg0, %c0_i32, %c0_i32_0 : i32, i32, i32
  }
}

</mosaic_0001>

<llo_original>
// kernel: tpu_custom_call.1
$region0: #{tpu_custom_call.1}
  #allocation0 [shape = 'u32[]', space=smem, size = 0x4, offset = 0x4, fixed_abs, tag = 'smem constant byte address 0x4 - core index']
  #allocation1 [shape = 'u32[144,128]{1,0:T(1,128)}', space=vmem, size = 0x12000, scoped, tag = 'internal scratch']
  #allocation2 [shape = 'f32[1,1280]{1,0:T(1,128)}', space=vmem, size = 0x1400, scoped, tag = 'scratch operand']
  %s0 = inlined_call_operand.vmem [shape: f32[2,4,400], index: 0, kind: input, shape index: {}]
  %s1 = inlined_call_operand.vmem [shape: bf16[4,1280], index: 1, kind: input, shape index: {}]
  %s2 = inlined_call_operand.vmem [shape: f32[1,1280], index: 2, kind: input, shape index: {}]
  %s3 = inlined_call_operand.vmem [shape: bf16[1280,8], index: 3, kind: input, shape index: {}]
  %s4 = inlined_call_operand.vmem [shape: f32[1,8], index: 4, kind: input, shape index: {}]
  %s5 = inlined_call_operand.hbm [shape: f32[2,1,8], index: 5, kind: output, shape index: {0}]
  %s6 = inlined_call_operand.hbm [shape: f32[2,1,8], index: 6, kind: output, shape index: {1}]
  %7 = xla_tuple %s5, %s6
  %s8 = sld [smem:[#allocation0]]
  $region69: #{tpu_custom_call.1} parent=0
    _
  %s10 = ssub.s32 1, %s8
  %s11 = scalar_select 0, %s10, %s8
  $region1: #{tpu_custom_call.1} parent=0
    #allocation3 [shape = 'u8[1024]{0}', space=vmem, size = 0x400, scoped, tag = 'output window, operand 0']
    #allocation4 [shape = 's32[2]{0}', space=sflag, size = 0x8, scoped, tag = 'scoped memory for tpu_custom_call.1']
    #allocation5 [shape = 'u8[1024]{0}', space=vmem, size = 0x400, scoped, tag = 'output window, operand 1']
    #allocation6 [shape = 's32[2]{0}', space=sflag, size = 0x8, scoped, tag = 'scoped memory for tpu_custom_call.1']
    %12 = vsyncpa [#allocation4], 0
    %s13 = scalar_lea.sflag [#allocation4], 1
    %14 = vsyncpa %s13, 0
    %15 = vsyncpa [#allocation6], 0
    %s16 = scalar_lea.sflag [#allocation6], 1
    %17 = vsyncpa %s16, 0
    loop: start=0, step=1, limit=4
    $region2: #{tpu_custom_call.1} parent=1 // loop_pre_header
      _
    $region3: #{tpu_custom_call.1} parent=1 // loop_header
      %s19 = sphi 0, %s23
      %p20 = scmp.ge.s32.totalorder %s19, 4
      %s26 = sphi 0, %s38
      %s27 = sphi 0, %s34
      %s28 = sphi 0, %s26
      %s29 = sphi 0, %s27
      %s30 = sphi 0, %s28
      %s31 = sphi 0, %s29
      %s43 = sphi 0, %s45
      %s46 = sphi 0, %s43
      %s47 = sphi 0, %s46
      %s63 = sphi 0, %s47
      %s67 = sphi 0, %s67
      %s69 = sphi 0, %s67
      %s70 = sphi 0, %s69
      %s84 = sphi 0, %s70
      %s88 = sphi 0, %s88
      %s90 = sphi 0, %s88
      %s91 = sphi 0, %s90
      %s105 = sphi 0, %s91
      %s109 = sphi 0, %s109
      %s111 = sphi 0, %s109
      %s112 = sphi 0, %s111
      %s126 = sphi 0, %s112
      %s130 = sphi 0, %s130
      %s132 = sphi 0, %s130
      %s133 = sphi 0, %s132
      %s147 = sphi 0, %s133
      %s153 = sphi 0, %s155
      %s156 = sphi 0, %s153
      %s157 = sphi 0, %s156
      %s173 = sphi 0, %s157
      %s179 = sphi 0, %s181
      %s182 = sphi 0, %s179
      %s183 = sphi 0, %s182
      %s199 = sphi 0, %s183
    $region4: #{tpu_custom_call.1} parent=1 // loop_header_branch
      %22 = sbr.rel (%p20) target = $region8
    $region5: #{tpu_custom_call.1} parent=1 // loop_body
      %s24 = ssub.s32 %s19, 1
      %s25 = ssub.s32 %s19, 2
      %s32 = sadd.s32 1, %s27
      %p33 = scmp.ge.s32.totalorder %s32, 1
      %s34 = scalar_select %p33, 0, %s32
      %s35 = sadd.s32 1, %s26
      %s36 = scalar_select %p33, %s35, %s26
      %p37 = scmp.ge.s32.totalorder %s36, 2
      %s38 = scalar_select %p37, 0, %s36
      %s39 = ssub.s32 %s26, %s38
      %s40 = ssub.s32 %s27, %s34
      %s41 = sor.u32 %s39, %s40
      %p42 = scmp.eq.s32.totalorder %s41, 0
      %s44 = sadd.s32 %s43, 1
      %s45 = scalar_select %p42, %s43, %s44
      %p48 = pneg %p42
      %p49 = scmp.eq.s32.totalorder %s19, 1
      %p50 = por %p48, %p49
      %p51 = scmp.ne.s32.totalorder %s43, %s46
      %p52 = scmp.eq.s32.totalorder %s19, 0
      %p53 = por %p51, %p52
      %p54 = scmp.ne.s32.totalorder %s43, %s46
      %p55 = scmp.eq.s32.totalorder %s24, 1
      %p56 = por %p54, %p55
      %p57 = scmp.ne.s32.totalorder %s46, %s47
      %p58 = scmp.eq.s32.totalorder %s24, 0
      %p59 = por %p57, %p58
      %p60 = scmp.ne.s32.totalorder %s46, %s47
      %p61 = scmp.eq.s32.totalorder %s25, 1
      %p62 = por %p60, %p61
      %p64 = scmp.ne.s32.totalorder %s47, %s63
      %p65 = scmp.eq.s32.totalorder %s25, 0
      %p66 = por %p64, %p65
      %s68 = sadd.s32 %s67, 1
      %p71 = scmp.eq.s32.totalorder %s19, 1
      %p72 = scmp.ne.s32.totalorder %s67, %s69
      %p73 = scmp.eq.s32.totalorder %s19, 0
      %p74 = por %p72, %p73
      %p75 = scmp.ne.s32.totalorder %s67, %s69
      %p76 = scmp.eq.s32.totalorder %s24, 1
      %p77 = por %p75, %p76
      %p78 = scmp.ne.s32.totalorder %s69, %s70
      %p79 = scmp.eq.s32.totalorder %s24, 0
      %p80 = por %p78, %p79
      %p81 = scmp.ne.s32.totalorder %s69, %s70
      %p82 = scmp.eq.s32.totalorder %s25, 1
      %p83 = por %p81, %p82
      %p85 = scmp.ne.s32.totalorder %s70, %s84
      %p86 = scmp.eq.s32.totalorder %s25, 0
      %p87 = por %p85, %p86
      %s89 = sadd.s32 %s88, 1
      %p92 = scmp.eq.s32.totalorder %s19, 1
      %p93 = scmp.ne.s32.totalorder %s88, %s90
      %p94 = scmp.eq.s32.totalorder %s19, 0
      %p95 = por %p93, %p94
      %p96 = scmp.ne.s32.totalorder %s88, %s90
      %p97 = scmp.eq.s32.totalorder %s24, 1
      %p98 = por %p96, %p97
      %p99 = scmp.ne.s32.totalorder %s90, %s91
      %p100 = scmp.eq.s32.totalorder %s24, 0
      %p101 = por %p99, %p100
      %p102 = scmp.ne.s32.totalorder %s90, %s91
      %p103 = scmp.eq.s32.totalorder %s25, 1
      %p104 = por %p102, %p103
      %p106 = scmp.ne.s32.totalorder %s91, %s105
      %p107 = scmp.eq.s32.totalorder %s25, 0
      %p108 = por %p106, %p107
      %s110 = sadd.s32 %s109, 1
      %p113 = scmp.eq.s32.totalorder %s19, 1
      %p114 = scmp.ne.s32.totalorder %s109, %s111
      %p115 = scmp.eq.s32.totalorder %s19, 0
      %p116 = por %p114, %p115
      %p117 = scmp.ne.s32.totalorder %s109, %s111
      %p118 = scmp.eq.s32.totalorder %s24, 1
      %p119 = por %p117, %p118
      %p120 = scmp.ne.s32.totalorder %s111, %s112
      %p121 = scmp.eq.s32.totalorder %s24, 0
      %p122 = por %p120, %p121
      %p123 = scmp.ne.s32.totalorder %s111, %s112
      %p124 = scmp.eq.s32.totalorder %s25, 1
      %p125 = por %p123, %p124
      %p127 = scmp.ne.s32.totalorder %s112, %s126
      %p128 = scmp.eq.s32.totalorder %s25, 0
      %p129 = por %p127, %p128
      %s131 = sadd.s32 %s130, 1
      %p134 = scmp.eq.s32.totalorder %s19, 1
      %p135 = scmp.ne.s32.totalorder %s130, %s132
      %p136 = scmp.eq.s32.totalorder %s19, 0
      %p137 = por %p135, %p136
      %p138 = scmp.ne.s32.totalorder %s130, %s132
      %p139 = scmp.eq.s32.totalorder %s24, 1
      %p140 = por %p138, %p139
      %p141 = scmp.ne.s32.totalorder %s132, %s133
      %p142 = scmp.eq.s32.totalorder %s24, 0
      %p143 = por %p141, %p142
      %p144 = scmp.ne.s32.totalorder %s132, %s133
      %p145 = scmp.eq.s32.totalorder %s25, 1
      %p146 = por %p144, %p145
      %p148 = scmp.ne.s32.totalorder %s133, %s147
      %p149 = scmp.eq.s32.totalorder %s25, 0
      %p150 = por %p148, %p149
      %s151 = ssub.s32 %s26, %s38
      %p152 = scmp.eq.s32.totalorder %s151, 0
      %s154 = sadd.s32 %s153, 1
      %s155 = scalar_select %p152, %s153, %s154
      %p158 = pneg %p152
      %p159 = scmp.eq.s32.totalorder %s19, 1
      %p160 = por %p158, %p159
      %p161 = scmp.ne.s32.totalorder %s153, %s156
      %p162 = scmp.eq.s32.totalorder %s19, 0
      %p163 = por %p161, %p162
      %p164 = scmp.ne.s32.totalorder %s153, %s156
      %p165 = scmp.eq.s32.totalorder %s24, 1
      %p166 = por %p164, %p165
      %p167 = scmp.ne.s32.totalorder %s156, %s157
      %p168 = scmp.eq.s32.totalorder %s24, 0
      %p169 = por %p167, %p168
      %p170 = scmp.ne.s32.totalorder %s156, %s157
      %p171 = scmp.eq.s32.totalorder %s25, 1
      %p172 = por %p170, %p171
      %p174 = scmp.ne.s32.totalorder %s157, %s173
      %p175 = scmp.eq.s32.totalorder %s25, 0
      %p176 = por %p174, %p175
      %s177 = ssub.s32 %s26, %s38
      %p178 = scmp.eq.s32.totalorder %s177, 0
      %s180 = sadd.s32 %s179, 1
      %s181 = scalar_select %p178, %s179, %s180
      %p184 = pneg %p178
      %p185 = scmp.eq.s32.totalorder %s19, 1
      %p186 = por %p184, %p185
      %p187 = scmp.ne.s32.totalorder %s179, %s182
      %p188 = scmp.eq.s32.totalorder %s19, 0
      %p189 = por %p187, %p188
      %p190 = scmp.ne.s32.totalorder %s179, %s182
      %p191 = scmp.eq.s32.totalorder %s24, 1
      %p192 = por %p190, %p191
      %p193 = scmp.ne.s32.totalorder %s182, %s183
      %p194 = scmp.eq.s32.totalorder %s24, 0
      %p195 = por %p193, %p194
      %p196 = scmp.ne.s32.totalorder %s182, %s183
      %p197 = scmp.eq.s32.totalorder %s25, 1
      %p198 = por %p196, %p197
      %p200 = scmp.ne.s32.totalorder %s183, %s199
      %p201 = scmp.eq.s32.totalorder %s25, 0
      %p202 = por %p200, %p201
      %p203 = scmp.le.s32.totalorder 1, %s19
      %p204 = scmp.lt.s32.totalorder %s19, 3
      %p205 = pnand %p203, %p204
      %p206 = pneg %p205
      // Predicated region
      $region9: #{tpu_custom_call.1} parent=5 // pred_check
        _
      $region10: #{tpu_custom_call.1} parent=5 // pred_check_branch
        %208 = sbr.rel (%p205) target = $region12
      $region11: #{tpu_custom_call.1} parent=5 // pred_region
        %s209 = ssub.s32 %s19, 1
        // Predicated region
        $region13: #{tpu_custom_call.1} parent=11 // pred_check
          %p210 = pneg %p80
        $region14: #{tpu_custom_call.1} parent=11 // pred_check_branch
          %212 = sbr.rel (%p210) target = $region16
        $region15: #{tpu_custom_call.1} parent=11 // pred_region
          _
        $region16: #{tpu_custom_call.1} parent=11 // pred_fallthru
          _
        // Predicated region
        $region17: #{tpu_custom_call.1} parent=11 // pred_check
          %p213 = pneg %p101
        $region18: #{tpu_custom_call.1} parent=11 // pred_check_branch
          %215 = sbr.rel (%p213) target = $region20
        $region19: #{tpu_custom_call.1} parent=11 // pred_region
          _
        $region20: #{tpu_custom_call.1} parent=11 // pred_fallthru
          _
        // Predicated region
        $region21: #{tpu_custom_call.1} parent=11 // pred_check
          %p216 = pneg %p122
        $region22: #{tpu_custom_call.1} parent=11 // pred_check_branch
          %218 = sbr.rel (%p216) target = $region24
        $region23: #{tpu_custom_call.1} parent=11 // pred_region
          _
        $region24: #{tpu_custom_call.1} parent=11 // pred_fallthru
          _
        // Predicated region
        $region25: #{tpu_custom_call.1} parent=11 // pred_check
          %p219 = pneg %p143
        $region26: #{tpu_custom_call.1} parent=11 // pred_check_branch
          %221 = sbr.rel (%p219) target = $region28
        $region27: #{tpu_custom_call.1} parent=11 // pred_region
          _
        $region28: #{tpu_custom_call.1} parent=11 // pred_fallthru
          _
      $region12: #{tpu_custom_call.1} parent=5 // pred_fallthru
        _
      %p222 = scmp.lt.s32.totalorder %s19, 2
      // Predicated region
      $region29: #{tpu_custom_call.1} parent=5 // pred_check
        %p223 = pneg %p222
      $region30: #{tpu_custom_call.1} parent=5 // pred_check_branch
        %225 = sbr.rel (%p223) target = $region32
      $region31: #{tpu_custom_call.1} parent=5 // pred_region
        // Predicated region
        $region33: #{tpu_custom_call.1} parent=31 // pred_check
          %p226 = pneg %p53
        $region34: #{tpu_custom_call.1} parent=31 // pred_check_branch
          %228 = sbr.rel (%p226) target = $region36
        $region35: #{tpu_custom_call.1} parent=31 // pred_region
          %s229 = smul.u32 4, %s27
          %p230 = scmp.lt.s32.totalorder %s26, 1
          %s231 = scalar_select %p230, %s26, 1
          %p232 = scmp.lt.s32.totalorder %s229, 3
          %s233 = scalar_select %p232, %s229, 3
          %s234 = smul.addr %s231, 4
          %s235 = sadd.s32 %s233, %s234
          %s236 = smul.addr %s235, 4
          %s237 = scalar_lea.vmem %s0, %s236
          %s238 = smul.u32 4, %s27
        $region36: #{tpu_custom_call.1} parent=31 // pred_fallthru
          _
      $region32: #{tpu_custom_call.1} parent=5 // pred_fallthru
        _
      %p239 = scmp.le.s32.totalorder 1, %s19
      %p240 = scmp.lt.s32.totalorder %s19, 3
      %p241 = pnand %p239, %p240
      %p242 = pneg %p241
      // Predicated region
      $region37: #{tpu_custom_call.1} parent=5 // pred_check
        _
      $region38: #{tpu_custom_call.1} parent=5 // pred_check_branch
        %244 = sbr.rel (%p241) target = $region40
      $region39: #{tpu_custom_call.1} parent=5 // pred_region
        %s245 = ssub.s32 %s19, 1
        %s246 = smul.u32 4, %s29
        %p247 = scmp.lt.s32.totalorder %s28, 1
        %s248 = scalar_select %p247, %s28, 1
        %p249 = scmp.lt.s32.totalorder %s246, 3
        %s250 = scalar_select %p249, %s246, 3
        %s251 = smul.addr %s248, 4
        %s252 = sadd.s32 %s250, %s251
        %s253 = smul.addr %s252, 4
        %s254 = scalar_lea.vmem %s0, %s253
        %p255 = pneg %p59
        %p256 = pneg %p56
        %p257 = pneg %p80
        %p258 = pneg %p77
        %p259 = pneg %p101
        %p260 = pneg %p98
        %p261 = pneg %p122
        %p262 = pneg %p119
        %p263 = pneg %p143
        %p264 = pneg %p140
        %p265 = pneg %p169
        %p266 = pneg %p166
        %s267 = sand.u32 %s156, 1
        %s268 = scalar_lea.sflag [#allocation4], %s267
        %s269 = sand.u32 %s156, 1
        %s270 = scalar_lea.vmem [#allocation3], %s269
        %p271 = pneg %p195
        %p272 = pneg %p192
        %s273 = sand.u32 %s182, 1
        %s274 = scalar_lea.sflag [#allocation6], %s273
        %s275 = sand.u32 %s182, 1
        %s276 = scalar_lea.vmem [#allocation5], %s275
        %s277 = smul.u32 4, %s29
        %p278 = scmp.lt.s32.totalorder %s28, 1
        %s279 = scalar_select %p278, %s28, 1
        %p280 = scmp.lt.s32.totalorder %s277, 3
        %s281 = scalar_select %p280, %s277, 3
        %s282 = smul.addr %s279, 4
        %s283 = sadd.s32 %s281, %s282
        %s284 = smul.addr %s283, 4
        %s285 = scalar_lea.vmem %s0, %s284
        %s286 = smul.u32 4, %s29
        %p288 = scmp.eq.s32.totalorder %s29, 0
        // Predicated region
        $region41: #{tpu_custom_call.1} parent=39 // pred_check
          %p289 = pneg %p288
        $region42: #{tpu_custom_call.1} parent=39 // pred_check_branch
          %291 = sbr.rel (%p289) target = $region44
        $region43: #{tpu_custom_call.1} parent=39 // pred_region
          %292 = vst [vmem:[#allocation2] sm:$0xff] 0.0
          %v293 = vlaneseq
          %vm294 = vcmp.ge.s32.totalorder %v293, 0
          %vm295 = vcmp.lt.s32.totalorder %v293, 256
          %vm296 = vmand %vm294, %vm295
          %297 = vst.msk [vmem:[#allocation2 + $0x8] sm:$0x3] %vm296, 0.0
        $region44: #{tpu_custom_call.1} parent=39 // pred_fallthru
          _
        %v298 = vld [vmem:[%s285] sm:$0xff]
        %v299 = vld [vmem:[%s285 + $0x8] sm:$0xff]
        %v302 = vcombine.high %v298, %v298
        %v303 = vcombine.high %v299, %v299
        %v306 = vpack.c.bf16 %v298, %v298
        %v307 = vpack.c.bf16 %v302, %v302
        %v308 = vpack.c.bf16 %v299, %v299
        %v309 = vpack.c.bf16 %v303, %v303
        %v310 = vld [vmem:[%s1] sm:$0xff]
        %v311 = vld [vmem:[%s1 + $0x8] sm:$0xff]
        %v312 = vld [vmem:[%s1 + $0x10] sm:$0xf]
        %v313 = vld [vmem:[%s2] sm:$0xff]
        %v314 = vld [vmem:[%s2 + $0x8] sm:$0x3]
        %v317 = vlaneseq
        %v318 = vshrl.u32 %v317, 7
        %v319 = vsub.s32 0, %v318
        %v320 = vrot.slane %v313, %v319
        %v321 = vlaneseq
        %v322 = vshrl.u32 %v321, 7
        %v323 = vsub.s32 1, %v322
        %v324 = vrot.slane %v313, %v323
        %v325 = vlaneseq
        %v326 = vshrl.u32 %v325, 7
        %v327 = vsub.s32 2, %v326
        %v328 = vrot.slane %v313, %v327
        %v329 = vlaneseq
        %v330 = vshrl.u32 %v329, 7
        %v331 = vsub.s32 3, %v330
        %v332 = vrot.slane %v313, %v331
        %v333 = vlaneseq
        %v334 = vshrl.u32 %v333, 7
        %v335 = vsub.s32 4, %v334
        %v336 = vrot.slane %v313, %v335
        %v337 = vlaneseq
        %v338 = vshrl.u32 %v337, 7
        %v339 = vsub.s32 5, %v338
        %v340 = vrot.slane %v313, %v339
        %v341 = vlaneseq
        %v342 = vshrl.u32 %v341, 7
        %v343 = vsub.s32 6, %v342
        %v344 = vrot.slane %v313, %v343
        %v345 = vlaneseq
        %v346 = vshrl.u32 %v345, 7
        %v347 = vsub.s32 7, %v346
        %v348 = vrot.slane %v313, %v347
        %v349 = vlaneseq
        %v350 = vshrl.u32 %v349, 7
        %v351 = vsub.s32 0, %v350
        %v352 = vrot.slane %v314, %v351
        %v353 = vlaneseq
        %v354 = vshrl.u32 %v353, 7
        %v355 = vsub.s32 1, %v354
        %v356 = vrot.slane %v314, %v355
        %367 = vxpose.xlu0.c.b16.start [1/8] %v306, 128
        %368 = vxpose.xlu0.c.b16.cont [2/8] 0, 128
        %369 = vxpose.xlu0.c.b16.cont [3/8] 0, 128
        %370 = vxpose.xlu0.c.b16.cont [4/8] 0, 128
        %371 = vxpose.xlu0.c.b16.cont [5/8] 0, 128
        %372 = vxpose.xlu0.c.b16.cont [6/8] 0, 128
        %373 = vxpose.xlu0.c.b16.cont [7/8] 0, 128
        %374 = vxpose.xlu0.c.b16.end [8/8] 0, 128
        %v375 = vpop.trf.xlu0
        %v376 = vpop.trf.xlu0
        %v377 = vpop.trf.xlu0
        %v378 = vpop.trf.xlu0
        %v379 = vpop.trf.xlu0
        %v380 = vpop.trf.xlu0
        %v381 = vpop.trf.xlu0
        %v382 = vpop.trf.xlu0
        %383 = vxpose.xlu0.c.b16.start [1/8] %v307, 128
        %384 = vxpose.xlu0.c.b16.cont [2/8] 0, 128
        %385 = vxpose.xlu0.c.b16.cont [3/8] 0, 128
        %386 = vxpose.xlu0.c.b16.cont [4/8] 0, 128
        %387 = vxpose.xlu0.c.b16.cont [5/8] 0, 128
        %388 = vxpose.xlu0.c.b16.cont [6/8] 0, 128
        %389 = vxpose.xlu0.c.b16.cont [7/8] 0, 128
        %390 = vxpose.xlu0.c.b16.end [8/8] 0, 128
        %v391 = vpop.trf.xlu0
        %v392 = vpop.trf.xlu0
        %v393 = vpop.trf.xlu0
        %v394 = vpop.trf.xlu0
        %v395 = vpop.trf.xlu0
        %v396 = vpop.trf.xlu0
        %v397 = vpop.trf.xlu0
        %v398 = vpop.trf.xlu0
        %399 = vxpose.xlu0.c.b16.start [1/8] %v308, 128
        %400 = vxpose.xlu0.c.b16.cont [2/8] 0, 128
        %401 = vxpose.xlu0.c.b16.cont [3/8] 0, 128
        %402 = vxpose.xlu0.c.b16.cont [4/8] 0, 128
        %403 = vxpose.xlu0.c.b16.cont [5/8] 0, 128
        %404 = vxpose.xlu0.c.b16.cont [6/8] 0, 128
        %405 = vxpose.xlu0.c.b16.cont [7/8] 0, 128
        %406 = vxpose.xlu0.c.b16.end [8/8] 0, 128
        %v407 = vpop.trf.xlu0
        %v408 = vpop.trf.xlu0
        %v409 = vpop.trf.xlu0
        %v410 = vpop.trf.xlu0
        %v411 = vpop.trf.xlu0
        %v412 = vpop.trf.xlu0
        %v413 = vpop.trf.xlu0
        %v414 = vpop.trf.xlu0
        %415 = vxpose.xlu0.c.b16.start [1/8] %v309, 128
        %416 = vxpose.xlu0.c.b16.cont [2/8] 0, 128
        %417 = vxpose.xlu0.c.b16.cont [3/8] 0, 128
        %418 = vxpose.xlu0.c.b16.cont [4/8] 0, 128
        %419 = vxpose.xlu0.c.b16.cont [5/8] 0, 128
        %420 = vxpose.xlu0.c.b16.cont [6/8] 0, 128
        %421 = vxpose.xlu0.c.b16.cont [7/8] 0, 128
        %422 = vxpose.xlu0.c.b16.end [8/8] 0, 128
        %v423 = vpop.trf.xlu0
        %v424 = vpop.trf.xlu0
        %v425 = vpop.trf.xlu0
        %v426 = vpop.trf.xlu0
        %v427 = vpop.trf.xlu0
        %v428 = vpop.trf.xlu0
        %v429 = vpop.trf.xlu0
        %v430 = vpop.trf.xlu0
        %v434 = vcombine.high %v310, %v310
        %v436 = vunpack.c.l.s4 1983009808
        %v437 = vunpack.c.0.s8 %v436
        %v438 = vlaneseq
        %v439 = vshrl.u32 %v438, 7
        %v440 = vsub.s32 %v437, %v439
        %v441 = vrot.slane %v310, %v440
        %v443 = vunpack.c.l.s4 1983009808
        %v444 = vunpack.c.0.s8 %v443
        %v445 = vlaneseq
        %v446 = vshrl.u32 %v445, 7
        %v447 = vsub.s32 %v444, %v446
        %v448 = vrot.slane %v434, %v447
        %v449 = vcombine.high %v441, %v441
        %v450 = vcombine.high %v448, %v448
        %v451 = vcombine.high %v311, %v311
        %v453 = vunpack.c.l.s4 1983009808
        %v454 = vunpack.c.0.s8 %v453
        %v455 = vlaneseq
        %v456 = vshrl.u32 %v455, 7
        %v457 = vsub.s32 %v454, %v456
        %v458 = vrot.slane %v311, %v457
        %v460 = vunpack.c.l.s4 1983009808
        %v461 = vunpack.c.0.s8 %v460
        %v462 = vlaneseq
        %v463 = vshrl.u32 %v462, 7
        %v464 = vsub.s32 %v461, %v463
        %v465 = vrot.slane %v451, %v464
        %v466 = vcombine.high %v458, %v458
        %v467 = vcombine.high %v465, %v465
        %v469 = vunpack.c.l.s4 1983009808
        %v470 = vunpack.c.0.s8 %v469
        %v471 = vlaneseq
        %v472 = vshrl.u32 %v471, 7
        %v473 = vsub.s32 %v470, %v472
        %v474 = vrot.slane %v312, %v473
        %v475 = vcombine.high %v474, %v474
        %vm476 = vcmask 31744
        %v478 = vsel %vm476, %v375, 0
        %v481 = vsel %vm476, %v376, 0
        %v484 = vsel %vm476, %v377, 0
        %v487 = vsel %vm476, %v378, 0
        %v490 = vsel %vm476, %v379, 0
        %v493 = vsel %vm476, %v380, 0
        %v496 = vsel %vm476, %v381, 0
        %v499 = vsel %vm476, %v382, 0
        %v502 = vsel %vm476, %v391, 0
        %v505 = vsel %vm476, %v392, 0
        %v508 = vsel %vm476, %v393, 0
        %v511 = vsel %vm476, %v394, 0
        %v514 = vsel %vm476, %v395, 0
        %v517 = vsel %vm476, %v396, 0
        %v520 = vsel %vm476, %v397, 0
        %v523 = vsel %vm476, %v398, 0
        %v526 = vsel %vm476, %v407, 0
        %v529 = vsel %vm476, %v408, 0
        %v532 = vsel %vm476, %v409, 0
        %v535 = vsel %vm476, %v410, 0
        %v538 = vsel %vm476, %v411, 0
        %v541 = vsel %vm476, %v412, 0
        %v544 = vsel %vm476, %v413, 0
        %v547 = vsel %vm476, %v414, 0
        %v550 = vsel %vm476, %v423, 0
        %vm552 = vcmask 1041408
        %v554 = vsel %vm552, %v441, 0
        %v557 = vsel %vm552, %v449, 0
        %v560 = vsel %vm552, %v448, 0
        %v563 = vsel %vm552, %v450, 0
        %v566 = vsel %vm552, %v458, 0
        %v569 = vsel %vm552, %v466, 0
        %v572 = vsel %vm552, %v465, 0
        %v575 = vsel %vm552, %v467, 0
        %v578 = vsel %vm552, %v474, 0
        %v581 = vsel %vm552, %v475, 0
        %583 = vmatprep.subr.bf16.mxu0 %v557
        %584 = vmatpush1.bf16.msra.mxu0 %v554
        %585 = vmatprep.subr.bf16.mxu0 0
        %586 = vmatpush1.bf16.msra.mxu0 0
        %587 = vmatprep.subr.bf16.mxu0 0
        %588 = vmatpush1.bf16.msra.mxu0 0
        %589 = vmatprep.subr.bf16.mxu0 0
        %590 = vmatpush1.bf16.msra.mxu0 0
        %591 = vmatprep.subr.bf16.mxu0 0
        %592 = vmatpush1.bf16.msra.mxu0 0
        %593 = vmatprep.subr.bf16.mxu0 0
        %594 = vmatpush1.bf16.msra.mxu0 0
        %595 = vmatprep.subr.bf16.mxu0 0
        %596 = vmatpush1.bf16.msra.mxu0 0
        %597 = vmatprep.subr.bf16.mxu0 0
        %598 = vmatpush1.bf16.msra.mxu0 0
        %599 = vmatprep.subr.bf16.mxu0 0
        %600 = vmatpush1.bf16.msra.mxu0 0
        %601 = vmatprep.subr.bf16.mxu0 0
        %602 = vmatpush1.bf16.msra.mxu0 0
        %603 = vmatprep.subr.bf16.mxu0 0
        %604 = vmatpush1.bf16.msra.mxu0 0
        %605 = vmatprep.subr.bf16.mxu0 0
        %606 = vmatpush1.bf16.msra.mxu0 0
        %607 = vmatprep.subr.bf16.mxu0 0
        %608 = vmatpush1.bf16.msra.mxu0 0
        %609 = vmatprep.subr.bf16.mxu0 0
        %610 = vmatpush1.bf16.msra.mxu0 0
        %611 = vmatprep.subr.bf16.mxu0 0
        %612 = vmatpush1.bf16.msra.mxu0 0
        %613 = vmatprep.subr.bf16.mxu0 0
        %614 = vmatpush1.bf16.msra.mxu0 0
        %615 = vmatprep.mubr.bf16.mxu0 0
        %616 = vmatmul.mubr.bf16.gmra.mrb[0].mxu0 %v478
        %v617 = vpop.f32.mrb[0].mxu0
        %v618 = vadd.f32 %v320, %v617
        %v619 = vpop.f32.mrb[0].mxu0
        %v620 = vadd.f32 %v324, %v619
        %v621 = vpop.f32.mrb[0].mxu0
        %v622 = vadd.f32 %v320, %v621
        %v623 = vpop.f32.mrb[0].mxu0
        %v624 = vadd.f32 %v324, %v623
        %625 = vmatprep.mubr.bf16.mxu0 0
        %626 = vmatmul.mubr.bf16.gmra.mrb[0].mxu0 %v481
        %v627 = vpop.f32.mrb[0].mxu0
        %v628 = vadd.f32 %v320, %v627
        %v629 = vpop.f32.mrb[0].mxu0
        %v630 = vadd.f32 %v324, %v629
        %v631 = vpop.f32.mrb[0].mxu0
        %v632 = vadd.f32 %v320, %v631
        %v633 = vpop.f32.mrb[0].mxu0
        %v634 = vadd.f32 %v324, %v633
        %635 = vmatprep.mubr.bf16.mxu0 0
        %636 = vmatmul.mubr.bf16.gmra.mrb[0].mxu0 %v484
        %v637 = vpop.f32.mrb[0].mxu0
        %v638 = vadd.f32 %v320, %v637
        %v639 = vpop.f32.mrb[0].mxu0
        %v640 = vadd.f32 %v324, %v639
        %v641 = vpop.f32.mrb[0].mxu0
        %v642 = vadd.f32 %v320, %v641
        %v643 = vpop.f32.mrb[0].mxu0
        %v644 = vadd.f32 %v324, %v643
        %645 = vmatprep.mubr.bf16.mxu0 0
        %646 = vmatmul.mubr.bf16.gmra.mrb[0].mxu0 %v487
        %v647 = vpop.f32.mrb[0].mxu0
        %v648 = vadd.f32 %v320, %v647
        %v649 = vpop.f32.mrb[0].mxu0
        %v650 = vadd.f32 %v324, %v649
        %v651 = vpop.f32.mrb[0].mxu0
        %v652 = vadd.f32 %v320, %v651
        %v653 = vpop.f32.mrb[0].mxu0
        %v654 = vadd.f32 %v324, %v653
        %655 = vmatprep.mubr.bf16.mxu0 0
        %656 = vmatmul.mubr.bf16.gmra.mrb[0].mxu0 %v490
        %v657 = vpop.f32.mrb[0].mxu0
        %v658 = vadd.f32 %v320, %v657
        %v659 = vpop.f32.mrb[0].mxu0
        %v660 = vadd.f32 %v324, %v659
        %v661 = vpop.f32.mrb[0].mxu0
        %v662 = vadd.f32 %v320, %v661
        %v663 = vpop.f32.mrb[0].mxu0
        %v664 = vadd.f32 %v324, %v663
        %665 = vmatprep.mubr.bf16.mxu0 0
        %666 = vmatmul.mubr.bf16.gmra.mrb[0].mxu0 %v493
        %v667 = vpop.f32.mrb[0].mxu0
        %v668 = vadd.f32 %v320, %v667
        %v669 = vpop.f32.mrb[0].mxu0
        %v670 = vadd.f32 %v324, %v669
        %v671 = vpop.f32.mrb[0].mxu0
        %v672 = vadd.f32 %v320, %v671
        %v673 = vpop.f32.mrb[0].mxu0
        %v674 = vadd.f32 %v324, %v673
        %675 = vmatprep.mubr.bf16.mxu0 0
        %676 = vmatmul.mubr.bf16.gmra.mrb[0].mxu0 %v496
        %v677 = vpop.f32.mrb[0].mxu0
        %v678 = vadd.f32 %v320, %v677
        %v679 = vpop.f32.mrb[0].mxu0
        %v680 = vadd.f32 %v324, %v679
        %v681 = vpop.f32.mrb[0].mxu0
        %v682 = vadd.f32 %v320, %v681
        %v683 = vpop.f32.mrb[0].mxu0
        %v684 = vadd.f32 %v324, %v683
        %685 = vmatprep.mubr.bf16.mxu0 0
        %686 = vmatmul.mubr.bf16.gmra.mrb[0].mxu0 %v499
        %v687 = vpop.f32.mrb[0].mxu0
        %v688 = vadd.f32 %v320, %v687
        %v689 = vpop.f32.mrb[0].mxu0
        %v690 = vadd.f32 %v324, %v689
        %v691 = vpop.f32.mrb[0].mxu0
        %v692 = vadd.f32 %v320, %v691
        %v693 = vpop.f32.mrb[0].mxu0
        %v694 = vadd.f32 %v324, %v693
        %695 = vmatprep.mubr.bf16.mxu0 0
        %696 = vmatmul.mubr.bf16.gmra.mrb[0].mxu0 %v502
        %v697 = vpop.f32.mrb[0].mxu0
        %v698 = vadd.f32 %v320, %v697
        %v699 = vpop.f32.mrb[0].mxu0
        %v700 = vadd.f32 %v324, %v699
        %v701 = vpop.f32.mrb[0].mxu0
        %v702 = vadd.f32 %v320, %v701
        %v703 = vpop.f32.mrb[0].mxu0
        %v704 = vadd.f32 %v324, %v703
        %705 = vmatprep.mubr.bf16.mxu0 0
        %706 = vmatmul.mubr.bf16.gmra.mrb[0].mxu0 %v505
        %v707 = vpop.f32.mrb[0].mxu0
        %v708 = vadd.f32 %v320, %v707
        %v709 = vpop.f32.mrb[0].mxu0
        %v710 = vadd.f32 %v324, %v709
        %v711 = vpop.f32.mrb[0].mxu0
        %v712 = vadd.f32 %v320, %v711
        %v713 = vpop.f32.mrb[0].mxu0
        %v714 = vadd.f32 %v324, %v713
        %715 = vmatprep.mubr.bf16.mxu0 0
        %716 = vmatmul.mubr.bf16.gmra.mrb[0].mxu0 %v508
        %v717 = vpop.f32.mrb[0].mxu0
        %v718 = vadd.f32 %v320, %v717
        %v719 = vpop.f32.mrb[0].mxu0
        %v720 = vadd.f32 %v324, %v719
        %v721 = vpop.f32.mrb[0].mxu0
        %v722 = vadd.f32 %v320, %v721
        %v723 = vpop.f32.mrb[0].mxu0
        %v724 = vadd.f32 %v324, %v723
        %725 = vmatprep.mubr.bf16.mxu0 0
        %726 = vmatmul.mubr.bf16.gmra.mrb[0].mxu0 %v511
        %v727 = vpop.f32.mrb[0].mxu0
        %v728 = vadd.f32 %v320, %v727
        %v729 = vpop.f32.mrb[0].mxu0
        %v730 = vadd.f32 %v324, %v729
        %v731 = vpop.f32.mrb[0].mxu0
        %v732 = vadd.f32 %v320, %v731
        %v733 = vpop.f32.mrb[0].mxu0
        %v734 = vadd.f32 %v324, %v733
        %735 = vmatprep.mubr.bf16.mxu0 0
        %736 = vmatmul.mubr.bf16.gmra.mrb[0].mxu0 %v514
        %v737 = vpop.f32.mrb[0].mxu0
        %v738 = vadd.f32 %v320, %v737
        %v739 = vpop.f32.mrb[0].mxu0
        %v740 = vadd.f32 %v324, %v739
        %v741 = vpop.f32.mrb[0].mxu0
        %v742 = vadd.f32 %v320, %v741
        %v743 = vpop.f32.mrb[0].mxu0
        %v744 = vadd.f32 %v324, %v743
        %745 = vmatprep.mubr.bf16.mxu0 0
        %746 = vmatmul.mubr.bf16.gmra.mrb[0].mxu0 %v517
        %v747 = vpop.f32.mrb[0].mxu0
        %v748 = vadd.f32 %v320, %v747
        %v749 = vpop.f32.mrb[0].mxu0
        %v750 = vadd.f32 %v324, %v749
        %v751 = vpop.f32.mrb[0].mxu0
        %v752 = vadd.f32 %v320, %v751
        %v753 = vpop.f32.mrb[0].mxu0
        %v754 = vadd.f32 %v324, %v753
        %755 = vmatprep.mubr.bf16.mxu0 0
        %756 = vmatmul.mubr.bf16.gmra.mrb[0].mxu0 %v520
        %v757 = vpop.f32.mrb[0].mxu0
        %v758 = vadd.f32 %v320, %v757
        %v759 = vpop.f32.mrb[0].mxu0
        %v760 = vadd.f32 %v324, %v759
        %v761 = vpop.f32.mrb[0].mxu0
        %v762 = vadd.f32 %v320, %v761
        %v763 = vpop.f32.mrb[0].mxu0
        %v764 = vadd.f32 %v324, %v763
        %765 = vmatprep.mubr.bf16.mxu0 0
        %766 = vmatmul.mubr.bf16.gmra.mrb[0].mxu0 %v523
        %v767 = vpop.f32.mrb[0].mxu0
        %v768 = vadd.f32 %v320, %v767
        %v769 = vpop.f32.mrb[0].mxu0
        %v770 = vadd.f32 %v324, %v769
        %v771 = vpop.f32.mrb[0].mxu0
        %v772 = vadd.f32 %v320, %v771
        %v773 = vpop.f32.mrb[0].mxu0
        %v774 = vadd.f32 %v324, %v773
        %775 = vmatprep.mubr.bf16.mxu0 0
        %776 = vmatmul.mubr.bf16.gmra.mrb[0].mxu0 %v526
        %v777 = vpop.f32.mrb[0].mxu0
        %v778 = vadd.f32 %v320, %v777
        %v779 = vpop.f32.mrb[0].mxu0
        %v780 = vadd.f32 %v324, %v779
        %v781 = vpop.f32.mrb[0].mxu0
        %v782 = vadd.f32 %v320, %v781
        %v783 = vpop.f32.mrb[0].mxu0
        %v784 = vadd.f32 %v324, %v783
        %785 = vmatprep.mubr.bf16.mxu0 0
        %786 = vmatmul.mubr.bf16.gmra.mrb[0].mxu0 %v529
        %v787 = vpop.f32.mrb[0].mxu0
        %v788 = vadd.f32 %v320, %v787
        %v789 = vpop.f32.mrb[0].mxu0
        %v790 = vadd.f32 %v324, %v789
        %v791 = vpop.f32.mrb[0].mxu0
        %v792 = vadd.f32 %v320, %v791
        %v793 = vpop.f32.mrb[0].mxu0
        %v794 = vadd.f32 %v324, %v793
        %795 = vmatprep.mubr.bf16.mxu0 0
        %796 = vmatmul.mubr.bf16.gmra.mrb[0].mxu0 %v532
        %v797 = vpop.f32.mrb[0].mxu0
        %v798 = vadd.f32 %v320, %v797
        %v799 = vpop.f32.mrb[0].mxu0
        %v800 = vadd.f32 %v324, %v799
        %v801 = vpop.f32.mrb[0].mxu0
        %v802 = vadd.f32 %v320, %v801
        %v803 = vpop.f32.mrb[0].mxu0
        %v804 = vadd.f32 %v324, %v803
        %805 = vmatprep.mubr.bf16.mxu0 0
        %806 = vmatmul.mubr.bf16.gmra.mrb[0].mxu0 %v535
        %v807 = vpop.f32.mrb[0].mxu0
        %v808 = vadd.f32 %v320, %v807
        %v809 = vpop.f32.mrb[0].mxu0
        %v810 = vadd.f32 %v324, %v809
        %v811 = vpop.f32.mrb[0].mxu0
        %v812 = vadd.f32 %v320, %v811
        %v813 = vpop.f32.mrb[0].mxu0
        %v814 = vadd.f32 %v324, %v813
        %815 = vmatprep.mubr.bf16.mxu0 0
        %816 = vmatmul.mubr.bf16.gmra.mrb[0].mxu0 %v538
        %v817 = vpop.f32.mrb[0].mxu0
        %v818 = vadd.f32 %v320, %v817
        %v819 = vpop.f32.mrb[0].mxu0
        %v820 = vadd.f32 %v324, %v819
        %v821 = vpop.f32.mrb[0].mxu0
        %v822 = vadd.f32 %v320, %v821
        %v823 = vpop.f32.mrb[0].mxu0
        %v824 = vadd.f32 %v324, %v823
        %825 = vmatprep.mubr.bf16.mxu0 0
        %826 = vmatmul.mubr.bf16.gmra.mrb[0].mxu0 %v541
        %v827 = vpop.f32.mrb[0].mxu0
        %v828 = vadd.f32 %v320, %v827
        %v829 = vpop.f32.mrb[0].mxu0
        %v830 = vadd.f32 %v324, %v829
        %v831 = vpop.f32.mrb[0].mxu0
        %v832 = vadd.f32 %v320, %v831
        %v833 = vpop.f32.mrb[0].mxu0
        %v834 = vadd.f32 %v324, %v833
        %835 = vmatprep.mubr.bf16.mxu0 0
        %836 = vmatmul.mubr.bf16.gmra.mrb[0].mxu0 %v544
        %v837 = vpop.f32.mrb[0].mxu0
        %v838 = vadd.f32 %v320, %v837
        %v839 = vpop.f32.mrb[0].mxu0
        %v840 = vadd.f32 %v324, %v839
        %v841 = vpop.f32.mrb[0].mxu0
        %v842 = vadd.f32 %v320, %v841
        %v843 = vpop.f32.mrb[0].mxu0
        %v844 = vadd.f32 %v324, %v843
        %845 = vmatprep.mubr.bf16.mxu0 0
        %846 = vmatmul.mubr.bf16.gmra.mrb[0].mxu0 %v547
        %v847 = vpop.f32.mrb[0].mxu0
        %v848 = vadd.f32 %v320, %v847
        %v849 = vpop.f32.mrb[0].mxu0
        %v850 = vadd.f32 %v324, %v849
        %v851 = vpop.f32.mrb[0].mxu0
        %v852 = vadd.f32 %v320, %v851
        %v853 = vpop.f32.mrb[0].mxu0
        %v854 = vadd.f32 %v324, %v853
        %855 = vmatprep.mubr.bf16.mxu0 0
        %856 = vmatmul.mubr.bf16.gmra.mrb[0].mxu0 %v550
        %v857 = vpop.f32.mrb[0].mxu0
        %v858 = vadd.f32 %v320, %v857
        %v859 = vpop.f32.mrb[0].mxu0
        %v860 = vadd.f32 %v324, %v859
        %v861 = vpop.f32.mrb[0].mxu0
        %v862 = vadd.f32 %v320, %v861
        %v863 = vpop.f32.mrb[0].mxu0
        %v864 = vadd.f32 %v324, %v863
        %865 = vdwg.mxu0
        %866 = vmatprep.subr.bf16.mxu0 %v563
        %867 = vmatpush1.bf16.msra.mxu0 %v560
        %868 = vmatprep.subr.bf16.mxu0 0
        %869 = vmatpush1.bf16.msra.mxu0 0
        %870 = vmatprep.subr.bf16.mxu0 0
        %871 = vmatpush1.bf16.msra.mxu0 0
        %872 = vmatprep.subr.bf16.mxu0 0
        %873 = vmatpush1.bf16.msra.mxu0 0
        %874 = vmatprep.subr.bf16.mxu0 0
        %875 = vmatpush1.bf16.msra.mxu0 0
        %876 = vmatprep.subr.bf16.mxu0 0
        %877 = vmatpush1.bf16.msra.mxu0 0
        %878 = vmatprep.subr.bf16.mxu0 0
        %879 = vmatpush1.bf16.msra.mxu0 0
        %880 = vmatprep.subr.bf16.mxu0 0
        %881 = vmatpush1.bf16.msra.mxu0 0
        %882 = vmatprep.subr.bf16.mxu0 0
        %883 = vmatpush1.bf16.msra.mxu0 0
        %884 = vmatprep.subr.bf16.mxu0 0
        %885 = vmatpush1.bf16.msra.mxu0 0
        %886 = vmatprep.subr.bf16.mxu0 0
        %887 = vmatpush1.bf16.msra.mxu0 0
        %888 = vmatprep.subr.bf16.mxu0 0
        %889 = vmatpush1.bf16.msra.mxu0 0
        %890 = vmatprep.subr.bf16.mxu0 0
        %891 = vmatpush1.bf16.msra.mxu0 0
        %892 = vmatprep.subr.bf16.mxu0 0
        %893 = vmatpush1.bf16.msra.mxu0 0
        %894 = vmatprep.subr.bf16.mxu0 0
        %895 = vmatpush1.bf16.msra.mxu0 0
        %896 = vmatprep.subr.bf16.mxu0 0
        %897 = vmatpush1.bf16.msra.mxu0 0
        %898 = vmatprep.mubr.bf16.mxu0 0
        %899 = vmatmul.mubr.bf16.gmra.mrb[0].mxu0 %v478
        %v900 = vpop.f32.mrb[0].mxu0
        %v901 = vadd.f32 %v328, %v900
        %v902 = vpop.f32.mrb[0].mxu0
        %v903 = vadd.f32 %v332, %v902
        %v904 = vpop.f32.mrb[0].mxu0
        %v905 = vadd.f32 %v328, %v904
        %v906 = vpop.f32.mrb[0].mxu0
        %v907 = vadd.f32 %v332, %v906
        %908 = vmatprep.mubr.bf16.mxu0 0
        %909 = vmatmul.mubr.bf16.gmra.mrb[0].mxu0 %v481
        %v910 = vpop.f32.mrb[0].mxu0
        %v911 = vadd.f32 %v328, %v910
        %v912 = vpop.f32.mrb[0].mxu0
        %v913 = vadd.f32 %v332, %v912
        %v914 = vpop.f32.mrb[0].mxu0
        %v915 = vadd.f32 %v328, %v914
        %v916 = vpop.f32.mrb[0].mxu0
        %v917 = vadd.f32 %v332, %v916
        %918 = vmatprep.mubr.bf16.mxu0 0
        %919 = vmatmul.mubr.bf16.gmra.mrb[0].mxu0 %v484
        %v920 = vpop.f32.mrb[0].mxu0
        %v921 = vadd.f32 %v328, %v920
        %v922 = vpop.f32.mrb[0].mxu0
        %v923 = vadd.f32 %v332, %v922
        %v924 = vpop.f32.mrb[0].mxu0
        %v925 = vadd.f32 %v328, %v924
        %v926 = vpop.f32.mrb[0].mxu0
        %v927 = vadd.f32 %v332, %v926
        %928 = vmatprep.mubr.bf16.mxu0 0
        %929 = vmatmul.mubr.bf16.gmra.mrb[0].mxu0 %v487
        %v930 = vpop.f32.mrb[0].mxu0
        %v931 = vadd.f32 %v328, %v930
        %v932 = vpop.f32.mrb[0].mxu0
        %v933 = vadd.f32 %v332, %v932
        %v934 = vpop.f32.mrb[0].mxu0
        %v935 = vadd.f32 %v328, %v934
        %v936 = vpop.f32.mrb[0].mxu0
        %v937 = vadd.f32 %v332, %v936
        %938 = vmatprep.mubr.bf16.mxu0 0
        %939 = vmatmul.mubr.bf16.gmra.mrb[0].mxu0 %v490
        %v940 = vpop.f32.mrb[0].mxu0
        %v941 = vadd.f32 %v328, %v940
        %v942 = vpop.f32.mrb[0].mxu0
        %v943 = vadd.f32 %v332, %v942
        %v944 = vpop.f32.mrb[0].mxu0
        %v945 = vadd.f32 %v328, %v944
        %v946 = vpop.f32.mrb[0].mxu0
        %v947 = vadd.f32 %v332, %v946
        %948 = vmatprep.mubr.bf16.mxu0 0
        %949 = vmatmul.mubr.bf16.gmra.mrb[0].mxu0 %v493
        %v950 = vpop.f32.mrb[0].mxu0
        %v951 = vadd.f32 %v328, %v950
        %v952 = vpop.f32.mrb[0].mxu0
        %v953 = vadd.f32 %v332, %v952
        %v954 = vpop.f32.mrb[0].mxu0
        %v955 = vadd.f32 %v328, %v954
        %v956 = vpop.f32.mrb[0].mxu0
        %v957 = vadd.f32 %v332, %v956
        %958 = vmatprep.mubr.bf16.mxu0 0
        %959 = vmatmul.mubr.bf16.gmra.mrb[0].mxu0 %v496
        %v960 = vpop.f32.mrb[0].mxu0
        %v961 = vadd.f32 %v328, %v960
        %v962 = vpop.f32.mrb[0].mxu0
        %v963 = vadd.f32 %v332, %v962
        %v964 = vpop.f32.mrb[0].mxu0
        %v965 = vadd.f32 %v328, %v964
        %v966 = vpop.f32.mrb[0].mxu0
        %v967 = vadd.f32 %v332, %v966
        %968 = vmatprep.mubr.bf16.mxu0 0
        %969 = vmatmul.mubr.bf16.gmra.mrb[0].mxu0 %v499
        %v970 = vpop.f32.mrb[0].mxu0
        %v971 = vadd.f32 %v328, %v970
        %v972 = vpop.f32.mrb[0].mxu0
        %v973 = vadd.f32 %v332, %v972
        %v974 = vpop.f32.mrb[0].mxu0
        %v975 = vadd.f32 %v328, %v974
        %v976 = vpop.f32.mrb[0].mxu0
        %v977 = vadd.f32 %v332, %v976
        %978 = vmatprep.mubr.bf16.mxu0 0
        %979 = vmatmul.mubr.bf16.gmra.mrb[0].mxu0 %v502
        %v980 = vpop.f32.mrb[0].mxu0
        %v981 = vadd.f32 %v328, %v980
        %v982 = vpop.f32.mrb[0].mxu0
        %v983 = vadd.f32 %v332, %v982
        %v984 = vpop.f32.mrb[0].mxu0
        %v985 = vadd.f32 %v328, %v984
        %v986 = vpop.f32.mrb[0].mxu0
        %v987 = vadd.f32 %v332, %v986
        %988 = vmatprep.mubr.bf16.mxu0 0
        %989 = vmatmul.mubr.bf16.gmra.mrb[0].mxu0 %v505
        %v990 = vpop.f32.mrb[0].mxu0
        %v991 = vadd.f32 %v328, %v990
        %v992 = vpop.f32.mrb[0].mxu0
        %v993 = vadd.f32 %v332, %v992
        %v994 = vpop.f32.mrb[0].mxu0
        %v995 = vadd.f32 %v328, %v994
        %v996 = vpop.f32.mrb[0].mxu0
        %v997 = vadd.f32 %v332, %v996
        %998 = vmatprep.mubr.bf16.mxu0 0
        %999 = vmatmul.mubr.bf16.gmra.mrb[0].mxu0 %v508
        %v1000 = vpop.f32.mrb[0].mxu0
        %v1001 = vadd.f32 %v328, %v1000
        %v1002 = vpop.f32.mrb[0].mxu0
        %v1003 = vadd.f32 %v332, %v1002
        %v1004 = vpop.f32.mrb[0].mxu0
        %v1005 = vadd.f32 %v328, %v1004
        %v1006 = vpop.f32.mrb[0].mxu0
        %v1007 = vadd.f32 %v332, %v1006
        %1008 = vmatprep.mubr.bf16.mxu0 0
        %1009 = vmatmul.mubr.bf16.gmra.mrb[0].mxu0 %v511
        %v1010 = vpop.f32.mrb[0].mxu0
        %v1011 = vadd.f32 %v328, %v1010
        %v1012 = vpop.f32.mrb[0].mxu0
        %v1013 = vadd.f32 %v332, %v1012
        %v1014 = vpop.f32.mrb[0].mxu0
        %v1015 = vadd.f32 %v328, %v1014
        %v1016 = vpop.f32.mrb[0].mxu0
        %v1017 = vadd.f32 %v332, %v1016
        %1018 = vmatprep.mubr.bf16.mxu0 0
        %1019 = vmatmul.mubr.bf16.gmra.mrb[0].mxu0 %v514
        %v1020 = vpop.f32.mrb[0].mxu0
        %v1021 = vadd.f32 %v328, %v1020
        %v1022 = vpop.f32.mrb[0].mxu0
        %v1023 = vadd.f32 %v332, %v1022
        %v1024 = vpop.f32.mrb[0].mxu0
        %v1025 = vadd.f32 %v328, %v1024
        %v1026 = vpop.f32.mrb[0].mxu0
        %v1027 = vadd.f32 %v332, %v1026
        %1028 = vmatprep.mubr.bf16.mxu0 0
        %1029 = vmatmul.mubr.bf16.gmra.mrb[0].mxu0 %v517
        %v1030 = vpop.f32.mrb[0].mxu0
        %v1031 = vadd.f32 %v328, %v1030
        %v1032 = vpop.f32.mrb[0].mxu0
        %v1033 = vadd.f32 %v332, %v1032
        %v1034 = vpop.f32.mrb[0].mxu0
        %v1035 = vadd.f32 %v328, %v1034
        %v1036 = vpop.f32.mrb[0].mxu0
        %v1037 = vadd.f32 %v332, %v1036
        %1038 = vmatprep.mubr.bf16.mxu0 0
        %1039 = vmatmul.mubr.bf16.gmra.mrb[0].mxu0 %v520
        %v1040 = vpop.f32.mrb[0].mxu0
        %v1041 = vadd.f32 %v328, %v1040
        %v1042 = vpop.f32.mrb[0].mxu0
        %v1043 = vadd.f32 %v332, %v1042
        %v1044 = vpop.f32.mrb[0].mxu0
        %v1045 = vadd.f32 %v328, %v1044
        %v1046 = vpop.f32.mrb[0].mxu0
        %v1047 = vadd.f32 %v332, %v1046
        %1048 = vmatprep.mubr.bf16.mxu0 0
        %1049 = vmatmul.mubr.bf16.gmra.mrb[0].mxu0 %v523
        %v1050 = vpop.f32.mrb[0].mxu0
        %v1051 = vadd.f32 %v328, %v1050
        %v1052 = vpop.f32.mrb[0].mxu0
        %v1053 = vadd.f32 %v332, %v1052
        %v1054 = vpop.f32.mrb[0].mxu0
        %v1055 = vadd.f32 %v328, %v1054
        %v1056 = vpop.f32.mrb[0].mxu0
        %v1057 = vadd.f32 %v332, %v1056
        %1058 = vmatprep.mubr.bf16.mxu0 0
        %1059 = vmatmul.mubr.bf16.gmra.mrb[0].mxu0 %v526
        %v1060 = vpop.f32.mrb[0].mxu0
        %v1061 = vadd.f32 %v328, %v1060
        %v1062 = vpop.f32.mrb[0].mxu0
        %v1063 = vadd.f32 %v332, %v1062
        %v1064 = vpop.f32.mrb[0].mxu0
        %v1065 = vadd.f32 %v328, %v1064
        %v1066 = vpop.f32.mrb[0].mxu0
        %v1067 = vadd.f32 %v332, %v1066
        %1068 = vmatprep.mubr.bf16.mxu0 0
        %1069 = vmatmul.mubr.bf16.gmra.mrb[0].mxu0 %v529
        %v1070 = vpop.f32.mrb[0].mxu0
        %v1071 = vadd.f32 %v328, %v1070
        %v1072 = vpop.f32.mrb[0].mxu0
        %v1073 = vadd.f32 %v332, %v1072
        %v1074 = vpop.f32.mrb[0].mxu0
        %v1075 = vadd.f32 %v328, %v1074
        %v1076 = vpop.f32.mrb[0].mxu0
        %v1077 = vadd.f32 %v332, %v1076
        %1078 = vmatprep.mubr.bf16.mxu0 0
        %1079 = vmatmul.mubr.bf16.gmra.mrb[0].mxu0 %v532
        %v1080 = vpop.f32.mrb[0].mxu0
        %v1081 = vadd.f32 %v328, %v1080
        %v1082 = vpop.f32.mrb[0].mxu0
        %v1083 = vadd.f32 %v332, %v1082
        %v1084 = vpop.f32.mrb[0].mxu0
        %v1085 = vadd.f32 %v328, %v1084
        %v1086 = vpop.f32.mrb[0].mxu0
        %v1087 = vadd.f32 %v332, %v1086
        %1088 = vmatprep.mubr.bf16.mxu0 0
        %1089 = vmatmul.mubr.bf16.gmra.mrb[0].mxu0 %v535
        %v1090 = vpop.f32.mrb[0].mxu0
        %v1091 = vadd.f32 %v328, %v1090
        %v1092 = vpop.f32.mrb[0].mxu0
        %v1093 = vadd.f32 %v332, %v1092
        %v1094 = vpop.f32.mrb[0].mxu0
        %v1095 = vadd.f32 %v328, %v1094
        %v1096 = vpop.f32.mrb[0].mxu0
        %v1097 = vadd.f32 %v332, %v1096
        %1098 = vmatprep.mubr.bf16.mxu0 0
        %1099 = vmatmul.mubr.bf16.gmra.mrb[0].mxu0 %v538
        %v1100 = vpop.f32.mrb[0].mxu0
        %v1101 = vadd.f32 %v328, %v1100
        %v1102 = vpop.f32.mrb[0].mxu0
        %v1103 = vadd.f32 %v332, %v1102
        %v1104 = vpop.f32.mrb[0].mxu0
        %v1105 = vadd.f32 %v328, %v1104
        %v1106 = vpop.f32.mrb[0].mxu0
        %v1107 = vadd.f32 %v332, %v1106
        %1108 = vmatprep.mubr.bf16.mxu0 0
        %1109 = vmatmul.mubr.bf16.gmra.mrb[0].mxu0 %v541
        %v1110 = vpop.f32.mrb[0].mxu0
        %v1111 = vadd.f32 %v328, %v1110
        %v1112 = vpop.f32.mrb[0].mxu0
        %v1113 = vadd.f32 %v332, %v1112
        %v1114 = vpop.f32.mrb[0].mxu0
        %v1115 = vadd.f32 %v328, %v1114
        %v1116 = vpop.f32.mrb[0].mxu0
        %v1117 = vadd.f32 %v332, %v1116
        %1118 = vmatprep.mubr.bf16.mxu0 0
        %1119 = vmatmul.mubr.bf16.gmra.mrb[0].mxu0 %v544
        %v1120 = vpop.f32.mrb[0].mxu0
        %v1121 = vadd.f32 %v328, %v1120
        %v1122 = vpop.f32.mrb[0].mxu0
        %v1123 = vadd.f32 %v332, %v1122
        %v1124 = vpop.f32.mrb[0].mxu0
        %v1125 = vadd.f32 %v328, %v1124
        %v1126 = vpop.f32.mrb[0].mxu0
        %v1127 = vadd.f32 %v332, %v1126
        %1128 = vmatprep.mubr.bf16.mxu0 0
        %1129 = vmatmul.mubr.bf16.gmra.mrb[0].mxu0 %v547
        %v1130 = vpop.f32.mrb[0].mxu0
        %v1131 = vadd.f32 %v328, %v1130
        %v1132 = vpop.f32.mrb[0].mxu0
        %v1133 = vadd.f32 %v332, %v1132
        %v1134 = vpop.f32.mrb[0].mxu0
        %v1135 = vadd.f32 %v328, %v1134
        %v1136 = vpop.f32.mrb[0].mxu0
        %v1137 = vadd.f32 %v332, %v1136
        %1138 = vmatprep.mubr.bf16.mxu0 0
        %1139 = vmatmul.mubr.bf16.gmra.mrb[0].mxu0 %v550
        %v1140 = vpop.f32.mrb[0].mxu0
        %v1141 = vadd.f32 %v328, %v1140
        %v1142 = vpop.f32.mrb[0].mxu0
        %v1143 = vadd.f32 %v332, %v1142
        %v1144 = vpop.f32.mrb[0].mxu0
        %v1145 = vadd.f32 %v328, %v1144
        %v1146 = vpop.f32.mrb[0].mxu0
        %v1147 = vadd.f32 %v332, %v1146
        %1148 = vdwg.mxu0
        %1149 = vmatprep.subr.bf16.mxu0 %v569
        %1150 = vmatpush1.bf16.msra.mxu0 %v566
        %1151 = vmatprep.subr.bf16.mxu0 0
        %1152 = vmatpush1.bf16.msra.mxu0 0
        %1153 = vmatprep.subr.bf16.mxu0 0
        %1154 = vmatpush1.bf16.msra.mxu0 0
        %1155 = vmatprep.subr.bf16.mxu0 0
        %1156 = vmatpush1.bf16.msra.mxu0 0
        %1157 = vmatprep.subr.bf16.mxu0 0
        %1158 = vmatpush1.bf16.msra.mxu0 0
        %1159 = vmatprep.subr.bf16.mxu0 0
        %1160 = vmatpush1.bf16.msra.mxu0 0
        %1161 = vmatprep.subr.bf16.mxu0 0
        %1162 = vmatpush1.bf16.msra.mxu0 0
        %1163 = vmatprep.subr.bf16.mxu0 0
        %1164 = vmatpush1.bf16.msra.mxu0 0
        %1165 = vmatprep.subr.bf16.mxu0 0
        %1166 = vmatpush1.bf16.msra.mxu0 0
        %1167 = vmatprep.subr.bf16.mxu0 0
        %1168 = vmatpush1.bf16.msra.mxu0 0
        %1169 = vmatprep.subr.bf16.mxu0 0
        %1170 = vmatpush1.bf16.msra.mxu0 0
        %1171 = vmatprep.subr.bf16.mxu0 0
        %1172 = vmatpush1.bf16.msra.mxu0 0
        %1173 = vmatprep.subr.bf16.mxu0 0
        %1174 = vmatpush1.bf16.msra.mxu0 0
        %1175 = vmatprep.subr.bf16.mxu0 0
        %1176 = vmatpush1.bf16.msra.mxu0 0
        %1177 = vmatprep.subr.bf16.mxu0 0
        %1178 = vmatpush1.bf16.msra.mxu0 0
        %1179 = vmatprep.subr.bf16.mxu0 0
        %1180 = vmatpush1.bf16.msra.mxu0 0
        %1181 = vmatprep.mubr.bf16.mxu0 0
        %1182 = vmatmul.mubr.bf16.gmra.mrb[0].mxu0 %v478
        %v1183 = vpop.f32.mrb[0].mxu0
        %v1184 = vadd.f32 %v336, %v1183
        %v1185 = vpop.f32.mrb[0].mxu0
        %v1186 = vadd.f32 %v340, %v1185
        %v1187 = vpop.f32.mrb[0].mxu0
        %v1188 = vadd.f32 %v336, %v1187
        %v1189 = vpop.f32.mrb[0].mxu0
        %v1190 = vadd.f32 %v340, %v1189
        %1191 = vmatprep.mubr.bf16.mxu0 0
        %1192 = vmatmul.mubr.bf16.gmra.mrb[0].mxu0 %v481
        %v1193 = vpop.f32.mrb[0].mxu0
        %v1194 = vadd.f32 %v336, %v1193
        %v1195 = vpop.f32.mrb[0].mxu0
        %v1196 = vadd.f32 %v340, %v1195
        %v1197 = vpop.f32.mrb[0].mxu0
        %v1198 = vadd.f32 %v336, %v1197
        %v1199 = vpop.f32.mrb[0].mxu0
        %v1200 = vadd.f32 %v340, %v1199
        %1201 = vmatprep.mubr.bf16.mxu0 0
        %1202 = vmatmul.mubr.bf16.gmra.mrb[0].mxu0 %v484
        %v1203 = vpop.f32.mrb[0].mxu0
        %v1204 = vadd.f32 %v336, %v1203
        %v1205 = vpop.f32.mrb[0].mxu0
        %v1206 = vadd.f32 %v340, %v1205
        %v1207 = vpop.f32.mrb[0].mxu0
        %v1208 = vadd.f32 %v336, %v1207
        %v1209 = vpop.f32.mrb[0].mxu0
        %v1210 = vadd.f32 %v340, %v1209
        %1211 = vmatprep.mubr.bf16.mxu0 0
        %1212 = vmatmul.mubr.bf16.gmra.mrb[0].mxu0 %v487
        %v1213 = vpop.f32.mrb[0].mxu0
        %v1214 = vadd.f32 %v336, %v1213
        %v1215 = vpop.f32.mrb[0].mxu0
        %v1216 = vadd.f32 %v340, %v1215
        %v1217 = vpop.f32.mrb[0].mxu0
        %v1218 = vadd.f32 %v336, %v1217
        %v1219 = vpop.f32.mrb[0].mxu0
        %v1220 = vadd.f32 %v340, %v1219
        %1221 = vmatprep.mubr.bf16.mxu0 0
        %1222 = vmatmul.mubr.bf16.gmra.mrb[0].mxu0 %v490
        %v1223 = vpop.f32.mrb[0].mxu0
        %v1224 = vadd.f32 %v336, %v1223
        %v1225 = vpop.f32.mrb[0].mxu0
        %v1226 = vadd.f32 %v340, %v1225
        %v1227 = vpop.f32.mrb[0].mxu0
        %v1228 = vadd.f32 %v336, %v1227
        %v1229 = vpop.f32.mrb[0].mxu0
        %v1230 = vadd.f32 %v340, %v1229
        %1231 = vmatprep.mubr.bf16.mxu0 0
        %1232 = vmatmul.mubr.bf16.gmra.mrb[0].mxu0 %v493
        %v1233 = vpop.f32.mrb[0].mxu0
        %v1234 = vadd.f32 %v336, %v1233
        %v1235 = vpop.f32.mrb[0].mxu0
        %v1236 = vadd.f32 %v340, %v1235
        %v1237 = vpop.f32.mrb[0].mxu0
        %v1238 = vadd.f32 %v336, %v1237
        %v1239 = vpop.f32.mrb[0].mxu0
        %v1240 = vadd.f32 %v340, %v1239
        %1241 = vmatprep.mubr.bf16.mxu0 0
        %1242 = vmatmul.mubr.bf16.gmra.mrb[0].mxu0 %v496
        %v1243 = vpop.f32.mrb[0].mxu0
        %v1244 = vadd.f32 %v336, %v1243
        %v1245 = vpop.f32.mrb[0].mxu0
        %v1246 = vadd.f32 %v340, %v1245
        %v1247 = vpop.f32.mrb[0].mxu0
        %v1248 = vadd.f32 %v336, %v1247
        %v1249 = vpop.f32.mrb[0].mxu0
        %v1250 = vadd.f32 %v340, %v1249
        %1251 = vmatprep.mubr.bf16.mxu0 0
        %1252 = vmatmul.mubr.bf16.gmra.mrb[0].mxu0 %v499
        %v1253 = vpop.f32.mrb[0].mxu0
        %v1254 = vadd.f32 %v336, %v1253
        %v1255 = vpop.f32.mrb[0].mxu0
        %v1256 = vadd.f32 %v340, %v1255
        %v1257 = vpop.f32.mrb[0].mxu0
        %v1258 = vadd.f32 %v336, %v1257
        %v1259 = vpop.f32.mrb[0].mxu0
        %v1260 = vadd.f32 %v340, %v1259
        %1261 = vmatprep.mubr.bf16.mxu0 0
        %1262 = vmatmul.mubr.bf16.gmra.mrb[0].mxu0 %v502
        %v1263 = vpop.f32.mrb[0].mxu0
        %v1264 = vadd.f32 %v336, %v1263
        %v1265 = vpop.f32.mrb[0].mxu0
        %v1266 = vadd.f32 %v340, %v1265
        %v1267 = vpop.f32.mrb[0].mxu0
        %v1268 = vadd.f32 %v336, %v1267
        %v1269 = vpop.f32.mrb[0].mxu0
        %v1270 = vadd.f32 %v340, %v1269
        %1271 = vmatprep.mubr.bf16.mxu0 0
        %1272 = vmatmul.mubr.bf16.gmra.mrb[0].mxu0 %v505
        %v1273 = vpop.f32.mrb[0].mxu0
        %v1274 = vadd.f32 %v336, %v1273
        %v1275 = vpop.f32.mrb[0].mxu0
        %v1276 = vadd.f32 %v340, %v1275
        %v1277 = vpop.f32.mrb[0].mxu0
        %v1278 = vadd.f32 %v336, %v1277
        %v1279 = vpop.f32.mrb[0].mxu0
        %v1280 = vadd.f32 %v340, %v1279
        %1281 = vmatprep.mubr.bf16.mxu0 0
        %1282 = vmatmul.mubr.bf16.gmra.mrb[0].mxu0 %v508
        %v1283 = vpop.f32.mrb[0].mxu0
        %v1284 = vadd.f32 %v336, %v1283
        %v1285 = vpop.f32.mrb[0].mxu0
        %v1286 = vadd.f32 %v340, %v1285
        %v1287 = vpop.f32.mrb[0].mxu0
        %v1288 = vadd.f32 %v336, %v1287
        %v1289 = vpop.f32.mrb[0].mxu0
        %v1290 = vadd.f32 %v340, %v1289
        %1291 = vmatprep.mubr.bf16.mxu0 0
        %1292 = vmatmul.mubr.bf16.gmra.mrb[0].mxu0 %v511
        %v1293 = vpop.f32.mrb[0].mxu0
        %v1294 = vadd.f32 %v336, %v1293
        %v1295 = vpop.f32.mrb[0].mxu0
        %v1296 = vadd.f32 %v340, %v1295
        %v1297 = vpop.f32.mrb[0].mxu0
        %v1298 = vadd.f32 %v336, %v1297
        %v1299 = vpop.f32.mrb[0].mxu0
        %v1300 = vadd.f32 %v340, %v1299
        %1301 = vmatprep.mubr.bf16.mxu0 0
        %1302 = vmatmul.mubr.bf16.gmra.mrb[0].mxu0 %v514
        %v1303 = vpop.f32.mrb[0].mxu0
        %v1304 = vadd.f32 %v336, %v1303
        %v1305 = vpop.f32.mrb[0].mxu0
        %v1306 = vadd.f32 %v340, %v1305
        %v1307 = vpop.f32.mrb[0].mxu0
        %v1308 = vadd.f32 %v336, %v1307
        %v1309 = vpop.f32.mrb[0].mxu0
        %v1310 = vadd.f32 %v340, %v1309
        %1311 = vmatprep.mubr.bf16.mxu0 0
        %1312 = vmatmul.mubr.bf16.gmra.mrb[0].mxu0 %v517
        %v1313 = vpop.f32.mrb[0].mxu0
        %v1314 = vadd.f32 %v336, %v1313
        %v1315 = vpop.f32.mrb[0].mxu0
        %v1316 = vadd.f32 %v340, %v1315
        %v1317 = vpop.f32.mrb[0].mxu0
        %v1318 = vadd.f32 %v336, %v1317
        %v1319 = vpop.f32.mrb[0].mxu0
        %v1320 = vadd.f32 %v340, %v1319
        %1321 = vmatprep.mubr.bf16.mxu0 0
        %1322 = vmatmul.mubr.bf16.gmra.mrb[0].mxu0 %v520
        %v1323 = vpop.f32.mrb[0].mxu0
        %v1324 = vadd.f32 %v336, %v1323
        %v1325 = vpop.f32.mrb[0].mxu0
        %v1326 = vadd.f32 %v340, %v1325
        %v1327 = vpop.f32.mrb[0].mxu0
        %v1328 = vadd.f32 %v336, %v1327
        %v1329 = vpop.f32.mrb[0].mxu0
        %v1330 = vadd.f32 %v340, %v1329
        %1331 = vmatprep.mubr.bf16.mxu0 0
        %1332 = vmatmul.mubr.bf16.gmra.mrb[0].mxu0 %v523
        %v1333 = vpop.f32.mrb[0].mxu0
        %v1334 = vadd.f32 %v336, %v1333
        %v1335 = vpop.f32.mrb[0].mxu0
        %v1336 = vadd.f32 %v340, %v1335
        %v1337 = vpop.f32.mrb[0].mxu0
        %v1338 = vadd.f32 %v336, %v1337
        %v1339 = vpop.f32.mrb[0].mxu0
        %v1340 = vadd.f32 %v340, %v1339
        %1341 = vmatprep.mubr.bf16.mxu0 0
        %1342 = vmatmul.mubr.bf16.gmra.mrb[0].mxu0 %v526
        %v1343 = vpop.f32.mrb[0].mxu0
        %v1344 = vadd.f32 %v336, %v1343
        %v1345 = vpop.f32.mrb[0].mxu0
        %v1346 = vadd.f32 %v340, %v1345
        %v1347 = vpop.f32.mrb[0].mxu0
        %v1348 = vadd.f32 %v336, %v1347
        %v1349 = vpop.f32.mrb[0].mxu0
        %v1350 = vadd.f32 %v340, %v1349
        %1351 = vmatprep.mubr.bf16.mxu0 0
        %1352 = vmatmul.mubr.bf16.gmra.mrb[0].mxu0 %v529
        %v1353 = vpop.f32.mrb[0].mxu0
        %v1354 = vadd.f32 %v336, %v1353
        %v1355 = vpop.f32.mrb[0].mxu0
        %v1356 = vadd.f32 %v340, %v1355
        %v1357 = vpop.f32.mrb[0].mxu0
        %v1358 = vadd.f32 %v336, %v1357
        %v1359 = vpop.f32.mrb[0].mxu0
        %v1360 = vadd.f32 %v340, %v1359
        %1361 = vmatprep.mubr.bf16.mxu0 0
        %1362 = vmatmul.mubr.bf16.gmra.mrb[0].mxu0 %v532
        %v1363 = vpop.f32.mrb[0].mxu0
        %v1364 = vadd.f32 %v336, %v1363
        %v1365 = vpop.f32.mrb[0].mxu0
        %v1366 = vadd.f32 %v340, %v1365
        %v1367 = vpop.f32.mrb[0].mxu0
        %v1368 = vadd.f32 %v336, %v1367
        %v1369 = vpop.f32.mrb[0].mxu0
        %v1370 = vadd.f32 %v340, %v1369
        %1371 = vmatprep.mubr.bf16.mxu0 0
        %1372 = vmatmul.mubr.bf16.gmra.mrb[0].mxu0 %v535
        %v1373 = vpop.f32.mrb[0].mxu0
        %v1374 = vadd.f32 %v336, %v1373
        %v1375 = vpop.f32.mrb[0].mxu0
        %v1376 = vadd.f32 %v340, %v1375
        %v1377 = vpop.f32.mrb[0].mxu0
        %v1378 = vadd.f32 %v336, %v1377
        %v1379 = vpop.f32.mrb[0].mxu0
        %v1380 = vadd.f32 %v340, %v1379
        %1381 = vmatprep.mubr.bf16.mxu0 0
        %1382 = vmatmul.mubr.bf16.gmra.mrb[0].mxu0 %v538
        %v1383 = vpop.f32.mrb[0].mxu0
        %v1384 = vadd.f32 %v336, %v1383
        %v1385 = vpop.f32.mrb[0].mxu0
        %v1386 = vadd.f32 %v340, %v1385
        %v1387 = vpop.f32.mrb[0].mxu0
        %v1388 = vadd.f32 %v336, %v1387
        %v1389 = vpop.f32.mrb[0].mxu0
        %v1390 = vadd.f32 %v340, %v1389
        %1391 = vmatprep.mubr.bf16.mxu0 0
        %1392 = vmatmul.mubr.bf16.gmra.mrb[0].mxu0 %v541
        %v1393 = vpop.f32.mrb[0].mxu0
        %v1394 = vadd.f32 %v336, %v1393
        %v1395 = vpop.f32.mrb[0].mxu0
        %v1396 = vadd.f32 %v340, %v1395
        %v1397 = vpop.f32.mrb[0].mxu0
        %v1398 = vadd.f32 %v336, %v1397
        %v1399 = vpop.f32.mrb[0].mxu0
        %v1400 = vadd.f32 %v340, %v1399
        %1401 = vmatprep.mubr.bf16.mxu0 0
        %1402 = vmatmul.mubr.bf16.gmra.mrb[0].mxu0 %v544
        %v1403 = vpop.f32.mrb[0].mxu0
        %v1404 = vadd.f32 %v336, %v1403
        %v1405 = vpop.f32.mrb[0].mxu0
        %v1406 = vadd.f32 %v340, %v1405
        %v1407 = vpop.f32.mrb[0].mxu0
        %v1408 = vadd.f32 %v336, %v1407
        %v1409 = vpop.f32.mrb[0].mxu0
        %v1410 = vadd.f32 %v340, %v1409
        %1411 = vmatprep.mubr.bf16.mxu0 0
        %1412 = vmatmul.mubr.bf16.gmra.mrb[0].mxu0 %v547
        %v1413 = vpop.f32.mrb[0].mxu0
        %v1414 = vadd.f32 %v336, %v1413
        %v1415 = vpop.f32.mrb[0].mxu0
        %v1416 = vadd.f32 %v340, %v1415
        %v1417 = vpop.f32.mrb[0].mxu0
        %v1418 = vadd.f32 %v336, %v1417
        %v1419 = vpop.f32.mrb[0].mxu0
        %v1420 = vadd.f32 %v340, %v1419
        %1421 = vmatprep.mubr.bf16.mxu0 0
        %1422 = vmatmul.mubr.bf16.gmra.mrb[0].mxu0 %v550
        %v1423 = vpop.f32.mrb[0].mxu0
        %v1424 = vadd.f32 %v336, %v1423
        %v1425 = vpop.f32.mrb[0].mxu0
        %v1426 = vadd.f32 %v340, %v1425
        %v1427 = vpop.f32.mrb[0].mxu0
        %v1428 = vadd.f32 %v336, %v1427
        %v1429 = vpop.f32.mrb[0].mxu0
        %v1430 = vadd.f32 %v340, %v1429
        %1431 = vdwg.mxu0
        %1432 = vmatprep.subr.bf16.mxu0 %v575
        %1433 = vmatpush1.bf16.msra.mxu0 %v572
        %1434 = vmatprep.subr.bf16.mxu0 0
        %1435 = vmatpush1.bf16.msra.mxu0 0
        %1436 = vmatprep.subr.bf16.mxu0 0
        %1437 = vmatpush1.bf16.msra.mxu0 0
        %1438 = vmatprep.subr.bf16.mxu0 0
        %1439 = vmatpush1.bf16.msra.mxu0 0
        %1440 = vmatprep.subr.bf16.mxu0 0
        %1441 = vmatpush1.bf16.msra.mxu0 0
        %1442 = vmatprep.subr.bf16.mxu0 0
        %1443 = vmatpush1.bf16.msra.mxu0 0
        %1444 = vmatprep.subr.bf16.mxu0 0
        %1445 = vmatpush1.bf16.msra.mxu0 0
        %1446 = vmatprep.subr.bf16.mxu0 0
        %1447 = vmatpush1.bf16.msra.mxu0 0
        %1448 = vmatprep.subr.bf16.mxu0 0
        %1449 = vmatpush1.bf16.msra.mxu0 0
        %1450 = vmatprep.subr.bf16.mxu0 0
        %1451 = vmatpush1.bf16.msra.mxu0 0
        %1452 = vmatprep.subr.bf16.mxu0 0
        %1453 = vmatpush1.bf16.msra.mxu0 0
        %1454 = vmatprep.subr.bf16.mxu0 0
        %1455 = vmatpush1.bf16.msra.mxu0 0
        %1456 = vmatprep.subr.bf16.mxu0 0
        %1457 = vmatpush1.bf16.msra.mxu0 0
        %1458 = vmatprep.subr.bf16.mxu0 0
        %1459 = vmatpush1.bf16.msra.mxu0 0
        %1460 = vmatprep.subr.bf16.mxu0 0
        %1461 = vmatpush1.bf16.msra.mxu0 0
        %1462 = vmatprep.subr.bf16.mxu0 0
        %1463 = vmatpush1.bf16.msra.mxu0 0
        %1464 = vmatprep.mubr.bf16.mxu0 0
        %1465 = vmatmul.mubr.bf16.gmra.mrb[0].mxu0 %v478
        %v1466 = vpop.f32.mrb[0].mxu0
        %v1467 = vadd.f32 %v344, %v1466
        %v1468 = vpop.f32.mrb[0].mxu0
        %v1469 = vadd.f32 %v348, %v1468
        %v1470 = vpop.f32.mrb[0].mxu0
        %v1471 = vadd.f32 %v344, %v1470
        %v1472 = vpop.f32.mrb[0].mxu0
        %v1473 = vadd.f32 %v348, %v1472
        %1474 = vmatprep.mubr.bf16.mxu0 0
        %1475 = vmatmul.mubr.bf16.gmra.mrb[0].mxu0 %v481
        %v1476 = vpop.f32.mrb[0].mxu0
        %v1477 = vadd.f32 %v344, %v1476
        %v1478 = vpop.f32.mrb[0].mxu0
        %v1479 = vadd.f32 %v348, %v1478
        %v1480 = vpop.f32.mrb[0].mxu0
        %v1481 = vadd.f32 %v344, %v1480
        %v1482 = vpop.f32.mrb[0].mxu0
        %v1483 = vadd.f32 %v348, %v1482
        %1484 = vmatprep.mubr.bf16.mxu0 0
        %1485 = vmatmul.mubr.bf16.gmra.mrb[0].mxu0 %v484
        %v1486 = vpop.f32.mrb[0].mxu0
        %v1487 = vadd.f32 %v344, %v1486
        %v1488 = vpop.f32.mrb[0].mxu0
        %v1489 = vadd.f32 %v348, %v1488
        %v1490 = vpop.f32.mrb[0].mxu0
        %v1491 = vadd.f32 %v344, %v1490
        %v1492 = vpop.f32.mrb[0].mxu0
        %v1493 = vadd.f32 %v348, %v1492
        %1494 = vmatprep.mubr.bf16.mxu0 0
        %1495 = vmatmul.mubr.bf16.gmra.mrb[0].mxu0 %v487
        %v1496 = vpop.f32.mrb[0].mxu0
        %v1497 = vadd.f32 %v344, %v1496
        %v1498 = vpop.f32.mrb[0].mxu0
        %v1499 = vadd.f32 %v348, %v1498
        %v1500 = vpop.f32.mrb[0].mxu0
        %v1501 = vadd.f32 %v344, %v1500
        %v1502 = vpop.f32.mrb[0].mxu0
        %v1503 = vadd.f32 %v348, %v1502
        %1504 = vmatprep.mubr.bf16.mxu0 0
        %1505 = vmatmul.mubr.bf16.gmra.mrb[0].mxu0 %v490
        %v1506 = vpop.f32.mrb[0].mxu0
        %v1507 = vadd.f32 %v344, %v1506
        %v1508 = vpop.f32.mrb[0].mxu0
        %v1509 = vadd.f32 %v348, %v1508
        %v1510 = vpop.f32.mrb[0].mxu0
        %v1511 = vadd.f32 %v344, %v1510
        %v1512 = vpop.f32.mrb[0].mxu0
        %v1513 = vadd.f32 %v348, %v1512
        %1514 = vmatprep.mubr.bf16.mxu0 0
        %1515 = vmatmul.mubr.bf16.gmra.mrb[0].mxu0 %v493
        %v1516 = vpop.f32.mrb[0].mxu0
        %v1517 = vadd.f32 %v344, %v1516
        %v1518 = vpop.f32.mrb[0].mxu0
        %v1519 = vadd.f32 %v348, %v1518
        %v1520 = vpop.f32.mrb[0].mxu0
        %v1521 = vadd.f32 %v344, %v1520
        %v1522 = vpop.f32.mrb[0].mxu0
        %v1523 = vadd.f32 %v348, %v1522
        %1524 = vmatprep.mubr.bf16.mxu0 0
        %1525 = vmatmul.mubr.bf16.gmra.mrb[0].mxu0 %v496
        %v1526 = vpop.f32.mrb[0].mxu0
        %v1527 = vadd.f32 %v344, %v1526
        %v1528 = vpop.f32.mrb[0].mxu0
        %v1529 = vadd.f32 %v348, %v1528
        %v1530 = vpop.f32.mrb[0].mxu0
        %v1531 = vadd.f32 %v344, %v1530
        %v1532 = vpop.f32.mrb[0].mxu0
        %v1533 = vadd.f32 %v348, %v1532
        %1534 = vmatprep.mubr.bf16.mxu0 0
        %1535 = vmatmul.mubr.bf16.gmra.mrb[0].mxu0 %v499
        %v1536 = vpop.f32.mrb[0].mxu0
        %v1537 = vadd.f32 %v344, %v1536
        %v1538 = vpop.f32.mrb[0].mxu0
        %v1539 = vadd.f32 %v348, %v1538
        %v1540 = vpop.f32.mrb[0].mxu0
        %v1541 = vadd.f32 %v344, %v1540
        %v1542 = vpop.f32.mrb[0].mxu0
        %v1543 = vadd.f32 %v348, %v1542
        %1544 = vmatprep.mubr.bf16.mxu0 0
        %1545 = vmatmul.mubr.bf16.gmra.mrb[0].mxu0 %v502
        %v1546 = vpop.f32.mrb[0].mxu0
        %v1547 = vadd.f32 %v344, %v1546
        %v1548 = vpop.f32.mrb[0].mxu0
        %v1549 = vadd.f32 %v348, %v1548
        %v1550 = vpop.f32.mrb[0].mxu0
        %v1551 = vadd.f32 %v344, %v1550
        %v1552 = vpop.f32.mrb[0].mxu0
        %v1553 = vadd.f32 %v348, %v1552
        %1554 = vmatprep.mubr.bf16.mxu0 0
        %1555 = vmatmul.mubr.bf16.gmra.mrb[0].mxu0 %v505
        %v1556 = vpop.f32.mrb[0].mxu0
        %v1557 = vadd.f32 %v344, %v1556
        %v1558 = vpop.f32.mrb[0].mxu0
        %v1559 = vadd.f32 %v348, %v1558
        %v1560 = vpop.f32.mrb[0].mxu0
        %v1561 = vadd.f32 %v344, %v1560
        %v1562 = vpop.f32.mrb[0].mxu0
        %v1563 = vadd.f32 %v348, %v1562
        %1564 = vmatprep.mubr.bf16.mxu0 0
        %1565 = vmatmul.mubr.bf16.gmra.mrb[0].mxu0 %v508
        %v1566 = vpop.f32.mrb[0].mxu0
        %v1567 = vadd.f32 %v344, %v1566
        %v1568 = vpop.f32.mrb[0].mxu0
        %v1569 = vadd.f32 %v348, %v1568
        %v1570 = vpop.f32.mrb[0].mxu0
        %v1571 = vadd.f32 %v344, %v1570
        %v1572 = vpop.f32.mrb[0].mxu0
        %v1573 = vadd.f32 %v348, %v1572
        %1574 = vmatprep.mubr.bf16.mxu0 0
        %1575 = vmatmul.mubr.bf16.gmra.mrb[0].mxu0 %v511
        %v1576 = vpop.f32.mrb[0].mxu0
        %v1577 = vadd.f32 %v344, %v1576
        %v1578 = vpop.f32.mrb[0].mxu0
        %v1579 = vadd.f32 %v348, %v1578
        %v1580 = vpop.f32.mrb[0].mxu0
        %v1581 = vadd.f32 %v344, %v1580
        %v1582 = vpop.f32.mrb[0].mxu0
        %v1583 = vadd.f32 %v348, %v1582
        %1584 = vmatprep.mubr.bf16.mxu0 0
        %1585 = vmatmul.mubr.bf16.gmra.mrb[0].mxu0 %v514
        %v1586 = vpop.f32.mrb[0].mxu0
        %v1587 = vadd.f32 %v344, %v1586
        %v1588 = vpop.f32.mrb[0].mxu0
        %v1589 = vadd.f32 %v348, %v1588
        %v1590 = vpop.f32.mrb[0].mxu0
        %v1591 = vadd.f32 %v344, %v1590
        %v1592 = vpop.f32.mrb[0].mxu0
        %v1593 = vadd.f32 %v348, %v1592
        %1594 = vmatprep.mubr.bf16.mxu0 0
        %1595 = vmatmul.mubr.bf16.gmra.mrb[0].mxu0 %v517
        %v1596 = vpop.f32.mrb[0].mxu0
        %v1597 = vadd.f32 %v344, %v1596
        %v1598 = vpop.f32.mrb[0].mxu0
        %v1599 = vadd.f32 %v348, %v1598
        %v1600 = vpop.f32.mrb[0].mxu0
        %v1601 = vadd.f32 %v344, %v1600
        %v1602 = vpop.f32.mrb[0].mxu0
        %v1603 = vadd.f32 %v348, %v1602
        %1604 = vmatprep.mubr.bf16.mxu0 0
        %1605 = vmatmul.mubr.bf16.gmra.mrb[0].mxu0 %v520
        %v1606 = vpop.f32.mrb[0].mxu0
        %v1607 = vadd.f32 %v344, %v1606
        %v1608 = vpop.f32.mrb[0].mxu0
        %v1609 = vadd.f32 %v348, %v1608
        %v1610 = vpop.f32.mrb[0].mxu0
        %v1611 = vadd.f32 %v344, %v1610
        %v1612 = vpop.f32.mrb[0].mxu0
        %v1613 = vadd.f32 %v348, %v1612
        %1614 = vmatprep.mubr.bf16.mxu0 0
        %1615 = vmatmul.mubr.bf16.gmra.mrb[0].mxu0 %v523
        %v1616 = vpop.f32.mrb[0].mxu0
        %v1617 = vadd.f32 %v344, %v1616
        %v1618 = vpop.f32.mrb[0].mxu0
        %v1619 = vadd.f32 %v348, %v1618
        %v1620 = vpop.f32.mrb[0].mxu0
        %v1621 = vadd.f32 %v344, %v1620
        %v1622 = vpop.f32.mrb[0].mxu0
        %v1623 = vadd.f32 %v348, %v1622
        %1624 = vmatprep.mubr.bf16.mxu0 0
        %1625 = vmatmul.mubr.bf16.gmra.mrb[0].mxu0 %v526
        %v1626 = vpop.f32.mrb[0].mxu0
        %v1627 = vadd.f32 %v344, %v1626
        %v1628 = vpop.f32.mrb[0].mxu0
        %v1629 = vadd.f32 %v348, %v1628
        %v1630 = vpop.f32.mrb[0].mxu0
        %v1631 = vadd.f32 %v344, %v1630
        %v1632 = vpop.f32.mrb[0].mxu0
        %v1633 = vadd.f32 %v348, %v1632
        %1634 = vmatprep.mubr.bf16.mxu0 0
        %1635 = vmatmul.mubr.bf16.gmra.mrb[0].mxu0 %v529
        %v1636 = vpop.f32.mrb[0].mxu0
        %v1637 = vadd.f32 %v344, %v1636
        %v1638 = vpop.f32.mrb[0].mxu0
        %v1639 = vadd.f32 %v348, %v1638
        %v1640 = vpop.f32.mrb[0].mxu0
        %v1641 = vadd.f32 %v344, %v1640
        %v1642 = vpop.f32.mrb[0].mxu0
        %v1643 = vadd.f32 %v348, %v1642
        %1644 = vmatprep.mubr.bf16.mxu0 0
        %1645 = vmatmul.mubr.bf16.gmra.mrb[0].mxu0 %v532
        %v1646 = vpop.f32.mrb[0].mxu0
        %v1647 = vadd.f32 %v344, %v1646
        %v1648 = vpop.f32.mrb[0].mxu0
        %v1649 = vadd.f32 %v348, %v1648
        %v1650 = vpop.f32.mrb[0].mxu0
        %v1651 = vadd.f32 %v344, %v1650
        %v1652 = vpop.f32.mrb[0].mxu0
        %v1653 = vadd.f32 %v348, %v1652
        %1654 = vmatprep.mubr.bf16.mxu0 0
        %1655 = vmatmul.mubr.bf16.gmra.mrb[0].mxu0 %v535
        %v1656 = vpop.f32.mrb[0].mxu0
        %v1657 = vadd.f32 %v344, %v1656
        %v1658 = vpop.f32.mrb[0].mxu0
        %v1659 = vadd.f32 %v348, %v1658
        %v1660 = vpop.f32.mrb[0].mxu0
        %v1661 = vadd.f32 %v344, %v1660
        %v1662 = vpop.f32.mrb[0].mxu0
        %v1663 = vadd.f32 %v348, %v1662
        %1664 = vmatprep.mubr.bf16.mxu0 0
        %1665 = vmatmul.mubr.bf16.gmra.mrb[0].mxu0 %v538
        %v1666 = vpop.f32.mrb[0].mxu0
        %v1667 = vadd.f32 %v344, %v1666
        %v1668 = vpop.f32.mrb[0].mxu0
        %v1669 = vadd.f32 %v348, %v1668
        %v1670 = vpop.f32.mrb[0].mxu0
        %v1671 = vadd.f32 %v344, %v1670
        %v1672 = vpop.f32.mrb[0].mxu0
        %v1673 = vadd.f32 %v348, %v1672
        %1674 = vmatprep.mubr.bf16.mxu0 0
        %1675 = vmatmul.mubr.bf16.gmra.mrb[0].mxu0 %v541
        %v1676 = vpop.f32.mrb[0].mxu0
        %v1677 = vadd.f32 %v344, %v1676
        %v1678 = vpop.f32.mrb[0].mxu0
        %v1679 = vadd.f32 %v348, %v1678
        %v1680 = vpop.f32.mrb[0].mxu0
        %v1681 = vadd.f32 %v344, %v1680
        %v1682 = vpop.f32.mrb[0].mxu0
        %v1683 = vadd.f32 %v348, %v1682
        %1684 = vmatprep.mubr.bf16.mxu0 0
        %1685 = vmatmul.mubr.bf16.gmra.mrb[0].mxu0 %v544
        %v1686 = vpop.f32.mrb[0].mxu0
        %v1687 = vadd.f32 %v344, %v1686
        %v1688 = vpop.f32.mrb[0].mxu0
        %v1689 = vadd.f32 %v348, %v1688
        %v1690 = vpop.f32.mrb[0].mxu0
        %v1691 = vadd.f32 %v344, %v1690
        %v1692 = vpop.f32.mrb[0].mxu0
        %v1693 = vadd.f32 %v348, %v1692
        %1694 = vmatprep.mubr.bf16.mxu0 0
        %1695 = vmatmul.mubr.bf16.gmra.mrb[0].mxu0 %v547
        %v1696 = vpop.f32.mrb[0].mxu0
        %v1697 = vadd.f32 %v344, %v1696
        %v1698 = vpop.f32.mrb[0].mxu0
        %v1699 = vadd.f32 %v348, %v1698
        %v1700 = vpop.f32.mrb[0].mxu0
        %v1701 = vadd.f32 %v344, %v1700
        %v1702 = vpop.f32.mrb[0].mxu0
        %v1703 = vadd.f32 %v348, %v1702
        %1704 = vmatprep.mubr.bf16.mxu0 0
        %1705 = vmatmul.mubr.bf16.gmra.mrb[0].mxu0 %v550
        %v1706 = vpop.f32.mrb[0].mxu0
        %v1707 = vadd.f32 %v344, %v1706
        %v1708 = vpop.f32.mrb[0].mxu0
        %v1709 = vadd.f32 %v348, %v1708
        %v1710 = vpop.f32.mrb[0].mxu0
        %v1711 = vadd.f32 %v344, %v1710
        %v1712 = vpop.f32.mrb[0].mxu0
        %v1713 = vadd.f32 %v348, %v1712
        %1714 = vdwg.mxu0
        %1715 = vmatprep.subr.bf16.mxu0 %v581
        %1716 = vmatpush1.bf16.msra.mxu0 %v578
        %1717 = vmatprep.subr.bf16.mxu0 0
        %1718 = vmatpush1.bf16.msra.mxu0 0
        %1719 = vmatprep.subr.bf16.mxu0 0
        %1720 = vmatpush1.bf16.msra.mxu0 0
        %1721 = vmatprep.subr.bf16.mxu0 0
        %1722 = vmatpush1.bf16.msra.mxu0 0
        %1723 = vmatprep.subr.bf16.mxu0 0
        %1724 = vmatpush1.bf16.msra.mxu0 0
        %1725 = vmatprep.subr.bf16.mxu0 0
        %1726 = vmatpush1.bf16.msra.mxu0 0
        %1727 = vmatprep.subr.bf16.mxu0 0
        %1728 = vmatpush1.bf16.msra.mxu0 0
        %1729 = vmatprep.subr.bf16.mxu0 0
        %1730 = vmatpush1.bf16.msra.mxu0 0
        %1731 = vmatprep.subr.bf16.mxu0 0
        %1732 = vmatpush1.bf16.msra.mxu0 0
        %1733 = vmatprep.subr.bf16.mxu0 0
        %1734 = vmatpush1.bf16.msra.mxu0 0
        %1735 = vmatprep.subr.bf16.mxu0 0
        %1736 = vmatpush1.bf16.msra.mxu0 0
        %1737 = vmatprep.subr.bf16.mxu0 0
        %1738 = vmatpush1.bf16.msra.mxu0 0
        %1739 = vmatprep.subr.bf16.mxu0 0
        %1740 = vmatpush1.bf16.msra.mxu0 0
        %1741 = vmatprep.subr.bf16.mxu0 0
        %1742 = vmatpush1.bf16.msra.mxu0 0
        %1743 = vmatprep.subr.bf16.mxu0 0
        %1744 = vmatpush1.bf16.msra.mxu0 0
        %1745 = vmatprep.subr.bf16.mxu0 0
        %1746 = vmatpush1.bf16.msra.mxu0 0
        %1747 = vmatprep.mubr.bf16.mxu0 0
        %1748 = vmatmul.mubr.bf16.gmra.mrb[0].mxu0 %v478
        %v1749 = vpop.f32.mrb[0].mxu0
        %v1750 = vadd.f32 %v352, %v1749
        %v1751 = vpop.f32.mrb[0].mxu0
        %v1752 = vadd.f32 %v356, %v1751
        %v1753 = vpop.f32.mrb[0].mxu0
        %v1754 = vadd.f32 %v352, %v1753
        %v1755 = vpop.f32.mrb[0].mxu0
        %v1756 = vadd.f32 %v356, %v1755
        %1757 = vmatprep.mubr.bf16.mxu0 0
        %1758 = vmatmul.mubr.bf16.gmra.mrb[0].mxu0 %v481
        %v1759 = vpop.f32.mrb[0].mxu0
        %v1760 = vadd.f32 %v352, %v1759
        %v1761 = vpop.f32.mrb[0].mxu0
        %v1762 = vadd.f32 %v356, %v1761
        %v1763 = vpop.f32.mrb[0].mxu0
        %v1764 = vadd.f32 %v352, %v1763
        %v1765 = vpop.f32.mrb[0].mxu0
        %v1766 = vadd.f32 %v356, %v1765
        %1767 = vmatprep.mubr.bf16.mxu0 0
        %1768 = vmatmul.mubr.bf16.gmra.mrb[0].mxu0 %v484
        %v1769 = vpop.f32.mrb[0].mxu0
        %v1770 = vadd.f32 %v352, %v1769
        %v1771 = vpop.f32.mrb[0].mxu0
        %v1772 = vadd.f32 %v356, %v1771
        %v1773 = vpop.f32.mrb[0].mxu0
        %v1774 = vadd.f32 %v352, %v1773
        %v1775 = vpop.f32.mrb[0].mxu0
        %v1776 = vadd.f32 %v356, %v1775
        %1777 = vmatprep.mubr.bf16.mxu0 0
        %1778 = vmatmul.mubr.bf16.gmra.mrb[0].mxu0 %v487
        %v1779 = vpop.f32.mrb[0].mxu0
        %v1780 = vadd.f32 %v352, %v1779
        %v1781 = vpop.f32.mrb[0].mxu0
        %v1782 = vadd.f32 %v356, %v1781
        %v1783 = vpop.f32.mrb[0].mxu0
        %v1784 = vadd.f32 %v352, %v1783
        %v1785 = vpop.f32.mrb[0].mxu0
        %v1786 = vadd.f32 %v356, %v1785
        %1787 = vmatprep.mubr.bf16.mxu0 0
        %1788 = vmatmul.mubr.bf16.gmra.mrb[0].mxu0 %v490
        %v1789 = vpop.f32.mrb[0].mxu0
        %v1790 = vadd.f32 %v352, %v1789
        %v1791 = vpop.f32.mrb[0].mxu0
        %v1792 = vadd.f32 %v356, %v1791
        %v1793 = vpop.f32.mrb[0].mxu0
        %v1794 = vadd.f32 %v352, %v1793
        %v1795 = vpop.f32.mrb[0].mxu0
        %v1796 = vadd.f32 %v356, %v1795
        %1797 = vmatprep.mubr.bf16.mxu0 0
        %1798 = vmatmul.mubr.bf16.gmra.mrb[0].mxu0 %v493
        %v1799 = vpop.f32.mrb[0].mxu0
        %v1800 = vadd.f32 %v352, %v1799
        %v1801 = vpop.f32.mrb[0].mxu0
        %v1802 = vadd.f32 %v356, %v1801
        %v1803 = vpop.f32.mrb[0].mxu0
        %v1804 = vadd.f32 %v352, %v1803
        %v1805 = vpop.f32.mrb[0].mxu0
        %v1806 = vadd.f32 %v356, %v1805
        %1807 = vmatprep.mubr.bf16.mxu0 0
        %1808 = vmatmul.mubr.bf16.gmra.mrb[0].mxu0 %v496
        %v1809 = vpop.f32.mrb[0].mxu0
        %v1810 = vadd.f32 %v352, %v1809
        %v1811 = vpop.f32.mrb[0].mxu0
        %v1812 = vadd.f32 %v356, %v1811
        %v1813 = vpop.f32.mrb[0].mxu0
        %v1814 = vadd.f32 %v352, %v1813
        %v1815 = vpop.f32.mrb[0].mxu0
        %v1816 = vadd.f32 %v356, %v1815
        %1817 = vmatprep.mubr.bf16.mxu0 0
        %1818 = vmatmul.mubr.bf16.gmra.mrb[0].mxu0 %v499
        %v1819 = vpop.f32.mrb[0].mxu0
        %v1820 = vadd.f32 %v352, %v1819
        %v1821 = vpop.f32.mrb[0].mxu0
        %v1822 = vadd.f32 %v356, %v1821
        %v1823 = vpop.f32.mrb[0].mxu0
        %v1824 = vadd.f32 %v352, %v1823
        %v1825 = vpop.f32.mrb[0].mxu0
        %v1826 = vadd.f32 %v356, %v1825
        %1827 = vmatprep.mubr.bf16.mxu0 0
        %1828 = vmatmul.mubr.bf16.gmra.mrb[0].mxu0 %v502
        %v1829 = vpop.f32.mrb[0].mxu0
        %v1830 = vadd.f32 %v352, %v1829
        %v1831 = vpop.f32.mrb[0].mxu0
        %v1832 = vadd.f32 %v356, %v1831
        %v1833 = vpop.f32.mrb[0].mxu0
        %v1834 = vadd.f32 %v352, %v1833
        %v1835 = vpop.f32.mrb[0].mxu0
        %v1836 = vadd.f32 %v356, %v1835
        %1837 = vmatprep.mubr.bf16.mxu0 0
        %1838 = vmatmul.mubr.bf16.gmra.mrb[0].mxu0 %v505
        %v1839 = vpop.f32.mrb[0].mxu0
        %v1840 = vadd.f32 %v352, %v1839
        %v1841 = vpop.f32.mrb[0].mxu0
        %v1842 = vadd.f32 %v356, %v1841
        %v1843 = vpop.f32.mrb[0].mxu0
        %v1844 = vadd.f32 %v352, %v1843
        %v1845 = vpop.f32.mrb[0].mxu0
        %v1846 = vadd.f32 %v356, %v1845
        %1847 = vmatprep.mubr.bf16.mxu0 0
        %1848 = vmatmul.mubr.bf16.gmra.mrb[0].mxu0 %v508
        %v1849 = vpop.f32.mrb[0].mxu0
        %v1850 = vadd.f32 %v352, %v1849
        %v1851 = vpop.f32.mrb[0].mxu0
        %v1852 = vadd.f32 %v356, %v1851
        %v1853 = vpop.f32.mrb[0].mxu0
        %v1854 = vadd.f32 %v352, %v1853
        %v1855 = vpop.f32.mrb[0].mxu0
        %v1856 = vadd.f32 %v356, %v1855
        %1857 = vmatprep.mubr.bf16.mxu0 0
        %1858 = vmatmul.mubr.bf16.gmra.mrb[0].mxu0 %v511
        %v1859 = vpop.f32.mrb[0].mxu0
        %v1860 = vadd.f32 %v352, %v1859
        %v1861 = vpop.f32.mrb[0].mxu0
        %v1862 = vadd.f32 %v356, %v1861
        %v1863 = vpop.f32.mrb[0].mxu0
        %v1864 = vadd.f32 %v352, %v1863
        %v1865 = vpop.f32.mrb[0].mxu0
        %v1866 = vadd.f32 %v356, %v1865
        %1867 = vmatprep.mubr.bf16.mxu0 0
        %1868 = vmatmul.mubr.bf16.gmra.mrb[0].mxu0 %v514
        %v1869 = vpop.f32.mrb[0].mxu0
        %v1870 = vadd.f32 %v352, %v1869
        %v1871 = vpop.f32.mrb[0].mxu0
        %v1872 = vadd.f32 %v356, %v1871
        %v1873 = vpop.f32.mrb[0].mxu0
        %v1874 = vadd.f32 %v352, %v1873
        %v1875 = vpop.f32.mrb[0].mxu0
        %v1876 = vadd.f32 %v356, %v1875
        %1877 = vmatprep.mubr.bf16.mxu0 0
        %1878 = vmatmul.mubr.bf16.gmra.mrb[0].mxu0 %v517
        %v1879 = vpop.f32.mrb[0].mxu0
        %v1880 = vadd.f32 %v352, %v1879
        %v1881 = vpop.f32.mrb[0].mxu0
        %v1882 = vadd.f32 %v356, %v1881
        %v1883 = vpop.f32.mrb[0].mxu0
        %v1884 = vadd.f32 %v352, %v1883
        %v1885 = vpop.f32.mrb[0].mxu0
        %v1886 = vadd.f32 %v356, %v1885
        %1887 = vmatprep.mubr.bf16.mxu0 0
        %1888 = vmatmul.mubr.bf16.gmra.mrb[0].mxu0 %v520
        %v1889 = vpop.f32.mrb[0].mxu0
        %v1890 = vadd.f32 %v352, %v1889
        %v1891 = vpop.f32.mrb[0].mxu0
        %v1892 = vadd.f32 %v356, %v1891
        %v1893 = vpop.f32.mrb[0].mxu0
        %v1894 = vadd.f32 %v352, %v1893
        %v1895 = vpop.f32.mrb[0].mxu0
        %v1896 = vadd.f32 %v356, %v1895
        %1897 = vmatprep.mubr.bf16.mxu0 0
        %1898 = vmatmul.mubr.bf16.gmra.mrb[0].mxu0 %v523
        %v1899 = vpop.f32.mrb[0].mxu0
        %v1900 = vadd.f32 %v352, %v1899
        %v1901 = vpop.f32.mrb[0].mxu0
        %v1902 = vadd.f32 %v356, %v1901
        %v1903 = vpop.f32.mrb[0].mxu0
        %v1904 = vadd.f32 %v352, %v1903
        %v1905 = vpop.f32.mrb[0].mxu0
        %v1906 = vadd.f32 %v356, %v1905
        %1907 = vmatprep.mubr.bf16.mxu0 0
        %1908 = vmatmul.mubr.bf16.gmra.mrb[0].mxu0 %v526
        %v1909 = vpop.f32.mrb[0].mxu0
        %v1910 = vadd.f32 %v352, %v1909
        %v1911 = vpop.f32.mrb[0].mxu0
        %v1912 = vadd.f32 %v356, %v1911
        %v1913 = vpop.f32.mrb[0].mxu0
        %v1914 = vadd.f32 %v352, %v1913
        %v1915 = vpop.f32.mrb[0].mxu0
        %v1916 = vadd.f32 %v356, %v1915
        %1917 = vmatprep.mubr.bf16.mxu0 0
        %1918 = vmatmul.mubr.bf16.gmra.mrb[0].mxu0 %v529
        %v1919 = vpop.f32.mrb[0].mxu0
        %v1920 = vadd.f32 %v352, %v1919
        %v1921 = vpop.f32.mrb[0].mxu0
        %v1922 = vadd.f32 %v356, %v1921
        %v1923 = vpop.f32.mrb[0].mxu0
        %v1924 = vadd.f32 %v352, %v1923
        %v1925 = vpop.f32.mrb[0].mxu0
        %v1926 = vadd.f32 %v356, %v1925
        %1927 = vmatprep.mubr.bf16.mxu0 0
        %1928 = vmatmul.mubr.bf16.gmra.mrb[0].mxu0 %v532
        %v1929 = vpop.f32.mrb[0].mxu0
        %v1930 = vadd.f32 %v352, %v1929
        %v1931 = vpop.f32.mrb[0].mxu0
        %v1932 = vadd.f32 %v356, %v1931
        %v1933 = vpop.f32.mrb[0].mxu0
        %v1934 = vadd.f32 %v352, %v1933
        %v1935 = vpop.f32.mrb[0].mxu0
        %v1936 = vadd.f32 %v356, %v1935
        %1937 = vmatprep.mubr.bf16.mxu0 0
        %1938 = vmatmul.mubr.bf16.gmra.mrb[0].mxu0 %v535
        %v1939 = vpop.f32.mrb[0].mxu0
        %v1940 = vadd.f32 %v352, %v1939
        %v1941 = vpop.f32.mrb[0].mxu0
        %v1942 = vadd.f32 %v356, %v1941
        %v1943 = vpop.f32.mrb[0].mxu0
        %v1944 = vadd.f32 %v352, %v1943
        %v1945 = vpop.f32.mrb[0].mxu0
        %v1946 = vadd.f32 %v356, %v1945
        %1947 = vmatprep.mubr.bf16.mxu0 0
        %1948 = vmatmul.mubr.bf16.gmra.mrb[0].mxu0 %v538
        %v1949 = vpop.f32.mrb[0].mxu0
        %v1950 = vadd.f32 %v352, %v1949
        %v1951 = vpop.f32.mrb[0].mxu0
        %v1952 = vadd.f32 %v356, %v1951
        %v1953 = vpop.f32.mrb[0].mxu0
        %v1954 = vadd.f32 %v352, %v1953
        %v1955 = vpop.f32.mrb[0].mxu0
        %v1956 = vadd.f32 %v356, %v1955
        %1957 = vmatprep.mubr.bf16.mxu0 0
        %1958 = vmatmul.mubr.bf16.gmra.mrb[0].mxu0 %v541
        %v1959 = vpop.f32.mrb[0].mxu0
        %v1960 = vadd.f32 %v352, %v1959
        %v1961 = vpop.f32.mrb[0].mxu0
        %v1962 = vadd.f32 %v356, %v1961
        %v1963 = vpop.f32.mrb[0].mxu0
        %v1964 = vadd.f32 %v352, %v1963
        %v1965 = vpop.f32.mrb[0].mxu0
        %v1966 = vadd.f32 %v356, %v1965
        %1967 = vmatprep.mubr.bf16.mxu0 0
        %1968 = vmatmul.mubr.bf16.gmra.mrb[0].mxu0 %v544
        %v1969 = vpop.f32.mrb[0].mxu0
        %v1970 = vadd.f32 %v352, %v1969
        %v1971 = vpop.f32.mrb[0].mxu0
        %v1972 = vadd.f32 %v356, %v1971
        %v1973 = vpop.f32.mrb[0].mxu0
        %v1974 = vadd.f32 %v352, %v1973
        %v1975 = vpop.f32.mrb[0].mxu0
        %v1976 = vadd.f32 %v356, %v1975
        %1977 = vmatprep.mubr.bf16.mxu0 0
        %1978 = vmatmul.mubr.bf16.gmra.mrb[0].mxu0 %v547
        %v1979 = vpop.f32.mrb[0].mxu0
        %v1980 = vadd.f32 %v352, %v1979
        %v1981 = vpop.f32.mrb[0].mxu0
        %v1982 = vadd.f32 %v356, %v1981
        %v1983 = vpop.f32.mrb[0].mxu0
        %v1984 = vadd.f32 %v352, %v1983
        %v1985 = vpop.f32.mrb[0].mxu0
        %v1986 = vadd.f32 %v356, %v1985
        %1987 = vmatprep.mubr.bf16.mxu0 0
        %1988 = vmatmul.mubr.bf16.gmra.mrb[0].mxu0 %v550
        %v1989 = vpop.f32.mrb[0].mxu0
        %v1990 = vadd.f32 %v352, %v1989
        %v1991 = vpop.f32.mrb[0].mxu0
        %v1992 = vadd.f32 %v356, %v1991
        %v1993 = vpop.f32.mrb[0].mxu0
        %v1994 = vadd.f32 %v352, %v1993
        %v1995 = vpop.f32.mrb[0].mxu0
        %v1996 = vadd.f32 %v356, %v1995
        %1997 = vdwg.mxu0
        %v1998 = vmul.f32 %v618, 0.5
        %v1999 = vmul.f32 %v620, 0.5
        %v2000 = vmul.f32 %v901, 0.5
        %v2001 = vmul.f32 %v903, 0.5
        %v2002 = vmul.f32 %v1184, 0.5
        %v2003 = vmul.f32 %v1186, 0.5
        %v2004 = vmul.f32 %v1467, 0.5
        %v2005 = vmul.f32 %v1469, 0.5
        %v2006 = vmul.f32 %v1750, 0.5
        %v2007 = vmul.f32 %v1752, 0.5
        %v2008 = vmul.f32 %v622, 0.5
        %v2009 = vmul.f32 %v624, 0.5
        %v2010 = vmul.f32 %v905, 0.5
        %v2011 = vmul.f32 %v907, 0.5
        %v2012 = vmul.f32 %v1188, 0.5
        %v2013 = vmul.f32 %v1190, 0.5
        %v2014 = vmul.f32 %v1471, 0.5
        %v2015 = vmul.f32 %v1473, 0.5
        %v2016 = vmul.f32 %v1754, 0.5
        %v2017 = vmul.f32 %v1756, 0.5
        %v2018 = vmul.f32 %v628, 0.5
        %v2019 = vmul.f32 %v630, 0.5
        %v2020 = vmul.f32 %v911, 0.5
        %v2021 = vmul.f32 %v913, 0.5
        %v2022 = vmul.f32 %v1194, 0.5
        %v2023 = vmul.f32 %v1196, 0.5
        %v2024 = vmul.f32 %v1477, 0.5
        %v2025 = vmul.f32 %v1479, 0.5
        %v2026 = vmul.f32 %v1760, 0.5
        %v2027 = vmul.f32 %v1762, 0.5
        %v2028 = vmul.f32 %v632, 0.5
        %v2029 = vmul.f32 %v634, 0.5
        %v2030 = vmul.f32 %v915, 0.5
        %v2031 = vmul.f32 %v917, 0.5
        %v2032 = vmul.f32 %v1198, 0.5
        %v2033 = vmul.f32 %v1200, 0.5
        %v2034 = vmul.f32 %v1481, 0.5
        %v2035 = vmul.f32 %v1483, 0.5
        %v2036 = vmul.f32 %v1764, 0.5
        %v2037 = vmul.f32 %v1766, 0.5
        %v2038 = vmul.f32 %v638, 0.5
        %v2039 = vmul.f32 %v640, 0.5
        %v2040 = vmul.f32 %v921, 0.5
        %v2041 = vmul.f32 %v923, 0.5
        %v2042 = vmul.f32 %v1204, 0.5
        %v2043 = vmul.f32 %v1206, 0.5
        %v2044 = vmul.f32 %v1487, 0.5
        %v2045 = vmul.f32 %v1489, 0.5
        %v2046 = vmul.f32 %v1770, 0.5
        %v2047 = vmul.f32 %v1772, 0.5
        %v2048 = vmul.f32 %v642, 0.5
        %v2049 = vmul.f32 %v644, 0.5
        %v2050 = vmul.f32 %v925, 0.5
        %v2051 = vmul.f32 %v927, 0.5
        %v2052 = vmul.f32 %v1208, 0.5
        %v2053 = vmul.f32 %v1210, 0.5
        %v2054 = vmul.f32 %v1491, 0.5
        %v2055 = vmul.f32 %v1493, 0.5
        %v2056 = vmul.f32 %v1774, 0.5
        %v2057 = vmul.f32 %v1776, 0.5
        %v2058 = vmul.f32 %v648, 0.5
        %v2059 = vmul.f32 %v650, 0.5
        %v2060 = vmul.f32 %v931, 0.5
        %v2061 = vmul.f32 %v933, 0.5
        %v2062 = vmul.f32 %v1214, 0.5
        %v2063 = vmul.f32 %v1216, 0.5
        %v2064 = vmul.f32 %v1497, 0.5
        %v2065 = vmul.f32 %v1499, 0.5
        %v2066 = vmul.f32 %v1780, 0.5
        %v2067 = vmul.f32 %v1782, 0.5
        %v2068 = vmul.f32 %v652, 0.5
        %v2069 = vmul.f32 %v654, 0.5
        %v2070 = vmul.f32 %v935, 0.5
        %v2071 = vmul.f32 %v937, 0.5
        %v2072 = vmul.f32 %v1218, 0.5
        %v2073 = vmul.f32 %v1220, 0.5
        %v2074 = vmul.f32 %v1501, 0.5
        %v2075 = vmul.f32 %v1503, 0.5
        %v2076 = vmul.f32 %v1784, 0.5
        %v2077 = vmul.f32 %v1786, 0.5
        %v2078 = vmul.f32 %v658, 0.5
        %v2079 = vmul.f32 %v660, 0.5
        %v2080 = vmul.f32 %v941, 0.5
        %v2081 = vmul.f32 %v943, 0.5
        %v2082 = vmul.f32 %v1224, 0.5
        %v2083 = vmul.f32 %v1226, 0.5
        %v2084 = vmul.f32 %v1507, 0.5
        %v2085 = vmul.f32 %v1509, 0.5
        %v2086 = vmul.f32 %v1790, 0.5
        %v2087 = vmul.f32 %v1792, 0.5
        %v2088 = vmul.f32 %v662, 0.5
        %v2089 = vmul.f32 %v664, 0.5
        %v2090 = vmul.f32 %v945, 0.5
        %v2091 = vmul.f32 %v947, 0.5
        %v2092 = vmul.f32 %v1228, 0.5
        %v2093 = vmul.f32 %v1230, 0.5
        %v2094 = vmul.f32 %v1511, 0.5
        %v2095 = vmul.f32 %v1513, 0.5
        %v2096 = vmul.f32 %v1794, 0.5
        %v2097 = vmul.f32 %v1796, 0.5
        %v2098 = vmul.f32 %v668, 0.5
        %v2099 = vmul.f32 %v670, 0.5
        %v2100 = vmul.f32 %v951, 0.5
        %v2101 = vmul.f32 %v953, 0.5
        %v2102 = vmul.f32 %v1234, 0.5
        %v2103 = vmul.f32 %v1236, 0.5
        %v2104 = vmul.f32 %v1517, 0.5
        %v2105 = vmul.f32 %v1519, 0.5
        %v2106 = vmul.f32 %v1800, 0.5
        %v2107 = vmul.f32 %v1802, 0.5
        %v2108 = vmul.f32 %v672, 0.5
        %v2109 = vmul.f32 %v674, 0.5
        %v2110 = vmul.f32 %v955, 0.5
        %v2111 = vmul.f32 %v957, 0.5
        %v2112 = vmul.f32 %v1238, 0.5
        %v2113 = vmul.f32 %v1240, 0.5
        %v2114 = vmul.f32 %v1521, 0.5
        %v2115 = vmul.f32 %v1523, 0.5
        %v2116 = vmul.f32 %v1804, 0.5
        %v2117 = vmul.f32 %v1806, 0.5
        %v2118 = vmul.f32 %v678, 0.5
        %v2119 = vmul.f32 %v680, 0.5
        %v2120 = vmul.f32 %v961, 0.5
        %v2121 = vmul.f32 %v963, 0.5
        %v2122 = vmul.f32 %v1244, 0.5
        %v2123 = vmul.f32 %v1246, 0.5
        %v2124 = vmul.f32 %v1527, 0.5
        %v2125 = vmul.f32 %v1529, 0.5
        %v2126 = vmul.f32 %v1810, 0.5
        %v2127 = vmul.f32 %v1812, 0.5
        %v2128 = vmul.f32 %v682, 0.5
        %v2129 = vmul.f32 %v684, 0.5
        %v2130 = vmul.f32 %v965, 0.5
        %v2131 = vmul.f32 %v967, 0.5
        %v2132 = vmul.f32 %v1248, 0.5
        %v2133 = vmul.f32 %v1250, 0.5
        %v2134 = vmul.f32 %v1531, 0.5
        %v2135 = vmul.f32 %v1533, 0.5
        %v2136 = vmul.f32 %v1814, 0.5
        %v2137 = vmul.f32 %v1816, 0.5
        %v2138 = vmul.f32 %v688, 0.5
        %v2139 = vmul.f32 %v690, 0.5
        %v2140 = vmul.f32 %v971, 0.5
        %v2141 = vmul.f32 %v973, 0.5
        %v2142 = vmul.f32 %v1254, 0.5
        %v2143 = vmul.f32 %v1256, 0.5
        %v2144 = vmul.f32 %v1537, 0.5
        %v2145 = vmul.f32 %v1539, 0.5
        %v2146 = vmul.f32 %v1820, 0.5
        %v2147 = vmul.f32 %v1822, 0.5
        %v2148 = vmul.f32 %v692, 0.5
        %v2149 = vmul.f32 %v694, 0.5
        %v2150 = vmul.f32 %v975, 0.5
        %v2151 = vmul.f32 %v977, 0.5
        %v2152 = vmul.f32 %v1258, 0.5
        %v2153 = vmul.f32 %v1260, 0.5
        %v2154 = vmul.f32 %v1541, 0.5
        %v2155 = vmul.f32 %v1543, 0.5
        %v2156 = vmul.f32 %v1824, 0.5
        %v2157 = vmul.f32 %v1826, 0.5
        %v2158 = vmul.f32 %v698, 0.5
        %v2159 = vmul.f32 %v700, 0.5
        %v2160 = vmul.f32 %v981, 0.5
        %v2161 = vmul.f32 %v983, 0.5
        %v2162 = vmul.f32 %v1264, 0.5
        %v2163 = vmul.f32 %v1266, 0.5
        %v2164 = vmul.f32 %v1547, 0.5
        %v2165 = vmul.f32 %v1549, 0.5
        %v2166 = vmul.f32 %v1830, 0.5
        %v2167 = vmul.f32 %v1832, 0.5
        %v2168 = vmul.f32 %v702, 0.5
        %v2169 = vmul.f32 %v704, 0.5
        %v2170 = vmul.f32 %v985, 0.5
        %v2171 = vmul.f32 %v987, 0.5
        %v2172 = vmul.f32 %v1268, 0.5
        %v2173 = vmul.f32 %v1270, 0.5
        %v2174 = vmul.f32 %v1551, 0.5
        %v2175 = vmul.f32 %v1553, 0.5
        %v2176 = vmul.f32 %v1834, 0.5
        %v2177 = vmul.f32 %v1836, 0.5
        %v2178 = vmul.f32 %v708, 0.5
        %v2179 = vmul.f32 %v710, 0.5
        %v2180 = vmul.f32 %v991, 0.5
        %v2181 = vmul.f32 %v993, 0.5
        %v2182 = vmul.f32 %v1274, 0.5
        %v2183 = vmul.f32 %v1276, 0.5
        %v2184 = vmul.f32 %v1557, 0.5
        %v2185 = vmul.f32 %v1559, 0.5
        %v2186 = vmul.f32 %v1840, 0.5
        %v2187 = vmul.f32 %v1842, 0.5
        %v2188 = vmul.f32 %v712, 0.5
        %v2189 = vmul.f32 %v714, 0.5
        %v2190 = vmul.f32 %v995, 0.5
        %v2191 = vmul.f32 %v997, 0.5
        %v2192 = vmul.f32 %v1278, 0.5
        %v2193 = vmul.f32 %v1280, 0.5
        %v2194 = vmul.f32 %v1561, 0.5
        %v2195 = vmul.f32 %v1563, 0.5
        %v2196 = vmul.f32 %v1844, 0.5
        %v2197 = vmul.f32 %v1846, 0.5
        %v2198 = vmul.f32 %v718, 0.5
        %v2199 = vmul.f32 %v720, 0.5
        %v2200 = vmul.f32 %v1001, 0.5
        %v2201 = vmul.f32 %v1003, 0.5
        %v2202 = vmul.f32 %v1284, 0.5
        %v2203 = vmul.f32 %v1286, 0.5
        %v2204 = vmul.f32 %v1567, 0.5
        %v2205 = vmul.f32 %v1569, 0.5
        %v2206 = vmul.f32 %v1850, 0.5
        %v2207 = vmul.f32 %v1852, 0.5
        %v2208 = vmul.f32 %v722, 0.5
        %v2209 = vmul.f32 %v724, 0.5
        %v2210 = vmul.f32 %v1005, 0.5
        %v2211 = vmul.f32 %v1007, 0.5
        %v2212 = vmul.f32 %v1288, 0.5
        %v2213 = vmul.f32 %v1290, 0.5
        %v2214 = vmul.f32 %v1571, 0.5
        %v2215 = vmul.f32 %v1573, 0.5
        %v2216 = vmul.f32 %v1854, 0.5
        %v2217 = vmul.f32 %v1856, 0.5
        %v2218 = vmul.f32 %v728, 0.5
        %v2219 = vmul.f32 %v730, 0.5
        %v2220 = vmul.f32 %v1011, 0.5
        %v2221 = vmul.f32 %v1013, 0.5
        %v2222 = vmul.f32 %v1294, 0.5
        %v2223 = vmul.f32 %v1296, 0.5
        %v2224 = vmul.f32 %v1577, 0.5
        %v2225 = vmul.f32 %v1579, 0.5
        %v2226 = vmul.f32 %v1860, 0.5
        %v2227 = vmul.f32 %v1862, 0.5
        %v2228 = vmul.f32 %v732, 0.5
        %v2229 = vmul.f32 %v734, 0.5
        %v2230 = vmul.f32 %v1015, 0.5
        %v2231 = vmul.f32 %v1017, 0.5
        %v2232 = vmul.f32 %v1298, 0.5
        %v2233 = vmul.f32 %v1300, 0.5
        %v2234 = vmul.f32 %v1581, 0.5
        %v2235 = vmul.f32 %v1583, 0.5
        %v2236 = vmul.f32 %v1864, 0.5
        %v2237 = vmul.f32 %v1866, 0.5
        %v2238 = vmul.f32 %v738, 0.5
        %v2239 = vmul.f32 %v740, 0.5
        %v2240 = vmul.f32 %v1021, 0.5
        %v2241 = vmul.f32 %v1023, 0.5
        %v2242 = vmul.f32 %v1304, 0.5
        %v2243 = vmul.f32 %v1306, 0.5
        %v2244 = vmul.f32 %v1587, 0.5
        %v2245 = vmul.f32 %v1589, 0.5
        %v2246 = vmul.f32 %v1870, 0.5
        %v2247 = vmul.f32 %v1872, 0.5
        %v2248 = vmul.f32 %v742, 0.5
        %v2249 = vmul.f32 %v744, 0.5
        %v2250 = vmul.f32 %v1025, 0.5
        %v2251 = vmul.f32 %v1027, 0.5
        %v2252 = vmul.f32 %v1308, 0.5
        %v2253 = vmul.f32 %v1310, 0.5
        %v2254 = vmul.f32 %v1591, 0.5
        %v2255 = vmul.f32 %v1593, 0.5
        %v2256 = vmul.f32 %v1874, 0.5
        %v2257 = vmul.f32 %v1876, 0.5
        %v2258 = vmul.f32 %v748, 0.5
        %v2259 = vmul.f32 %v750, 0.5
        %v2260 = vmul.f32 %v1031, 0.5
        %v2261 = vmul.f32 %v1033, 0.5
        %v2262 = vmul.f32 %v1314, 0.5
        %v2263 = vmul.f32 %v1316, 0.5
        %v2264 = vmul.f32 %v1597, 0.5
        %v2265 = vmul.f32 %v1599, 0.5
        %v2266 = vmul.f32 %v1880, 0.5
        %v2267 = vmul.f32 %v1882, 0.5
        %v2268 = vmul.f32 %v752, 0.5
        %v2269 = vmul.f32 %v754, 0.5
        %v2270 = vmul.f32 %v1035, 0.5
        %v2271 = vmul.f32 %v1037, 0.5
        %v2272 = vmul.f32 %v1318, 0.5
        %v2273 = vmul.f32 %v1320, 0.5
        %v2274 = vmul.f32 %v1601, 0.5
        %v2275 = vmul.f32 %v1603, 0.5
        %v2276 = vmul.f32 %v1884, 0.5
        %v2277 = vmul.f32 %v1886, 0.5
        %v2278 = vmul.f32 %v758, 0.5
        %v2279 = vmul.f32 %v760, 0.5
        %v2280 = vmul.f32 %v1041, 0.5
        %v2281 = vmul.f32 %v1043, 0.5
        %v2282 = vmul.f32 %v1324, 0.5
        %v2283 = vmul.f32 %v1326, 0.5
        %v2284 = vmul.f32 %v1607, 0.5
        %v2285 = vmul.f32 %v1609, 0.5
        %v2286 = vmul.f32 %v1890, 0.5
        %v2287 = vmul.f32 %v1892, 0.5
        %v2288 = vmul.f32 %v762, 0.5
        %v2289 = vmul.f32 %v764, 0.5
        %v2290 = vmul.f32 %v1045, 0.5
        %v2291 = vmul.f32 %v1047, 0.5
        %v2292 = vmul.f32 %v1328, 0.5
        %v2293 = vmul.f32 %v1330, 0.5
        %v2294 = vmul.f32 %v1611, 0.5
        %v2295 = vmul.f32 %v1613, 0.5
        %v2296 = vmul.f32 %v1894, 0.5
        %v2297 = vmul.f32 %v1896, 0.5
        %v2298 = vmul.f32 %v768, 0.5
        %v2299 = vmul.f32 %v770, 0.5
        %v2300 = vmul.f32 %v1051, 0.5
        %v2301 = vmul.f32 %v1053, 0.5
        %v2302 = vmul.f32 %v1334, 0.5
        %v2303 = vmul.f32 %v1336, 0.5
        %v2304 = vmul.f32 %v1617, 0.5
        %v2305 = vmul.f32 %v1619, 0.5
        %v2306 = vmul.f32 %v1900, 0.5
        %v2307 = vmul.f32 %v1902, 0.5
        %v2308 = vmul.f32 %v772, 0.5
        %v2309 = vmul.f32 %v774, 0.5
        %v2310 = vmul.f32 %v1055, 0.5
        %v2311 = vmul.f32 %v1057, 0.5
        %v2312 = vmul.f32 %v1338, 0.5
        %v2313 = vmul.f32 %v1340, 0.5
        %v2314 = vmul.f32 %v1621, 0.5
        %v2315 = vmul.f32 %v1623, 0.5
        %v2316 = vmul.f32 %v1904, 0.5
        %v2317 = vmul.f32 %v1906, 0.5
        %v2318 = vmul.f32 %v778, 0.5
        %v2319 = vmul.f32 %v780, 0.5
        %v2320 = vmul.f32 %v1061, 0.5
        %v2321 = vmul.f32 %v1063, 0.5
        %v2322 = vmul.f32 %v1344, 0.5
        %v2323 = vmul.f32 %v1346, 0.5
        %v2324 = vmul.f32 %v1627, 0.5
        %v2325 = vmul.f32 %v1629, 0.5
        %v2326 = vmul.f32 %v1910, 0.5
        %v2327 = vmul.f32 %v1912, 0.5
        %v2328 = vmul.f32 %v782, 0.5
        %v2329 = vmul.f32 %v784, 0.5
        %v2330 = vmul.f32 %v1065, 0.5
        %v2331 = vmul.f32 %v1067, 0.5
        %v2332 = vmul.f32 %v1348, 0.5
        %v2333 = vmul.f32 %v1350, 0.5
        %v2334 = vmul.f32 %v1631, 0.5
        %v2335 = vmul.f32 %v1633, 0.5
        %v2336 = vmul.f32 %v1914, 0.5
        %v2337 = vmul.f32 %v1916, 0.5
        %v2338 = vmul.f32 %v788, 0.5
        %v2339 = vmul.f32 %v790, 0.5
        %v2340 = vmul.f32 %v1071, 0.5
        %v2341 = vmul.f32 %v1073, 0.5
        %v2342 = vmul.f32 %v1354, 0.5
        %v2343 = vmul.f32 %v1356, 0.5
        %v2344 = vmul.f32 %v1637, 0.5
        %v2345 = vmul.f32 %v1639, 0.5
        %v2346 = vmul.f32 %v1920, 0.5
        %v2347 = vmul.f32 %v1922, 0.5
        %v2348 = vmul.f32 %v792, 0.5
        %v2349 = vmul.f32 %v794, 0.5
        %v2350 = vmul.f32 %v1075, 0.5
        %v2351 = vmul.f32 %v1077, 0.5
        %v2352 = vmul.f32 %v1358, 0.5
        %v2353 = vmul.f32 %v1360, 0.5
        %v2354 = vmul.f32 %v1641, 0.5
        %v2355 = vmul.f32 %v1643, 0.5
        %v2356 = vmul.f32 %v1924, 0.5
        %v2357 = vmul.f32 %v1926, 0.5
        %v2358 = vmul.f32 %v798, 0.5
        %v2359 = vmul.f32 %v800, 0.5
        %v2360 = vmul.f32 %v1081, 0.5
        %v2361 = vmul.f32 %v1083, 0.5
        %v2362 = vmul.f32 %v1364, 0.5
        %v2363 = vmul.f32 %v1366, 0.5
        %v2364 = vmul.f32 %v1647, 0.5
        %v2365 = vmul.f32 %v1649, 0.5
        %v2366 = vmul.f32 %v1930, 0.5
        %v2367 = vmul.f32 %v1932, 0.5
        %v2368 = vmul.f32 %v802, 0.5
        %v2369 = vmul.f32 %v804, 0.5
        %v2370 = vmul.f32 %v1085, 0.5
        %v2371 = vmul.f32 %v1087, 0.5
        %v2372 = vmul.f32 %v1368, 0.5
        %v2373 = vmul.f32 %v1370, 0.5
        %v2374 = vmul.f32 %v1651, 0.5
        %v2375 = vmul.f32 %v1653, 0.5
        %v2376 = vmul.f32 %v1934, 0.5
        %v2377 = vmul.f32 %v1936, 0.5
        %v2378 = vmul.f32 %v808, 0.5
        %v2379 = vmul.f32 %v810, 0.5
        %v2380 = vmul.f32 %v1091, 0.5
        %v2381 = vmul.f32 %v1093, 0.5
        %v2382 = vmul.f32 %v1374, 0.5
        %v2383 = vmul.f32 %v1376, 0.5
        %v2384 = vmul.f32 %v1657, 0.5
        %v2385 = vmul.f32 %v1659, 0.5
        %v2386 = vmul.f32 %v1940, 0.5
        %v2387 = vmul.f32 %v1942, 0.5
        %v2388 = vmul.f32 %v812, 0.5
        %v2389 = vmul.f32 %v814, 0.5
        %v2390 = vmul.f32 %v1095, 0.5
        %v2391 = vmul.f32 %v1097, 0.5
        %v2392 = vmul.f32 %v1378, 0.5
        %v2393 = vmul.f32 %v1380, 0.5
        %v2394 = vmul.f32 %v1661, 0.5
        %v2395 = vmul.f32 %v1663, 0.5
        %v2396 = vmul.f32 %v1944, 0.5
        %v2397 = vmul.f32 %v1946, 0.5
        %v2398 = vmul.f32 %v818, 0.5
        %v2399 = vmul.f32 %v820, 0.5
        %v2400 = vmul.f32 %v1101, 0.5
        %v2401 = vmul.f32 %v1103, 0.5
        %v2402 = vmul.f32 %v1384, 0.5
        %v2403 = vmul.f32 %v1386, 0.5
        %v2404 = vmul.f32 %v1667, 0.5
        %v2405 = vmul.f32 %v1669, 0.5
        %v2406 = vmul.f32 %v1950, 0.5
        %v2407 = vmul.f32 %v1952, 0.5
        %v2408 = vmul.f32 %v822, 0.5
        %v2409 = vmul.f32 %v824, 0.5
        %v2410 = vmul.f32 %v1105, 0.5
        %v2411 = vmul.f32 %v1107, 0.5
        %v2412 = vmul.f32 %v1388, 0.5
        %v2413 = vmul.f32 %v1390, 0.5
        %v2414 = vmul.f32 %v1671, 0.5
        %v2415 = vmul.f32 %v1673, 0.5
        %v2416 = vmul.f32 %v1954, 0.5
        %v2417 = vmul.f32 %v1956, 0.5
        %v2418 = vmul.f32 %v828, 0.5
        %v2419 = vmul.f32 %v830, 0.5
        %v2420 = vmul.f32 %v1111, 0.5
        %v2421 = vmul.f32 %v1113, 0.5
        %v2422 = vmul.f32 %v1394, 0.5
        %v2423 = vmul.f32 %v1396, 0.5
        %v2424 = vmul.f32 %v1677, 0.5
        %v2425 = vmul.f32 %v1679, 0.5
        %v2426 = vmul.f32 %v1960, 0.5
        %v2427 = vmul.f32 %v1962, 0.5
        %v2428 = vmul.f32 %v832, 0.5
        %v2429 = vmul.f32 %v834, 0.5
        %v2430 = vmul.f32 %v1115, 0.5
        %v2431 = vmul.f32 %v1117, 0.5
        %v2432 = vmul.f32 %v1398, 0.5
        %v2433 = vmul.f32 %v1400, 0.5
        %v2434 = vmul.f32 %v1681, 0.5
        %v2435 = vmul.f32 %v1683, 0.5
        %v2436 = vmul.f32 %v1964, 0.5
        %v2437 = vmul.f32 %v1966, 0.5
        %v2438 = vmul.f32 %v838, 0.5
        %v2439 = vmul.f32 %v840, 0.5
        %v2440 = vmul.f32 %v1121, 0.5
        %v2441 = vmul.f32 %v1123, 0.5
        %v2442 = vmul.f32 %v1404, 0.5
        %v2443 = vmul.f32 %v1406, 0.5
        %v2444 = vmul.f32 %v1687, 0.5
        %v2445 = vmul.f32 %v1689, 0.5
        %v2446 = vmul.f32 %v1970, 0.5
        %v2447 = vmul.f32 %v1972, 0.5
        %v2448 = vmul.f32 %v842, 0.5
        %v2449 = vmul.f32 %v844, 0.5
        %v2450 = vmul.f32 %v1125, 0.5
        %v2451 = vmul.f32 %v1127, 0.5
        %v2452 = vmul.f32 %v1408, 0.5
        %v2453 = vmul.f32 %v1410, 0.5
        %v2454 = vmul.f32 %v1691, 0.5
        %v2455 = vmul.f32 %v1693, 0.5
        %v2456 = vmul.f32 %v1974, 0.5
        %v2457 = vmul.f32 %v1976, 0.5
        %v2458 = vmul.f32 %v848, 0.5
        %v2459 = vmul.f32 %v850, 0.5
        %v2460 = vmul.f32 %v1131, 0.5
        %v2461 = vmul.f32 %v1133, 0.5
        %v2462 = vmul.f32 %v1414, 0.5
        %v2463 = vmul.f32 %v1416, 0.5
        %v2464 = vmul.f32 %v1697, 0.5
        %v2465 = vmul.f32 %v1699, 0.5
        %v2466 = vmul.f32 %v1980, 0.5
        %v2467 = vmul.f32 %v1982, 0.5
        %v2468 = vmul.f32 %v852, 0.5
        %v2469 = vmul.f32 %v854, 0.5
        %v2470 = vmul.f32 %v1135, 0.5
        %v2471 = vmul.f32 %v1137, 0.5
        %v2472 = vmul.f32 %v1418, 0.5
        %v2473 = vmul.f32 %v1420, 0.5
        %v2474 = vmul.f32 %v1701, 0.5
        %v2475 = vmul.f32 %v1703, 0.5
        %v2476 = vmul.f32 %v1984, 0.5
        %v2477 = vmul.f32 %v1986, 0.5
        %v2478 = vmul.f32 %v858, 0.5
        %v2479 = vmul.f32 %v860, 0.5
        %v2480 = vmul.f32 %v1141, 0.5
        %v2481 = vmul.f32 %v1143, 0.5
        %v2482 = vmul.f32 %v1424, 0.5
        %v2483 = vmul.f32 %v1426, 0.5
        %v2484 = vmul.f32 %v1707, 0.5
        %v2485 = vmul.f32 %v1709, 0.5
        %v2486 = vmul.f32 %v1990, 0.5
        %v2487 = vmul.f32 %v1992, 0.5
        %v2488 = vmul.f32 %v862, 0.5
        %v2489 = vmul.f32 %v864, 0.5
        %v2490 = vmul.f32 %v1145, 0.5
        %v2491 = vmul.f32 %v1147, 0.5
        %v2492 = vmul.f32 %v1428, 0.5
        %v2493 = vmul.f32 %v1430, 0.5
        %v2494 = vmul.f32 %v1711, 0.5
        %v2495 = vmul.f32 %v1713, 0.5
        %v2496 = vmul.f32 %v1994, 0.5
        %v2497 = vmul.f32 %v1996, 0.5
        %v2498 = vtanh.pop %v1998
        %v2499 = vtanh.pop %v1999
        %v2500 = vtanh.pop %v2000
        %v2501 = vtanh.pop %v2001
        %v2502 = vtanh.pop %v2002
        %v2503 = vtanh.pop %v2003
        %v2504 = vtanh.pop %v2004
        %v2505 = vtanh.pop %v2005
        %v2506 = vtanh.pop %v2006
        %v2507 = vtanh.pop %v2007
        %v2508 = vtanh.pop %v2008
        %v2509 = vtanh.pop %v2009
        %v2510 = vtanh.pop %v2010
        %v2511 = vtanh.pop %v2011
        %v2512 = vtanh.pop %v2012
        %v2513 = vtanh.pop %v2013
        %v2514 = vtanh.pop %v2014
        %v2515 = vtanh.pop %v2015
        %v2516 = vtanh.pop %v2016
        %v2517 = vtanh.pop %v2017
        %v2518 = vtanh.pop %v2018
        %v2519 = vtanh.pop %v2019
        %v2520 = vtanh.pop %v2020
        %v2521 = vtanh.pop %v2021
        %v2522 = vtanh.pop %v2022
        %v2523 = vtanh.pop %v2023
        %v2524 = vtanh.pop %v2024
        %v2525 = vtanh.pop %v2025
        %v2526 = vtanh.pop %v2026
        %v2527 = vtanh.pop %v2027
        %v2528 = vtanh.pop %v2028
        %v2529 = vtanh.pop %v2029
        %v2530 = vtanh.pop %v2030
        %v2531 = vtanh.pop %v2031
        %v2532 = vtanh.pop %v2032
        %v2533 = vtanh.pop %v2033
        %v2534 = vtanh.pop %v2034
        %v2535 = vtanh.pop %v2035
        %v2536 = vtanh.pop %v2036
        %v2537 = vtanh.pop %v2037
        %v2538 = vtanh.pop %v2038
        %v2539 = vtanh.pop %v2039
        %v2540 = vtanh.pop %v2040
        %v2541 = vtanh.pop %v2041
        %v2542 = vtanh.pop %v2042
        %v2543 = vtanh.pop %v2043
        %v2544 = vtanh.pop %v2044
        %v2545 = vtanh.pop %v2045
        %v2546 = vtanh.pop %v2046
        %v2547 = vtanh.pop %v2047
        %v2548 = vtanh.pop %v2048
        %v2549 = vtanh.pop %v2049
        %v2550 = vtanh.pop %v2050
        %v2551 = vtanh.pop %v2051
        %v2552 = vtanh.pop %v2052
        %v2553 = vtanh.pop %v2053
        %v2554 = vtanh.pop %v2054
        %v2555 = vtanh.pop %v2055
        %v2556 = vtanh.pop %v2056
        %v2557 = vtanh.pop %v2057
        %v2558 = vtanh.pop %v2058
        %v2559 = vtanh.pop %v2059
        %v2560 = vtanh.pop %v2060
        %v2561 = vtanh.pop %v2061
        %v2562 = vtanh.pop %v2062
        %v2563 = vtanh.pop %v2063
        %v2564 = vtanh.pop %v2064
        %v2565 = vtanh.pop %v2065
        %v2566 = vtanh.pop %v2066
        %v2567 = vtanh.pop %v2067
        %v2568 = vtanh.pop %v2068
        %v2569 = vtanh.pop %v2069
        %v2570 = vtanh.pop %v2070
        %v2571 = vtanh.pop %v2071
        %v2572 = vtanh.pop %v2072
        %v2573 = vtanh.pop %v2073
        %v2574 = vtanh.pop %v2074
        %v2575 = vtanh.pop %v2075
        %v2576 = vtanh.pop %v2076
        %v2577 = vtanh.pop %v2077
        %v2578 = vtanh.pop %v2078
        %v2579 = vtanh.pop %v2079
        %v2580 = vtanh.pop %v2080
        %v2581 = vtanh.pop %v2081
        %v2582 = vtanh.pop %v2082
        %v2583 = vtanh.pop %v2083
        %v2584 = vtanh.pop %v2084
        %v2585 = vtanh.pop %v2085
        %v2586 = vtanh.pop %v2086
        %v2587 = vtanh.pop %v2087
        %v2588 = vtanh.pop %v2088
        %v2589 = vtanh.pop %v2089
        %v2590 = vtanh.pop %v2090
        %v2591 = vtanh.pop %v2091
        %v2592 = vtanh.pop %v2092
        %v2593 = vtanh.pop %v2093
        %v2594 = vtanh.pop %v2094
        %v2595 = vtanh.pop %v2095
        %v2596 = vtanh.pop %v2096
        %v2597 = vtanh.pop %v2097
        %v2598 = vtanh.pop %v2098
        %v2599 = vtanh.pop %v2099
        %v2600 = vtanh.pop %v2100
        %v2601 = vtanh.pop %v2101
        %v2602 = vtanh.pop %v2102
        %v2603 = vtanh.pop %v2103
        %v2604 = vtanh.pop %v2104
        %v2605 = vtanh.pop %v2105
        %v2606 = vtanh.pop %v2106
        %v2607 = vtanh.pop %v2107
        %v2608 = vtanh.pop %v2108
        %v2609 = vtanh.pop %v2109
        %v2610 = vtanh.pop %v2110
        %v2611 = vtanh.pop %v2111
        %v2612 = vtanh.pop %v2112
        %v2613 = vtanh.pop %v2113
        %v2614 = vtanh.pop %v2114
        %v2615 = vtanh.pop %v2115
        %v2616 = vtanh.pop %v2116
        %v2617 = vtanh.pop %v2117
        %v2618 = vtanh.pop %v2118
        %v2619 = vtanh.pop %v2119
        %v2620 = vtanh.pop %v2120
        %v2621 = vtanh.pop %v2121
        %v2622 = vtanh.pop %v2122
        %v2623 = vtanh.pop %v2123
        %v2624 = vtanh.pop %v2124
        %v2625 = vtanh.pop %v2125
        %v2626 = vtanh.pop %v2126
        %v2627 = vtanh.pop %v2127
        %v2628 = vtanh.pop %v2128
        %v2629 = vtanh.pop %v2129
        %v2630 = vtanh.pop %v2130
        %v2631 = vtanh.pop %v2131
        %v2632 = vtanh.pop %v2132
        %v2633 = vtanh.pop %v2133
        %v2634 = vtanh.pop %v2134
        %v2635 = vtanh.pop %v2135
        %v2636 = vtanh.pop %v2136
        %v2637 = vtanh.pop %v2137
        %v2638 = vtanh.pop %v2138
        %v2639 = vtanh.pop %v2139
        %v2640 = vtanh.pop %v2140
        %v2641 = vtanh.pop %v2141
        %v2642 = vtanh.pop %v2142
        %v2643 = vtanh.pop %v2143
        %v2644 = vtanh.pop %v2144
        %v2645 = vtanh.pop %v2145
        %v2646 = vtanh.pop %v2146
        %v2647 = vtanh.pop %v2147
        %v2648 = vtanh.pop %v2148
        %v2649 = vtanh.pop %v2149
        %v2650 = vtanh.pop %v2150
        %v2651 = vtanh.pop %v2151
        %v2652 = vtanh.pop %v2152
        %v2653 = vtanh.pop %v2153
        %v2654 = vtanh.pop %v2154
        %v2655 = vtanh.pop %v2155
        %v2656 = vtanh.pop %v2156
        %v2657 = vtanh.pop %v2157
        %v2658 = vtanh.pop %v2158
        %v2659 = vtanh.pop %v2159
        %v2660 = vtanh.pop %v2160
        %v2661 = vtanh.pop %v2161
        %v2662 = vtanh.pop %v2162
        %v2663 = vtanh.pop %v2163
        %v2664 = vtanh.pop %v2164
        %v2665 = vtanh.pop %v2165
        %v2666 = vtanh.pop %v2166
        %v2667 = vtanh.pop %v2167
        %v2668 = vtanh.pop %v2168
        %v2669 = vtanh.pop %v2169
        %v2670 = vtanh.pop %v2170
        %v2671 = vtanh.pop %v2171
        %v2672 = vtanh.pop %v2172
        %v2673 = vtanh.pop %v2173
        %v2674 = vtanh.pop %v2174
        %v2675 = vtanh.pop %v2175
        %v2676 = vtanh.pop %v2176
        %v2677 = vtanh.pop %v2177
        %v2678 = vtanh.pop %v2178
        %v2679 = vtanh.pop %v2179
        %v2680 = vtanh.pop %v2180
        %v2681 = vtanh.pop %v2181
        %v2682 = vtanh.pop %v2182
        %v2683 = vtanh.pop %v2183
        %v2684 = vtanh.pop %v2184
        %v2685 = vtanh.pop %v2185
        %v2686 = vtanh.pop %v2186
        %v2687 = vtanh.pop %v2187
        %v2688 = vtanh.pop %v2188
        %v2689 = vtanh.pop %v2189
        %v2690 = vtanh.pop %v2190
        %v2691 = vtanh.pop %v2191
        %v2692 = vtanh.pop %v2192
        %v2693 = vtanh.pop %v2193
        %v2694 = vtanh.pop %v2194
        %v2695 = vtanh.pop %v2195
        %v2696 = vtanh.pop %v2196
        %v2697 = vtanh.pop %v2197
        %v2698 = vtanh.pop %v2198
        %v2699 = vtanh.pop %v2199
        %v2700 = vtanh.pop %v2200
        %v2701 = vtanh.pop %v2201
        %v2702 = vtanh.pop %v2202
        %v2703 = vtanh.pop %v2203
        %v2704 = vtanh.pop %v2204
        %v2705 = vtanh.pop %v2205
        %v2706 = vtanh.pop %v2206
        %v2707 = vtanh.pop %v2207
        %v2708 = vtanh.pop %v2208
        %v2709 = vtanh.pop %v2209
        %v2710 = vtanh.pop %v2210
        %v2711 = vtanh.pop %v2211
        %v2712 = vtanh.pop %v2212
        %v2713 = vtanh.pop %v2213
        %v2714 = vtanh.pop %v2214
        %v2715 = vtanh.pop %v2215
        %v2716 = vtanh.pop %v2216
        %v2717 = vtanh.pop %v2217
        %v2718 = vtanh.pop %v2218
        %v2719 = vtanh.pop %v2219
        %v2720 = vtanh.pop %v2220
        %v2721 = vtanh.pop %v2221
        %v2722 = vtanh.pop %v2222
        %v2723 = vtanh.pop %v2223
        %v2724 = vtanh.pop %v2224
        %v2725 = vtanh.pop %v2225
        %v2726 = vtanh.pop %v2226
        %v2727 = vtanh.pop %v2227
        %v2728 = vtanh.pop %v2228
        %v2729 = vtanh.pop %v2229
        %v2730 = vtanh.pop %v2230
        %v2731 = vtanh.pop %v2231
        %v2732 = vtanh.pop %v2232
        %v2733 = vtanh.pop %v2233
        %v2734 = vtanh.pop %v2234
        %v2735 = vtanh.pop %v2235
        %v2736 = vtanh.pop %v2236
        %v2737 = vtanh.pop %v2237
        %v2738 = vtanh.pop %v2238
        %v2739 = vtanh.pop %v2239
        %v2740 = vtanh.pop %v2240
        %v2741 = vtanh.pop %v2241
        %v2742 = vtanh.pop %v2242
        %v2743 = vtanh.pop %v2243
        %v2744 = vtanh.pop %v2244
        %v2745 = vtanh.pop %v2245
        %v2746 = vtanh.pop %v2246
        %v2747 = vtanh.pop %v2247
        %v2748 = vtanh.pop %v2248
        %v2749 = vtanh.pop %v2249
        %v2750 = vtanh.pop %v2250
        %v2751 = vtanh.pop %v2251
        %v2752 = vtanh.pop %v2252
        %v2753 = vtanh.pop %v2253
        %v2754 = vtanh.pop %v2254
        %v2755 = vtanh.pop %v2255
        %v2756 = vtanh.pop %v2256
        %v2757 = vtanh.pop %v2257
        %v2758 = vtanh.pop %v2258
        %v2759 = vtanh.pop %v2259
        %v2760 = vtanh.pop %v2260
        %v2761 = vtanh.pop %v2261
        %v2762 = vtanh.pop %v2262
        %v2763 = vtanh.pop %v2263
        %v2764 = vtanh.pop %v2264
        %v2765 = vtanh.pop %v2265
        %v2766 = vtanh.pop %v2266
        %v2767 = vtanh.pop %v2267
        %v2768 = vtanh.pop %v2268
        %v2769 = vtanh.pop %v2269
        %v2770 = vtanh.pop %v2270
        %v2771 = vtanh.pop %v2271
        %v2772 = vtanh.pop %v2272
        %v2773 = vtanh.pop %v2273
        %v2774 = vtanh.pop %v2274
        %v2775 = vtanh.pop %v2275
        %v2776 = vtanh.pop %v2276
        %v2777 = vtanh.pop %v2277
        %v2778 = vtanh.pop %v2278
        %v2779 = vtanh.pop %v2279
        %v2780 = vtanh.pop %v2280
        %v2781 = vtanh.pop %v2281
        %v2782 = vtanh.pop %v2282
        %v2783 = vtanh.pop %v2283
        %v2784 = vtanh.pop %v2284
        %v2785 = vtanh.pop %v2285
        %v2786 = vtanh.pop %v2286
        %v2787 = vtanh.pop %v2287
        %v2788 = vtanh.pop %v2288
        %v2789 = vtanh.pop %v2289
        %v2790 = vtanh.pop %v2290
        %v2791 = vtanh.pop %v2291
        %v2792 = vtanh.pop %v2292
        %v2793 = vtanh.pop %v2293
        %v2794 = vtanh.pop %v2294
        %v2795 = vtanh.pop %v2295
        %v2796 = vtanh.pop %v2296
        %v2797 = vtanh.pop %v2297
        %v2798 = vtanh.pop %v2298
        %v2799 = vtanh.pop %v2299
        %v2800 = vtanh.pop %v2300
        %v2801 = vtanh.pop %v2301
        %v2802 = vtanh.pop %v2302
        %v2803 = vtanh.pop %v2303
        %v2804 = vtanh.pop %v2304
        %v2805 = vtanh.pop %v2305
        %v2806 = vtanh.pop %v2306
        %v2807 = vtanh.pop %v2307
        %v2808 = vtanh.pop %v2308
        %v2809 = vtanh.pop %v2309
        %v2810 = vtanh.pop %v2310
        %v2811 = vtanh.pop %v2311
        %v2812 = vtanh.pop %v2312
        %v2813 = vtanh.pop %v2313
        %v2814 = vtanh.pop %v2314
        %v2815 = vtanh.pop %v2315
        %v2816 = vtanh.pop %v2316
        %v2817 = vtanh.pop %v2317
        %v2818 = vtanh.pop %v2318
        %v2819 = vtanh.pop %v2319
        %v2820 = vtanh.pop %v2320
        %v2821 = vtanh.pop %v2321
        %v2822 = vtanh.pop %v2322
        %v2823 = vtanh.pop %v2323
        %v2824 = vtanh.pop %v2324
        %v2825 = vtanh.pop %v2325
        %v2826 = vtanh.pop %v2326
        %v2827 = vtanh.pop %v2327
        %v2828 = vtanh.pop %v2328
        %v2829 = vtanh.pop %v2329
        %v2830 = vtanh.pop %v2330
        %v2831 = vtanh.pop %v2331
        %v2832 = vtanh.pop %v2332
        %v2833 = vtanh.pop %v2333
        %v2834 = vtanh.pop %v2334
        %v2835 = vtanh.pop %v2335
        %v2836 = vtanh.pop %v2336
        %v2837 = vtanh.pop %v2337
        %v2838 = vtanh.pop %v2338
        %v2839 = vtanh.pop %v2339
        %v2840 = vtanh.pop %v2340
        %v2841 = vtanh.pop %v2341
        %v2842 = vtanh.pop %v2342
        %v2843 = vtanh.pop %v2343
        %v2844 = vtanh.pop %v2344
        %v2845 = vtanh.pop %v2345
        %v2846 = vtanh.pop %v2346
        %v2847 = vtanh.pop %v2347
        %v2848 = vtanh.pop %v2348
        %v2849 = vtanh.pop %v2349
        %v2850 = vtanh.pop %v2350
        %v2851 = vtanh.pop %v2351
        %v2852 = vtanh.pop %v2352
        %v2853 = vtanh.pop %v2353
        %v2854 = vtanh.pop %v2354
        %v2855 = vtanh.pop %v2355
        %v2856 = vtanh.pop %v2356
        %v2857 = vtanh.pop %v2357
        %v2858 = vtanh.pop %v2358
        %v2859 = vtanh.pop %v2359
        %v2860 = vtanh.pop %v2360
        %v2861 = vtanh.pop %v2361
        %v2862 = vtanh.pop %v2362
        %v2863 = vtanh.pop %v2363
        %v2864 = vtanh.pop %v2364
        %v2865 = vtanh.pop %v2365
        %v2866 = vtanh.pop %v2366
        %v2867 = vtanh.pop %v2367
        %v2868 = vtanh.pop %v2368
        %v2869 = vtanh.pop %v2369
        %v2870 = vtanh.pop %v2370
        %v2871 = vtanh.pop %v2371
        %v2872 = vtanh.pop %v2372
        %v2873 = vtanh.pop %v2373
        %v2874 = vtanh.pop %v2374
        %v2875 = vtanh.pop %v2375
        %v2876 = vtanh.pop %v2376
        %v2877 = vtanh.pop %v2377
        %v2878 = vtanh.pop %v2378
        %v2879 = vtanh.pop %v2379
        %v2880 = vtanh.pop %v2380
        %v2881 = vtanh.pop %v2381
        %v2882 = vtanh.pop %v2382
        %v2883 = vtanh.pop %v2383
        %v2884 = vtanh.pop %v2384
        %v2885 = vtanh.pop %v2385
        %v2886 = vtanh.pop %v2386
        %v2887 = vtanh.pop %v2387
        %v2888 = vtanh.pop %v2388
        %v2889 = vtanh.pop %v2389
        %v2890 = vtanh.pop %v2390
        %v2891 = vtanh.pop %v2391
        %v2892 = vtanh.pop %v2392
        %v2893 = vtanh.pop %v2393
        %v2894 = vtanh.pop %v2394
        %v2895 = vtanh.pop %v2395
        %v2896 = vtanh.pop %v2396
        %v2897 = vtanh.pop %v2397
        %v2898 = vtanh.pop %v2398
        %v2899 = vtanh.pop %v2399
        %v2900 = vtanh.pop %v2400
        %v2901 = vtanh.pop %v2401
        %v2902 = vtanh.pop %v2402
        %v2903 = vtanh.pop %v2403
        %v2904 = vtanh.pop %v2404
        %v2905 = vtanh.pop %v2405
        %v2906 = vtanh.pop %v2406
        %v2907 = vtanh.pop %v2407
        %v2908 = vtanh.pop %v2408
        %v2909 = vtanh.pop %v2409
        %v2910 = vtanh.pop %v2410
        %v2911 = vtanh.pop %v2411
        %v2912 = vtanh.pop %v2412
        %v2913 = vtanh.pop %v2413
        %v2914 = vtanh.pop %v2414
        %v2915 = vtanh.pop %v2415
        %v2916 = vtanh.pop %v2416
        %v2917 = vtanh.pop %v2417
        %v2918 = vtanh.pop %v2418
        %v2919 = vtanh.pop %v2419
        %v2920 = vtanh.pop %v2420
        %v2921 = vtanh.pop %v2421
        %v2922 = vtanh.pop %v2422
        %v2923 = vtanh.pop %v2423
        %v2924 = vtanh.pop %v2424
        %v2925 = vtanh.pop %v2425
        %v2926 = vtanh.pop %v2426
        %v2927 = vtanh.pop %v2427
        %v2928 = vtanh.pop %v2428
        %v2929 = vtanh.pop %v2429
        %v2930 = vtanh.pop %v2430
        %v2931 = vtanh.pop %v2431
        %v2932 = vtanh.pop %v2432
        %v2933 = vtanh.pop %v2433
        %v2934 = vtanh.pop %v2434
        %v2935 = vtanh.pop %v2435
        %v2936 = vtanh.pop %v2436
        %v2937 = vtanh.pop %v2437
        %v2938 = vtanh.pop %v2438
        %v2939 = vtanh.pop %v2439
        %v2940 = vtanh.pop %v2440
        %v2941 = vtanh.pop %v2441
        %v2942 = vtanh.pop %v2442
        %v2943 = vtanh.pop %v2443
        %v2944 = vtanh.pop %v2444
        %v2945 = vtanh.pop %v2445
        %v2946 = vtanh.pop %v2446
        %v2947 = vtanh.pop %v2447
        %v2948 = vtanh.pop %v2448
        %v2949 = vtanh.pop %v2449
        %v2950 = vtanh.pop %v2450
        %v2951 = vtanh.pop %v2451
        %v2952 = vtanh.pop %v2452
        %v2953 = vtanh.pop %v2453
        %v2954 = vtanh.pop %v2454
        %v2955 = vtanh.pop %v2455
        %v2956 = vtanh.pop %v2456
        %v2957 = vtanh.pop %v2457
        %v2958 = vtanh.pop %v2458
        %v2959 = vtanh.pop %v2459
        %v2960 = vtanh.pop %v2460
        %v2961 = vtanh.pop %v2461
        %v2962 = vtanh.pop %v2462
        %v2963 = vtanh.pop %v2463
        %v2964 = vtanh.pop %v2464
        %v2965 = vtanh.pop %v2465
        %v2966 = vtanh.pop %v2466
        %v2967 = vtanh.pop %v2467
        %v2968 = vtanh.pop %v2468
        %v2969 = vtanh.pop %v2469
        %v2970 = vtanh.pop %v2470
        %v2971 = vtanh.pop %v2471
        %v2972 = vtanh.pop %v2472
        %v2973 = vtanh.pop %v2473
        %v2974 = vtanh.pop %v2474
        %v2975 = vtanh.pop %v2475
        %v2976 = vtanh.pop %v2476
        %v2977 = vtanh.pop %v2477
        %v2978 = vtanh.pop %v2478
        %v2979 = vtanh.pop %v2479
        %v2980 = vtanh.pop %v2480
        %v2981 = vtanh.pop %v2481
        %v2982 = vtanh.pop %v2482
        %v2983 = vtanh.pop %v2483
        %v2984 = vtanh.pop %v2484
        %v2985 = vtanh.pop %v2485
        %v2986 = vtanh.pop %v2486
        %v2987 = vtanh.pop %v2487
        %v2988 = vtanh.pop %v2488
        %v2989 = vtanh.pop %v2489
        %v2990 = vtanh.pop %v2490
        %v2991 = vtanh.pop %v2491
        %v2992 = vtanh.pop %v2492
        %v2993 = vtanh.pop %v2493
        %v2994 = vtanh.pop %v2494
        %v2995 = vtanh.pop %v2495
        %v2996 = vtanh.pop %v2496
        %v2997 = vtanh.pop %v2497
        %v2998 = vadd.f32 %v2498, 1.0
        %v2999 = vadd.f32 %v2499, 1.0
        %v3000 = vadd.f32 %v2500, 1.0
        %v3001 = vadd.f32 %v2501, 1.0
        %v3002 = vadd.f32 %v2502, 1.0
        %v3003 = vadd.f32 %v2503, 1.0
        %v3004 = vadd.f32 %v2504, 1.0
        %v3005 = vadd.f32 %v2505, 1.0
        %v3006 = vadd.f32 %v2506, 1.0
        %v3007 = vadd.f32 %v2507, 1.0
        %v3008 = vadd.f32 %v2508, 1.0
        %v3009 = vadd.f32 %v2509, 1.0
        %v3010 = vadd.f32 %v2510, 1.0
        %v3011 = vadd.f32 %v2511, 1.0
        %v3012 = vadd.f32 %v2512, 1.0
        %v3013 = vadd.f32 %v2513, 1.0
        %v3014 = vadd.f32 %v2514, 1.0
        %v3015 = vadd.f32 %v2515, 1.0
        %v3016 = vadd.f32 %v2516, 1.0
        %v3017 = vadd.f32 %v2517, 1.0
        %v3018 = vadd.f32 %v2518, 1.0
        %v3019 = vadd.f32 %v2519, 1.0
        %v3020 = vadd.f32 %v2520, 1.0
        %v3021 = vadd.f32 %v2521, 1.0
        %v3022 = vadd.f32 %v2522, 1.0
        %v3023 = vadd.f32 %v2523, 1.0
        %v3024 = vadd.f32 %v2524, 1.0
        %v3025 = vadd.f32 %v2525, 1.0
        %v3026 = vadd.f32 %v2526, 1.0
        %v3027 = vadd.f32 %v2527, 1.0
        %v3028 = vadd.f32 %v2528, 1.0
        %v3029 = vadd.f32 %v2529, 1.0
        %v3030 = vadd.f32 %v2530, 1.0
        %v3031 = vadd.f32 %v2531, 1.0
        %v3032 = vadd.f32 %v2532, 1.0
        %v3033 = vadd.f32 %v2533, 1.0
        %v3034 = vadd.f32 %v2534, 1.0
        %v3035 = vadd.f32 %v2535, 1.0
        %v3036 = vadd.f32 %v2536, 1.0
        %v3037 = vadd.f32 %v2537, 1.0
        %v3038 = vadd.f32 %v2538, 1.0
        %v3039 = vadd.f32 %v2539, 1.0
        %v3040 = vadd.f32 %v2540, 1.0
        %v3041 = vadd.f32 %v2541, 1.0
        %v3042 = vadd.f32 %v2542, 1.0
        %v3043 = vadd.f32 %v2543, 1.0
        %v3044 = vadd.f32 %v2544, 1.0
        %v3045 = vadd.f32 %v2545, 1.0
        %v3046 = vadd.f32 %v2546, 1.0
        %v3047 = vadd.f32 %v2547, 1.0
        %v3048 = vadd.f32 %v2548, 1.0
        %v3049 = vadd.f32 %v2549, 1.0
        %v3050 = vadd.f32 %v2550, 1.0
        %v3051 = vadd.f32 %v2551, 1.0
        %v3052 = vadd.f32 %v2552, 1.0
        %v3053 = vadd.f32 %v2553, 1.0
        %v3054 = vadd.f32 %v2554, 1.0
        %v3055 = vadd.f32 %v2555, 1.0
        %v3056 = vadd.f32 %v2556, 1.0
        %v3057 = vadd.f32 %v2557, 1.0
        %v3058 = vadd.f32 %v2558, 1.0
        %v3059 = vadd.f32 %v2559, 1.0
        %v3060 = vadd.f32 %v2560, 1.0
        %v3061 = vadd.f32 %v2561, 1.0
        %v3062 = vadd.f32 %v2562, 1.0
        %v3063 = vadd.f32 %v2563, 1.0
        %v3064 = vadd.f32 %v2564, 1.0
        %v3065 = vadd.f32 %v2565, 1.0
        %v3066 = vadd.f32 %v2566, 1.0
        %v3067 = vadd.f32 %v2567, 1.0
        %v3068 = vadd.f32 %v2568, 1.0
        %v3069 = vadd.f32 %v2569, 1.0
        %v3070 = vadd.f32 %v2570, 1.0
        %v3071 = vadd.f32 %v2571, 1.0
        %v3072 = vadd.f32 %v2572, 1.0
        %v3073 = vadd.f32 %v2573, 1.0
        %v3074 = vadd.f32 %v2574, 1.0
        %v3075 = vadd.f32 %v2575, 1.0
        %v3076 = vadd.f32 %v2576, 1.0
        %v3077 = vadd.f32 %v2577, 1.0
        %v3078 = vadd.f32 %v2578, 1.0
        %v3079 = vadd.f32 %v2579, 1.0
        %v3080 = vadd.f32 %v2580, 1.0
        %v3081 = vadd.f32 %v2581, 1.0
        %v3082 = vadd.f32 %v2582, 1.0
        %v3083 = vadd.f32 %v2583, 1.0
        %v3084 = vadd.f32 %v2584, 1.0
        %v3085 = vadd.f32 %v2585, 1.0
        %v3086 = vadd.f32 %v2586, 1.0
        %v3087 = vadd.f32 %v2587, 1.0
        %v3088 = vadd.f32 %v2588, 1.0
        %v3089 = vadd.f32 %v2589, 1.0
        %v3090 = vadd.f32 %v2590, 1.0
        %v3091 = vadd.f32 %v2591, 1.0
        %v3092 = vadd.f32 %v2592, 1.0
        %v3093 = vadd.f32 %v2593, 1.0
        %v3094 = vadd.f32 %v2594, 1.0
        %v3095 = vadd.f32 %v2595, 1.0
        %v3096 = vadd.f32 %v2596, 1.0
        %v3097 = vadd.f32 %v2597, 1.0
        %v3098 = vadd.f32 %v2598, 1.0
        %v3099 = vadd.f32 %v2599, 1.0
        %v3100 = vadd.f32 %v2600, 1.0
        %v3101 = vadd.f32 %v2601, 1.0
        %v3102 = vadd.f32 %v2602, 1.0
        %v3103 = vadd.f32 %v2603, 1.0
        %v3104 = vadd.f32 %v2604, 1.0
        %v3105 = vadd.f32 %v2605, 1.0
        %v3106 = vadd.f32 %v2606, 1.0
        %v3107 = vadd.f32 %v2607, 1.0
        %v3108 = vadd.f32 %v2608, 1.0
        %v3109 = vadd.f32 %v2609, 1.0
        %v3110 = vadd.f32 %v2610, 1.0
        %v3111 = vadd.f32 %v2611, 1.0
        %v3112 = vadd.f32 %v2612, 1.0
        %v3113 = vadd.f32 %v2613, 1.0
        %v3114 = vadd.f32 %v2614, 1.0
        %v3115 = vadd.f32 %v2615, 1.0
        %v3116 = vadd.f32 %v2616, 1.0
        %v3117 = vadd.f32 %v2617, 1.0
        %v3118 = vadd.f32 %v2618, 1.0
        %v3119 = vadd.f32 %v2619, 1.0
        %v3120 = vadd.f32 %v2620, 1.0
        %v3121 = vadd.f32 %v2621, 1.0
        %v3122 = vadd.f32 %v2622, 1.0
        %v3123 = vadd.f32 %v2623, 1.0
        %v3124 = vadd.f32 %v2624, 1.0
        %v3125 = vadd.f32 %v2625, 1.0
        %v3126 = vadd.f32 %v2626, 1.0
        %v3127 = vadd.f32 %v2627, 1.0
        %v3128 = vadd.f32 %v2628, 1.0
        %v3129 = vadd.f32 %v2629, 1.0
        %v3130 = vadd.f32 %v2630, 1.0
        %v3131 = vadd.f32 %v2631, 1.0
        %v3132 = vadd.f32 %v2632, 1.0
        %v3133 = vadd.f32 %v2633, 1.0
        %v3134 = vadd.f32 %v2634, 1.0
        %v3135 = vadd.f32 %v2635, 1.0
        %v3136 = vadd.f32 %v2636, 1.0
        %v3137 = vadd.f32 %v2637, 1.0
        %v3138 = vadd.f32 %v2638, 1.0
        %v3139 = vadd.f32 %v2639, 1.0
        %v3140 = vadd.f32 %v2640, 1.0
        %v3141 = vadd.f32 %v2641, 1.0
        %v3142 = vadd.f32 %v2642, 1.0
        %v3143 = vadd.f32 %v2643, 1.0
        %v3144 = vadd.f32 %v2644, 1.0
        %v3145 = vadd.f32 %v2645, 1.0
        %v3146 = vadd.f32 %v2646, 1.0
        %v3147 = vadd.f32 %v2647, 1.0
        %v3148 = vadd.f32 %v2648, 1.0
        %v3149 = vadd.f32 %v2649, 1.0
        %v3150 = vadd.f32 %v2650, 1.0
        %v3151 = vadd.f32 %v2651, 1.0
        %v3152 = vadd.f32 %v2652, 1.0
        %v3153 = vadd.f32 %v2653, 1.0
        %v3154 = vadd.f32 %v2654, 1.0
        %v3155 = vadd.f32 %v2655, 1.0
        %v3156 = vadd.f32 %v2656, 1.0
        %v3157 = vadd.f32 %v2657, 1.0
        %v3158 = vadd.f32 %v2658, 1.0
        %v3159 = vadd.f32 %v2659, 1.0
        %v3160 = vadd.f32 %v2660, 1.0
        %v3161 = vadd.f32 %v2661, 1.0
        %v3162 = vadd.f32 %v2662, 1.0
        %v3163 = vadd.f32 %v2663, 1.0
        %v3164 = vadd.f32 %v2664, 1.0
        %v3165 = vadd.f32 %v2665, 1.0
        %v3166 = vadd.f32 %v2666, 1.0
        %v3167 = vadd.f32 %v2667, 1.0
        %v3168 = vadd.f32 %v2668, 1.0
        %v3169 = vadd.f32 %v2669, 1.0
        %v3170 = vadd.f32 %v2670, 1.0
        %v3171 = vadd.f32 %v2671, 1.0
        %v3172 = vadd.f32 %v2672, 1.0
        %v3173 = vadd.f32 %v2673, 1.0
        %v3174 = vadd.f32 %v2674, 1.0
        %v3175 = vadd.f32 %v2675, 1.0
        %v3176 = vadd.f32 %v2676, 1.0
        %v3177 = vadd.f32 %v2677, 1.0
        %v3178 = vadd.f32 %v2678, 1.0
        %v3179 = vadd.f32 %v2679, 1.0
        %v3180 = vadd.f32 %v2680, 1.0
        %v3181 = vadd.f32 %v2681, 1.0
        %v3182 = vadd.f32 %v2682, 1.0
        %v3183 = vadd.f32 %v2683, 1.0
        %v3184 = vadd.f32 %v2684, 1.0
        %v3185 = vadd.f32 %v2685, 1.0
        %v3186 = vadd.f32 %v2686, 1.0
        %v3187 = vadd.f32 %v2687, 1.0
        %v3188 = vadd.f32 %v2688, 1.0
        %v3189 = vadd.f32 %v2689, 1.0
        %v3190 = vadd.f32 %v2690, 1.0
        %v3191 = vadd.f32 %v2691, 1.0
        %v3192 = vadd.f32 %v2692, 1.0
        %v3193 = vadd.f32 %v2693, 1.0
        %v3194 = vadd.f32 %v2694, 1.0
        %v3195 = vadd.f32 %v2695, 1.0
        %v3196 = vadd.f32 %v2696, 1.0
        %v3197 = vadd.f32 %v2697, 1.0
        %v3198 = vadd.f32 %v2698, 1.0
        %v3199 = vadd.f32 %v2699, 1.0
        %v3200 = vadd.f32 %v2700, 1.0
        %v3201 = vadd.f32 %v2701, 1.0
        %v3202 = vadd.f32 %v2702, 1.0
        %v3203 = vadd.f32 %v2703, 1.0
        %v3204 = vadd.f32 %v2704, 1.0
        %v3205 = vadd.f32 %v2705, 1.0
        %v3206 = vadd.f32 %v2706, 1.0
        %v3207 = vadd.f32 %v2707, 1.0
        %v3208 = vadd.f32 %v2708, 1.0
        %v3209 = vadd.f32 %v2709, 1.0
        %v3210 = vadd.f32 %v2710, 1.0
        %v3211 = vadd.f32 %v2711, 1.0
        %v3212 = vadd.f32 %v2712, 1.0
        %v3213 = vadd.f32 %v2713, 1.0
        %v3214 = vadd.f32 %v2714, 1.0
        %v3215 = vadd.f32 %v2715, 1.0
        %v3216 = vadd.f32 %v2716, 1.0
        %v3217 = vadd.f32 %v2717, 1.0
        %v3218 = vadd.f32 %v2718, 1.0
        %v3219 = vadd.f32 %v2719, 1.0
        %v3220 = vadd.f32 %v2720, 1.0
        %v3221 = vadd.f32 %v2721, 1.0
        %v3222 = vadd.f32 %v2722, 1.0
        %v3223 = vadd.f32 %v2723, 1.0
        %v3224 = vadd.f32 %v2724, 1.0
        %v3225 = vadd.f32 %v2725, 1.0
        %v3226 = vadd.f32 %v2726, 1.0
        %v3227 = vadd.f32 %v2727, 1.0
        %v3228 = vadd.f32 %v2728, 1.0
        %v3229 = vadd.f32 %v2729, 1.0
        %v3230 = vadd.f32 %v2730, 1.0
        %v3231 = vadd.f32 %v2731, 1.0
        %v3232 = vadd.f32 %v2732, 1.0
        %v3233 = vadd.f32 %v2733, 1.0
        %v3234 = vadd.f32 %v2734, 1.0
        %v3235 = vadd.f32 %v2735, 1.0
        %v3236 = vadd.f32 %v2736, 1.0
        %v3237 = vadd.f32 %v2737, 1.0
        %v3238 = vadd.f32 %v2738, 1.0
        %v3239 = vadd.f32 %v2739, 1.0
        %v3240 = vadd.f32 %v2740, 1.0
        %v3241 = vadd.f32 %v2741, 1.0
        %v3242 = vadd.f32 %v2742, 1.0
        %v3243 = vadd.f32 %v2743, 1.0
        %v3244 = vadd.f32 %v2744, 1.0
        %v3245 = vadd.f32 %v2745, 1.0
        %v3246 = vadd.f32 %v2746, 1.0
        %v3247 = vadd.f32 %v2747, 1.0
        %v3248 = vadd.f32 %v2748, 1.0
        %v3249 = vadd.f32 %v2749, 1.0
        %v3250 = vadd.f32 %v2750, 1.0
        %v3251 = vadd.f32 %v2751, 1.0
        %v3252 = vadd.f32 %v2752, 1.0
        %v3253 = vadd.f32 %v2753, 1.0
        %v3254 = vadd.f32 %v2754, 1.0
        %v3255 = vadd.f32 %v2755, 1.0
        %v3256 = vadd.f32 %v2756, 1.0
        %v3257 = vadd.f32 %v2757, 1.0
        %v3258 = vadd.f32 %v2758, 1.0
        %v3259 = vadd.f32 %v2759, 1.0
        %v3260 = vadd.f32 %v2760, 1.0
        %v3261 = vadd.f32 %v2761, 1.0
        %v3262 = vadd.f32 %v2762, 1.0
        %v3263 = vadd.f32 %v2763, 1.0
        %v3264 = vadd.f32 %v2764, 1.0
        %v3265 = vadd.f32 %v2765, 1.0
        %v3266 = vadd.f32 %v2766, 1.0
        %v3267 = vadd.f32 %v2767, 1.0
        %v3268 = vadd.f32 %v2768, 1.0
        %v3269 = vadd.f32 %v2769, 1.0
        %v3270 = vadd.f32 %v2770, 1.0
        %v3271 = vadd.f32 %v2771, 1.0
        %v3272 = vadd.f32 %v2772, 1.0
        %v3273 = vadd.f32 %v2773, 1.0
        %v3274 = vadd.f32 %v2774, 1.0
        %v3275 = vadd.f32 %v2775, 1.0
        %v3276 = vadd.f32 %v2776, 1.0
        %v3277 = vadd.f32 %v2777, 1.0
        %v3278 = vadd.f32 %v2778, 1.0
        %v3279 = vadd.f32 %v2779, 1.0
        %v3280 = vadd.f32 %v2780, 1.0
        %v3281 = vadd.f32 %v2781, 1.0
        %v3282 = vadd.f32 %v2782, 1.0
        %v3283 = vadd.f32 %v2783, 1.0
        %v3284 = vadd.f32 %v2784, 1.0
        %v3285 = vadd.f32 %v2785, 1.0
        %v3286 = vadd.f32 %v2786, 1.0
        %v3287 = vadd.f32 %v2787, 1.0
        %v3288 = vadd.f32 %v2788, 1.0
        %v3289 = vadd.f32 %v2789, 1.0
        %v3290 = vadd.f32 %v2790, 1.0
        %v3291 = vadd.f32 %v2791, 1.0
        %v3292 = vadd.f32 %v2792, 1.0
        %v3293 = vadd.f32 %v2793, 1.0
        %v3294 = vadd.f32 %v2794, 1.0
        %v3295 = vadd.f32 %v2795, 1.0
        %v3296 = vadd.f32 %v2796, 1.0
        %v3297 = vadd.f32 %v2797, 1.0
        %v3298 = vadd.f32 %v2798, 1.0
        %v3299 = vadd.f32 %v2799, 1.0
        %v3300 = vadd.f32 %v2800, 1.0
        %v3301 = vadd.f32 %v2801, 1.0
        %v3302 = vadd.f32 %v2802, 1.0
        %v3303 = vadd.f32 %v2803, 1.0
        %v3304 = vadd.f32 %v2804, 1.0
        %v3305 = vadd.f32 %v2805, 1.0
        %v3306 = vadd.f32 %v2806, 1.0
        %v3307 = vadd.f32 %v2807, 1.0
        %v3308 = vadd.f32 %v2808, 1.0
        %v3309 = vadd.f32 %v2809, 1.0
        %v3310 = vadd.f32 %v2810, 1.0
        %v3311 = vadd.f32 %v2811, 1.0
        %v3312 = vadd.f32 %v2812, 1.0
        %v3313 = vadd.f32 %v2813, 1.0
        %v3314 = vadd.f32 %v2814, 1.0
        %v3315 = vadd.f32 %v2815, 1.0
        %v3316 = vadd.f32 %v2816, 1.0
        %v3317 = vadd.f32 %v2817, 1.0
        %v3318 = vadd.f32 %v2818, 1.0
        %v3319 = vadd.f32 %v2819, 1.0
        %v3320 = vadd.f32 %v2820, 1.0
        %v3321 = vadd.f32 %v2821, 1.0
        %v3322 = vadd.f32 %v2822, 1.0
        %v3323 = vadd.f32 %v2823, 1.0
        %v3324 = vadd.f32 %v2824, 1.0
        %v3325 = vadd.f32 %v2825, 1.0
        %v3326 = vadd.f32 %v2826, 1.0
        %v3327 = vadd.f32 %v2827, 1.0
        %v3328 = vadd.f32 %v2828, 1.0
        %v3329 = vadd.f32 %v2829, 1.0
        %v3330 = vadd.f32 %v2830, 1.0
        %v3331 = vadd.f32 %v2831, 1.0
        %v3332 = vadd.f32 %v2832, 1.0
        %v3333 = vadd.f32 %v2833, 1.0
        %v3334 = vadd.f32 %v2834, 1.0
        %v3335 = vadd.f32 %v2835, 1.0
        %v3336 = vadd.f32 %v2836, 1.0
        %v3337 = vadd.f32 %v2837, 1.0
        %v3338 = vadd.f32 %v2838, 1.0
        %v3339 = vadd.f32 %v2839, 1.0
        %v3340 = vadd.f32 %v2840, 1.0
        %v3341 = vadd.f32 %v2841, 1.0
        %v3342 = vadd.f32 %v2842, 1.0
        %v3343 = vadd.f32 %v2843, 1.0
        %v3344 = vadd.f32 %v2844, 1.0
        %v3345 = vadd.f32 %v2845, 1.0
        %v3346 = vadd.f32 %v2846, 1.0
        %v3347 = vadd.f32 %v2847, 1.0
        %v3348 = vadd.f32 %v2848, 1.0
        %v3349 = vadd.f32 %v2849, 1.0
        %v3350 = vadd.f32 %v2850, 1.0
        %v3351 = vadd.f32 %v2851, 1.0
        %v3352 = vadd.f32 %v2852, 1.0
        %v3353 = vadd.f32 %v2853, 1.0
        %v3354 = vadd.f32 %v2854, 1.0
        %v3355 = vadd.f32 %v2855, 1.0
        %v3356 = vadd.f32 %v2856, 1.0
        %v3357 = vadd.f32 %v2857, 1.0
        %v3358 = vadd.f32 %v2858, 1.0
        %v3359 = vadd.f32 %v2859, 1.0
        %v3360 = vadd.f32 %v2860, 1.0
        %v3361 = vadd.f32 %v2861, 1.0
        %v3362 = vadd.f32 %v2862, 1.0
        %v3363 = vadd.f32 %v2863, 1.0
        %v3364 = vadd.f32 %v2864, 1.0
        %v3365 = vadd.f32 %v2865, 1.0
        %v3366 = vadd.f32 %v2866, 1.0
        %v3367 = vadd.f32 %v2867, 1.0
        %v3368 = vadd.f32 %v2868, 1.0
        %v3369 = vadd.f32 %v2869, 1.0
        %v3370 = vadd.f32 %v2870, 1.0
        %v3371 = vadd.f32 %v2871, 1.0
        %v3372 = vadd.f32 %v2872, 1.0
        %v3373 = vadd.f32 %v2873, 1.0
        %v3374 = vadd.f32 %v2874, 1.0
        %v3375 = vadd.f32 %v2875, 1.0
        %v3376 = vadd.f32 %v2876, 1.0
        %v3377 = vadd.f32 %v2877, 1.0
        %v3378 = vadd.f32 %v2878, 1.0
        %v3379 = vadd.f32 %v2879, 1.0
        %v3380 = vadd.f32 %v2880, 1.0
        %v3381 = vadd.f32 %v2881, 1.0
        %v3382 = vadd.f32 %v2882, 1.0
        %v3383 = vadd.f32 %v2883, 1.0
        %v3384 = vadd.f32 %v2884, 1.0
        %v3385 = vadd.f32 %v2885, 1.0
        %v3386 = vadd.f32 %v2886, 1.0
        %v3387 = vadd.f32 %v2887, 1.0
        %v3388 = vadd.f32 %v2888, 1.0
        %v3389 = vadd.f32 %v2889, 1.0
        %v3390 = vadd.f32 %v2890, 1.0
        %v3391 = vadd.f32 %v2891, 1.0
        %v3392 = vadd.f32 %v2892, 1.0
        %v3393 = vadd.f32 %v2893, 1.0
        %v3394 = vadd.f32 %v2894, 1.0
        %v3395 = vadd.f32 %v2895, 1.0
        %v3396 = vadd.f32 %v2896, 1.0
        %v3397 = vadd.f32 %v2897, 1.0
        %v3398 = vadd.f32 %v2898, 1.0
        %v3399 = vadd.f32 %v2899, 1.0
        %v3400 = vadd.f32 %v2900, 1.0
        %v3401 = vadd.f32 %v2901, 1.0
        %v3402 = vadd.f32 %v2902, 1.0
        %v3403 = vadd.f32 %v2903, 1.0
        %v3404 = vadd.f32 %v2904, 1.0
        %v3405 = vadd.f32 %v2905, 1.0
        %v3406 = vadd.f32 %v2906, 1.0
        %v3407 = vadd.f32 %v2907, 1.0
        %v3408 = vadd.f32 %v2908, 1.0
        %v3409 = vadd.f32 %v2909, 1.0
        %v3410 = vadd.f32 %v2910, 1.0
        %v3411 = vadd.f32 %v2911, 1.0
        %v3412 = vadd.f32 %v2912, 1.0
        %v3413 = vadd.f32 %v2913, 1.0
        %v3414 = vadd.f32 %v2914, 1.0
        %v3415 = vadd.f32 %v2915, 1.0
        %v3416 = vadd.f32 %v2916, 1.0
        %v3417 = vadd.f32 %v2917, 1.0
        %v3418 = vadd.f32 %v2918, 1.0
        %v3419 = vadd.f32 %v2919, 1.0
        %v3420 = vadd.f32 %v2920, 1.0
        %v3421 = vadd.f32 %v2921, 1.0
        %v3422 = vadd.f32 %v2922, 1.0
        %v3423 = vadd.f32 %v2923, 1.0
        %v3424 = vadd.f32 %v2924, 1.0
        %v3425 = vadd.f32 %v2925, 1.0
        %v3426 = vadd.f32 %v2926, 1.0
        %v3427 = vadd.f32 %v2927, 1.0
        %v3428 = vadd.f32 %v2928, 1.0
        %v3429 = vadd.f32 %v2929, 1.0
        %v3430 = vadd.f32 %v2930, 1.0
        %v3431 = vadd.f32 %v2931, 1.0
        %v3432 = vadd.f32 %v2932, 1.0
        %v3433 = vadd.f32 %v2933, 1.0
        %v3434 = vadd.f32 %v2934, 1.0
        %v3435 = vadd.f32 %v2935, 1.0
        %v3436 = vadd.f32 %v2936, 1.0
        %v3437 = vadd.f32 %v2937, 1.0
        %v3438 = vadd.f32 %v2938, 1.0
        %v3439 = vadd.f32 %v2939, 1.0
        %v3440 = vadd.f32 %v2940, 1.0
        %v3441 = vadd.f32 %v2941, 1.0
        %v3442 = vadd.f32 %v2942, 1.0
        %v3443 = vadd.f32 %v2943, 1.0
        %v3444 = vadd.f32 %v2944, 1.0
        %v3445 = vadd.f32 %v2945, 1.0
        %v3446 = vadd.f32 %v2946, 1.0
        %v3447 = vadd.f32 %v2947, 1.0
        %v3448 = vadd.f32 %v2948, 1.0
        %v3449 = vadd.f32 %v2949, 1.0
        %v3450 = vadd.f32 %v2950, 1.0
        %v3451 = vadd.f32 %v2951, 1.0
        %v3452 = vadd.f32 %v2952, 1.0
        %v3453 = vadd.f32 %v2953, 1.0
        %v3454 = vadd.f32 %v2954, 1.0
        %v3455 = vadd.f32 %v2955, 1.0
        %v3456 = vadd.f32 %v2956, 1.0
        %v3457 = vadd.f32 %v2957, 1.0
        %v3458 = vadd.f32 %v2958, 1.0
        %v3459 = vadd.f32 %v2959, 1.0
        %v3460 = vadd.f32 %v2960, 1.0
        %v3461 = vadd.f32 %v2961, 1.0
        %v3462 = vadd.f32 %v2962, 1.0
        %v3463 = vadd.f32 %v2963, 1.0
        %v3464 = vadd.f32 %v2964, 1.0
        %v3465 = vadd.f32 %v2965, 1.0
        %v3466 = vadd.f32 %v2966, 1.0
        %v3467 = vadd.f32 %v2967, 1.0
        %v3468 = vadd.f32 %v2968, 1.0
        %v3469 = vadd.f32 %v2969, 1.0
        %v3470 = vadd.f32 %v2970, 1.0
        %v3471 = vadd.f32 %v2971, 1.0
        %v3472 = vadd.f32 %v2972, 1.0
        %v3473 = vadd.f32 %v2973, 1.0
        %v3474 = vadd.f32 %v2974, 1.0
        %v3475 = vadd.f32 %v2975, 1.0
        %v3476 = vadd.f32 %v2976, 1.0
        %v3477 = vadd.f32 %v2977, 1.0
        %v3478 = vadd.f32 %v2978, 1.0
        %v3479 = vadd.f32 %v2979, 1.0
        %v3480 = vadd.f32 %v2980, 1.0
        %v3481 = vadd.f32 %v2981, 1.0
        %v3482 = vadd.f32 %v2982, 1.0
        %v3483 = vadd.f32 %v2983, 1.0
        %v3484 = vadd.f32 %v2984, 1.0
        %v3485 = vadd.f32 %v2985, 1.0
        %v3486 = vadd.f32 %v2986, 1.0
        %v3487 = vadd.f32 %v2987, 1.0
        %v3488 = vadd.f32 %v2988, 1.0
        %v3489 = vadd.f32 %v2989, 1.0
        %v3490 = vadd.f32 %v2990, 1.0
        %v3491 = vadd.f32 %v2991, 1.0
        %v3492 = vadd.f32 %v2992, 1.0
        %v3493 = vadd.f32 %v2993, 1.0
        %v3494 = vadd.f32 %v2994, 1.0
        %v3495 = vadd.f32 %v2995, 1.0
        %v3496 = vadd.f32 %v2996, 1.0
        %v3497 = vadd.f32 %v2997, 1.0
        %v3498 = vmul.f32 %v1998, %v2998
        %v3499 = vmul.f32 %v1999, %v2999
        %v3500 = vmul.f32 %v2000, %v3000
        %v3501 = vmul.f32 %v2001, %v3001
        %v3502 = vmul.f32 %v2002, %v3002
        %v3503 = vmul.f32 %v2003, %v3003
        %v3504 = vmul.f32 %v2004, %v3004
        %v3505 = vmul.f32 %v2005, %v3005
        %v3506 = vmul.f32 %v2006, %v3006
        %v3507 = vmul.f32 %v2007, %v3007
        %v3508 = vmul.f32 %v2008, %v3008
        %v3509 = vmul.f32 %v2009, %v3009
        %v3510 = vmul.f32 %v2010, %v3010
        %v3511 = vmul.f32 %v2011, %v3011
        %v3512 = vmul.f32 %v2012, %v3012
        %v3513 = vmul.f32 %v2013, %v3013
        %v3514 = vmul.f32 %v2014, %v3014
        %v3515 = vmul.f32 %v2015, %v3015
        %v3516 = vmul.f32 %v2016, %v3016
        %v3517 = vmul.f32 %v2017, %v3017
        %v3518 = vmul.f32 %v2018, %v3018
        %v3519 = vmul.f32 %v2019, %v3019
        %v3520 = vmul.f32 %v2020, %v3020
        %v3521 = vmul.f32 %v2021, %v3021
        %v3522 = vmul.f32 %v2022, %v3022
        %v3523 = vmul.f32 %v2023, %v3023
        %v3524 = vmul.f32 %v2024, %v3024
        %v3525 = vmul.f32 %v2025, %v3025
        %v3526 = vmul.f32 %v2026, %v3026
        %v3527 = vmul.f32 %v2027, %v3027
        %v3528 = vmul.f32 %v2028, %v3028
        %v3529 = vmul.f32 %v2029, %v3029
        %v3530 = vmul.f32 %v2030, %v3030
        %v3531 = vmul.f32 %v2031, %v3031
        %v3532 = vmul.f32 %v2032, %v3032
        %v3533 = vmul.f32 %v2033, %v3033
        %v3534 = vmul.f32 %v2034, %v3034
        %v3535 = vmul.f32 %v2035, %v3035
        %v3536 = vmul.f32 %v2036, %v3036
        %v3537 = vmul.f32 %v2037, %v3037
        %v3538 = vmul.f32 %v2038, %v3038
        %v3539 = vmul.f32 %v2039, %v3039
        %v3540 = vmul.f32 %v2040, %v3040
        %v3541 = vmul.f32 %v2041, %v3041
        %v3542 = vmul.f32 %v2042, %v3042
        %v3543 = vmul.f32 %v2043, %v3043
        %v3544 = vmul.f32 %v2044, %v3044
        %v3545 = vmul.f32 %v2045, %v3045
        %v3546 = vmul.f32 %v2046, %v3046
        %v3547 = vmul.f32 %v2047, %v3047
        %v3548 = vmul.f32 %v2048, %v3048
        %v3549 = vmul.f32 %v2049, %v3049
        %v3550 = vmul.f32 %v2050, %v3050
        %v3551 = vmul.f32 %v2051, %v3051
        %v3552 = vmul.f32 %v2052, %v3052
        %v3553 = vmul.f32 %v2053, %v3053
        %v3554 = vmul.f32 %v2054, %v3054
        %v3555 = vmul.f32 %v2055, %v3055
        %v3556 = vmul.f32 %v2056, %v3056
        %v3557 = vmul.f32 %v2057, %v3057
        %v3558 = vmul.f32 %v2058, %v3058
        %v3559 = vmul.f32 %v2059, %v3059
        %v3560 = vmul.f32 %v2060, %v3060
        %v3561 = vmul.f32 %v2061, %v3061
        %v3562 = vmul.f32 %v2062, %v3062
        %v3563 = vmul.f32 %v2063, %v3063
        %v3564 = vmul.f32 %v2064, %v3064
        %v3565 = vmul.f32 %v2065, %v3065
        %v3566 = vmul.f32 %v2066, %v3066
        %v3567 = vmul.f32 %v2067, %v3067
        %v3568 = vmul.f32 %v2068, %v3068
        %v3569 = vmul.f32 %v2069, %v3069
        %v3570 = vmul.f32 %v2070, %v3070
        %v3571 = vmul.f32 %v2071, %v3071
        %v3572 = vmul.f32 %v2072, %v3072
        %v3573 = vmul.f32 %v2073, %v3073
        %v3574 = vmul.f32 %v2074, %v3074
        %v3575 = vmul.f32 %v2075, %v3075
        %v3576 = vmul.f32 %v2076, %v3076
        %v3577 = vmul.f32 %v2077, %v3077
        %v3578 = vmul.f32 %v2078, %v3078
        %v3579 = vmul.f32 %v2079, %v3079
        %v3580 = vmul.f32 %v2080, %v3080
        %v3581 = vmul.f32 %v2081, %v3081
        %v3582 = vmul.f32 %v2082, %v3082
        %v3583 = vmul.f32 %v2083, %v3083
        %v3584 = vmul.f32 %v2084, %v3084
        %v3585 = vmul.f32 %v2085, %v3085
        %v3586 = vmul.f32 %v2086, %v3086
        %v3587 = vmul.f32 %v2087, %v3087
        %v3588 = vmul.f32 %v2088, %v3088
        %v3589 = vmul.f32 %v2089, %v3089
        %v3590 = vmul.f32 %v2090, %v3090
        %v3591 = vmul.f32 %v2091, %v3091
        %v3592 = vmul.f32 %v2092, %v3092
        %v3593 = vmul.f32 %v2093, %v3093
        %v3594 = vmul.f32 %v2094, %v3094
        %v3595 = vmul.f32 %v2095, %v3095
        %v3596 = vmul.f32 %v2096, %v3096
        %v3597 = vmul.f32 %v2097, %v3097
        %v3598 = vmul.f32 %v2098, %v3098
        %v3599 = vmul.f32 %v2099, %v3099
        %v3600 = vmul.f32 %v2100, %v3100
        %v3601 = vmul.f32 %v2101, %v3101
        %v3602 = vmul.f32 %v2102, %v3102
        %v3603 = vmul.f32 %v2103, %v3103
        %v3604 = vmul.f32 %v2104, %v3104
        %v3605 = vmul.f32 %v2105, %v3105
        %v3606 = vmul.f32 %v2106, %v3106
        %v3607 = vmul.f32 %v2107, %v3107
        %v3608 = vmul.f32 %v2108, %v3108
        %v3609 = vmul.f32 %v2109, %v3109
        %v3610 = vmul.f32 %v2110, %v3110
        %v3611 = vmul.f32 %v2111, %v3111
        %v3612 = vmul.f32 %v2112, %v3112
        %v3613 = vmul.f32 %v2113, %v3113
        %v3614 = vmul.f32 %v2114, %v3114
        %v3615 = vmul.f32 %v2115, %v3115
        %v3616 = vmul.f32 %v2116, %v3116
        %v3617 = vmul.f32 %v2117, %v3117
        %v3618 = vmul.f32 %v2118, %v3118
        %v3619 = vmul.f32 %v2119, %v3119
        %v3620 = vmul.f32 %v2120, %v3120
        %v3621 = vmul.f32 %v2121, %v3121
        %v3622 = vmul.f32 %v2122, %v3122
        %v3623 = vmul.f32 %v2123, %v3123
        %v3624 = vmul.f32 %v2124, %v3124
        %v3625 = vmul.f32 %v2125, %v3125
        %v3626 = vmul.f32 %v2126, %v3126
        %v3627 = vmul.f32 %v2127, %v3127
        %v3628 = vmul.f32 %v2128, %v3128
        %v3629 = vmul.f32 %v2129, %v3129
        %v3630 = vmul.f32 %v2130, %v3130
        %v3631 = vmul.f32 %v2131, %v3131
        %v3632 = vmul.f32 %v2132, %v3132
        %v3633 = vmul.f32 %v2133, %v3133
        %v3634 = vmul.f32 %v2134, %v3134
        %v3635 = vmul.f32 %v2135, %v3135
        %v3636 = vmul.f32 %v2136, %v3136
        %v3637 = vmul.f32 %v2137, %v3137
        %v3638 = vmul.f32 %v2138, %v3138
        %v3639 = vmul.f32 %v2139, %v3139
        %v3640 = vmul.f32 %v2140, %v3140
        %v3641 = vmul.f32 %v2141, %v3141
        %v3642 = vmul.f32 %v2142, %v3142
        %v3643 = vmul.f32 %v2143, %v3143
        %v3644 = vmul.f32 %v2144, %v3144
        %v3645 = vmul.f32 %v2145, %v3145
        %v3646 = vmul.f32 %v2146, %v3146
        %v3647 = vmul.f32 %v2147, %v3147
        %v3648 = vmul.f32 %v2148, %v3148
        %v3649 = vmul.f32 %v2149, %v3149
        %v3650 = vmul.f32 %v2150, %v3150
        %v3651 = vmul.f32 %v2151, %v3151
        %v3652 = vmul.f32 %v2152, %v3152
        %v3653 = vmul.f32 %v2153, %v3153
        %v3654 = vmul.f32 %v2154, %v3154
        %v3655 = vmul.f32 %v2155, %v3155
        %v3656 = vmul.f32 %v2156, %v3156
        %v3657 = vmul.f32 %v2157, %v3157
        %v3658 = vmul.f32 %v2158, %v3158
        %v3659 = vmul.f32 %v2159, %v3159
        %v3660 = vmul.f32 %v2160, %v3160
        %v3661 = vmul.f32 %v2161, %v3161
        %v3662 = vmul.f32 %v2162, %v3162
        %v3663 = vmul.f32 %v2163, %v3163
        %v3664 = vmul.f32 %v2164, %v3164
        %v3665 = vmul.f32 %v2165, %v3165
        %v3666 = vmul.f32 %v2166, %v3166
        %v3667 = vmul.f32 %v2167, %v3167
        %v3668 = vmul.f32 %v2168, %v3168
        %v3669 = vmul.f32 %v2169, %v3169
        %v3670 = vmul.f32 %v2170, %v3170
        %v3671 = vmul.f32 %v2171, %v3171
        %v3672 = vmul.f32 %v2172, %v3172
        %v3673 = vmul.f32 %v2173, %v3173
        %v3674 = vmul.f32 %v2174, %v3174
        %v3675 = vmul.f32 %v2175, %v3175
        %v3676 = vmul.f32 %v2176, %v3176
        %v3677 = vmul.f32 %v2177, %v3177
        %v3678 = vmul.f32 %v2178, %v3178
        %v3679 = vmul.f32 %v2179, %v3179
        %v3680 = vmul.f32 %v2180, %v3180
        %v3681 = vmul.f32 %v2181, %v3181
        %v3682 = vmul.f32 %v2182, %v3182
        %v3683 = vmul.f32 %v2183, %v3183
        %v3684 = vmul.f32 %v2184, %v3184
        %v3685 = vmul.f32 %v2185, %v3185
        %v3686 = vmul.f32 %v2186, %v3186
        %v3687 = vmul.f32 %v2187, %v3187
        %v3688 = vmul.f32 %v2188, %v3188
        %v3689 = vmul.f32 %v2189, %v3189
        %v3690 = vmul.f32 %v2190, %v3190
        %v3691 = vmul.f32 %v2191, %v3191
        %v3692 = vmul.f32 %v2192, %v3192
        %v3693 = vmul.f32 %v2193, %v3193
        %v3694 = vmul.f32 %v2194, %v3194
        %v3695 = vmul.f32 %v2195, %v3195
        %v3696 = vmul.f32 %v2196, %v3196
        %v3697 = vmul.f32 %v2197, %v3197
        %v3698 = vmul.f32 %v2198, %v3198
        %v3699 = vmul.f32 %v2199, %v3199
        %v3700 = vmul.f32 %v2200, %v3200
        %v3701 = vmul.f32 %v2201, %v3201
        %v3702 = vmul.f32 %v2202, %v3202
        %v3703 = vmul.f32 %v2203, %v3203
        %v3704 = vmul.f32 %v2204, %v3204
        %v3705 = vmul.f32 %v2205, %v3205
        %v3706 = vmul.f32 %v2206, %v3206
        %v3707 = vmul.f32 %v2207, %v3207
        %v3708 = vmul.f32 %v2208, %v3208
        %v3709 = vmul.f32 %v2209, %v3209
        %v3710 = vmul.f32 %v2210, %v3210
        %v3711 = vmul.f32 %v2211, %v3211
        %v3712 = vmul.f32 %v2212, %v3212
        %v3713 = vmul.f32 %v2213, %v3213
        %v3714 = vmul.f32 %v2214, %v3214
        %v3715 = vmul.f32 %v2215, %v3215
        %v3716 = vmul.f32 %v2216, %v3216
        %v3717 = vmul.f32 %v2217, %v3217
        %v3718 = vmul.f32 %v2218, %v3218
        %v3719 = vmul.f32 %v2219, %v3219
        %v3720 = vmul.f32 %v2220, %v3220
        %v3721 = vmul.f32 %v2221, %v3221
        %v3722 = vmul.f32 %v2222, %v3222
        %v3723 = vmul.f32 %v2223, %v3223
        %v3724 = vmul.f32 %v2224, %v3224
        %v3725 = vmul.f32 %v2225, %v3225
        %v3726 = vmul.f32 %v2226, %v3226
        %v3727 = vmul.f32 %v2227, %v3227
        %v3728 = vmul.f32 %v2228, %v3228
        %v3729 = vmul.f32 %v2229, %v3229
        %v3730 = vmul.f32 %v2230, %v3230
        %v3731 = vmul.f32 %v2231, %v3231
        %v3732 = vmul.f32 %v2232, %v3232
        %v3733 = vmul.f32 %v2233, %v3233
        %v3734 = vmul.f32 %v2234, %v3234
        %v3735 = vmul.f32 %v2235, %v3235
        %v3736 = vmul.f32 %v2236, %v3236
        %v3737 = vmul.f32 %v2237, %v3237
        %v3738 = vmul.f32 %v2238, %v3238
        %v3739 = vmul.f32 %v2239, %v3239
        %v3740 = vmul.f32 %v2240, %v3240
        %v3741 = vmul.f32 %v2241, %v3241
        %v3742 = vmul.f32 %v2242, %v3242
        %v3743 = vmul.f32 %v2243, %v3243
        %v3744 = vmul.f32 %v2244, %v3244
        %v3745 = vmul.f32 %v2245, %v3245
        %v3746 = vmul.f32 %v2246, %v3246
        %v3747 = vmul.f32 %v2247, %v3247
        %v3748 = vmul.f32 %v2248, %v3248
        %v3749 = vmul.f32 %v2249, %v3249
        %v3750 = vmul.f32 %v2250, %v3250
        %v3751 = vmul.f32 %v2251, %v3251
        %v3752 = vmul.f32 %v2252, %v3252
        %v3753 = vmul.f32 %v2253, %v3253
        %v3754 = vmul.f32 %v2254, %v3254
        %v3755 = vmul.f32 %v2255, %v3255
        %v3756 = vmul.f32 %v2256, %v3256
        %v3757 = vmul.f32 %v2257, %v3257
        %v3758 = vmul.f32 %v2258, %v3258
        %v3759 = vmul.f32 %v2259, %v3259
        %v3760 = vmul.f32 %v2260, %v3260
        %v3761 = vmul.f32 %v2261, %v3261
        %v3762 = vmul.f32 %v2262, %v3262
        %v3763 = vmul.f32 %v2263, %v3263
        %v3764 = vmul.f32 %v2264, %v3264
        %v3765 = vmul.f32 %v2265, %v3265
        %v3766 = vmul.f32 %v2266, %v3266
        %v3767 = vmul.f32 %v2267, %v3267
        %v3768 = vmul.f32 %v2268, %v3268
        %v3769 = vmul.f32 %v2269, %v3269
        %v3770 = vmul.f32 %v2270, %v3270
        %v3771 = vmul.f32 %v2271, %v3271
        %v3772 = vmul.f32 %v2272, %v3272
        %v3773 = vmul.f32 %v2273, %v3273
        %v3774 = vmul.f32 %v2274, %v3274
        %v3775 = vmul.f32 %v2275, %v3275
        %v3776 = vmul.f32 %v2276, %v3276
        %v3777 = vmul.f32 %v2277, %v3277
        %v3778 = vmul.f32 %v2278, %v3278
        %v3779 = vmul.f32 %v2279, %v3279
        %v3780 = vmul.f32 %v2280, %v3280
        %v3781 = vmul.f32 %v2281, %v3281
        %v3782 = vmul.f32 %v2282, %v3282
        %v3783 = vmul.f32 %v2283, %v3283
        %v3784 = vmul.f32 %v2284, %v3284
        %v3785 = vmul.f32 %v2285, %v3285
        %v3786 = vmul.f32 %v2286, %v3286
        %v3787 = vmul.f32 %v2287, %v3287
        %v3788 = vmul.f32 %v2288, %v3288
        %v3789 = vmul.f32 %v2289, %v3289
        %v3790 = vmul.f32 %v2290, %v3290
        %v3791 = vmul.f32 %v2291, %v3291
        %v3792 = vmul.f32 %v2292, %v3292
        %v3793 = vmul.f32 %v2293, %v3293
        %v3794 = vmul.f32 %v2294, %v3294
        %v3795 = vmul.f32 %v2295, %v3295
        %v3796 = vmul.f32 %v2296, %v3296
        %v3797 = vmul.f32 %v2297, %v3297
        %v3798 = vmul.f32 %v2298, %v3298
        %v3799 = vmul.f32 %v2299, %v3299
        %v3800 = vmul.f32 %v2300, %v3300
        %v3801 = vmul.f32 %v2301, %v3301
        %v3802 = vmul.f32 %v2302, %v3302
        %v3803 = vmul.f32 %v2303, %v3303
        %v3804 = vmul.f32 %v2304, %v3304
        %v3805 = vmul.f32 %v2305, %v3305
        %v3806 = vmul.f32 %v2306, %v3306
        %v3807 = vmul.f32 %v2307, %v3307
        %v3808 = vmul.f32 %v2308, %v3308
        %v3809 = vmul.f32 %v2309, %v3309
        %v3810 = vmul.f32 %v2310, %v3310
        %v3811 = vmul.f32 %v2311, %v3311
        %v3812 = vmul.f32 %v2312, %v3312
        %v3813 = vmul.f32 %v2313, %v3313
        %v3814 = vmul.f32 %v2314, %v3314
        %v3815 = vmul.f32 %v2315, %v3315
        %v3816 = vmul.f32 %v2316, %v3316
        %v3817 = vmul.f32 %v2317, %v3317
        %v3818 = vmul.f32 %v2318, %v3318
        %v3819 = vmul.f32 %v2319, %v3319
        %v3820 = vmul.f32 %v2320, %v3320
        %v3821 = vmul.f32 %v2321, %v3321
        %v3822 = vmul.f32 %v2322, %v3322
        %v3823 = vmul.f32 %v2323, %v3323
        %v3824 = vmul.f32 %v2324, %v3324
        %v3825 = vmul.f32 %v2325, %v3325
        %v3826 = vmul.f32 %v2326, %v3326
        %v3827 = vmul.f32 %v2327, %v3327
        %v3828 = vmul.f32 %v2328, %v3328
        %v3829 = vmul.f32 %v2329, %v3329
        %v3830 = vmul.f32 %v2330, %v3330
        %v3831 = vmul.f32 %v2331, %v3331
        %v3832 = vmul.f32 %v2332, %v3332
        %v3833 = vmul.f32 %v2333, %v3333
        %v3834 = vmul.f32 %v2334, %v3334
        %v3835 = vmul.f32 %v2335, %v3335
        %v3836 = vmul.f32 %v2336, %v3336
        %v3837 = vmul.f32 %v2337, %v3337
        %v3838 = vmul.f32 %v2338, %v3338
        %v3839 = vmul.f32 %v2339, %v3339
        %v3840 = vmul.f32 %v2340, %v3340
        %v3841 = vmul.f32 %v2341, %v3341
        %v3842 = vmul.f32 %v2342, %v3342
        %v3843 = vmul.f32 %v2343, %v3343
        %v3844 = vmul.f32 %v2344, %v3344
        %v3845 = vmul.f32 %v2345, %v3345
        %v3846 = vmul.f32 %v2346, %v3346
        %v3847 = vmul.f32 %v2347, %v3347
        %v3848 = vmul.f32 %v2348, %v3348
        %v3849 = vmul.f32 %v2349, %v3349
        %v3850 = vmul.f32 %v2350, %v3350
        %v3851 = vmul.f32 %v2351, %v3351
        %v3852 = vmul.f32 %v2352, %v3352
        %v3853 = vmul.f32 %v2353, %v3353
        %v3854 = vmul.f32 %v2354, %v3354
        %v3855 = vmul.f32 %v2355, %v3355
        %v3856 = vmul.f32 %v2356, %v3356
        %v3857 = vmul.f32 %v2357, %v3357
        %v3858 = vmul.f32 %v2358, %v3358
        %v3859 = vmul.f32 %v2359, %v3359
        %v3860 = vmul.f32 %v2360, %v3360
        %v3861 = vmul.f32 %v2361, %v3361
        %v3862 = vmul.f32 %v2362, %v3362
        %v3863 = vmul.f32 %v2363, %v3363
        %v3864 = vmul.f32 %v2364, %v3364
        %v3865 = vmul.f32 %v2365, %v3365
        %v3866 = vmul.f32 %v2366, %v3366
        %v3867 = vmul.f32 %v2367, %v3367
        %v3868 = vmul.f32 %v2368, %v3368
        %v3869 = vmul.f32 %v2369, %v3369
        %v3870 = vmul.f32 %v2370, %v3370
        %v3871 = vmul.f32 %v2371, %v3371
        %v3872 = vmul.f32 %v2372, %v3372
        %v3873 = vmul.f32 %v2373, %v3373
        %v3874 = vmul.f32 %v2374, %v3374
        %v3875 = vmul.f32 %v2375, %v3375
        %v3876 = vmul.f32 %v2376, %v3376
        %v3877 = vmul.f32 %v2377, %v3377
        %v3878 = vmul.f32 %v2378, %v3378
        %v3879 = vmul.f32 %v2379, %v3379
        %v3880 = vmul.f32 %v2380, %v3380
        %v3881 = vmul.f32 %v2381, %v3381
        %v3882 = vmul.f32 %v2382, %v3382
        %v3883 = vmul.f32 %v2383, %v3383
        %v3884 = vmul.f32 %v2384, %v3384
        %v3885 = vmul.f32 %v2385, %v3385
        %v3886 = vmul.f32 %v2386, %v3386
        %v3887 = vmul.f32 %v2387, %v3387
        %v3888 = vmul.f32 %v2388, %v3388
        %v3889 = vmul.f32 %v2389, %v3389
        %v3890 = vmul.f32 %v2390, %v3390
        %v3891 = vmul.f32 %v2391, %v3391
        %v3892 = vmul.f32 %v2392, %v3392
        %v3893 = vmul.f32 %v2393, %v3393
        %v3894 = vmul.f32 %v2394, %v3394
        %v3895 = vmul.f32 %v2395, %v3395
        %v3896 = vmul.f32 %v2396, %v3396
        %v3897 = vmul.f32 %v2397, %v3397
        %v3898 = vmul.f32 %v2398, %v3398
        %v3899 = vmul.f32 %v2399, %v3399
        %v3900 = vmul.f32 %v2400, %v3400
        %v3901 = vmul.f32 %v2401, %v3401
        %v3902 = vmul.f32 %v2402, %v3402
        %v3903 = vmul.f32 %v2403, %v3403
        %v3904 = vmul.f32 %v2404, %v3404
        %v3905 = vmul.f32 %v2405, %v3405
        %v3906 = vmul.f32 %v2406, %v3406
        %v3907 = vmul.f32 %v2407, %v3407
        %v3908 = vmul.f32 %v2408, %v3408
        %v3909 = vmul.f32 %v2409, %v3409
        %v3910 = vmul.f32 %v2410, %v3410
        %v3911 = vmul.f32 %v2411, %v3411
        %v3912 = vmul.f32 %v2412, %v3412
        %v3913 = vmul.f32 %v2413, %v3413
        %v3914 = vmul.f32 %v2414, %v3414
        %v3915 = vmul.f32 %v2415, %v3415
        %v3916 = vmul.f32 %v2416, %v3416
        %v3917 = vmul.f32 %v2417, %v3417
        %v3918 = vmul.f32 %v2418, %v3418
        %v3919 = vmul.f32 %v2419, %v3419
        %v3920 = vmul.f32 %v2420, %v3420
        %v3921 = vmul.f32 %v2421, %v3421
        %v3922 = vmul.f32 %v2422, %v3422
        %v3923 = vmul.f32 %v2423, %v3423
        %v3924 = vmul.f32 %v2424, %v3424
        %v3925 = vmul.f32 %v2425, %v3425
        %v3926 = vmul.f32 %v2426, %v3426
        %v3927 = vmul.f32 %v2427, %v3427
        %v3928 = vmul.f32 %v2428, %v3428
        %v3929 = vmul.f32 %v2429, %v3429
        %v3930 = vmul.f32 %v2430, %v3430
        %v3931 = vmul.f32 %v2431, %v3431
        %v3932 = vmul.f32 %v2432, %v3432
        %v3933 = vmul.f32 %v2433, %v3433
        %v3934 = vmul.f32 %v2434, %v3434
        %v3935 = vmul.f32 %v2435, %v3435
        %v3936 = vmul.f32 %v2436, %v3436
        %v3937 = vmul.f32 %v2437, %v3437
        %v3938 = vmul.f32 %v2438, %v3438
        %v3939 = vmul.f32 %v2439, %v3439
        %v3940 = vmul.f32 %v2440, %v3440
        %v3941 = vmul.f32 %v2441, %v3441
        %v3942 = vmul.f32 %v2442, %v3442
        %v3943 = vmul.f32 %v2443, %v3443
        %v3944 = vmul.f32 %v2444, %v3444
        %v3945 = vmul.f32 %v2445, %v3445
        %v3946 = vmul.f32 %v2446, %v3446
        %v3947 = vmul.f32 %v2447, %v3447
        %v3948 = vmul.f32 %v2448, %v3448
        %v3949 = vmul.f32 %v2449, %v3449
        %v3950 = vmul.f32 %v2450, %v3450
        %v3951 = vmul.f32 %v2451, %v3451
        %v3952 = vmul.f32 %v2452, %v3452
        %v3953 = vmul.f32 %v2453, %v3453
        %v3954 = vmul.f32 %v2454, %v3454
        %v3955 = vmul.f32 %v2455, %v3455
        %v3956 = vmul.f32 %v2456, %v3456
        %v3957 = vmul.f32 %v2457, %v3457
        %v3958 = vmul.f32 %v2458, %v3458
        %v3959 = vmul.f32 %v2459, %v3459
        %v3960 = vmul.f32 %v2460, %v3460
        %v3961 = vmul.f32 %v2461, %v3461
        %v3962 = vmul.f32 %v2462, %v3462
        %v3963 = vmul.f32 %v2463, %v3463
        %v3964 = vmul.f32 %v2464, %v3464
        %v3965 = vmul.f32 %v2465, %v3465
        %v3966 = vmul.f32 %v2466, %v3466
        %v3967 = vmul.f32 %v2467, %v3467
        %v3968 = vmul.f32 %v2468, %v3468
        %v3969 = vmul.f32 %v2469, %v3469
        %v3970 = vmul.f32 %v2470, %v3470
        %v3971 = vmul.f32 %v2471, %v3471
        %v3972 = vmul.f32 %v2472, %v3472
        %v3973 = vmul.f32 %v2473, %v3473
        %v3974 = vmul.f32 %v2474, %v3474
        %v3975 = vmul.f32 %v2475, %v3475
        %v3976 = vmul.f32 %v2476, %v3476
        %v3977 = vmul.f32 %v2477, %v3477
        %v3978 = vmul.f32 %v2478, %v3478
        %v3979 = vmul.f32 %v2479, %v3479
        %v3980 = vmul.f32 %v2480, %v3480
        %v3981 = vmul.f32 %v2481, %v3481
        %v3982 = vmul.f32 %v2482, %v3482
        %v3983 = vmul.f32 %v2483, %v3483
        %v3984 = vmul.f32 %v2484, %v3484
        %v3985 = vmul.f32 %v2485, %v3485
        %v3986 = vmul.f32 %v2486, %v3486
        %v3987 = vmul.f32 %v2487, %v3487
        %v3988 = vmul.f32 %v2488, %v3488
        %v3989 = vmul.f32 %v2489, %v3489
        %v3990 = vmul.f32 %v2490, %v3490
        %v3991 = vmul.f32 %v2491, %v3491
        %v3992 = vmul.f32 %v2492, %v3492
        %v3993 = vmul.f32 %v2493, %v3493
        %v3994 = vmul.f32 %v2494, %v3494
        %v3995 = vmul.f32 %v2495, %v3495
        %v3996 = vmul.f32 %v2496, %v3496
        %v3997 = vmul.f32 %v2497, %v3497
        %v3998 = vld [vmem:[#allocation2] sm:$0xff]
        %v3999 = vld [vmem:[#allocation2 + $0x8] sm:$0x3]
        %v4000 = vadd.f32 %v3498, %v3508
        %v4001 = vadd.f32 %v4000, %v3518
        %v4002 = vadd.f32 %v4001, %v3528
        %v4003 = vadd.f32 %v4002, %v3538
        %v4004 = vadd.f32 %v4003, %v3548
        %v4005 = vadd.f32 %v4004, %v3558
        %v4006 = vadd.f32 %v4005, %v3568
        %v4007 = vadd.f32 %v4006, %v3578
        %v4008 = vadd.f32 %v4007, %v3588
        %v4009 = vadd.f32 %v4008, %v3598
        %v4010 = vadd.f32 %v4009, %v3608
        %v4011 = vadd.f32 %v4010, %v3618
        %v4012 = vadd.f32 %v4011, %v3628
        %v4013 = vadd.f32 %v4012, %v3638
        %v4014 = vadd.f32 %v4013, %v3648
        %v4015 = vadd.f32 %v4014, %v3658
        %v4016 = vadd.f32 %v4015, %v3668
        %v4017 = vadd.f32 %v4016, %v3678
        %v4018 = vadd.f32 %v4017, %v3688
        %v4019 = vadd.f32 %v4018, %v3698
        %v4020 = vadd.f32 %v4019, %v3708
        %v4021 = vadd.f32 %v4020, %v3718
        %v4022 = vadd.f32 %v4021, %v3728
        %v4023 = vadd.f32 %v4022, %v3738
        %v4024 = vadd.f32 %v4023, %v3748
        %v4025 = vadd.f32 %v4024, %v3758
        %v4026 = vadd.f32 %v4025, %v3768
        %v4027 = vadd.f32 %v4026, %v3778
        %v4028 = vadd.f32 %v4027, %v3788
        %v4029 = vadd.f32 %v4028, %v3798
        %v4030 = vadd.f32 %v4029, %v3808
        %v4031 = vadd.f32 %v4030, %v3818
        %v4032 = vadd.f32 %v4031, %v3828
        %v4033 = vadd.f32 %v4032, %v3838
        %v4034 = vadd.f32 %v4033, %v3848
        %v4035 = vadd.f32 %v4034, %v3858
        %v4036 = vadd.f32 %v4035, %v3868
        %v4037 = vadd.f32 %v4036, %v3878
        %v4038 = vadd.f32 %v4037, %v3888
        %v4039 = vadd.f32 %v4038, %v3898
        %v4040 = vadd.f32 %v4039, %v3908
        %v4041 = vadd.f32 %v4040, %v3918
        %v4042 = vadd.f32 %v4041, %v3928
        %v4043 = vadd.f32 %v4042, %v3938
        %v4044 = vadd.f32 %v4043, %v3948
        %v4045 = vadd.f32 %v4044, %v3958
        %v4046 = vadd.f32 %v4045, %v3968
        %v4047 = vadd.f32 %v4046, %v3978
        %v4048 = vadd.f32 %v4047, %v3988
        %v4049 = vrot.slane %v4048, 4
        %v4050 = vadd.f32 %v4048, %v4049
        %v4051 = vrot.slane %v4050, 2
        %v4052 = vadd.f32 %v4050, %v4051
        %v4053 = vrot.slane %v4052, 1
        %v4054 = vadd.f32 %v4052, %v4053
        %v4055 = vadd.f32 %v3499, %v3509
        %v4056 = vadd.f32 %v4055, %v3519
        %v4057 = vadd.f32 %v4056, %v3529
        %v4058 = vadd.f32 %v4057, %v3539
        %v4059 = vadd.f32 %v4058, %v3549
        %v4060 = vadd.f32 %v4059, %v3559
        %v4061 = vadd.f32 %v4060, %v3569
        %v4062 = vadd.f32 %v4061, %v3579
        %v4063 = vadd.f32 %v4062, %v3589
        %v4064 = vadd.f32 %v4063, %v3599
        %v4065 = vadd.f32 %v4064, %v3609
        %v4066 = vadd.f32 %v4065, %v3619
        %v4067 = vadd.f32 %v4066, %v3629
        %v4068 = vadd.f32 %v4067, %v3639
        %v4069 = vadd.f32 %v4068, %v3649
        %v4070 = vadd.f32 %v4069, %v3659
        %v4071 = vadd.f32 %v4070, %v3669
        %v4072 = vadd.f32 %v4071, %v3679
        %v4073 = vadd.f32 %v4072, %v3689
        %v4074 = vadd.f32 %v4073, %v3699
        %v4075 = vadd.f32 %v4074, %v3709
        %v4076 = vadd.f32 %v4075, %v3719
        %v4077 = vadd.f32 %v4076, %v3729
        %v4078 = vadd.f32 %v4077, %v3739
        %v4079 = vadd.f32 %v4078, %v3749
        %v4080 = vadd.f32 %v4079, %v3759
        %v4081 = vadd.f32 %v4080, %v3769
        %v4082 = vadd.f32 %v4081, %v3779
        %v4083 = vadd.f32 %v4082, %v3789
        %v4084 = vadd.f32 %v4083, %v3799
        %v4085 = vadd.f32 %v4084, %v3809
        %v4086 = vadd.f32 %v4085, %v3819
        %v4087 = vadd.f32 %v4086, %v3829
        %v4088 = vadd.f32 %v4087, %v3839
        %v4089 = vadd.f32 %v4088, %v3849
        %v4090 = vadd.f32 %v4089, %v3859
        %v4091 = vadd.f32 %v4090, %v3869
        %v4092 = vadd.f32 %v4091, %v3879
        %v4093 = vadd.f32 %v4092, %v3889
        %v4094 = vadd.f32 %v4093, %v3899
        %v4095 = vadd.f32 %v4094, %v3909
        %v4096 = vadd.f32 %v4095, %v3919
        %v4097 = vadd.f32 %v4096, %v3929
        %v4098 = vadd.f32 %v4097, %v3939
        %v4099 = vadd.f32 %v4098, %v3949
        %v4100 = vadd.f32 %v4099, %v3959
        %v4101 = vadd.f32 %v4100, %v3969
        %v4102 = vadd.f32 %v4101, %v3979
        %v4103 = vadd.f32 %v4102, %v3989
        %v4104 = vrot.slane %v4103, 4
        %v4105 = vadd.f32 %v4103, %v4104
        %v4106 = vrot.slane %v4105, 2
        %v4107 = vadd.f32 %v4105, %v4106
        %v4108 = vrot.slane %v4107, 1
        %v4109 = vadd.f32 %v4107, %v4108
        %v4110 = vadd.f32 %v3500, %v3510
        %v4111 = vadd.f32 %v4110, %v3520
        %v4112 = vadd.f32 %v4111, %v3530
        %v4113 = vadd.f32 %v4112, %v3540
        %v4114 = vadd.f32 %v4113, %v3550
        %v4115 = vadd.f32 %v4114, %v3560
        %v4116 = vadd.f32 %v4115, %v3570
        %v4117 = vadd.f32 %v4116, %v3580
        %v4118 = vadd.f32 %v4117, %v3590
        %v4119 = vadd.f32 %v4118, %v3600
        %v4120 = vadd.f32 %v4119, %v3610
        %v4121 = vadd.f32 %v4120, %v3620
        %v4122 = vadd.f32 %v4121, %v3630
        %v4123 = vadd.f32 %v4122, %v3640
        %v4124 = vadd.f32 %v4123, %v3650
        %v4125 = vadd.f32 %v4124, %v3660
        %v4126 = vadd.f32 %v4125, %v3670
        %v4127 = vadd.f32 %v4126, %v3680
        %v4128 = vadd.f32 %v4127, %v3690
        %v4129 = vadd.f32 %v4128, %v3700
        %v4130 = vadd.f32 %v4129, %v3710
        %v4131 = vadd.f32 %v4130, %v3720
        %v4132 = vadd.f32 %v4131, %v3730
        %v4133 = vadd.f32 %v4132, %v3740
        %v4134 = vadd.f32 %v4133, %v3750
        %v4135 = vadd.f32 %v4134, %v3760
        %v4136 = vadd.f32 %v4135, %v3770
        %v4137 = vadd.f32 %v4136, %v3780
        %v4138 = vadd.f32 %v4137, %v3790
        %v4139 = vadd.f32 %v4138, %v3800
        %v4140 = vadd.f32 %v4139, %v3810
        %v4141 = vadd.f32 %v4140, %v3820
        %v4142 = vadd.f32 %v4141, %v3830
        %v4143 = vadd.f32 %v4142, %v3840
        %v4144 = vadd.f32 %v4143, %v3850
        %v4145 = vadd.f32 %v4144, %v3860
        %v4146 = vadd.f32 %v4145, %v3870
        %v4147 = vadd.f32 %v4146, %v3880
        %v4148 = vadd.f32 %v4147, %v3890
        %v4149 = vadd.f32 %v4148, %v3900
        %v4150 = vadd.f32 %v4149, %v3910
        %v4151 = vadd.f32 %v4150, %v3920
        %v4152 = vadd.f32 %v4151, %v3930
        %v4153 = vadd.f32 %v4152, %v3940
        %v4154 = vadd.f32 %v4153, %v3950
        %v4155 = vadd.f32 %v4154, %v3960
        %v4156 = vadd.f32 %v4155, %v3970
        %v4157 = vadd.f32 %v4156, %v3980
        %v4158 = vadd.f32 %v4157, %v3990
        %v4159 = vrot.slane %v4158, 4
        %v4160 = vadd.f32 %v4158, %v4159
        %v4161 = vrot.slane %v4160, 2
        %v4162 = vadd.f32 %v4160, %v4161
        %v4163 = vrot.slane %v4162, 1
        %v4164 = vadd.f32 %v4162, %v4163
        %v4165 = vadd.f32 %v3501, %v3511
        %v4166 = vadd.f32 %v4165, %v3521
        %v4167 = vadd.f32 %v4166, %v3531
        %v4168 = vadd.f32 %v4167, %v3541
        %v4169 = vadd.f32 %v4168, %v3551
        %v4170 = vadd.f32 %v4169, %v3561
        %v4171 = vadd.f32 %v4170, %v3571
        %v4172 = vadd.f32 %v4171, %v3581
        %v4173 = vadd.f32 %v4172, %v3591
        %v4174 = vadd.f32 %v4173, %v3601
        %v4175 = vadd.f32 %v4174, %v3611
        %v4176 = vadd.f32 %v4175, %v3621
        %v4177 = vadd.f32 %v4176, %v3631
        %v4178 = vadd.f32 %v4177, %v3641
        %v4179 = vadd.f32 %v4178, %v3651
        %v4180 = vadd.f32 %v4179, %v3661
        %v4181 = vadd.f32 %v4180, %v3671
        %v4182 = vadd.f32 %v4181, %v3681
        %v4183 = vadd.f32 %v4182, %v3691
        %v4184 = vadd.f32 %v4183, %v3701
        %v4185 = vadd.f32 %v4184, %v3711
        %v4186 = vadd.f32 %v4185, %v3721
        %v4187 = vadd.f32 %v4186, %v3731
        %v4188 = vadd.f32 %v4187, %v3741
        %v4189 = vadd.f32 %v4188, %v3751
        %v4190 = vadd.f32 %v4189, %v3761
        %v4191 = vadd.f32 %v4190, %v3771
        %v4192 = vadd.f32 %v4191, %v3781
        %v4193 = vadd.f32 %v4192, %v3791
        %v4194 = vadd.f32 %v4193, %v3801
        %v4195 = vadd.f32 %v4194, %v3811
        %v4196 = vadd.f32 %v4195, %v3821
        %v4197 = vadd.f32 %v4196, %v3831
        %v4198 = vadd.f32 %v4197, %v3841
        %v4199 = vadd.f32 %v4198, %v3851
        %v4200 = vadd.f32 %v4199, %v3861
        %v4201 = vadd.f32 %v4200, %v3871
        %v4202 = vadd.f32 %v4201, %v3881
        %v4203 = vadd.f32 %v4202, %v3891
        %v4204 = vadd.f32 %v4203, %v3901
        %v4205 = vadd.f32 %v4204, %v3911
        %v4206 = vadd.f32 %v4205, %v3921
        %v4207 = vadd.f32 %v4206, %v3931
        %v4208 = vadd.f32 %v4207, %v3941
        %v4209 = vadd.f32 %v4208, %v3951
        %v4210 = vadd.f32 %v4209, %v3961
        %v4211 = vadd.f32 %v4210, %v3971
        %v4212 = vadd.f32 %v4211, %v3981
        %v4213 = vadd.f32 %v4212, %v3991
        %v4214 = vrot.slane %v4213, 4
        %v4215 = vadd.f32 %v4213, %v4214
        %v4216 = vrot.slane %v4215, 2
        %v4217 = vadd.f32 %v4215, %v4216
        %v4218 = vrot.slane %v4217, 1
        %v4219 = vadd.f32 %v4217, %v4218
        %v4220 = vadd.f32 %v3502, %v3512
        %v4221 = vadd.f32 %v4220, %v3522
        %v4222 = vadd.f32 %v4221, %v3532
        %v4223 = vadd.f32 %v4222, %v3542
        %v4224 = vadd.f32 %v4223, %v3552
        %v4225 = vadd.f32 %v4224, %v3562
        %v4226 = vadd.f32 %v4225, %v3572
        %v4227 = vadd.f32 %v4226, %v3582
        %v4228 = vadd.f32 %v4227, %v3592
        %v4229 = vadd.f32 %v4228, %v3602
        %v4230 = vadd.f32 %v4229, %v3612
        %v4231 = vadd.f32 %v4230, %v3622
        %v4232 = vadd.f32 %v4231, %v3632
        %v4233 = vadd.f32 %v4232, %v3642
        %v4234 = vadd.f32 %v4233, %v3652
        %v4235 = vadd.f32 %v4234, %v3662
        %v4236 = vadd.f32 %v4235, %v3672
        %v4237 = vadd.f32 %v4236, %v3682
        %v4238 = vadd.f32 %v4237, %v3692
        %v4239 = vadd.f32 %v4238, %v3702
        %v4240 = vadd.f32 %v4239, %v3712
        %v4241 = vadd.f32 %v4240, %v3722
        %v4242 = vadd.f32 %v4241, %v3732
        %v4243 = vadd.f32 %v4242, %v3742
        %v4244 = vadd.f32 %v4243, %v3752
        %v4245 = vadd.f32 %v4244, %v3762
        %v4246 = vadd.f32 %v4245, %v3772
        %v4247 = vadd.f32 %v4246, %v3782
        %v4248 = vadd.f32 %v4247, %v3792
        %v4249 = vadd.f32 %v4248, %v3802
        %v4250 = vadd.f32 %v4249, %v3812
        %v4251 = vadd.f32 %v4250, %v3822
        %v4252 = vadd.f32 %v4251, %v3832
        %v4253 = vadd.f32 %v4252, %v3842
        %v4254 = vadd.f32 %v4253, %v3852
        %v4255 = vadd.f32 %v4254, %v3862
        %v4256 = vadd.f32 %v4255, %v3872
        %v4257 = vadd.f32 %v4256, %v3882
        %v4258 = vadd.f32 %v4257, %v3892
        %v4259 = vadd.f32 %v4258, %v3902
        %v4260 = vadd.f32 %v4259, %v3912
        %v4261 = vadd.f32 %v4260, %v3922
        %v4262 = vadd.f32 %v4261, %v3932
        %v4263 = vadd.f32 %v4262, %v3942
        %v4264 = vadd.f32 %v4263, %v3952
        %v4265 = vadd.f32 %v4264, %v3962
        %v4266 = vadd.f32 %v4265, %v3972
        %v4267 = vadd.f32 %v4266, %v3982
        %v4268 = vadd.f32 %v4267, %v3992
        %v4269 = vrot.slane %v4268, 4
        %v4270 = vadd.f32 %v4268, %v4269
        %v4271 = vrot.slane %v4270, 2
        %v4272 = vadd.f32 %v4270, %v4271
        %v4273 = vrot.slane %v4272, 1
        %v4274 = vadd.f32 %v4272, %v4273
        %v4275 = vadd.f32 %v3503, %v3513
        %v4276 = vadd.f32 %v4275, %v3523
        %v4277 = vadd.f32 %v4276, %v3533
        %v4278 = vadd.f32 %v4277, %v3543
        %v4279 = vadd.f32 %v4278, %v3553
        %v4280 = vadd.f32 %v4279, %v3563
        %v4281 = vadd.f32 %v4280, %v3573
        %v4282 = vadd.f32 %v4281, %v3583
        %v4283 = vadd.f32 %v4282, %v3593
        %v4284 = vadd.f32 %v4283, %v3603
        %v4285 = vadd.f32 %v4284, %v3613
        %v4286 = vadd.f32 %v4285, %v3623
        %v4287 = vadd.f32 %v4286, %v3633
        %v4288 = vadd.f32 %v4287, %v3643
        %v4289 = vadd.f32 %v4288, %v3653
        %v4290 = vadd.f32 %v4289, %v3663
        %v4291 = vadd.f32 %v4290, %v3673
        %v4292 = vadd.f32 %v4291, %v3683
        %v4293 = vadd.f32 %v4292, %v3693
        %v4294 = vadd.f32 %v4293, %v3703
        %v4295 = vadd.f32 %v4294, %v3713
        %v4296 = vadd.f32 %v4295, %v3723
        %v4297 = vadd.f32 %v4296, %v3733
        %v4298 = vadd.f32 %v4297, %v3743
        %v4299 = vadd.f32 %v4298, %v3753
        %v4300 = vadd.f32 %v4299, %v3763
        %v4301 = vadd.f32 %v4300, %v3773
        %v4302 = vadd.f32 %v4301, %v3783
        %v4303 = vadd.f32 %v4302, %v3793
        %v4304 = vadd.f32 %v4303, %v3803
        %v4305 = vadd.f32 %v4304, %v3813
        %v4306 = vadd.f32 %v4305, %v3823
        %v4307 = vadd.f32 %v4306, %v3833
        %v4308 = vadd.f32 %v4307, %v3843
        %v4309 = vadd.f32 %v4308, %v3853
        %v4310 = vadd.f32 %v4309, %v3863
        %v4311 = vadd.f32 %v4310, %v3873
        %v4312 = vadd.f32 %v4311, %v3883
        %v4313 = vadd.f32 %v4312, %v3893
        %v4314 = vadd.f32 %v4313, %v3903
        %v4315 = vadd.f32 %v4314, %v3913
        %v4316 = vadd.f32 %v4315, %v3923
        %v4317 = vadd.f32 %v4316, %v3933
        %v4318 = vadd.f32 %v4317, %v3943
        %v4319 = vadd.f32 %v4318, %v3953
        %v4320 = vadd.f32 %v4319, %v3963
        %v4321 = vadd.f32 %v4320, %v3973
        %v4322 = vadd.f32 %v4321, %v3983
        %v4323 = vadd.f32 %v4322, %v3993
        %v4324 = vrot.slane %v4323, 4
        %v4325 = vadd.f32 %v4323, %v4324
        %v4326 = vrot.slane %v4325, 2
        %v4327 = vadd.f32 %v4325, %v4326
        %v4328 = vrot.slane %v4327, 1
        %v4329 = vadd.f32 %v4327, %v4328
        %v4330 = vadd.f32 %v3504, %v3514
        %v4331 = vadd.f32 %v4330, %v3524
        %v4332 = vadd.f32 %v4331, %v3534
        %v4333 = vadd.f32 %v4332, %v3544
        %v4334 = vadd.f32 %v4333, %v3554
        %v4335 = vadd.f32 %v4334, %v3564
        %v4336 = vadd.f32 %v4335, %v3574
        %v4337 = vadd.f32 %v4336, %v3584
        %v4338 = vadd.f32 %v4337, %v3594
        %v4339 = vadd.f32 %v4338, %v3604
        %v4340 = vadd.f32 %v4339, %v3614
        %v4341 = vadd.f32 %v4340, %v3624
        %v4342 = vadd.f32 %v4341, %v3634
        %v4343 = vadd.f32 %v4342, %v3644
        %v4344 = vadd.f32 %v4343, %v3654
        %v4345 = vadd.f32 %v4344, %v3664
        %v4346 = vadd.f32 %v4345, %v3674
        %v4347 = vadd.f32 %v4346, %v3684
        %v4348 = vadd.f32 %v4347, %v3694
        %v4349 = vadd.f32 %v4348, %v3704
        %v4350 = vadd.f32 %v4349, %v3714
        %v4351 = vadd.f32 %v4350, %v3724
        %v4352 = vadd.f32 %v4351, %v3734
        %v4353 = vadd.f32 %v4352, %v3744
        %v4354 = vadd.f32 %v4353, %v3754
        %v4355 = vadd.f32 %v4354, %v3764
        %v4356 = vadd.f32 %v4355, %v3774
        %v4357 = vadd.f32 %v4356, %v3784
        %v4358 = vadd.f32 %v4357, %v3794
        %v4359 = vadd.f32 %v4358, %v3804
        %v4360 = vadd.f32 %v4359, %v3814
        %v4361 = vadd.f32 %v4360, %v3824
        %v4362 = vadd.f32 %v4361, %v3834
        %v4363 = vadd.f32 %v4362, %v3844
        %v4364 = vadd.f32 %v4363, %v3854
        %v4365 = vadd.f32 %v4364, %v3864
        %v4366 = vadd.f32 %v4365, %v3874
        %v4367 = vadd.f32 %v4366, %v3884
        %v4368 = vadd.f32 %v4367, %v3894
        %v4369 = vadd.f32 %v4368, %v3904
        %v4370 = vadd.f32 %v4369, %v3914
        %v4371 = vadd.f32 %v4370, %v3924
        %v4372 = vadd.f32 %v4371, %v3934
        %v4373 = vadd.f32 %v4372, %v3944
        %v4374 = vadd.f32 %v4373, %v3954
        %v4375 = vadd.f32 %v4374, %v3964
        %v4376 = vadd.f32 %v4375, %v3974
        %v4377 = vadd.f32 %v4376, %v3984
        %v4378 = vadd.f32 %v4377, %v3994
        %v4379 = vrot.slane %v4378, 4
        %v4380 = vadd.f32 %v4378, %v4379
        %v4381 = vrot.slane %v4380, 2
        %v4382 = vadd.f32 %v4380, %v4381
        %v4383 = vrot.slane %v4382, 1
        %v4384 = vadd.f32 %v4382, %v4383
        %v4385 = vadd.f32 %v3505, %v3515
        %v4386 = vadd.f32 %v4385, %v3525
        %v4387 = vadd.f32 %v4386, %v3535
        %v4388 = vadd.f32 %v4387, %v3545
        %v4389 = vadd.f32 %v4388, %v3555
        %v4390 = vadd.f32 %v4389, %v3565
        %v4391 = vadd.f32 %v4390, %v3575
        %v4392 = vadd.f32 %v4391, %v3585
        %v4393 = vadd.f32 %v4392, %v3595
        %v4394 = vadd.f32 %v4393, %v3605
        %v4395 = vadd.f32 %v4394, %v3615
        %v4396 = vadd.f32 %v4395, %v3625
        %v4397 = vadd.f32 %v4396, %v3635
        %v4398 = vadd.f32 %v4397, %v3645
        %v4399 = vadd.f32 %v4398, %v3655
        %v4400 = vadd.f32 %v4399, %v3665
        %v4401 = vadd.f32 %v4400, %v3675
        %v4402 = vadd.f32 %v4401, %v3685
        %v4403 = vadd.f32 %v4402, %v3695
        %v4404 = vadd.f32 %v4403, %v3705
        %v4405 = vadd.f32 %v4404, %v3715
        %v4406 = vadd.f32 %v4405, %v3725
        %v4407 = vadd.f32 %v4406, %v3735
        %v4408 = vadd.f32 %v4407, %v3745
        %v4409 = vadd.f32 %v4408, %v3755
        %v4410 = vadd.f32 %v4409, %v3765
        %v4411 = vadd.f32 %v4410, %v3775
        %v4412 = vadd.f32 %v4411, %v3785
        %v4413 = vadd.f32 %v4412, %v3795
        %v4414 = vadd.f32 %v4413, %v3805
        %v4415 = vadd.f32 %v4414, %v3815
        %v4416 = vadd.f32 %v4415, %v3825
        %v4417 = vadd.f32 %v4416, %v3835
        %v4418 = vadd.f32 %v4417, %v3845
        %v4419 = vadd.f32 %v4418, %v3855
        %v4420 = vadd.f32 %v4419, %v3865
        %v4421 = vadd.f32 %v4420, %v3875
        %v4422 = vadd.f32 %v4421, %v3885
        %v4423 = vadd.f32 %v4422, %v3895
        %v4424 = vadd.f32 %v4423, %v3905
        %v4425 = vadd.f32 %v4424, %v3915
        %v4426 = vadd.f32 %v4425, %v3925
        %v4427 = vadd.f32 %v4426, %v3935
        %v4428 = vadd.f32 %v4427, %v3945
        %v4429 = vadd.f32 %v4428, %v3955
        %v4430 = vadd.f32 %v4429, %v3965
        %v4431 = vadd.f32 %v4430, %v3975
        %v4432 = vadd.f32 %v4431, %v3985
        %v4433 = vadd.f32 %v4432, %v3995
        %v4434 = vrot.slane %v4433, 4
        %v4435 = vadd.f32 %v4433, %v4434
        %v4436 = vrot.slane %v4435, 2
        %v4437 = vadd.f32 %v4435, %v4436
        %v4438 = vrot.slane %v4437, 1
        %v4439 = vadd.f32 %v4437, %v4438
        %v4440 = vadd.f32 %v3506, %v3516
        %v4441 = vadd.f32 %v4440, %v3526
        %v4442 = vadd.f32 %v4441, %v3536
        %v4443 = vadd.f32 %v4442, %v3546
        %v4444 = vadd.f32 %v4443, %v3556
        %v4445 = vadd.f32 %v4444, %v3566
        %v4446 = vadd.f32 %v4445, %v3576
        %v4447 = vadd.f32 %v4446, %v3586
        %v4448 = vadd.f32 %v4447, %v3596
        %v4449 = vadd.f32 %v4448, %v3606
        %v4450 = vadd.f32 %v4449, %v3616
        %v4451 = vadd.f32 %v4450, %v3626
        %v4452 = vadd.f32 %v4451, %v3636
        %v4453 = vadd.f32 %v4452, %v3646
        %v4454 = vadd.f32 %v4453, %v3656
        %v4455 = vadd.f32 %v4454, %v3666
        %v4456 = vadd.f32 %v4455, %v3676
        %v4457 = vadd.f32 %v4456, %v3686
        %v4458 = vadd.f32 %v4457, %v3696
        %v4459 = vadd.f32 %v4458, %v3706
        %v4460 = vadd.f32 %v4459, %v3716
        %v4461 = vadd.f32 %v4460, %v3726
        %v4462 = vadd.f32 %v4461, %v3736
        %v4463 = vadd.f32 %v4462, %v3746
        %v4464 = vadd.f32 %v4463, %v3756
        %v4465 = vadd.f32 %v4464, %v3766
        %v4466 = vadd.f32 %v4465, %v3776
        %v4467 = vadd.f32 %v4466, %v3786
        %v4468 = vadd.f32 %v4467, %v3796
        %v4469 = vadd.f32 %v4468, %v3806
        %v4470 = vadd.f32 %v4469, %v3816
        %v4471 = vadd.f32 %v4470, %v3826
        %v4472 = vadd.f32 %v4471, %v3836
        %v4473 = vadd.f32 %v4472, %v3846
        %v4474 = vadd.f32 %v4473, %v3856
        %v4475 = vadd.f32 %v4474, %v3866
        %v4476 = vadd.f32 %v4475, %v3876
        %v4477 = vadd.f32 %v4476, %v3886
        %v4478 = vadd.f32 %v4477, %v3896
        %v4479 = vadd.f32 %v4478, %v3906
        %v4480 = vadd.f32 %v4479, %v3916
        %v4481 = vadd.f32 %v4480, %v3926
        %v4482 = vadd.f32 %v4481, %v3936
        %v4483 = vadd.f32 %v4482, %v3946
        %v4484 = vadd.f32 %v4483, %v3956
        %v4485 = vadd.f32 %v4484, %v3966
        %v4486 = vadd.f32 %v4485, %v3976
        %v4487 = vadd.f32 %v4486, %v3986
        %v4488 = vadd.f32 %v4487, %v3996
        %v4489 = vrot.slane %v4488, 4
        %v4490 = vadd.f32 %v4488, %v4489
        %v4491 = vrot.slane %v4490, 2
        %v4492 = vadd.f32 %v4490, %v4491
        %v4493 = vrot.slane %v4492, 1
        %v4494 = vadd.f32 %v4492, %v4493
        %v4495 = vadd.f32 %v3507, %v3517
        %v4496 = vadd.f32 %v4495, %v3527
        %v4497 = vadd.f32 %v4496, %v3537
        %v4498 = vadd.f32 %v4497, %v3547
        %v4499 = vadd.f32 %v4498, %v3557
        %v4500 = vadd.f32 %v4499, %v3567
        %v4501 = vadd.f32 %v4500, %v3577
        %v4502 = vadd.f32 %v4501, %v3587
        %v4503 = vadd.f32 %v4502, %v3597
        %v4504 = vadd.f32 %v4503, %v3607
        %v4505 = vadd.f32 %v4504, %v3617
        %v4506 = vadd.f32 %v4505, %v3627
        %v4507 = vadd.f32 %v4506, %v3637
        %v4508 = vadd.f32 %v4507, %v3647
        %v4509 = vadd.f32 %v4508, %v3657
        %v4510 = vadd.f32 %v4509, %v3667
        %v4511 = vadd.f32 %v4510, %v3677
        %v4512 = vadd.f32 %v4511, %v3687
        %v4513 = vadd.f32 %v4512, %v3697
        %v4514 = vadd.f32 %v4513, %v3707
        %v4515 = vadd.f32 %v4514, %v3717
        %v4516 = vadd.f32 %v4515, %v3727
        %v4517 = vadd.f32 %v4516, %v3737
        %v4518 = vadd.f32 %v4517, %v3747
        %v4519 = vadd.f32 %v4518, %v3757
        %v4520 = vadd.f32 %v4519, %v3767
        %v4521 = vadd.f32 %v4520, %v3777
        %v4522 = vadd.f32 %v4521, %v3787
        %v4523 = vadd.f32 %v4522, %v3797
        %v4524 = vadd.f32 %v4523, %v3807
        %v4525 = vadd.f32 %v4524, %v3817
        %v4526 = vadd.f32 %v4525, %v3827
        %v4527 = vadd.f32 %v4526, %v3837
        %v4528 = vadd.f32 %v4527, %v3847
        %v4529 = vadd.f32 %v4528, %v3857
        %v4530 = vadd.f32 %v4529, %v3867
        %v4531 = vadd.f32 %v4530, %v3877
        %v4532 = vadd.f32 %v4531, %v3887
        %v4533 = vadd.f32 %v4532, %v3897
        %v4534 = vadd.f32 %v4533, %v3907
        %v4535 = vadd.f32 %v4534, %v3917
        %v4536 = vadd.f32 %v4535, %v3927
        %v4537 = vadd.f32 %v4536, %v3937
        %v4538 = vadd.f32 %v4537, %v3947
        %v4539 = vadd.f32 %v4538, %v3957
        %v4540 = vadd.f32 %v4539, %v3967
        %v4541 = vadd.f32 %v4540, %v3977
        %v4542 = vadd.f32 %v4541, %v3987
        %v4543 = vadd.f32 %v4542, %v3997
        %v4544 = vrot.slane %v4543, 4
        %v4545 = vadd.f32 %v4543, %v4544
        %v4546 = vrot.slane %v4545, 2
        %v4547 = vadd.f32 %v4545, %v4546
        %v4548 = vrot.slane %v4547, 1
        %v4549 = vadd.f32 %v4547, %v4548
        %v4560 = vcombine.low %v4054, %v4109
        %v4561 = vcombine.low %v4164, %v4219
        %v4562 = vcombine.low %v4274, %v4329
        %v4563 = vcombine.low %v4384, %v4439
        %v4565 = vunpack.c.l.s4 1966171168
        %v4566 = vunpack.c.0.s8 %v4565
        %v4567 = vlaneseq
        %v4568 = vshrl.u32 %v4567, 7
        %v4569 = vsub.s32 %v4566, %v4568
        %v4570 = vrot.slane %v4560, %v4569
        %v4572 = vunpack.c.l.s4 1966171168
        %v4573 = vunpack.c.0.s8 %v4572
        %v4574 = vlaneseq
        %v4575 = vshrl.u32 %v4574, 7
        %v4576 = vsub.s32 %v4573, %v4575
        %v4577 = vrot.slane %v4561, %v4576
        %v4579 = vunpack.c.l.s4 1966171168
        %v4580 = vunpack.c.0.s8 %v4579
        %v4581 = vlaneseq
        %v4582 = vshrl.u32 %v4581, 7
        %v4583 = vsub.s32 %v4580, %v4582
        %v4584 = vrot.slane %v4562, %v4583
        %v4586 = vunpack.c.l.s4 1966171168
        %v4587 = vunpack.c.0.s8 %v4586
        %v4588 = vlaneseq
        %v4589 = vshrl.u32 %v4588, 7
        %v4590 = vsub.s32 %v4587, %v4589
        %v4591 = vrot.slane %v4563, %v4590
        %v4592 = vcombine.low %v4570, %v4577
        %v4593 = vcombine.low %v4584, %v4591
        %v4595 = vunpack.c.l.s4 1966171168
        %v4596 = vunpack.c.0.s8 %v4595
        %v4597 = vlaneseq
        %v4598 = vshrl.u32 %v4597, 7
        %v4599 = vsub.s32 %v4596, %v4598
        %v4600 = vrot.slane %v4592, %v4599
        %v4602 = vunpack.c.l.s4 1966171168
        %v4603 = vunpack.c.0.s8 %v4602
        %v4604 = vlaneseq
        %v4605 = vshrl.u32 %v4604, 7
        %v4606 = vsub.s32 %v4603, %v4605
        %v4607 = vrot.slane %v4593, %v4606
        %v4608 = vcombine.low %v4600, %v4607
        %v4609 = vcombine.low %v4494, %v4549
        %v4611 = vunpack.c.l.s4 1966171168
        %v4612 = vunpack.c.0.s8 %v4611
        %v4613 = vlaneseq
        %v4614 = vshrl.u32 %v4613, 7
        %v4615 = vsub.s32 %v4612, %v4614
        %v4616 = vrot.slane %v4609, %v4615
        %v4618 = vunpack.c.l.s4 1966171168
        %v4619 = vunpack.c.0.s8 %v4618
        %v4620 = vlaneseq
        %v4621 = vshrl.u32 %v4620, 7
        %v4622 = vsub.s32 %v4619, %v4621
        %v4623 = vrot.slane %v4616, %v4622
        %v4626 = vadd.f32 %v3998, %v4608
        %v4627 = vadd.f32 %v3999, %v4623
        %4628 = vst [vmem:[#allocation2] sm:$0xff] %v4626
        %v4629 = vlaneseq
        %vm4630 = vcmp.ge.s32.totalorder %v4629, 0
        %vm4631 = vcmp.lt.s32.totalorder %v4629, 256
        %vm4632 = vmand %vm4630, %vm4631
        %4633 = vst.msk [vmem:[#allocation2 + $0x8] sm:$0x3] %vm4632, %v4627
        // Predicated region
        $region45: #{tpu_custom_call.1} parent=39 // pred_check
          %p4634 = pneg %p288
        $region46: #{tpu_custom_call.1} parent=39 // pred_check_branch
          %4636 = sbr.rel (%p4634) target = $region48
        $region47: #{tpu_custom_call.1} parent=39 // pred_region
          %v4637 = vld [vmem:[#allocation2] sm:$0xff]
          %v4638 = vld [vmem:[#allocation2 + $0x8] sm:$0x3]
          %v4639 = vmul.f32 %v4637, 0.0025
          %v4640 = vmul.f32 %v4638, 0.0025
          %v4643 = vlaneseq
          %v4644 = vshrl.u32 %v4643, 7
          %v4645 = vsub.s32 0, %v4644
          %v4646 = vrot.slane %v4639, %v4645
          %v4647 = vlaneseq
          %v4648 = vshrl.u32 %v4647, 7
          %v4649 = vsub.s32 1, %v4648
          %v4650 = vrot.slane %v4639, %v4649
          %v4651 = vlaneseq
          %v4652 = vshrl.u32 %v4651, 7
          %v4653 = vsub.s32 2, %v4652
          %v4654 = vrot.slane %v4639, %v4653
          %v4655 = vlaneseq
          %v4656 = vshrl.u32 %v4655, 7
          %v4657 = vsub.s32 3, %v4656
          %v4658 = vrot.slane %v4639, %v4657
          %v4659 = vlaneseq
          %v4660 = vshrl.u32 %v4659, 7
          %v4661 = vsub.s32 4, %v4660
          %v4662 = vrot.slane %v4639, %v4661
          %v4663 = vlaneseq
          %v4664 = vshrl.u32 %v4663, 7
          %v4665 = vsub.s32 5, %v4664
          %v4666 = vrot.slane %v4639, %v4665
          %v4667 = vlaneseq
          %v4668 = vshrl.u32 %v4667, 7
          %v4669 = vsub.s32 6, %v4668
          %v4670 = vrot.slane %v4639, %v4669
          %v4671 = vlaneseq
          %v4672 = vshrl.u32 %v4671, 7
          %v4673 = vsub.s32 7, %v4672
          %v4674 = vrot.slane %v4639, %v4673
          %v4675 = vlaneseq
          %v4676 = vshrl.u32 %v4675, 7
          %v4677 = vsub.s32 0, %v4676
          %v4678 = vrot.slane %v4640, %v4677
          %v4679 = vlaneseq
          %v4680 = vshrl.u32 %v4679, 7
          %v4681 = vsub.s32 1, %v4680
          %v4682 = vrot.slane %v4640, %v4681
          %v4693 = vpack.c.bf16 %v4646, %v4646
          %v4694 = vpack.c.bf16 %v4650, %v4650
          %v4695 = vpack.c.bf16 %v4654, %v4654
          %v4696 = vpack.c.bf16 %v4658, %v4658
          %v4697 = vpack.c.bf16 %v4662, %v4662
          %v4698 = vpack.c.bf16 %v4666, %v4666
          %v4699 = vpack.c.bf16 %v4670, %v4670
          %v4700 = vpack.c.bf16 %v4674, %v4674
          %v4701 = vpack.c.bf16 %v4678, %v4678
          %v4702 = vpack.c.bf16 %v4682, %v4682
          %v4703 = vld [vmem:[%s3] sm:$0xf]
          %v4704 = vld [vmem:[%s3 + $0x4] sm:$0xf]
          %v4705 = vld [vmem:[%s3 + $0x8] sm:$0xf]
          %v4706 = vld [vmem:[%s3 + $0xc] sm:$0xf]
          %v4707 = vld [vmem:[%s3 + $0x10] sm:$0xf]
          %v4708 = vld [vmem:[%s3 + $0x14] sm:$0xf]
          %v4709 = vld [vmem:[%s3 + $0x18] sm:$0xf]
          %v4710 = vld [vmem:[%s3 + $0x1c] sm:$0xf]
          %v4711 = vld [vmem:[%s3 + $0x20] sm:$0xf]
          %v4712 = vld [vmem:[%s3 + $0x24] sm:$0xf]
          %v4713 = vld [vmem:[%s3 + $0x28] sm:$0xf]
          %v4714 = vld [vmem:[%s3 + $0x2c] sm:$0xf]
          %v4715 = vld [vmem:[%s3 + $0x30] sm:$0xf]
          %v4716 = vld [vmem:[%s3 + $0x34] sm:$0xf]
          %v4717 = vld [vmem:[%s3 + $0x38] sm:$0xf]
          %v4718 = vld [vmem:[%s3 + $0x3c] sm:$0xf]
          %v4719 = vld [vmem:[%s3 + $0x40] sm:$0xf]
          %v4720 = vld [vmem:[%s3 + $0x44] sm:$0xf]
          %v4721 = vld [vmem:[%s3 + $0x48] sm:$0xf]
          %v4722 = vld [vmem:[%s3 + $0x4c] sm:$0xf]
          %v4723 = vld [vmem:[%s3 + $0x50] sm:$0xf]
          %v4724 = vld [vmem:[%s3 + $0x54] sm:$0xf]
          %v4725 = vld [vmem:[%s3 + $0x58] sm:$0xf]
          %v4726 = vld [vmem:[%s3 + $0x5c] sm:$0xf]
          %v4727 = vld [vmem:[%s3 + $0x60] sm:$0xf]
          %v4728 = vld [vmem:[%s3 + $0x64] sm:$0xf]
          %v4729 = vld [vmem:[%s3 + $0x68] sm:$0xf]
          %v4730 = vld [vmem:[%s3 + $0x6c] sm:$0xf]
          %v4731 = vld [vmem:[%s3 + $0x70] sm:$0xf]
          %v4732 = vld [vmem:[%s3 + $0x74] sm:$0xf]
          %v4733 = vld [vmem:[%s3 + $0x78] sm:$0xf]
          %v4734 = vld [vmem:[%s3 + $0x7c] sm:$0xf]
          %v4735 = vld [vmem:[%s3 + $0x80] sm:$0xf]
          %v4736 = vld [vmem:[%s3 + $0x84] sm:$0xf]
          %v4737 = vld [vmem:[%s3 + $0x88] sm:$0xf]
          %v4738 = vld [vmem:[%s3 + $0x8c] sm:$0xf]
          %v4739 = vld [vmem:[%s3 + $0x90] sm:$0xf]
          %v4740 = vld [vmem:[%s3 + $0x94] sm:$0xf]
          %v4741 = vld [vmem:[%s3 + $0x98] sm:$0xf]
          %v4742 = vld [vmem:[%s3 + $0x9c] sm:$0xf]
          %v4743 = vld [vmem:[%s3 + $0xa0] sm:$0xf]
          %v4744 = vld [vmem:[%s3 + $0xa4] sm:$0xf]
          %v4745 = vld [vmem:[%s3 + $0xa8] sm:$0xf]
          %v4746 = vld [vmem:[%s3 + $0xac] sm:$0xf]
          %v4747 = vld [vmem:[%s3 + $0xb0] sm:$0xf]
          %v4748 = vld [vmem:[%s3 + $0xb4] sm:$0xf]
          %v4749 = vld [vmem:[%s3 + $0xb8] sm:$0xf]
          %v4750 = vld [vmem:[%s3 + $0xbc] sm:$0xf]
          %v4751 = vld [vmem:[%s3 + $0xc0] sm:$0xf]
          %v4752 = vld [vmem:[%s3 + $0xc4] sm:$0xf]
          %v4753 = vld [vmem:[%s3 + $0xc8] sm:$0xf]
          %v4754 = vld [vmem:[%s3 + $0xcc] sm:$0xf]
          %v4755 = vld [vmem:[%s3 + $0xd0] sm:$0xf]
          %v4756 = vld [vmem:[%s3 + $0xd4] sm:$0xf]
          %v4757 = vld [vmem:[%s3 + $0xd8] sm:$0xf]
          %v4758 = vld [vmem:[%s3 + $0xdc] sm:$0xf]
          %v4759 = vld [vmem:[%s3 + $0xe0] sm:$0xf]
          %v4760 = vld [vmem:[%s3 + $0xe4] sm:$0xf]
          %v4761 = vld [vmem:[%s3 + $0xe8] sm:$0xf]
          %v4762 = vld [vmem:[%s3 + $0xec] sm:$0xf]
          %v4763 = vld [vmem:[%s3 + $0xf0] sm:$0xf]
          %v4764 = vld [vmem:[%s3 + $0xf4] sm:$0xf]
          %v4765 = vld [vmem:[%s3 + $0xf8] sm:$0xf]
          %v4766 = vld [vmem:[%s3 + $0xfc] sm:$0xf]
          %v4767 = vld [vmem:[%s3 + $0x100] sm:$0xf]
          %v4768 = vld [vmem:[%s3 + $0x104] sm:$0xf]
          %v4769 = vld [vmem:[%s3 + $0x108] sm:$0xf]
          %v4770 = vld [vmem:[%s3 + $0x10c] sm:$0xf]
          %v4771 = vld [vmem:[%s3 + $0x110] sm:$0xf]
          %v4772 = vld [vmem:[%s3 + $0x114] sm:$0xf]
          %v4773 = vld [vmem:[%s3 + $0x118] sm:$0xf]
          %v4774 = vld [vmem:[%s3 + $0x11c] sm:$0xf]
          %v4775 = vld [vmem:[%s3 + $0x120] sm:$0xf]
          %v4776 = vld [vmem:[%s3 + $0x124] sm:$0xf]
          %v4777 = vld [vmem:[%s3 + $0x128] sm:$0xf]
          %v4778 = vld [vmem:[%s3 + $0x12c] sm:$0xf]
          %v4779 = vld [vmem:[%s3 + $0x130] sm:$0xf]
          %v4780 = vld [vmem:[%s3 + $0x134] sm:$0xf]
          %v4781 = vld [vmem:[%s3 + $0x138] sm:$0xf]
          %v4782 = vld [vmem:[%s3 + $0x13c] sm:$0xf]
          %v4783 = vld [vmem:[%s3 + $0x140] sm:$0xf]
          %v4784 = vld [vmem:[%s3 + $0x144] sm:$0xf]
          %v4785 = vld [vmem:[%s3 + $0x148] sm:$0xf]
          %v4786 = vld [vmem:[%s3 + $0x14c] sm:$0xf]
          %v4787 = vld [vmem:[%s3 + $0x150] sm:$0xf]
          %v4788 = vld [vmem:[%s3 + $0x154] sm:$0xf]
          %v4789 = vld [vmem:[%s3 + $0x158] sm:$0xf]
          %v4790 = vld [vmem:[%s3 + $0x15c] sm:$0xf]
          %v4791 = vld [vmem:[%s3 + $0x160] sm:$0xf]
          %v4792 = vld [vmem:[%s3 + $0x164] sm:$0xf]
          %v4793 = vld [vmem:[%s3 + $0x168] sm:$0xf]
          %v4794 = vld [vmem:[%s3 + $0x16c] sm:$0xf]
          %v4795 = vld [vmem:[%s3 + $0x170] sm:$0xf]
          %v4796 = vld [vmem:[%s3 + $0x174] sm:$0xf]
          %v4797 = vld [vmem:[%s3 + $0x178] sm:$0xf]
          %v4798 = vld [vmem:[%s3 + $0x17c] sm:$0xf]
          %v4799 = vld [vmem:[%s3 + $0x180] sm:$0xf]
          %v4800 = vld [vmem:[%s3 + $0x184] sm:$0xf]
          %v4801 = vld [vmem:[%s3 + $0x188] sm:$0xf]
          %v4802 = vld [vmem:[%s3 + $0x18c] sm:$0xf]
          %v4803 = vld [vmem:[%s3 + $0x190] sm:$0xf]
          %v4804 = vld [vmem:[%s3 + $0x194] sm:$0xf]
          %v4805 = vld [vmem:[%s3 + $0x198] sm:$0xf]
          %v4806 = vld [vmem:[%s3 + $0x19c] sm:$0xf]
          %v4807 = vld [vmem:[%s3 + $0x1a0] sm:$0xf]
          %v4808 = vld [vmem:[%s3 + $0x1a4] sm:$0xf]
          %v4809 = vld [vmem:[%s3 + $0x1a8] sm:$0xf]
          %v4810 = vld [vmem:[%s3 + $0x1ac] sm:$0xf]
          %v4811 = vld [vmem:[%s3 + $0x1b0] sm:$0xf]
          %v4812 = vld [vmem:[%s3 + $0x1b4] sm:$0xf]
          %v4813 = vld [vmem:[%s3 + $0x1b8] sm:$0xf]
          %v4814 = vld [vmem:[%s3 + $0x1bc] sm:$0xf]
          %v4815 = vld [vmem:[%s3 + $0x1c0] sm:$0xf]
          %v4816 = vld [vmem:[%s3 + $0x1c4] sm:$0xf]
          %v4817 = vld [vmem:[%s3 + $0x1c8] sm:$0xf]
          %v4818 = vld [vmem:[%s3 + $0x1cc] sm:$0xf]
          %v4819 = vld [vmem:[%s3 + $0x1d0] sm:$0xf]
          %v4820 = vld [vmem:[%s3 + $0x1d4] sm:$0xf]
          %v4821 = vld [vmem:[%s3 + $0x1d8] sm:$0xf]
          %v4822 = vld [vmem:[%s3 + $0x1dc] sm:$0xf]
          %v4823 = vld [vmem:[%s3 + $0x1e0] sm:$0xf]
          %v4824 = vld [vmem:[%s3 + $0x1e4] sm:$0xf]
          %v4825 = vld [vmem:[%s3 + $0x1e8] sm:$0xf]
          %v4826 = vld [vmem:[%s3 + $0x1ec] sm:$0xf]
          %v4827 = vld [vmem:[%s3 + $0x1f0] sm:$0xf]
          %v4828 = vld [vmem:[%s3 + $0x1f4] sm:$0xf]
          %v4829 = vld [vmem:[%s3 + $0x1f8] sm:$0xf]
          %v4830 = vld [vmem:[%s3 + $0x1fc] sm:$0xf]
          %v4831 = vld [vmem:[%s3 + $0x200] sm:$0xf]
          %v4832 = vld [vmem:[%s3 + $0x204] sm:$0xf]
          %v4833 = vld [vmem:[%s3 + $0x208] sm:$0xf]
          %v4834 = vld [vmem:[%s3 + $0x20c] sm:$0xf]
          %v4835 = vld [vmem:[%s3 + $0x210] sm:$0xf]
          %v4836 = vld [vmem:[%s3 + $0x214] sm:$0xf]
          %v4837 = vld [vmem:[%s3 + $0x218] sm:$0xf]
          %v4838 = vld [vmem:[%s3 + $0x21c] sm:$0xf]
          %v4839 = vld [vmem:[%s3 + $0x220] sm:$0xf]
          %v4840 = vld [vmem:[%s3 + $0x224] sm:$0xf]
          %v4841 = vld [vmem:[%s3 + $0x228] sm:$0xf]
          %v4842 = vld [vmem:[%s3 + $0x22c] sm:$0xf]
          %v4843 = vld [vmem:[%s3 + $0x230] sm:$0xf]
          %v4844 = vld [vmem:[%s3 + $0x234] sm:$0xf]
          %v4845 = vld [vmem:[%s3 + $0x238] sm:$0xf]
          %v4846 = vld [vmem:[%s3 + $0x23c] sm:$0xf]
          %v4847 = vld [vmem:[%s3 + $0x240] sm:$0xf]
          %v4848 = vld [vmem:[%s3 + $0x244] sm:$0xf]
          %v4849 = vld [vmem:[%s3 + $0x248] sm:$0xf]
          %v4850 = vld [vmem:[%s3 + $0x24c] sm:$0xf]
          %v4851 = vld [vmem:[%s3 + $0x250] sm:$0xf]
          %v4852 = vld [vmem:[%s3 + $0x254] sm:$0xf]
          %v4853 = vld [vmem:[%s3 + $0x258] sm:$0xf]
          %v4854 = vld [vmem:[%s3 + $0x25c] sm:$0xf]
          %v4855 = vld [vmem:[%s3 + $0x260] sm:$0xf]
          %v4856 = vld [vmem:[%s3 + $0x264] sm:$0xf]
          %v4857 = vld [vmem:[%s3 + $0x268] sm:$0xf]
          %v4858 = vld [vmem:[%s3 + $0x26c] sm:$0xf]
          %v4859 = vld [vmem:[%s3 + $0x270] sm:$0xf]
          %v4860 = vld [vmem:[%s3 + $0x274] sm:$0xf]
          %v4861 = vld [vmem:[%s3 + $0x278] sm:$0xf]
          %v4862 = vld [vmem:[%s3 + $0x27c] sm:$0xf]
          %v4863 = vld [vmem:[%s4] sm:$0x1]
          %v5024 = vunpack.c.l.b16 %v4703
          %v5025 = vunpack.c.l.b16 %v4704
          %v5026 = vunpack.c.l.b16 %v4705
          %v5027 = vunpack.c.l.b16 %v4706
          %v5028 = vunpack.c.l.b16 %v4707
          %v5029 = vunpack.c.l.b16 %v4708
          %v5030 = vunpack.c.l.b16 %v4709
          %v5031 = vunpack.c.l.b16 %v4710
          %v5032 = vunpack.c.l.b16 %v4711
          %v5033 = vunpack.c.l.b16 %v4712
          %v5034 = vunpack.c.l.b16 %v4713
          %v5035 = vunpack.c.l.b16 %v4714
          %v5036 = vunpack.c.l.b16 %v4715
          %v5037 = vunpack.c.l.b16 %v4716
          %v5038 = vunpack.c.l.b16 %v4717
          %v5039 = vunpack.c.l.b16 %v4718
          %v5040 = vunpack.c.l.b16 %v4719
          %v5041 = vunpack.c.l.b16 %v4720
          %v5042 = vunpack.c.l.b16 %v4721
          %v5043 = vunpack.c.l.b16 %v4722
          %v5044 = vunpack.c.l.b16 %v4723
          %v5045 = vunpack.c.l.b16 %v4724
          %v5046 = vunpack.c.l.b16 %v4725
          %v5047 = vunpack.c.l.b16 %v4726
          %v5048 = vunpack.c.l.b16 %v4727
          %v5049 = vunpack.c.l.b16 %v4728
          %v5050 = vunpack.c.l.b16 %v4729
          %v5051 = vunpack.c.l.b16 %v4730
          %v5052 = vunpack.c.l.b16 %v4731
          %v5053 = vunpack.c.l.b16 %v4732
          %v5054 = vunpack.c.l.b16 %v4733
          %v5055 = vunpack.c.l.b16 %v4734
          %v5056 = vunpack.c.l.b16 %v4735
          %v5057 = vunpack.c.l.b16 %v4736
          %v5058 = vunpack.c.l.b16 %v4737
          %v5059 = vunpack.c.l.b16 %v4738
          %v5060 = vunpack.c.l.b16 %v4739
          %v5061 = vunpack.c.l.b16 %v4740
          %v5062 = vunpack.c.l.b16 %v4741
          %v5063 = vunpack.c.l.b16 %v4742
          %v5064 = vunpack.c.l.b16 %v4743
          %v5065 = vunpack.c.l.b16 %v4744
          %v5066 = vunpack.c.l.b16 %v4745
          %v5067 = vunpack.c.l.b16 %v4746
          %v5068 = vunpack.c.l.b16 %v4747
          %v5069 = vunpack.c.l.b16 %v4748
          %v5070 = vunpack.c.l.b16 %v4749
          %v5071 = vunpack.c.l.b16 %v4750
          %v5072 = vunpack.c.l.b16 %v4751
          %v5073 = vunpack.c.l.b16 %v4752
          %v5074 = vunpack.c.l.b16 %v4753
          %v5075 = vunpack.c.l.b16 %v4754
          %v5076 = vunpack.c.l.b16 %v4755
          %v5077 = vunpack.c.l.b16 %v4756
          %v5078 = vunpack.c.l.b16 %v4757
          %v5079 = vunpack.c.l.b16 %v4758
          %v5080 = vunpack.c.l.b16 %v4759
          %v5081 = vunpack.c.l.b16 %v4760
          %v5082 = vunpack.c.l.b16 %v4761
          %v5083 = vunpack.c.l.b16 %v4762
          %v5084 = vunpack.c.l.b16 %v4763
          %v5085 = vunpack.c.l.b16 %v4764
          %v5086 = vunpack.c.l.b16 %v4765
          %v5087 = vunpack.c.l.b16 %v4766
          %v5088 = vunpack.c.l.b16 %v4767
          %v5089 = vunpack.c.l.b16 %v4768
          %v5090 = vunpack.c.l.b16 %v4769
          %v5091 = vunpack.c.l.b16 %v4770
          %v5092 = vunpack.c.l.b16 %v4771
          %v5093 = vunpack.c.l.b16 %v4772
          %v5094 = vunpack.c.l.b16 %v4773
          %v5095 = vunpack.c.l.b16 %v4774
          %v5096 = vunpack.c.l.b16 %v4775
          %v5097 = vunpack.c.l.b16 %v4776
          %v5098 = vunpack.c.l.b16 %v4777
          %v5099 = vunpack.c.l.b16 %v4778
          %v5100 = vunpack.c.l.b16 %v4779
          %v5101 = vunpack.c.l.b16 %v4780
          %v5102 = vunpack.c.l.b16 %v4781
          %v5103 = vunpack.c.l.b16 %v4782
          %v5104 = vunpack.c.l.b16 %v4783
          %v5105 = vunpack.c.l.b16 %v4784
          %v5106 = vunpack.c.l.b16 %v4785
          %v5107 = vunpack.c.l.b16 %v4786
          %v5108 = vunpack.c.l.b16 %v4787
          %v5109 = vunpack.c.l.b16 %v4788
          %v5110 = vunpack.c.l.b16 %v4789
          %v5111 = vunpack.c.l.b16 %v4790
          %v5112 = vunpack.c.l.b16 %v4791
          %v5113 = vunpack.c.l.b16 %v4792
          %v5114 = vunpack.c.l.b16 %v4793
          %v5115 = vunpack.c.l.b16 %v4794
          %v5116 = vunpack.c.l.b16 %v4795
          %v5117 = vunpack.c.l.b16 %v4796
          %v5118 = vunpack.c.l.b16 %v4797
          %v5119 = vunpack.c.l.b16 %v4798
          %v5120 = vunpack.c.l.b16 %v4799
          %v5121 = vunpack.c.l.b16 %v4800
          %v5122 = vunpack.c.l.b16 %v4801
          %v5123 = vunpack.c.l.b16 %v4802
          %v5124 = vunpack.c.l.b16 %v4803
          %v5125 = vunpack.c.l.b16 %v4804
          %v5126 = vunpack.c.l.b16 %v4805
          %v5127 = vunpack.c.l.b16 %v4806
          %v5128 = vunpack.c.l.b16 %v4807
          %v5129 = vunpack.c.l.b16 %v4808
          %v5130 = vunpack.c.l.b16 %v4809
          %v5131 = vunpack.c.l.b16 %v4810
          %v5132 = vunpack.c.l.b16 %v4811
          %v5133 = vunpack.c.l.b16 %v4812
          %v5134 = vunpack.c.l.b16 %v4813
          %v5135 = vunpack.c.l.b16 %v4814
          %v5136 = vunpack.c.l.b16 %v4815
          %v5137 = vunpack.c.l.b16 %v4816
          %v5138 = vunpack.c.l.b16 %v4817
          %v5139 = vunpack.c.l.b16 %v4818
          %v5140 = vunpack.c.l.b16 %v4819
          %v5141 = vunpack.c.l.b16 %v4820
          %v5142 = vunpack.c.l.b16 %v4821
          %v5143 = vunpack.c.l.b16 %v4822
          %v5144 = vunpack.c.l.b16 %v4823
          %v5145 = vunpack.c.l.b16 %v4824
          %v5146 = vunpack.c.l.b16 %v4825
          %v5147 = vunpack.c.l.b16 %v4826
          %v5148 = vunpack.c.l.b16 %v4827
          %v5149 = vunpack.c.l.b16 %v4828
          %v5150 = vunpack.c.l.b16 %v4829
          %v5151 = vunpack.c.l.b16 %v4830
          %v5152 = vunpack.c.l.b16 %v4831
          %v5153 = vunpack.c.l.b16 %v4832
          %v5154 = vunpack.c.l.b16 %v4833
          %v5155 = vunpack.c.l.b16 %v4834
          %v5156 = vunpack.c.l.b16 %v4835
          %v5157 = vunpack.c.l.b16 %v4836
          %v5158 = vunpack.c.l.b16 %v4837
          %v5159 = vunpack.c.l.b16 %v4838
          %v5160 = vunpack.c.l.b16 %v4839
          %v5161 = vunpack.c.l.b16 %v4840
          %v5162 = vunpack.c.l.b16 %v4841
          %v5163 = vunpack.c.l.b16 %v4842
          %v5164 = vunpack.c.l.b16 %v4843
          %v5165 = vunpack.c.l.b16 %v4844
          %v5166 = vunpack.c.l.b16 %v4845
          %v5167 = vunpack.c.l.b16 %v4846
          %v5168 = vunpack.c.l.b16 %v4847
          %v5169 = vunpack.c.l.b16 %v4848
          %v5170 = vunpack.c.l.b16 %v4849
          %v5171 = vunpack.c.l.b16 %v4850
          %v5172 = vunpack.c.l.b16 %v4851
          %v5173 = vunpack.c.l.b16 %v4852
          %v5174 = vunpack.c.l.b16 %v4853
          %v5175 = vunpack.c.l.b16 %v4854
          %v5176 = vunpack.c.l.b16 %v4855
          %v5177 = vunpack.c.l.b16 %v4856
          %v5178 = vunpack.c.l.b16 %v4857
          %v5179 = vunpack.c.l.b16 %v4858
          %v5180 = vunpack.c.l.b16 %v4859
          %v5181 = vunpack.c.l.b16 %v4860
          %v5182 = vunpack.c.l.b16 %v4861
          %v5183 = vunpack.c.l.b16 %v4862
          %v5184 = vpack.c.b16 %v5025, %v5024
          %v5185 = vpack.c.b16 %v5027, %v5026
          %v5186 = vpack.c.b16 %v5029, %v5028
          %v5187 = vpack.c.b16 %v5031, %v5030
          %v5188 = vpack.c.b16 %v5033, %v5032
          %v5189 = vpack.c.b16 %v5035, %v5034
          %v5190 = vpack.c.b16 %v5037, %v5036
          %v5191 = vpack.c.b16 %v5039, %v5038
          %v5192 = vpack.c.b16 %v5041, %v5040
          %v5193 = vpack.c.b16 %v5043, %v5042
          %v5194 = vpack.c.b16 %v5045, %v5044
          %v5195 = vpack.c.b16 %v5047, %v5046
          %v5196 = vpack.c.b16 %v5049, %v5048
          %v5197 = vpack.c.b16 %v5051, %v5050
          %v5198 = vpack.c.b16 %v5053, %v5052
          %v5199 = vpack.c.b16 %v5055, %v5054
          %v5200 = vpack.c.b16 %v5057, %v5056
          %v5201 = vpack.c.b16 %v5059, %v5058
          %v5202 = vpack.c.b16 %v5061, %v5060
          %v5203 = vpack.c.b16 %v5063, %v5062
          %v5204 = vpack.c.b16 %v5065, %v5064
          %v5205 = vpack.c.b16 %v5067, %v5066
          %v5206 = vpack.c.b16 %v5069, %v5068
          %v5207 = vpack.c.b16 %v5071, %v5070
          %v5208 = vpack.c.b16 %v5073, %v5072
          %v5209 = vpack.c.b16 %v5075, %v5074
          %v5210 = vpack.c.b16 %v5077, %v5076
          %v5211 = vpack.c.b16 %v5079, %v5078
          %v5212 = vpack.c.b16 %v5081, %v5080
          %v5213 = vpack.c.b16 %v5083, %v5082
          %v5214 = vpack.c.b16 %v5085, %v5084
          %v5215 = vpack.c.b16 %v5087, %v5086
          %v5216 = vpack.c.b16 %v5089, %v5088
          %v5217 = vpack.c.b16 %v5091, %v5090
          %v5218 = vpack.c.b16 %v5093, %v5092
          %v5219 = vpack.c.b16 %v5095, %v5094
          %v5220 = vpack.c.b16 %v5097, %v5096
          %v5221 = vpack.c.b16 %v5099, %v5098
          %v5222 = vpack.c.b16 %v5101, %v5100
          %v5223 = vpack.c.b16 %v5103, %v5102
          %v5224 = vpack.c.b16 %v5105, %v5104
          %v5225 = vpack.c.b16 %v5107, %v5106
          %v5226 = vpack.c.b16 %v5109, %v5108
          %v5227 = vpack.c.b16 %v5111, %v5110
          %v5228 = vpack.c.b16 %v5113, %v5112
          %v5229 = vpack.c.b16 %v5115, %v5114
          %v5230 = vpack.c.b16 %v5117, %v5116
          %v5231 = vpack.c.b16 %v5119, %v5118
          %v5232 = vpack.c.b16 %v5121, %v5120
          %v5233 = vpack.c.b16 %v5123, %v5122
          %v5234 = vpack.c.b16 %v5125, %v5124
          %v5235 = vpack.c.b16 %v5127, %v5126
          %v5236 = vpack.c.b16 %v5129, %v5128
          %v5237 = vpack.c.b16 %v5131, %v5130
          %v5238 = vpack.c.b16 %v5133, %v5132
          %v5239 = vpack.c.b16 %v5135, %v5134
          %v5240 = vpack.c.b16 %v5137, %v5136
          %v5241 = vpack.c.b16 %v5139, %v5138
          %v5242 = vpack.c.b16 %v5141, %v5140
          %v5243 = vpack.c.b16 %v5143, %v5142
          %v5244 = vpack.c.b16 %v5145, %v5144
          %v5245 = vpack.c.b16 %v5147, %v5146
          %v5246 = vpack.c.b16 %v5149, %v5148
          %v5247 = vpack.c.b16 %v5151, %v5150
          %v5248 = vpack.c.b16 %v5153, %v5152
          %v5249 = vpack.c.b16 %v5155, %v5154
          %v5250 = vpack.c.b16 %v5157, %v5156
          %v5251 = vpack.c.b16 %v5159, %v5158
          %v5252 = vpack.c.b16 %v5161, %v5160
          %v5253 = vpack.c.b16 %v5163, %v5162
          %v5254 = vpack.c.b16 %v5165, %v5164
          %v5255 = vpack.c.b16 %v5167, %v5166
          %v5256 = vpack.c.b16 %v5169, %v5168
          %v5257 = vpack.c.b16 %v5171, %v5170
          %v5258 = vpack.c.b16 %v5173, %v5172
          %v5259 = vpack.c.b16 %v5175, %v5174
          %v5260 = vpack.c.b16 %v5177, %v5176
          %v5261 = vpack.c.b16 %v5179, %v5178
          %v5262 = vpack.c.b16 %v5181, %v5180
          %v5263 = vpack.c.b16 %v5183, %v5182
          %5344 = vmatprep.subr.bf16.mxu0 0
          %5345 = vmatpush1.bf16.msra.mxu0 %v5184
          %5346 = vmatprep.subr.bf16.mxu0 0
          %5347 = vmatpush1.bf16.msra.mxu0 %v5185
          %5348 = vmatprep.subr.bf16.mxu0 0
          %5349 = vmatpush1.bf16.msra.mxu0 %v5186
          %5350 = vmatprep.subr.bf16.mxu0 0
          %5351 = vmatpush1.bf16.msra.mxu0 %v5187
          %5352 = vmatprep.subr.bf16.mxu0 0
          %5353 = vmatpush1.bf16.msra.mxu0 %v5188
          %5354 = vmatprep.subr.bf16.mxu0 0
          %5355 = vmatpush1.bf16.msra.mxu0 %v5189
          %5356 = vmatprep.subr.bf16.mxu0 0
          %5357 = vmatpush1.bf16.msra.mxu0 %v5190
          %5358 = vmatprep.subr.bf16.mxu0 0
          %5359 = vmatpush1.bf16.msra.mxu0 %v5191
          %5360 = vmatprep.subr.bf16.mxu0 0
          %5361 = vmatpush1.bf16.msra.mxu0 %v5192
          %5362 = vmatprep.subr.bf16.mxu0 0
          %5363 = vmatpush1.bf16.msra.mxu0 %v5193
          %5364 = vmatprep.subr.bf16.mxu0 0
          %5365 = vmatpush1.bf16.msra.mxu0 %v5194
          %5366 = vmatprep.subr.bf16.mxu0 0
          %5367 = vmatpush1.bf16.msra.mxu0 %v5195
          %5368 = vmatprep.subr.bf16.mxu0 0
          %5369 = vmatpush1.bf16.msra.mxu0 %v5196
          %5370 = vmatprep.subr.bf16.mxu0 0
          %5371 = vmatpush1.bf16.msra.mxu0 %v5197
          %5372 = vmatprep.subr.bf16.mxu0 0
          %5373 = vmatpush1.bf16.msra.mxu0 %v5198
          %5374 = vmatprep.subr.bf16.mxu0 0
          %5375 = vmatpush1.bf16.msra.mxu0 %v5199
          %5376 = vmatprep.mubr.bf16.mxu0 %v4694
          %5377 = vmatmul.mubr.bf16.gmra.mrb[0].mxu0 %v4693
          %v5378 = vpop.f32.mrb[0].mxu0
          %v5379 = vadd.f32 %v4863, %v5378
          %v5380 = vpop.f32.mrb[0].mxu0
          %v5381 = vpop.f32.mrb[0].mxu0
          %v5382 = vpop.f32.mrb[0].mxu0
          %5383 = vdwg.mxu0
          %5384 = vmatprep.subr.bf16.mxu0 0
          %5385 = vmatpush1.bf16.msra.mxu0 %v5200
          %5386 = vmatprep.subr.bf16.mxu0 0
          %5387 = vmatpush1.bf16.msra.mxu0 %v5201
          %5388 = vmatprep.subr.bf16.mxu0 0
          %5389 = vmatpush1.bf16.msra.mxu0 %v5202
          %5390 = vmatprep.subr.bf16.mxu0 0
          %5391 = vmatpush1.bf16.msra.mxu0 %v5203
          %5392 = vmatprep.subr.bf16.mxu0 0
          %5393 = vmatpush1.bf16.msra.mxu0 %v5204
          %5394 = vmatprep.subr.bf16.mxu0 0
          %5395 = vmatpush1.bf16.msra.mxu0 %v5205
          %5396 = vmatprep.subr.bf16.mxu0 0
          %5397 = vmatpush1.bf16.msra.mxu0 %v5206
          %5398 = vmatprep.subr.bf16.mxu0 0
          %5399 = vmatpush1.bf16.msra.mxu0 %v5207
          %5400 = vmatprep.subr.bf16.mxu0 0
          %5401 = vmatpush1.bf16.msra.mxu0 %v5208
          %5402 = vmatprep.subr.bf16.mxu0 0
          %5403 = vmatpush1.bf16.msra.mxu0 %v5209
          %5404 = vmatprep.subr.bf16.mxu0 0
          %5405 = vmatpush1.bf16.msra.mxu0 %v5210
          %5406 = vmatprep.subr.bf16.mxu0 0
          %5407 = vmatpush1.bf16.msra.mxu0 %v5211
          %5408 = vmatprep.subr.bf16.mxu0 0
          %5409 = vmatpush1.bf16.msra.mxu0 %v5212
          %5410 = vmatprep.subr.bf16.mxu0 0
          %5411 = vmatpush1.bf16.msra.mxu0 %v5213
          %5412 = vmatprep.subr.bf16.mxu0 0
          %5413 = vmatpush1.bf16.msra.mxu0 %v5214
          %5414 = vmatprep.subr.bf16.mxu0 0
          %5415 = vmatpush1.bf16.msra.mxu0 %v5215
          %5416 = vmatprep.mubr.bf16.mxu0 %v4696
          %5417 = vmatmul.mubr.bf16.gmra.mrb[0].mxu0 %v4695
          %v5418 = vpop.f32.mrb[0].mxu0
          %v5419 = vadd.f32 %v5379, %v5418
          %v5420 = vpop.f32.mrb[0].mxu0
          %v5421 = vpop.f32.mrb[0].mxu0
          %v5422 = vpop.f32.mrb[0].mxu0
          %5423 = vdwg.mxu0
          %5424 = vmatprep.subr.bf16.mxu0 0
          %5425 = vmatpush1.bf16.msra.mxu0 %v5216
          %5426 = vmatprep.subr.bf16.mxu0 0
          %5427 = vmatpush1.bf16.msra.mxu0 %v5217
          %5428 = vmatprep.subr.bf16.mxu0 0
          %5429 = vmatpush1.bf16.msra.mxu0 %v5218
          %5430 = vmatprep.subr.bf16.mxu0 0
          %5431 = vmatpush1.bf16.msra.mxu0 %v5219
          %5432 = vmatprep.subr.bf16.mxu0 0
          %5433 = vmatpush1.bf16.msra.mxu0 %v5220
          %5434 = vmatprep.subr.bf16.mxu0 0
          %5435 = vmatpush1.bf16.msra.mxu0 %v5221
          %5436 = vmatprep.subr.bf16.mxu0 0
          %5437 = vmatpush1.bf16.msra.mxu0 %v5222
          %5438 = vmatprep.subr.bf16.mxu0 0
          %5439 = vmatpush1.bf16.msra.mxu0 %v5223
          %5440 = vmatprep.subr.bf16.mxu0 0
          %5441 = vmatpush1.bf16.msra.mxu0 %v5224
          %5442 = vmatprep.subr.bf16.mxu0 0
          %5443 = vmatpush1.bf16.msra.mxu0 %v5225
          %5444 = vmatprep.subr.bf16.mxu0 0
          %5445 = vmatpush1.bf16.msra.mxu0 %v5226
          %5446 = vmatprep.subr.bf16.mxu0 0
          %5447 = vmatpush1.bf16.msra.mxu0 %v5227
          %5448 = vmatprep.subr.bf16.mxu0 0
          %5449 = vmatpush1.bf16.msra.mxu0 %v5228
          %5450 = vmatprep.subr.bf16.mxu0 0
          %5451 = vmatpush1.bf16.msra.mxu0 %v5229
          %5452 = vmatprep.subr.bf16.mxu0 0
          %5453 = vmatpush1.bf16.msra.mxu0 %v5230
          %5454 = vmatprep.subr.bf16.mxu0 0
          %5455 = vmatpush1.bf16.msra.mxu0 %v5231
          %5456 = vmatprep.mubr.bf16.mxu0 %v4698
          %5457 = vmatmul.mubr.bf16.gmra.mrb[0].mxu0 %v4697
          %v5458 = vpop.f32.mrb[0].mxu0
          %v5459 = vadd.f32 %v5419, %v5458
          %v5460 = vpop.f32.mrb[0].mxu0
          %v5461 = vpop.f32.mrb[0].mxu0
          %v5462 = vpop.f32.mrb[0].mxu0
          %5463 = vdwg.mxu0
          %5464 = vmatprep.subr.bf16.mxu0 0
          %5465 = vmatpush1.bf16.msra.mxu0 %v5232
          %5466 = vmatprep.subr.bf16.mxu0 0
          %5467 = vmatpush1.bf16.msra.mxu0 %v5233
          %5468 = vmatprep.subr.bf16.mxu0 0
          %5469 = vmatpush1.bf16.msra.mxu0 %v5234
          %5470 = vmatprep.subr.bf16.mxu0 0
          %5471 = vmatpush1.bf16.msra.mxu0 %v5235
          %5472 = vmatprep.subr.bf16.mxu0 0
          %5473 = vmatpush1.bf16.msra.mxu0 %v5236
          %5474 = vmatprep.subr.bf16.mxu0 0
          %5475 = vmatpush1.bf16.msra.mxu0 %v5237
          %5476 = vmatprep.subr.bf16.mxu0 0
          %5477 = vmatpush1.bf16.msra.mxu0 %v5238
          %5478 = vmatprep.subr.bf16.mxu0 0
          %5479 = vmatpush1.bf16.msra.mxu0 %v5239
          %5480 = vmatprep.subr.bf16.mxu0 0
          %5481 = vmatpush1.bf16.msra.mxu0 %v5240
          %5482 = vmatprep.subr.bf16.mxu0 0
          %5483 = vmatpush1.bf16.msra.mxu0 %v5241
          %5484 = vmatprep.subr.bf16.mxu0 0
          %5485 = vmatpush1.bf16.msra.mxu0 %v5242
          %5486 = vmatprep.subr.bf16.mxu0 0
          %5487 = vmatpush1.bf16.msra.mxu0 %v5243
          %5488 = vmatprep.subr.bf16.mxu0 0
          %5489 = vmatpush1.bf16.msra.mxu0 %v5244
          %5490 = vmatprep.subr.bf16.mxu0 0
          %5491 = vmatpush1.bf16.msra.mxu0 %v5245
          %5492 = vmatprep.subr.bf16.mxu0 0
          %5493 = vmatpush1.bf16.msra.mxu0 %v5246
          %5494 = vmatprep.subr.bf16.mxu0 0
          %5495 = vmatpush1.bf16.msra.mxu0 %v5247
          %5496 = vmatprep.mubr.bf16.mxu0 %v4700
          %5497 = vmatmul.mubr.bf16.gmra.mrb[0].mxu0 %v4699
          %v5498 = vpop.f32.mrb[0].mxu0
          %v5499 = vadd.f32 %v5459, %v5498
          %v5500 = vpop.f32.mrb[0].mxu0
          %v5501 = vpop.f32.mrb[0].mxu0
          %v5502 = vpop.f32.mrb[0].mxu0
          %5503 = vdwg.mxu0
          %5504 = vmatprep.subr.bf16.mxu0 0
          %5505 = vmatpush1.bf16.msra.mxu0 %v5248
          %5506 = vmatprep.subr.bf16.mxu0 0
          %5507 = vmatpush1.bf16.msra.mxu0 %v5249
          %5508 = vmatprep.subr.bf16.mxu0 0
          %5509 = vmatpush1.bf16.msra.mxu0 %v5250
          %5510 = vmatprep.subr.bf16.mxu0 0
          %5511 = vmatpush1.bf16.msra.mxu0 %v5251
          %5512 = vmatprep.subr.bf16.mxu0 0
          %5513 = vmatpush1.bf16.msra.mxu0 %v5252
          %5514 = vmatprep.subr.bf16.mxu0 0
          %5515 = vmatpush1.bf16.msra.mxu0 %v5253
          %5516 = vmatprep.subr.bf16.mxu0 0
          %5517 = vmatpush1.bf16.msra.mxu0 %v5254
          %5518 = vmatprep.subr.bf16.mxu0 0
          %5519 = vmatpush1.bf16.msra.mxu0 %v5255
          %5520 = vmatprep.subr.bf16.mxu0 0
          %5521 = vmatpush1.bf16.msra.mxu0 %v5256
          %5522 = vmatprep.subr.bf16.mxu0 0
          %5523 = vmatpush1.bf16.msra.mxu0 %v5257
          %5524 = vmatprep.subr.bf16.mxu0 0
          %5525 = vmatpush1.bf16.msra.mxu0 %v5258
          %5526 = vmatprep.subr.bf16.mxu0 0
          %5527 = vmatpush1.bf16.msra.mxu0 %v5259
          %5528 = vmatprep.subr.bf16.mxu0 0
          %5529 = vmatpush1.bf16.msra.mxu0 %v5260
          %5530 = vmatprep.subr.bf16.mxu0 0
          %5531 = vmatpush1.bf16.msra.mxu0 %v5261
          %5532 = vmatprep.subr.bf16.mxu0 0
          %5533 = vmatpush1.bf16.msra.mxu0 %v5262
          %5534 = vmatprep.subr.bf16.mxu0 0
          %5535 = vmatpush1.bf16.msra.mxu0 %v5263
          %5536 = vmatprep.mubr.bf16.mxu0 %v4702
          %5537 = vmatmul.mubr.bf16.gmra.mrb[0].mxu0 %v4701
          %v5538 = vpop.f32.mrb[0].mxu0
          %v5539 = vadd.f32 %v5499, %v5538
          %v5540 = vpop.f32.mrb[0].mxu0
          %v5541 = vpop.f32.mrb[0].mxu0
          %v5542 = vpop.f32.mrb[0].mxu0
          %5543 = vdwg.mxu0
          %vm5544 = vcmask 57344
          %v5545 = vsel %vm5544, %v5539, -inf
          %5546 = vmax.xlane.f32.xlu0 %v5545
          %v5547 = vpop.xlane.xlu0 %5546
          %v5548 = vsub.f32 %v5539, %v5547
          %v5549 = vmul.f32 %v5548, 1.442695
          %v5550 = vpow.pop %v5549
          %v5551 = vsel %vm5544, %v5550, 0.0
          %5552 = vadd.xlane.f32.xlu0 %v5551
          %v5553 = vpop.xlane.xlu0 %5552
          %v5554 = vrcp.pop %v5553
          %v5555 = vmul.f32 %v5550, %v5554
          %5556 = vst.msk [vmem:[%s276] sm:$0x1] %vm5544, %v5539
          %5557 = vst.msk [vmem:[%s270] sm:$0x1] %vm5544, %v5555
        $region48: #{tpu_custom_call.1} parent=39 // pred_fallthru
          _
        %s5558 = sand.u32 %s156, 1
        %s5559 = scalar_lea.sflag [#allocation4], %s5558
        %s5560 = sand.u32 %s156, 1
        %s5561 = scalar_lea.vmem [#allocation3], %s5560
        %s5562 = sand.u32 %s182, 1
        %s5563 = scalar_lea.sflag [#allocation6], %s5562
        %s5564 = sand.u32 %s182, 1
        %s5565 = scalar_lea.vmem [#allocation5], %s5564
        // Predicated region
        $region49: #{tpu_custom_call.1} parent=39 // pred_check
          %p5566 = pneg %p166
        $region50: #{tpu_custom_call.1} parent=39 // pred_check_branch
          %5568 = sbr.rel (%p5566) target = $region52
        $region51: #{tpu_custom_call.1} parent=39 // pred_region
          %s5570 = ssub.s32 16, 16
          %5571 = vsyncadd %s5559, %s5570
          %s5572 = smul.addr %s28, 16
          %s5573 = scalar_lea.hbm %s5, %s5572
          %s5575 = sshll.u32 %s5561, 4
          %s5576 = int_to_ptr.vmem [resolvable:$true] %s5575
          %5578 = dma.vmem_to_hbm [thread:$0]  %s5576, 16, %s5573, %s5559
        $region52: #{tpu_custom_call.1} parent=39 // pred_fallthru
          _
        // Predicated region
        $region53: #{tpu_custom_call.1} parent=39 // pred_check
          %p5579 = pneg %p192
        $region54: #{tpu_custom_call.1} parent=39 // pred_check_branch
          %5581 = sbr.rel (%p5579) target = $region56
        $region55: #{tpu_custom_call.1} parent=39 // pred_region
          %s5583 = ssub.s32 16, 16
          %5584 = vsyncadd %s5563, %s5583
          %s5585 = smul.addr %s28, 16
          %s5586 = scalar_lea.hbm %s6, %s5585
          %s5588 = sshll.u32 %s5565, 4
          %s5589 = int_to_ptr.vmem [resolvable:$true] %s5588
          %5591 = dma.vmem_to_hbm [thread:$0]  %s5589, 16, %s5586, %s5563
        $region56: #{tpu_custom_call.1} parent=39 // pred_fallthru
          _
      $region40: #{tpu_custom_call.1} parent=5 // pred_fallthru
        _
      %p5592 = scmp.le.s32.totalorder 2, %s19
      // Predicated region
      $region57: #{tpu_custom_call.1} parent=5 // pred_check
        %p5593 = pneg %p5592
      $region58: #{tpu_custom_call.1} parent=5 // pred_check_branch
        %5595 = sbr.rel (%p5593) target = $region60
      $region59: #{tpu_custom_call.1} parent=5 // pred_region
        %s5596 = ssub.s32 %s19, 2
        // Predicated region
        $region61: #{tpu_custom_call.1} parent=59 // pred_check
          %p5597 = pneg %p172
        $region62: #{tpu_custom_call.1} parent=59 // pred_check_branch
          %5599 = sbr.rel (%p5597) target = $region64
        $region63: #{tpu_custom_call.1} parent=59 // pred_region
          %s5600 = sand.u32 %s157, 1
          %s5601 = scalar_lea.sflag [#allocation4], %s5600
          %s5602 = sand.u32 %s157, 1
          %s5603 = scalar_lea.vmem [#allocation3], %s5602
          %5604 = dma.done %s5601, 16
        $region64: #{tpu_custom_call.1} parent=59 // pred_fallthru
          _
        // Predicated region
        $region65: #{tpu_custom_call.1} parent=59 // pred_check
          %p5605 = pneg %p198
        $region66: #{tpu_custom_call.1} parent=59 // pred_check_branch
          %5607 = sbr.rel (%p5605) target = $region68
        $region67: #{tpu_custom_call.1} parent=59 // pred_region
          %s5608 = sand.u32 %s183, 1
          %s5609 = scalar_lea.sflag [#allocation6], %s5608
          %s5610 = sand.u32 %s183, 1
          %s5611 = scalar_lea.vmem [#allocation5], %s5610
          %5612 = dma.done %s5609, 16
        $region68: #{tpu_custom_call.1} parent=59 // pred_fallthru
          _
      $region60: #{tpu_custom_call.1} parent=5 // pred_fallthru
        _
    $region6: #{tpu_custom_call.1} parent=1 // loop_footer
      %s23 = sadd.s32 1, %s19
    $region7: #{tpu_custom_call.1} parent=1 // loop_footer_branch
      %18 = sbr.rel target = $region3
    $region8: #{tpu_custom_call.1} parent=1 // loop_exit
      _
    %5613 = vsyncpa [#allocation4], 1
    %s5614 = scalar_lea.sflag [#allocation4], 1
    %5615 = vsyncpa %s5614, 1
    %5616 = vsyncpa [#allocation6], 1
    %s5617 = scalar_lea.sflag [#allocation6], 1
    %5618 = vsyncpa %s5617, 1

// kernel: tpu_custom_call.1
$region0: #{tpu_custom_call.1}
  #allocation0 [shape = 'u32[]', space=smem, size = 0x4, offset = 0x4, fixed_abs, tag = 'smem constant byte address 0x4 - core index']
  #allocation1 [shape = 'u32[144,128]{1,0:T(1,128)}', space=vmem, size = 0x12000, scoped, tag = 'internal scratch']
  #allocation2 [shape = 'f32[1,1280]{1,0:T(1,128)}', space=vmem, size = 0x1400, scoped, tag = 'scratch operand']
  %s0 = inlined_call_operand.vmem [shape: f32[2,4,400], index: 0, kind: input, shape index: {}]
  %s1 = inlined_call_operand.vmem [shape: bf16[4,1280], index: 1, kind: input, shape index: {}]
  %s2 = inlined_call_operand.vmem [shape: f32[1,1280], index: 2, kind: input, shape index: {}]
  %s3 = inlined_call_operand.vmem [shape: bf16[1280,8], index: 3, kind: input, shape index: {}]
  %s4 = inlined_call_operand.vmem [shape: f32[1,8], index: 4, kind: input, shape index: {}]
  %s5 = inlined_call_operand.hbm [shape: f32[2,1,8], index: 5, kind: output, shape index: {0}]
  %s6 = inlined_call_operand.hbm [shape: f32[2,1,8], index: 6, kind: output, shape index: {1}]
  %7 = xla_tuple %s5, %s6
  %s8 = sld [smem:[#allocation0]]
  $region69: #{tpu_custom_call.1} parent=0
    _
  %s10 = ssub.s32 1, %s8
  %s11 = scalar_select 0, %s10, %s8
  $region1: #{tpu_custom_call.1} parent=0
    #allocation3 [shape = 'u8[1024]{0}', space=vmem, size = 0x400, scoped, tag = 'output window, operand 0']
    #allocation4 [shape = 's32[2]{0}', space=sflag, size = 0x8, scoped, tag = 'scoped memory for tpu_custom_call.1']
    #allocation5 [shape = 'u8[1024]{0}', space=vmem, size = 0x400, scoped, tag = 'output window, operand 1']
    #allocation6 [shape = 's32[2]{0}', space=sflag, size = 0x8, scoped, tag = 'scoped memory for tpu_custom_call.1']
    %12 = vsyncpa [#allocation4], 0
    %s13 = scalar_lea.sflag [#allocation4], 1
    %14 = vsyncpa %s13, 0
    %15 = vsyncpa [#allocation6], 0
    %s16 = scalar_lea.sflag [#allocation6], 1
    %17 = vsyncpa %s16, 0
    loop: start=0, step=1, limit=4
    $region2: #{tpu_custom_call.1} parent=1 // loop_pre_header
      _
    $region3: #{tpu_custom_call.1} parent=1 // loop_header
      %s19 = sphi 0, %s23
      %p20 = scmp.ge.s32.totalorder %s19, 4
      %s26 = sphi 0, %s38
      %s27 = sphi 0, %s34
      %s28 = sphi 0, %s26
      %s29 = sphi 0, %s27
      %s30 = sphi 0, %s28
      %s31 = sphi 0, %s29
      %s43 = sphi 0, %s45
      %s46 = sphi 0, %s43
      %s47 = sphi 0, %s46
      %s63 = sphi 0, %s47
      %s67 = sphi 0, %s67
      %s69 = sphi 0, %s67
      %s70 = sphi 0, %s69
      %s84 = sphi 0, %s70
      %s88 = sphi 0, %s88
      %s90 = sphi 0, %s88
      %s91 = sphi 0, %s90
      %s105 = sphi 0, %s91
      %s109 = sphi 0, %s109
      %s111 = sphi 0, %s109
      %s112 = sphi 0, %s111
      %s126 = sphi 0, %s112
      %s130 = sphi 0, %s130
      %s132 = sphi 0, %s130
      %s133 = sphi 0, %s132
      %s147 = sphi 0, %s133
      %s153 = sphi 0, %s155
      %s156 = sphi 0, %s153
      %s157 = sphi 0, %s156
      %s173 = sphi 0, %s157
      %s179 = sphi 0, %s181
      %s182 = sphi 0, %s179
      %s183 = sphi 0, %s182
      %s199 = sphi 0, %s183
    $region4: #{tpu_custom_call.1} parent=1 // loop_header_branch
      %22 = sbr.rel (%p20) target = $region8
    $region5: #{tpu_custom_call.1} parent=1 // loop_body
      %s24 = ssub.s32 %s19, 1
      %s25 = ssub.s32 %s19, 2
      %s32 = sadd.s32 1, %s27
      %p33 = scmp.ge.s32.totalorder %s32, 1
      %s34 = scalar_select %p33, 0, %s32
      %s35 = sadd.s32 1, %s26
      %s36 = scalar_select %p33, %s35, %s26
      %p37 = scmp.ge.s32.totalorder %s36, 2
      %s38 = scalar_select %p37, 0, %s36
      %s39 = ssub.s32 %s26, %s38
      %s40 = ssub.s32 %s27, %s34
      %s41 = sor.u32 %s39, %s40
      %p42 = scmp.eq.s32.totalorder %s41, 0
      %s44 = sadd.s32 %s43, 1
      %s45 = scalar_select %p42, %s43, %s44
      %p48 = pneg %p42
      %p49 = scmp.eq.s32.totalorder %s19, 1
      %p50 = por %p48, %p49
      %p51 = scmp.ne.s32.totalorder %s43, %s46
      %p52 = scmp.eq.s32.totalorder %s19, 0
      %p53 = por %p51, %p52
      %p54 = scmp.ne.s32.totalorder %s43, %s46
      %p55 = scmp.eq.s32.totalorder %s24, 1
      %p56 = por %p54, %p55
      %p57 = scmp.ne.s32.totalorder %s46, %s47
      %p58 = scmp.eq.s32.totalorder %s24, 0
      %p59 = por %p57, %p58
      %p60 = scmp.ne.s32.totalorder %s46, %s47
      %p61 = scmp.eq.s32.totalorder %s25, 1
      %p62 = por %p60, %p61
      %p64 = scmp.ne.s32.totalorder %s47, %s63
      %p65 = scmp.eq.s32.totalorder %s25, 0
      %p66 = por %p64, %p65
      %s68 = sadd.s32 %s67, 1
      %p71 = scmp.eq.s32.totalorder %s19, 1
      %p72 = scmp.ne.s32.totalorder %s67, %s69
      %p73 = scmp.eq.s32.totalorder %s19, 0
      %p74 = por %p72, %p73
      %p75 = scmp.ne.s32.totalorder %s67, %s69
      %p76 = scmp.eq.s32.totalorder %s24, 1
      %p77 = por %p75, %p76
      %p78 = scmp.ne.s32.totalorder %s69, %s70
      %p79 = scmp.eq.s32.totalorder %s24, 0
      %p80 = por %p78, %p79
      %p81 = scmp.ne.s32.totalorder %s69, %s70
      %p82 = scmp.eq.s32.totalorder %s25, 1
      %p83 = por %p81, %p82
      %p85 = scmp.ne.s32.totalorder %s70, %s84
      %p86 = scmp.eq.s32.totalorder %s25, 0
      %p87 = por %p85, %p86
      %s89 = sadd.s32 %s88, 1
      %p92 = scmp.eq.s32.totalorder %s19, 1
      %p93 = scmp.ne.s32.totalorder %s88, %s90
      %p94 = scmp.eq.s32.totalorder %s19, 0
      %p95 = por %p93, %p94
      %p96 = scmp.ne.s32.totalorder %s88, %s90
      %p97 = scmp.eq.s32.totalorder %s24, 1
      %p98 = por %p96, %p97
      %p99 = scmp.ne.s32.totalorder %s90, %s91
      %p100 = scmp.eq.s32.totalorder %s24, 0
      %p101 = por %p99, %p100
      %p102 = scmp.ne.s32.totalorder %s90, %s91
      %p103 = scmp.eq.s32.totalorder %s25, 1
      %p104 = por %p102, %p103
      %p106 = scmp.ne.s32.totalorder %s91, %s105
      %p107 = scmp.eq.s32.totalorder %s25, 0
      %p108 = por %p106, %p107
      %s110 = sadd.s32 %s109, 1
      %p113 = scmp.eq.s32.totalorder %s19, 1
      %p114 = scmp.ne.s32.totalorder %s109, %s111
      %p115 = scmp.eq.s32.totalorder %s19, 0
      %p116 = por %p114, %p115
      %p117 = scmp.ne.s32.totalorder %s109, %s111
      %p118 = scmp.eq.s32.totalorder %s24, 1
      %p119 = por %p117, %p118
      %p120 = scmp.ne.s32.totalorder %s111, %s112
      %p121 = scmp.eq.s32.totalorder %s24, 0
      %p122 = por %p120, %p121
      %p123 = scmp.ne.s32.totalorder %s111, %s112
      %p124 = scmp.eq.s32.totalorder %s25, 1
      %p125 = por %p123, %p124
      %p127 = scmp.ne.s32.totalorder %s112, %s126
      %p128 = scmp.eq.s32.totalorder %s25, 0
      %p129 = por %p127, %p128
      %s131 = sadd.s32 %s130, 1
      %p134 = scmp.eq.s32.totalorder %s19, 1
      %p135 = scmp.ne.s32.totalorder %s130, %s132
      %p136 = scmp.eq.s32.totalorder %s19, 0
      %p137 = por %p135, %p136
      %p138 = scmp.ne.s32.totalorder %s130, %s132
      %p139 = scmp.eq.s32.totalorder %s24, 1
      %p140 = por %p138, %p139
      %p141 = scmp.ne.s32.totalorder %s132, %s133
      %p142 = scmp.eq.s32.totalorder %s24, 0
      %p143 = por %p141, %p142
      %p144 = scmp.ne.s32.totalorder %s132, %s133
      %p145 = scmp.eq.s32.totalorder %s25, 1
      %p146 = por %p144, %p145
      %p148 = scmp.ne.s32.totalorder %s133, %s147
      %p149 = scmp.eq.s32.totalorder %s25, 0
      %p150 = por %p148, %p149
      %s151 = ssub.s32 %s26, %s38
      %p152 = scmp.eq.s32.totalorder %s151, 0
      %s154 = sadd.s32 %s153, 1
      %s155 = scalar_select %p152, %s153, %s154
      %p158 = pneg %p152
      %p159 = scmp.eq.s32.totalorder %s19, 1
      %p160 = por %p158, %p159
      %p161 = scmp.ne.s32.totalorder %s153, %s156
      %p162 = scmp.eq.s32.totalorder %s19, 0
      %p163 = por %p161, %p162
      %p164 = scmp.ne.s32.totalorder %s153, %s156
      %p165 = scmp.eq.s32.totalorder %s24, 1
      %p166 = por %p164, %p165
      %p167 = scmp.ne.s32.totalorder %s156, %s157
      %p168 = scmp.eq.s32.totalorder %s24, 0
      %p169 = por %p167, %p168
      %p170 = scmp.ne.s32.totalorder %s156, %s157
      %p171 = scmp.eq.s32.totalorder %s25, 1
      %p172 = por %p170, %p171
      %p174 = scmp.ne.s32.totalorder %s157, %s173
      %p175 = scmp.eq.s32.totalorder %s25, 0
      %p176 = por %p174, %p175
      %s177 = ssub.s32 %s26, %s38
      %p178 = scmp.eq.s32.totalorder %s177, 0
      %s180 = sadd.s32 %s179, 1
      %s181 = scalar_select %p178, %s179, %s180
      %p184 = pneg %p178
      %p185 = scmp.eq.s32.totalorder %s19, 1
      %p186 = por %p184, %p185
      %p187 = scmp.ne.s32.totalorder %s179, %s182
      %p188 = scmp.eq.s32.totalorder %s19, 0
      %p189 = por %p187, %p188
      %p190 = scmp.ne.s32.totalorder %s179, %s182
      %p191 = scmp.eq.s32.totalorder %s24, 1
      %p192 = por %p190, %p191
      %p193 = scmp.ne.s32.totalorder %s182, %s183
      %p194 = scmp.eq.s32.totalorder %s24, 0
      %p195 = por %p193, %p194
      %p196 = scmp.ne.s32.totalorder %s182, %s183
      %p197 = scmp.eq.s32.totalorder %s25, 1
      %p198 = por %p196, %p197
      %p200 = scmp.ne.s32.totalorder %s183, %s199
      %p201 = scmp.eq.s32.totalorder %s25, 0
      %p202 = por %p200, %p201
      %p203 = scmp.le.s32.totalorder 1, %s19
      %p204 = scmp.lt.s32.totalorder %s19, 3
      %p205 = pnand %p203, %p204
      %p206 = pneg %p205
      // Predicated region
      $region9: #{tpu_custom_call.1} parent=5 // pred_check
        _
      $region10: #{tpu_custom_call.1} parent=5 // pred_check_branch
        %208 = sbr.rel (%p205) target = $region12
      $region11: #{tpu_custom_call.1} parent=5 // pred_region
        %s209 = ssub.s32 %s19, 1
        // Predicated region
        $region13: #{tpu_custom_call.1} parent=11 // pred_check
          %p210 = pneg %p80
        $region14: #{tpu_custom_call.1} parent=11 // pred_check_branch
          %212 = sbr.rel (%p210) target = $region16
        $region15: #{tpu_custom_call.1} parent=11 // pred_region
          _
        $region16: #{tpu_custom_call.1} parent=11 // pred_fallthru
          _
        // Predicated region
        $region17: #{tpu_custom_call.1} parent=11 // pred_check
          %p213 = pneg %p101
        $region18: #{tpu_custom_call.1} parent=11 // pred_check_branch
          %215 = sbr.rel (%p213) target = $region20
        $region19: #{tpu_custom_call.1} parent=11 // pred_region
          _
        $region20: #{tpu_custom_call.1} parent=11 // pred_fallthru
          _
        // Predicated region
        $region21: #{tpu_custom_call.1} parent=11 // pred_check
          %p216 = pneg %p122
        $region22: #{tpu_custom_call.1} parent=11 // pred_check_branch
          %218 = sbr.rel (%p216) target = $region24
        $region23: #{tpu_custom_call.1} parent=11 // pred_region
          _
        $region24: #{tpu_custom_call.1} parent=11 // pred_fallthru
          _
        // Predicated region
        $region25: #{tpu_custom_call.1} parent=11 // pred_check
          %p219 = pneg %p143
        $region26: #{tpu_custom_call.1} parent=11 // pred_check_branch
          %221 = sbr.rel (%p219) target = $region28
        $region27: #{tpu_custom_call.1} parent=11 // pred_region
          _
        $region28: #{tpu_custom_call.1} parent=11 // pred_fallthru
          _
      $region12: #{tpu_custom_call.1} parent=5 // pred_fallthru
        _
      %p222 = scmp.lt.s32.totalorder %s19, 2
      // Predicated region
      $region29: #{tpu_custom_call.1} parent=5 // pred_check
        %p223 = pneg %p222
      $region30: #{tpu_custom_call.1} parent=5 // pred_check_branch
        %225 = sbr.rel (%p223) target = $region32
      $region31: #{tpu_custom_call.1} parent=5 // pred_region
        // Predicated region
        $region33: #{tpu_custom_call.1} parent=31 // pred_check
          %p226 = pneg %p53
        $region34: #{tpu_custom_call.1} parent=31 // pred_check_branch
          %228 = sbr.rel (%p226) target = $region36
        $region35: #{tpu_custom_call.1} parent=31 // pred_region
          %s229 = smul.u32 4, %s27
          %p230 = scmp.lt.s32.totalorder %s26, 1
          %s231 = scalar_select %p230, %s26, 1
          %p232 = scmp.lt.s32.totalorder %s229, 3
          %s233 = scalar_select %p232, %s229, 3
          %s234 = smul.addr %s231, 4
          %s235 = sadd.s32 %s233, %s234
          %s236 = smul.addr %s235, 4
          %s237 = scalar_lea.vmem %s0, %s236
          %s238 = smul.u32 4, %s27
        $region36: #{tpu_custom_call.1} parent=31 // pred_fallthru
          _
      $region32: #{tpu_custom_call.1} parent=5 // pred_fallthru
        _
      %p239 = scmp.le.s32.totalorder 1, %s19
      %p240 = scmp.lt.s32.totalorder %s19, 3
      %p241 = pnand %p239, %p240
      %p242 = pneg %p241
      // Predicated region
      $region37: #{tpu_custom_call.1} parent=5 // pred_check
        _
      $region38: #{tpu_custom_call.1} parent=5 // pred_check_branch
        %244 = sbr.rel (%p241) target = $region40
      $region39: #{tpu_custom_call.1} parent=5 // pred_region
        %s245 = ssub.s32 %s19, 1
        %s246 = smul.u32 4, %s29
        %p247 = scmp.lt.s32.totalorder %s28, 1
        %s248 = scalar_select %p247, %s28, 1
        %p249 = scmp.lt.s32.totalorder %s246, 3
        %s250 = scalar_select %p249, %s246, 3
        %s251 = smul.addr %s248, 4
        %s252 = sadd.s32 %s250, %s251
        %s253 = smul.addr %s252, 4
        %s254 = scalar_lea.vmem %s0, %s253
        %p255 = pneg %p59
        %p256 = pneg %p56
        %p257 = pneg %p80
        %p258 = pneg %p77
        %p259 = pneg %p101
        %p260 = pneg %p98
        %p261 = pneg %p122
        %p262 = pneg %p119
        %p263 = pneg %p143
        %p264 = pneg %p140
        %p265 = pneg %p169
        %p266 = pneg %p166
        %s267 = sand.u32 %s156, 1
        %s268 = scalar_lea.sflag [#allocation4], %s267
        %s269 = sand.u32 %s156, 1
        %s270 = scalar_lea.vmem [#allocation3], %s269
        %p271 = pneg %p195
        %p272 = pneg %p192
        %s273 = sand.u32 %s182, 1
        %s274 = scalar_lea.sflag [#allocation6], %s273
        %s275 = sand.u32 %s182, 1
        %s276 = scalar_lea.vmem [#allocation5], %s275
        %s277 = smul.u32 4, %s29
        %p278 = scmp.lt.s32.totalorder %s28, 1
        %s279 = scalar_select %p278, %s28, 1
        %p280 = scmp.lt.s32.totalorder %s277, 3
        %s281 = scalar_select %p280, %s277, 3
        %s282 = smul.addr %s279, 4
        %s283 = sadd.s32 %s281, %s282
        %s284 = smul.addr %s283, 4
        %s285 = scalar_lea.vmem %s0, %s284
        %s286 = smul.u32 4, %s29
        %p288 = scmp.eq.s32.totalorder %s29, 0
        // Predicated region
        $region41: #{tpu_custom_call.1} parent=39 // pred_check
          %p289 = pneg %p288
        $region42: #{tpu_custom_call.1} parent=39 // pred_check_branch
          %291 = sbr.rel (%p289) target = $region44
        $region43: #{tpu_custom_call.1} parent=39 // pred_region
          %292 = vst [vmem:[#allocation2] sm:$0xff] 0.0
          %v293 = vlaneseq
          %vm294 = vcmp.ge.s32.totalorder %v293, 0
          %vm295 = vcmp.lt.s32.totalorder %v293, 256
          %vm296 = vmand %vm294, %vm295
          %297 = vst.msk [vmem:[#allocation2 + $0x8] sm:$0x3] %vm296, 0.0
        $region44: #{tpu_custom_call.1} parent=39 // pred_fallthru
          _
        %v298 = vld [vmem:[%s285] sm:$0xff]
        %v299 = vld [vmem:[%s285 + $0x8] sm:$0xff]
        %v302 = vcombine.high %v298, %v298
        %v303 = vcombine.high %v299, %v299
        %v306 = vpack.c.bf16 %v298, %v298
        %v307 = vpack.c.bf16 %v302, %v302
        %v308 = vpack.c.bf16 %v299, %v299
        %v309 = vpack.c.bf16 %v303, %v303
        %v310 = vld [vmem:[%s1] sm:$0xff]
        %v311 = vld [vmem:[%s1 + $0x8] sm:$0xff]
        %v312 = vld [vmem:[%s1 + $0x10] sm:$0xf]
        %v313 = vld [vmem:[%s2] sm:$0xff]
        %v314 = vld [vmem:[%s2 + $0x8] sm:$0x3]
        %v317 = vlaneseq
        %v318 = vshrl.u32 %v317, 7
        %v319 = vsub.s32 0, %v318
        %v320 = vrot.slane %v313, %v319
        %v321 = vlaneseq
        %v322 = vshrl.u32 %v321, 7
        %v323 = vsub.s32 1, %v322
        %v324 = vrot.slane %v313, %v323
        %v325 = vlaneseq
        %v326 = vshrl.u32 %v325, 7
        %v327 = vsub.s32 2, %v326
        %v328 = vrot.slane %v313, %v327
        %v329 = vlaneseq
        %v330 = vshrl.u32 %v329, 7
        %v331 = vsub.s32 3, %v330
        %v332 = vrot.slane %v313, %v331
        %v333 = vlaneseq
        %v334 = vshrl.u32 %v333, 7
        %v335 = vsub.s32 4, %v334
        %v336 = vrot.slane %v313, %v335
        %v337 = vlaneseq
        %v338 = vshrl.u32 %v337, 7
        %v339 = vsub.s32 5, %v338
        %v340 = vrot.slane %v313, %v339
        %v341 = vlaneseq
        %v342 = vshrl.u32 %v341, 7
        %v343 = vsub.s32 6, %v342
        %v344 = vrot.slane %v313, %v343
        %v345 = vlaneseq
        %v346 = vshrl.u32 %v345, 7
        %v347 = vsub.s32 7, %v346
        %v348 = vrot.slane %v313, %v347
        %v349 = vlaneseq
        %v350 = vshrl.u32 %v349, 7
        %v351 = vsub.s32 0, %v350
        %v352 = vrot.slane %v314, %v351
        %v353 = vlaneseq
        %v354 = vshrl.u32 %v353, 7
        %v355 = vsub.s32 1, %v354
        %v356 = vrot.slane %v314, %v355
        %367 = vxpose.xlu0.c.b16.start [1/8] %v306, 128
        %368 = vxpose.xlu0.c.b16.cont [2/8] 0, 128
        %369 = vxpose.xlu0.c.b16.cont [3/8] 0, 128
        %370 = vxpose.xlu0.c.b16.cont [4/8] 0, 128
        %371 = vxpose.xlu0.c.b16.cont [5/8] 0, 128
        %372 = vxpose.xlu0.c.b16.cont [6/8] 0, 128
        %373 = vxpose.xlu0.c.b16.cont [7/8] 0, 128
        %374 = vxpose.xlu0.c.b16.end [8/8] 0, 128
        %v375 = vpop.trf.xlu0
        %v376 = vpop.trf.xlu0
        %v377 = vpop.trf.xlu0
        %v378 = vpop.trf.xlu0
        %v379 = vpop.trf.xlu0
        %v380 = vpop.trf.xlu0
        %v381 = vpop.trf.xlu0
        %v382 = vpop.trf.xlu0
        %383 = vxpose.xlu0.c.b16.start [1/8] %v307, 128
        %384 = vxpose.xlu0.c.b16.cont [2/8] 0, 128
        %385 = vxpose.xlu0.c.b16.cont [3/8] 0, 128
        %386 = vxpose.xlu0.c.b16.cont [4/8] 0, 128
        %387 = vxpose.xlu0.c.b16.cont [5/8] 0, 128
        %388 = vxpose.xlu0.c.b16.cont [6/8] 0, 128
        %389 = vxpose.xlu0.c.b16.cont [7/8] 0, 128
        %390 = vxpose.xlu0.c.b16.end [8/8] 0, 128
        %v391 = vpop.trf.xlu0
        %v392 = vpop.trf.xlu0
        %v393 = vpop.trf.xlu0
        %v394 = vpop.trf.xlu0
        %v395 = vpop.trf.xlu0
        %v396 = vpop.trf.xlu0
        %v397 = vpop.trf.xlu0
        %v398 = vpop.trf.xlu0
        %399 = vxpose.xlu0.c.b16.start [1/8] %v308, 128
        %400 = vxpose.xlu0.c.b16.cont [2/8] 0, 128
        %401 = vxpose.xlu0.c.b16.cont [3/8] 0, 128
        %402 = vxpose.xlu0.c.b16.cont [4/8] 0, 128
        %403 = vxpose.xlu0.c.b16.cont [5/8] 0, 128
        %404 = vxpose.xlu0.c.b16.cont [6/8] 0, 128
        %405 = vxpose.xlu0.c.b16.cont [7/8] 0, 128
        %406 = vxpose.xlu0.c.b16.end [8/8] 0, 128
        %v407 = vpop.trf.xlu0
        %v408 = vpop.trf.xlu0
        %v409 = vpop.trf.xlu0
        %v410 = vpop.trf.xlu0
        %v411 = vpop.trf.xlu0
        %v412 = vpop.trf.xlu0
        %v413 = vpop.trf.xlu0
        %v414 = vpop.trf.xlu0
        %415 = vxpose.xlu0.c.b16.start [1/8] %v309, 128
        %416 = vxpose.xlu0.c.b16.cont [2/8] 0, 128
        %417 = vxpose.xlu0.c.b16.cont [3/8] 0, 128
        %418 = vxpose.xlu0.c.b16.cont [4/8] 0, 128
        %419 = vxpose.xlu0.c.b16.cont [5/8] 0, 128
        %420 = vxpose.xlu0.c.b16.cont [6/8] 0, 128
        %421 = vxpose.xlu0.c.b16.cont [7/8] 0, 128
        %422 = vxpose.xlu0.c.b16.end [8/8] 0, 128
        %v423 = vpop.trf.xlu0
        %v424 = vpop.trf.xlu0
        %v425 = vpop.trf.xlu0
        %v426 = vpop.trf.xlu0
        %v427 = vpop.trf.xlu0
        %v428 = vpop.trf.xlu0
        %v429 = vpop.trf.xlu0
        %v430 = vpop.trf.xlu0
        %v434 = vcombine.high %v310, %v310
        %v436 = vunpack.c.l.s4 1983009808
        %v437 = vunpack.c.0.s8 %v436
        %v438 = vlaneseq
        %v439 = vshrl.u32 %v438, 7
        %v440 = vsub.s32 %v437, %v439
        %v441 = vrot.slane %v310, %v440
        %v443 = vunpack.c.l.s4 1983009808
        %v444 = vunpack.c.0.s8 %v443
        %v445 = vlaneseq
        %v446 = vshrl.u32 %v445, 7
        %v447 = vsub.s32 %v444, %v446
        %v448 = vrot.slane %v434, %v447
        %v449 = vcombine.high %v441, %v441
        %v450 = vcombine.high %v448, %v448
        %v451 = vcombine.high %v311, %v311
        %v453 = vunpack.c.l.s4 1983009808
        %v454 = vunpack.c.0.s8 %v453
        %v455 = vlaneseq
        %v456 = vshrl.u32 %v455, 7
        %v457 = vsub.s32 %v454, %v456
        %v458 = vrot.slane %v311, %v457
        %v460 = vunpack.c.l.s4 1983009808
        %v461 = vunpack.c.0.s8 %v460
        %v462 = vlaneseq
        %v463 = vshrl.u32 %v462, 7
        %v464 = vsub.s32 %v461, %v463
        %v465 = vrot.slane %v451, %v464
        %v466 = vcombine.high %v458, %v458
        %v467 = vcombine.high %v465, %v465
        %v469 = vunpack.c.l.s4 1983009808
        %v470 = vunpack.c.0.s8 %v469
        %v471 = vlaneseq
        %v472 = vshrl.u32 %v471, 7
        %v473 = vsub.s32 %v470, %v472
        %v474 = vrot.slane %v312, %v473
        %v475 = vcombine.high %v474, %v474
        %vm476 = vcmask 31744
        %v478 = vsel %vm476, %v375, 0
        %v481 = vsel %vm476, %v376, 0
        %v484 = vsel %vm476, %v377, 0
        %v487 = vsel %vm476, %v378, 0
        %v490 = vsel %vm476, %v379, 0
        %v493 = vsel %vm476, %v380, 0
        %v496 = vsel %vm476, %v381, 0
        %v499 = vsel %vm476, %v382, 0
        %v502 = vsel %vm476, %v391, 0
        %v505 = vsel %vm476, %v392, 0
        %v508 = vsel %vm476, %v393, 0
        %v511 = vsel %vm476, %v394, 0
        %v514 = vsel %vm476, %v395, 0
        %v517 = vsel %vm476, %v396, 0
        %v520 = vsel %vm476, %v397, 0
        %v523 = vsel %vm476, %v398, 0
        %v526 = vsel %vm476, %v407, 0
        %v529 = vsel %vm476, %v408, 0
        %v532 = vsel %vm476, %v409, 0
        %v535 = vsel %vm476, %v410, 0
        %v538 = vsel %vm476, %v411, 0
        %v541 = vsel %vm476, %v412, 0
        %v544 = vsel %vm476, %v413, 0
        %v547 = vsel %vm476, %v414, 0
        %v550 = vsel %vm476, %v423, 0
        %vm552 = vcmask 1041408
        %v554 = vsel %vm552, %v441, 0
        %v557 = vsel %vm552, %v449, 0
        %v560 = vsel %vm552, %v448, 0
        %v563 = vsel %vm552, %v450, 0
        %v566 = vsel %vm552, %v458, 0
        %v569 = vsel %vm552, %v466, 0
        %v572 = vsel %vm552, %v465, 0
        %v575 = vsel %vm552, %v467, 0
        %v578 = vsel %vm552, %v474, 0
        %v581 = vsel %vm552, %v475, 0
        %583 = vmatprep.subr.bf16.mxu0 %v557
        %584 = vmatpush1.bf16.msra.mxu0 %v554
        %585 = vmatprep.subr.bf16.mxu0 0
        %586 = vmatpush1.bf16.msra.mxu0 0
        %587 = vmatprep.subr.bf16.mxu0 0
        %588 = vmatpush1.bf16.msra.mxu0 0
        %589 = vmatprep.subr.bf16.mxu0 0
        %590 = vmatpush1.bf16.msra.mxu0 0
        %591 = vmatprep.subr.bf16.mxu0 0
        %592 = vmatpush1.bf16.msra.mxu0 0
        %593 = vmatprep.subr.bf16.mxu0 0
        %594 = vmatpush1.bf16.msra.mxu0 0
        %595 = vmatprep.subr.bf16.mxu0 0
        %596 = vmatpush1.bf16.msra.mxu0 0
        %597 = vmatprep.subr.bf16.mxu0 0
        %598 = vmatpush1.bf16.msra.mxu0 0
        %599 = vmatprep.subr.bf16.mxu0 0
        %600 = vmatpush1.bf16.msra.mxu0 0
        %601 = vmatprep.subr.bf16.mxu0 0
        %602 = vmatpush1.bf16.msra.mxu0 0
        %603 = vmatprep.subr.bf16.mxu0 0
        %604 = vmatpush1.bf16.msra.mxu0 0
        %605 = vmatprep.subr.bf16.mxu0 0
        %606 = vmatpush1.bf16.msra.mxu0 0
        %607 = vmatprep.subr.bf16.mxu0 0
        %608 = vmatpush1.bf16.msra.mxu0 0
        %609 = vmatprep.subr.bf16.mxu0 0
        %610 = vmatpush1.bf16.msra.mxu0 0
        %611 = vmatprep.subr.bf16.mxu0 0
        %612 = vmatpush1.bf16.msra.mxu0 0
        %613 = vmatprep.subr.bf16.mxu0 0
        %614 = vmatpush1.bf16.msra.mxu0 0
        %615 = vmatprep.mubr.bf16.mxu0 0
        %616 = vmatmul.mubr.bf16.gmra.mrb[0].mxu0 %v478
        %v617 = vpop.f32.mrb[0].mxu0
        %v618 = vadd.f32 %v320, %v617
        %v619 = vpop.f32.mrb[0].mxu0
        %v620 = vadd.f32 %v324, %v619
        %v621 = vpop.f32.mrb[0].mxu0
        %v622 = vadd.f32 %v320, %v621
        %v623 = vpop.f32.mrb[0].mxu0
        %v624 = vadd.f32 %v324, %v623
        %625 = vmatprep.mubr.bf16.mxu0 0
        %626 = vmatmul.mubr.bf16.gmra.mrb[0].mxu0 %v481
        %v627 = vpop.f32.mrb[0].mxu0
        %v628 = vadd.f32 %v320, %v627
        %v629 = vpop.f32.mrb[0].mxu0
        %v630 = vadd.f32 %v324, %v629
        %v631 = vpop.f32.mrb[0].mxu0
        %v632 = vadd.f32 %v320, %v631
        %v633 = vpop.f32.mrb[0].mxu0
        %v634 = vadd.f32 %v324, %v633
        %635 = vmatprep.mubr.bf16.mxu0 0
        %636 = vmatmul.mubr.bf16.gmra.mrb[0].mxu0 %v484
        %v637 = vpop.f32.mrb[0].mxu0
        %v638 = vadd.f32 %v320, %v637
        %v639 = vpop.f32.mrb[0].mxu0
        %v640 = vadd.f32 %v324, %v639
        %v641 = vpop.f32.mrb[0].mxu0
        %v642 = vadd.f32 %v320, %v641
        %v643 = vpop.f32.mrb[0].mxu0
        %v644 = vadd.f32 %v324, %v643
        %645 = vmatprep.mubr.bf16.mxu0 0
        %646 = vmatmul.mubr.bf16.gmra.mrb[0].mxu0 %v487
        %v647 = vpop.f32.mrb[0].mxu0
        %v648 = vadd.f32 %v320, %v647
        %v649 = vpop.f32.mrb[0].mxu0
        %v650 = vadd.f32 %v324, %v649
        %v651 = vpop.f32.mrb[0].mxu0
        %v652 = vadd.f32 %v320, %v651
        %v653 = vpop.f32.mrb[0].mxu0
        %v654 = vadd.f32 %v324, %v653
        %655 = vmatprep.mubr.bf16.mxu0 0
        %656 = vmatmul.mubr.bf16.gmra.mrb[0].mxu0 %v490
        %v657 = vpop.f32.mrb[0].mxu0
        %v658 = vadd.f32 %v320, %v657
        %v659 = vpop.f32.mrb[0].mxu0
        %v660 = vadd.f32 %v324, %v659
        %v661 = vpop.f32.mrb[0].mxu0
        %v662 = vadd.f32 %v320, %v661
        %v663 = vpop.f32.mrb[0].mxu0
        %v664 = vadd.f32 %v324, %v663
        %665 = vmatprep.mubr.bf16.mxu0 0
        %666 = vmatmul.mubr.bf16.gmra.mrb[0].mxu0 %v493
        %v667 = vpop.f32.mrb[0].mxu0
        %v668 = vadd.f32 %v320, %v667
        %v669 = vpop.f32.mrb[0].mxu0
        %v670 = vadd.f32 %v324, %v669
        %v671 = vpop.f32.mrb[0].mxu0
        %v672 = vadd.f32 %v320, %v671
        %v673 = vpop.f32.mrb[0].mxu0
        %v674 = vadd.f32 %v324, %v673
        %675 = vmatprep.mubr.bf16.mxu0 0
        %676 = vmatmul.mubr.bf16.gmra.mrb[0].mxu0 %v496
        %v677 = vpop.f32.mrb[0].mxu0
        %v678 = vadd.f32 %v320, %v677
        %v679 = vpop.f32.mrb[0].mxu0
        %v680 = vadd.f32 %v324, %v679
        %v681 = vpop.f32.mrb[0].mxu0
        %v682 = vadd.f32 %v320, %v681
        %v683 = vpop.f32.mrb[0].mxu0
        %v684 = vadd.f32 %v324, %v683
        %685 = vmatprep.mubr.bf16.mxu0 0
        %686 = vmatmul.mubr.bf16.gmra.mrb[0].mxu0 %v499
        %v687 = vpop.f32.mrb[0].mxu0
        %v688 = vadd.f32 %v320, %v687
        %v689 = vpop.f32.mrb[0].mxu0
        %v690 = vadd.f32 %v324, %v689
        %v691 = vpop.f32.mrb[0].mxu0
        %v692 = vadd.f32 %v320, %v691
        %v693 = vpop.f32.mrb[0].mxu0
        %v694 = vadd.f32 %v324, %v693
        %695 = vmatprep.mubr.bf16.mxu0 0
        %696 = vmatmul.mubr.bf16.gmra.mrb[0].mxu0 %v502
        %v697 = vpop.f32.mrb[0].mxu0
        %v698 = vadd.f32 %v320, %v697
        %v699 = vpop.f32.mrb[0].mxu0
        %v700 = vadd.f32 %v324, %v699
        %v701 = vpop.f32.mrb[0].mxu0
        %v702 = vadd.f32 %v320, %v701
        %v703 = vpop.f32.mrb[0].mxu0
        %v704 = vadd.f32 %v324, %v703
        %705 = vmatprep.mubr.bf16.mxu0 0
        %706 = vmatmul.mubr.bf16.gmra.mrb[0].mxu0 %v505
        %v707 = vpop.f32.mrb[0].mxu0
        %v708 = vadd.f32 %v320, %v707
        %v709 = vpop.f32.mrb[0].mxu0
        %v710 = vadd.f32 %v324, %v709
        %v711 = vpop.f32.mrb[0].mxu0
        %v712 = vadd.f32 %v320, %v711
        %v713 = vpop.f32.mrb[0].mxu0
        %v714 = vadd.f32 %v324, %v713
        %715 = vmatprep.mubr.bf16.mxu0 0
        %716 = vmatmul.mubr.bf16.gmra.mrb[0].mxu0 %v508
        %v717 = vpop.f32.mrb[0].mxu0
        %v718 = vadd.f32 %v320, %v717
        %v719 = vpop.f32.mrb[0].mxu0
        %v720 = vadd.f32 %v324, %v719
        %v721 = vpop.f32.mrb[0].mxu0
        %v722 = vadd.f32 %v320, %v721
        %v723 = vpop.f32.mrb[0].mxu0
        %v724 = vadd.f32 %v324, %v723
        %725 = vmatprep.mubr.bf16.mxu0 0
        %726 = vmatmul.mubr.bf16.gmra.mrb[0].mxu0 %v511
        %v727 = vpop.f32.mrb[0].mxu0
        %v728 = vadd.f32 %v320, %v727
        %v729 = vpop.f32.mrb[0].mxu0
        %v730 = vadd.f32 %v324, %v729
        %v731 = vpop.f32.mrb[0].mxu0
        %v732 = vadd.f32 %v320, %v731
        %v733 = vpop.f32.mrb[0].mxu0
        %v734 = vadd.f32 %v324, %v733
        %735 = vmatprep.mubr.bf16.mxu0 0
        %736 = vmatmul.mubr.bf16.gmra.mrb[0].mxu0 %v514
        %v737 = vpop.f32.mrb[0].mxu0
        %v738 = vadd.f32 %v320, %v737
        %v739 = vpop.f32.mrb[0].mxu0
        %v740 = vadd.f32 %v324, %v739
        %v741 = vpop.f32.mrb[0].mxu0
        %v742 = vadd.f32 %v320, %v741
        %v743 = vpop.f32.mrb[0].mxu0
        %v744 = vadd.f32 %v324, %v743
        %745 = vmatprep.mubr.bf16.mxu0 0
        %746 = vmatmul.mubr.bf16.gmra.mrb[0].mxu0 %v517
        %v747 = vpop.f32.mrb[0].mxu0
        %v748 = vadd.f32 %v320, %v747
        %v749 = vpop.f32.mrb[0].mxu0
        %v750 = vadd.f32 %v324, %v749
        %v751 = vpop.f32.mrb[0].mxu0
        %v752 = vadd.f32 %v320, %v751
        %v753 = vpop.f32.mrb[0].mxu0
        %v754 = vadd.f32 %v324, %v753
        %755 = vmatprep.mubr.bf16.mxu0 0
        %756 = vmatmul.mubr.bf16.gmra.mrb[0].mxu0 %v520
        %v757 = vpop.f32.mrb[0].mxu0
        %v758 = vadd.f32 %v320, %v757
        %v759 = vpop.f32.mrb[0].mxu0
        %v760 = vadd.f32 %v324, %v759
        %v761 = vpop.f32.mrb[0].mxu0
        %v762 = vadd.f32 %v320, %v761
        %v763 = vpop.f32.mrb[0].mxu0
        %v764 = vadd.f32 %v324, %v763
        %765 = vmatprep.mubr.bf16.mxu0 0
        %766 = vmatmul.mubr.bf16.gmra.mrb[0].mxu0 %v523
        %v767 = vpop.f32.mrb[0].mxu0
        %v768 = vadd.f32 %v320, %v767
        %v769 = vpop.f32.mrb[0].mxu0
        %v770 = vadd.f32 %v324, %v769
        %v771 = vpop.f32.mrb[0].mxu0
        %v772 = vadd.f32 %v320, %v771
        %v773 = vpop.f32.mrb[0].mxu0
        %v774 = vadd.f32 %v324, %v773
        %775 = vmatprep.mubr.bf16.mxu0 0
        %776 = vmatmul.mubr.bf16.gmra.mrb[0].mxu0 %v526
        %v777 = vpop.f32.mrb[0].mxu0
        %v778 = vadd.f32 %v320, %v777
        %v779 = vpop.f32.mrb[0].mxu0
        %v780 = vadd.f32 %v324, %v779
        %v781 = vpop.f32.mrb[0].mxu0
        %v782 = vadd.f32 %v320, %v781
        %v783 = vpop.f32.mrb[0].mxu0
        %v784 = vadd.f32 %v324, %v783
        %785 = vmatprep.mubr.bf16.mxu0 0
        %786 = vmatmul.mubr.bf16.gmra.mrb[0].mxu0 %v529
        %v787 = vpop.f32.mrb[0].mxu0
        %v788 = vadd.f32 %v320, %v787
        %v789 = vpop.f32.mrb[0].mxu0
        %v790 = vadd.f32 %v324, %v789
        %v791 = vpop.f32.mrb[0].mxu0
        %v792 = vadd.f32 %v320, %v791
        %v793 = vpop.f32.mrb[0].mxu0
        %v794 = vadd.f32 %v324, %v793
        %795 = vmatprep.mubr.bf16.mxu0 0
        %796 = vmatmul.mubr.bf16.gmra.mrb[0].mxu0 %v532
        %v797 = vpop.f32.mrb[0].mxu0
        %v798 = vadd.f32 %v320, %v797
        %v799 = vpop.f32.mrb[0].mxu0
        %v800 = vadd.f32 %v324, %v799
        %v801 = vpop.f32.mrb[0].mxu0
        %v802 = vadd.f32 %v320, %v801
        %v803 = vpop.f32.mrb[0].mxu0
        %v804 = vadd.f32 %v324, %v803
        %805 = vmatprep.mubr.bf16.mxu0 0
        %806 = vmatmul.mubr.bf16.gmra.mrb[0].mxu0 %v535
        %v807 = vpop.f32.mrb[0].mxu0
        %v808 = vadd.f32 %v320, %v807
        %v809 = vpop.f32.mrb[0].mxu0
        %v810 = vadd.f32 %v324, %v809
        %v811 = vpop.f32.mrb[0].mxu0
        %v812 = vadd.f32 %v320, %v811
        %v813 = vpop.f32.mrb[0].mxu0
        %v814 = vadd.f32 %v324, %v813
        %815 = vmatprep.mubr.bf16.mxu0 0
        %816 = vmatmul.mubr.bf16.gmra.mrb[0].mxu0 %v538
        %v817 = vpop.f32.mrb[0].mxu0
        %v818 = vadd.f32 %v320, %v817
        %v819 = vpop.f32.mrb[0].mxu0
        %v820 = vadd.f32 %v324, %v819
        %v821 = vpop.f32.mrb[0].mxu0
        %v822 = vadd.f32 %v320, %v821
        %v823 = vpop.f32.mrb[0].mxu0
        %v824 = vadd.f32 %v324, %v823
        %825 = vmatprep.mubr.bf16.mxu0 0
        %826 = vmatmul.mubr.bf16.gmra.mrb[0].mxu0 %v541
        %v827 = vpop.f32.mrb[0].mxu0
        %v828 = vadd.f32 %v320, %v827
        %v829 = vpop.f32.mrb[0].mxu0
        %v830 = vadd.f32 %v324, %v829
        %v831 = vpop.f32.mrb[0].mxu0
        %v832 = vadd.f32 %v320, %v831
        %v833 = vpop.f32.mrb[0].mxu0
        %v834 = vadd.f32 %v324, %v833
        %835 = vmatprep.mubr.bf16.mxu0 0
        %836 = vmatmul.mubr.bf16.gmra.mrb[0].mxu0 %v544
        %v837 = vpop.f32.mrb[0].mxu0
        %v838 = vadd.f32 %v320, %v837
        %v839 = vpop.f32.mrb[0].mxu0
        %v840 = vadd.f32 %v324, %v839
        %v841 = vpop.f32.mrb[0].mxu0
        %v842 = vadd.f32 %v320, %v841
        %v843 = vpop.f32.mrb[0].mxu0
        %v844 = vadd.f32 %v324, %v843
        %845 = vmatprep.mubr.bf16.mxu0 0
        %846 = vmatmul.mubr.bf16.gmra.mrb[0].mxu0 %v547
        %v847 = vpop.f32.mrb[0].mxu0
        %v848 = vadd.f32 %v320, %v847
        %v849 = vpop.f32.mrb[0].mxu0
        %v850 = vadd.f32 %v324, %v849
        %v851 = vpop.f32.mrb[0].mxu0
        %v852 = vadd.f32 %v320, %v851
        %v853 = vpop.f32.mrb[0].mxu0
        %v854 = vadd.f32 %v324, %v853
        %855 = vmatprep.mubr.bf16.mxu0 0
        %856 = vmatmul.mubr.bf16.gmra.mrb[0].mxu0 %v550
        %v857 = vpop.f32.mrb[0].mxu0
        %v858 = vadd.f32 %v320, %v857
        %v859 = vpop.f32.mrb[0].mxu0
        %v860 = vadd.f32 %v324, %v859
        %v861 = vpop.f32.mrb[0].mxu0
        %v862 = vadd.f32 %v320, %v861
        %v863 = vpop.f32.mrb[0].mxu0
        %v864 = vadd.f32 %v324, %v863
        %865 = vdwg.mxu0
        %866 = vmatprep.subr.bf16.mxu0 %v563
        %867 = vmatpush1.bf16.msra.mxu0 %v560
        %868 = vmatprep.subr.bf16.mxu0 0
        %869 = vmatpush1.bf16.msra.mxu0 0
        %870 = vmatprep.subr.bf16.mxu0 0
        %871 = vmatpush1.bf16.msra.mxu0 0
        %872 = vmatprep.subr.bf16.mxu0 0
        %873 = vmatpush1.bf16.msra.mxu0 0
        %874 = vmatprep.subr.bf16.mxu0 0
        %875 = vmatpush1.bf16.msra.mxu0 0
        %876 = vmatprep.subr.bf16.mxu0 0
        %877 = vmatpush1.bf16.msra.mxu0 0
        %878 = vmatprep.subr.bf16.mxu0 0
        %879 = vmatpush1.bf16.msra.mxu0 0
        %880 = vmatprep.subr.bf16.mxu0 0
        %881 = vmatpush1.bf16.msra.mxu0 0
        %882 = vmatprep.subr.bf16.mxu0 0
        %883 = vmatpush1.bf16.msra.mxu0 0
        %884 = vmatprep.subr.bf16.mxu0 0
        %885 = vmatpush1.bf16.msra.mxu0 0
        %886 = vmatprep.subr.bf16.mxu0 0
        %887 = vmatpush1.bf16.msra.mxu0 0
        %888 = vmatprep.subr.bf16.mxu0 0
        %889 = vmatpush1.bf16.msra.mxu0 0
        %890 = vmatprep.subr.bf16.mxu0 0
        %891 = vmatpush1.bf16.msra.mxu0 0
        %892 = vmatprep.subr.bf16.mxu0 0
        %893 = vmatpush1.bf16.msra.mxu0 0
        %894 = vmatprep.subr.bf16.mxu0 0
        %895 = vmatpush1.bf16.msra.mxu0 0
        %896 = vmatprep.subr.bf16.mxu0 0
        %897 = vmatpush1.bf16.msra.mxu0 0
        %898 = vmatprep.mubr.bf16.mxu0 0
        %899 = vmatmul.mubr.bf16.gmra.mrb[0].mxu0 %v478
        %v900 = vpop.f32.mrb[0].mxu0
        %v901 = vadd.f32 %v328, %v900
        %v902 = vpop.f32.mrb[0].mxu0
        %v903 = vadd.f32 %v332, %v902
        %v904 = vpop.f32.mrb[0].mxu0
        %v905 = vadd.f32 %v328, %v904
        %v906 = vpop.f32.mrb[0].mxu0
        %v907 = vadd.f32 %v332, %v906
        %908 = vmatprep.mubr.bf16.mxu0 0
        %909 = vmatmul.mubr.bf16.gmra.mrb[0].mxu0 %v481
        %v910 = vpop.f32.mrb[0].mxu0
        %v911 = vadd.f32 %v328, %v910
        %v912 = vpop.f32.mrb[0].mxu0
        %v913 = vadd.f32 %v332, %v912
        %v914 = vpop.f32.mrb[0].mxu0
        %v915 = vadd.f32 %v328, %v914
        %v916 = vpop.f32.mrb[0].mxu0
        %v917 = vadd.f32 %v332, %v916
        %918 = vmatprep.mubr.bf16.mxu0 0
        %919 = vmatmul.mubr.bf16.gmra.mrb[0].mxu0 %v484
        %v920 = vpop.f32.mrb[0].mxu0
        %v921 = vadd.f32 %v328, %v920
        %v922 = vpop.f32.mrb[0].mxu0
        %v923 = vadd.f32 %v332, %v922
        %v924 = vpop.f32.mrb[0].mxu0
        %v925 = vadd.f32 %v328, %v924
        %v926 = vpop.f32.mrb[0].mxu0
        %v927 = vadd.f32 %v332, %v926
        %928 = vmatprep.mubr.bf16.mxu0 0
        %929 = vmatmul.mubr.bf16.gmra.mrb[0].mxu0 %v487
        %v930 = vpop.f32.mrb[0].mxu0
        %v931 = vadd.f32 %v328, %v930
        %v932 = vpop.f32.mrb[0].mxu0
        %v933 = vadd.f32 %v332, %v932
        %v934 = vpop.f32.mrb[0].mxu0
        %v935 = vadd.f32 %v328, %v934
        %v936 = vpop.f32.mrb[0].mxu0
        %v937 = vadd.f32 %v332, %v936
        %938 = vmatprep.mubr.bf16.mxu0 0
        %939 = vmatmul.mubr.bf16.gmra.mrb[0].mxu0 %v490
        %v940 = vpop.f32.mrb[0].mxu0
        %v941 = vadd.f32 %v328, %v940
        %v942 = vpop.f32.mrb[0].mxu0
        %v943 = vadd.f32 %v332, %v942
        %v944 = vpop.f32.mrb[0].mxu0
        %v945 = vadd.f32 %v328, %v944
        %v946 = vpop.f32.mrb[0].mxu0
        %v947 = vadd.f32 %v332, %v946
        %948 = vmatprep.mubr.bf16.mxu0 0
        %949 = vmatmul.mubr.bf16.gmra.mrb[0].mxu0 %v493
        %v950 = vpop.f32.mrb[0].mxu0
        %v951 = vadd.f32 %v328, %v950
        %v952 = vpop.f32.mrb[0].mxu0
        %v953 = vadd.f32 %v332, %v952
        %v954 = vpop.f32.mrb[0].mxu0
        %v955 = vadd.f32 %v328, %v954
        %v956 = vpop.f32.mrb[0].mxu0
        %v957 = vadd.f32 %v332, %v956
        %958 = vmatprep.mubr.bf16.mxu0 0
        %959 = vmatmul.mubr.bf16.gmra.mrb[0].mxu0 %v496
        %v960 = vpop.f32.mrb[0].mxu0
        %v961 = vadd.f32 %v328, %v960
        %v962 = vpop.f32.mrb[0].mxu0
        %v963 = vadd.f32 %v332, %v962
        %v964 = vpop.f32.mrb[0].mxu0
        %v965 = vadd.f32 %v328, %v964
        %v966 = vpop.f32.mrb[0].mxu0
        %v967 = vadd.f32 %v332, %v966
        %968 = vmatprep.mubr.bf16.mxu0 0
        %969 = vmatmul.mubr.bf16.gmra.mrb[0].mxu0 %v499
        %v970 = vpop.f32.mrb[0].mxu0
        %v971 = vadd.f32 %v328, %v970
        %v972 = vpop.f32.mrb[0].mxu0
        %v973 = vadd.f32 %v332, %v972
        %v974 = vpop.f32.mrb[0].mxu0
        %v975 = vadd.f32 %v328, %v974
        %v976 = vpop.f32.mrb[0].mxu0
        %v977 = vadd.f32 %v332, %v976
        %978 = vmatprep.mubr.bf16.mxu0 0
        %979 = vmatmul.mubr.bf16.gmra.mrb[0].mxu0 %v502
        %v980 = vpop.f32.mrb[0].mxu0
        %v981 = vadd.f32 %v328, %v980
        %v982 = vpop.f32.mrb[0].mxu0
        %v983 = vadd.f32 %v332, %v982
        %v984 = vpop.f32.mrb[0].mxu0
        %v985 = vadd.f32 %v328, %v984
        %v986 = vpop.f32.mrb[0].mxu0
        %v987 = vadd.f32 %v332, %v986
        %988 = vmatprep.mubr.bf16.mxu0 0
        %989 = vmatmul.mubr.bf16.gmra.mrb[0].mxu0 %v505
        %v990 = vpop.f32.mrb[0].mxu0
        %v991 = vadd.f32 %v328, %v990
        %v992 = vpop.f32.mrb[0].mxu0
        %v993 = vadd.f32 %v332, %v992
        %v994 = vpop.f32.mrb[0].mxu0
        %v995 = vadd.f32 %v328, %v994
        %v996 = vpop.f32.mrb[0].mxu0
        %v997 = vadd.f32 %v332, %v996
        %998 = vmatprep.mubr.bf16.mxu0 0
        %999 = vmatmul.mubr.bf16.gmra.mrb[0].mxu0 %v508
        %v1000 = vpop.f32.mrb[0].mxu0
        %v1001 = vadd.f32 %v328, %v1000
        %v1002 = vpop.f32.mrb[0].mxu0
        %v1003 = vadd.f32 %v332, %v1002
        %v1004 = vpop.f32.mrb[0].mxu0
        %v1005 = vadd.f32 %v328, %v1004
        %v1006 = vpop.f32.mrb[0].mxu0
        %v1007 = vadd.f32 %v332, %v1006
        %1008 = vmatprep.mubr.bf16.mxu0 0
        %1009 = vmatmul.mubr.bf16.gmra.mrb[0].mxu0 %v511
        %v1010 = vpop.f32.mrb[0].mxu0
        %v1011 = vadd.f32 %v328, %v1010
        %v1012 = vpop.f32.mrb[0].mxu0
        %v1013 = vadd.f32 %v332, %v1012
        %v1014 = vpop.f32.mrb[0].mxu0
        %v1015 = vadd.f32 %v328, %v1014
        %v1016 = vpop.f32.mrb[0].mxu0
        %v1017 = vadd.f32 %v332, %v1016
        %1018 = vmatprep.mubr.bf16.mxu0 0
        %1019 = vmatmul.mubr.bf16.gmra.mrb[0].mxu0 %v514
        %v1020 = vpop.f32.mrb[0].mxu0
        %v1021 = vadd.f32 %v328, %v1020
        %v1022 = vpop.f32.mrb[0].mxu0
        %v1023 = vadd.f32 %v332, %v1022
        %v1024 = vpop.f32.mrb[0].mxu0
        %v1025 = vadd.f32 %v328, %v1024
        %v1026 = vpop.f32.mrb[0].mxu0
        %v1027 = vadd.f32 %v332, %v1026
        %1028 = vmatprep.mubr.bf16.mxu0 0
        %1029 = vmatmul.mubr.bf16.gmra.mrb[0].mxu0 %v517
        %v1030 = vpop.f32.mrb[0].mxu0
        %v1031 = vadd.f32 %v328, %v1030
        %v1032 = vpop.f32.mrb[0].mxu0
        %v1033 = vadd.f32 %v332, %v1032
        %v1034 = vpop.f32.mrb[0].mxu0
        %v1035 = vadd.f32 %v328, %v1034
        %v1036 = vpop.f32.mrb[0].mxu0
        %v1037 = vadd.f32 %v332, %v1036
        %1038 = vmatprep.mubr.bf16.mxu0 0
        %1039 = vmatmul.mubr.bf16.gmra.mrb[0].mxu0 %v520
        %v1040 = vpop.f32.mrb[0].mxu0
        %v1041 = vadd.f32 %v328, %v1040
        %v1042 = vpop.f32.mrb[0].mxu0
        %v1043 = vadd.f32 %v332, %v1042
        %v1044 = vpop.f32.mrb[0].mxu0
        %v1045 = vadd.f32 %v328, %v1044
        %v1046 = vpop.f32.mrb[0].mxu0
        %v1047 = vadd.f32 %v332, %v1046
        %1048 = vmatprep.mubr.bf16.mxu0 0
        %1049 = vmatmul.mubr.bf16.gmra.mrb[0].mxu0 %v523
        %v1050 = vpop.f32.mrb[0].mxu0
        %v1051 = vadd.f32 %v328, %v1050
        %v1052 = vpop.f32.mrb[0].mxu0
        %v1053 = vadd.f32 %v332, %v1052
        %v1054 = vpop.f32.mrb[0].mxu0
        %v1055 = vadd.f32 %v328, %v1054
        %v1056 = vpop.f32.mrb[0].mxu0
        %v1057 = vadd.f32 %v332, %v1056
        %1058 = vmatprep.mubr.bf16.mxu0 0
        %1059 = vmatmul.mubr.bf16.gmra.mrb[0].mxu0 %v526
        %v1060 = vpop.f32.mrb[0].mxu0
        %v1061 = vadd.f32 %v328, %v1060
        %v1062 = vpop.f32.mrb[0].mxu0
        %v1063 = vadd.f32 %v332, %v1062
        %v1064 = vpop.f32.mrb[0].mxu0
        %v1065 = vadd.f32 %v328, %v1064
        %v1066 = vpop.f32.mrb[0].mxu0
        %v1067 = vadd.f32 %v332, %v1066
        %1068 = vmatprep.mubr.bf16.mxu0 0
        %1069 = vmatmul.mubr.bf16.gmra.mrb[0].mxu0 %v529
        %v1070 = vpop.f32.mrb[0].mxu0
        %v1071 = vadd.f32 %v328, %v1070
        %v1072 = vpop.f32.mrb[0].mxu0
        %v1073 = vadd.f32 %v332, %v1072
        %v1074 = vpop.f32.mrb[0].mxu0
        %v1075 = vadd.f32 %v328, %v1074
        %v1076 = vpop.f32.mrb[0].mxu0
        %v1077 = vadd.f32 %v332, %v1076
        %1078 = vmatprep.mubr.bf16.mxu0 0
        %1079 = vmatmul.mubr.bf16.gmra.mrb[0].mxu0 %v532
        %v1080 = vpop.f32.mrb[0].mxu0
        %v1081 = vadd.f32 %v328, %v1080
        %v1082 = vpop.f32.mrb[0].mxu0
        %v1083 = vadd.f32 %v332, %v1082
        %v1084 = vpop.f32.mrb[0].mxu0
        %v1085 = vadd.f32 %v328, %v1084
        %v1086 = vpop.f32.mrb[0].mxu0
        %v1087 = vadd.f32 %v332, %v1086
        %1088 = vmatprep.mubr.bf16.mxu0 0
        %1089 = vmatmul.mubr.bf16.gmra.mrb[0].mxu0 %v535
        %v1090 = vpop.f32.mrb[0].mxu0
        %v1091 = vadd.f32 %v328, %v1090
        %v1092 = vpop.f32.mrb[0].mxu0
        %v1093 = vadd.f32 %v332, %v1092
        %v1094 = vpop.f32.mrb[0].mxu0
        %v1095 = vadd.f32 %v328, %v1094
        %v1096 = vpop.f32.mrb[0].mxu0
        %v1097 = vadd.f32 %v332, %v1096
        %1098 = vmatprep.mubr.bf16.mxu0 0
        %1099 = vmatmul.mubr.bf16.gmra.mrb[0].mxu0 %v538
        %v1100 = vpop.f32.mrb[0].mxu0
        %v1101 = vadd.f32 %v328, %v1100
        %v1102 = vpop.f32.mrb[0].mxu0
        %v1103 = vadd.f32 %v332, %v1102
        %v1104 = vpop.f32.mrb[0].mxu0
        %v1105 = vadd.f32 %v328, %v1104
        %v1106 = vpop.f32.mrb[0].mxu0
        %v1107 = vadd.f32 %v332, %v1106
        %1108 = vmatprep.mubr.bf16.mxu0 0
        %1109 = vmatmul.mubr.bf16.gmra.mrb[0].mxu0 %v541
        %v1110 = vpop.f32.mrb[0].mxu0
        %v1111 = vadd.f32 %v328, %v1110
        %v1112 = vpop.f32.mrb[0].mxu0
        %v1113 = vadd.f32 %v332, %v1112
        %v1114 = vpop.f32.mrb[0].mxu0
        %v1115 = vadd.f32 %v328, %v1114
        %v1116 = vpop.f32.mrb[0].mxu0
        %v1117 = vadd.f32 %v332, %v1116
        %1118 = vmatprep.mubr.bf16.mxu0 0
        %1119 = vmatmul.mubr.bf16.gmra.mrb[0].mxu0 %v544
        %v1120 = vpop.f32.mrb[0].mxu0
        %v1121 = vadd.f32 %v328, %v1120
        %v1122 = vpop.f32.mrb[0].mxu0
        %v1123 = vadd.f32 %v332, %v1122
        %v1124 = vpop.f32.mrb[0].mxu0
        %v1125 = vadd.f32 %v328, %v1124
        %v1126 = vpop.f32.mrb[0].mxu0
        %v1127 = vadd.f32 %v332, %v1126
        %1128 = vmatprep.mubr.bf16.mxu0 0
        %1129 = vmatmul.mubr.bf16.gmra.mrb[0].mxu0 %v547
        %v1130 = vpop.f32.mrb[0].mxu0
        %v1131 = vadd.f32 %v328, %v1130
        %v1132 = vpop.f32.mrb[0].mxu0
        %v1133 = vadd.f32 %v332, %v1132
        %v1134 = vpop.f32.mrb[0].mxu0
        %v1135 = vadd.f32 %v328, %v1134
        %v1136 = vpop.f32.mrb[0].mxu0
        %v1137 = vadd.f32 %v332, %v1136
        %1138 = vmatprep.mubr.bf16.mxu0 0
        %1139 = vmatmul.mubr.bf16.gmra.mrb[0].mxu0 %v550
        %v1140 = vpop.f32.mrb[0].mxu0
        %v1141 = vadd.f32 %v328, %v1140
        %v1142 = vpop.f32.mrb[0].mxu0
        %v1143 = vadd.f32 %v332, %v1142
        %v1144 = vpop.f32.mrb[0].mxu0
        %v1145 = vadd.f32 %v328, %v1144
        %v1146 = vpop.f32.mrb[0].mxu0
        %v1147 = vadd.f32 %v332, %v1146
        %1148 = vdwg.mxu0
        %1149 = vmatprep.subr.bf16.mxu0 %v569
        %1150 = vmatpush1.bf16.msra.mxu0 %v566
        %1151 = vmatprep.subr.bf16.mxu0 0
        %1152 = vmatpush1.bf16.msra.mxu0 0
        %1153 = vmatprep.subr.bf16.mxu0 0
        %1154 = vmatpush1.bf16.msra.mxu0 0
        %1155 = vmatprep.subr.bf16.mxu0 0
        %1156 = vmatpush1.bf16.msra.mxu0 0
        %1157 = vmatprep.subr.bf16.mxu0 0
        %1158 = vmatpush1.bf16.msra.mxu0 0
        %1159 = vmatprep.subr.bf16.mxu0 0
        %1160 = vmatpush1.bf16.msra.mxu0 0
        %1161 = vmatprep.subr.bf16.mxu0 0
        %1162 = vmatpush1.bf16.msra.mxu0 0
        %1163 = vmatprep.subr.bf16.mxu0 0
        %1164 = vmatpush1.bf16.msra.mxu0 0
        %1165 = vmatprep.subr.bf16.mxu0 0
        %1166 = vmatpush1.bf16.msra.mxu0 0
        %1167 = vmatprep.subr.bf16.mxu0 0
        %1168 = vmatpush1.bf16.msra.mxu0 0
        %1169 = vmatprep.subr.bf16.mxu0 0
        %1170 = vmatpush1.bf16.msra.mxu0 0
        %1171 = vmatprep.subr.bf16.mxu0 0
        %1172 = vmatpush1.bf16.msra.mxu0 0
        %1173 = vmatprep.subr.bf16.mxu0 0
        %1174 = vmatpush1.bf16.msra.mxu0 0
        %1175 = vmatprep.subr.bf16.mxu0 0
        %1176 = vmatpush1.bf16.msra.mxu0 0
        %1177 = vmatprep.subr.bf16.mxu0 0
        %1178 = vmatpush1.bf16.msra.mxu0 0
        %1179 = vmatprep.subr.bf16.mxu0 0
        %1180 = vmatpush1.bf16.msra.mxu0 0
        %1181 = vmatprep.mubr.bf16.mxu0 0
        %1182 = vmatmul.mubr.bf16.gmra.mrb[0].mxu0 %v478
        %v1183 = vpop.f32.mrb[0].mxu0
        %v1184 = vadd.f32 %v336, %v1183
        %v1185 = vpop.f32.mrb[0].mxu0
        %v1186 = vadd.f32 %v340, %v1185
        %v1187 = vpop.f32.mrb[0].mxu0
        %v1188 = vadd.f32 %v336, %v1187
        %v1189 = vpop.f32.mrb[0].mxu0
        %v1190 = vadd.f32 %v340, %v1189
        %1191 = vmatprep.mubr.bf16.mxu0 0
        %1192 = vmatmul.mubr.bf16.gmra.mrb[0].mxu0 %v481
        %v1193 = vpop.f32.mrb[0].mxu0
        %v1194 = vadd.f32 %v336, %v1193
        %v1195 = vpop.f32.mrb[0].mxu0
        %v1196 = vadd.f32 %v340, %v1195
        %v1197 = vpop.f32.mrb[0].mxu0
        %v1198 = vadd.f32 %v336, %v1197
        %v1199 = vpop.f32.mrb[0].mxu0
        %v1200 = vadd.f32 %v340, %v1199
        %1201 = vmatprep.mubr.bf16.mxu0 0
        %1202 = vmatmul.mubr.bf16.gmra.mrb[0].mxu0 %v484
        %v1203 = vpop.f32.mrb[0].mxu0
        %v1204 = vadd.f32 %v336, %v1203
        %v1205 = vpop.f32.mrb[0].mxu0
        %v1206 = vadd.f32 %v340, %v1205
        %v1207 = vpop.f32.mrb[0].mxu0
        %v1208 = vadd.f32 %v336, %v1207
        %v1209 = vpop.f32.mrb[0].mxu0
        %v1210 = vadd.f32 %v340, %v1209
        %1211 = vmatprep.mubr.bf16.mxu0 0
        %1212 = vmatmul.mubr.bf16.gmra.mrb[0].mxu0 %v487
        %v1213 = vpop.f32.mrb[0].mxu0
        %v1214 = vadd.f32 %v336, %v1213
        %v1215 = vpop.f32.mrb[0].mxu0
        %v1216 = vadd.f32 %v340, %v1215
        %v1217 = vpop.f32.mrb[0].mxu0
        %v1218 = vadd.f32 %v336, %v1217
        %v1219 = vpop.f32.mrb[0].mxu0
        %v1220 = vadd.f32 %v340, %v1219
        %1221 = vmatprep.mubr.bf16.mxu0 0
        %1222 = vmatmul.mubr.bf16.gmra.mrb[0].mxu0 %v490
        %v1223 = vpop.f32.mrb[0].mxu0
        %v1224 = vadd.f32 %v336, %v1223
        %v1225 = vpop.f32.mrb[0].mxu0
        %v1226 = vadd.f32 %v340, %v1225
        %v1227 = vpop.f32.mrb[0].mxu0
        %v1228 = vadd.f32 %v336, %v1227
        %v1229 = vpop.f32.mrb[0].mxu0
        %v1230 = vadd.f32 %v340, %v1229
        %1231 = vmatprep.mubr.bf16.mxu0 0
        %1232 = vmatmul.mubr.bf16.gmra.mrb[0].mxu0 %v493
        %v1233 = vpop.f32.mrb[0].mxu0
        %v1234 = vadd.f32 %v336, %v1233
        %v1235 = vpop.f32.mrb[0].mxu0
        %v1236 = vadd.f32 %v340, %v1235
        %v1237 = vpop.f32.mrb[0].mxu0
        %v1238 = vadd.f32 %v336, %v1237
        %v1239 = vpop.f32.mrb[0].mxu0
        %v1240 = vadd.f32 %v340, %v1239
        %1241 = vmatprep.mubr.bf16.mxu0 0
        %1242 = vmatmul.mubr.bf16.gmra.mrb[0].mxu0 %v496
        %v1243 = vpop.f32.mrb[0].mxu0
        %v1244 = vadd.f32 %v336, %v1243
        %v1245 = vpop.f32.mrb[0].mxu0
        %v1246 = vadd.f32 %v340, %v1245
        %v1247 = vpop.f32.mrb[0].mxu0
        %v1248 = vadd.f32 %v336, %v1247
        %v1249 = vpop.f32.mrb[0].mxu0
        %v1250 = vadd.f32 %v340, %v1249
        %1251 = vmatprep.mubr.bf16.mxu0 0
        %1252 = vmatmul.mubr.bf16.gmra.mrb[0].mxu0 %v499
        %v1253 = vpop.f32.mrb[0].mxu0
        %v1254 = vadd.f32 %v336, %v1253
        %v1255 = vpop.f32.mrb[0].mxu0
        %v1256 = vadd.f32 %v340, %v1255
        %v1257 = vpop.f32.mrb[0].mxu0
        %v1258 = vadd.f32 %v336, %v1257
        %v1259 = vpop.f32.mrb[0].mxu0
        %v1260 = vadd.f32 %v340, %v1259
        %1261 = vmatprep.mubr.bf16.mxu0 0
        %1262 = vmatmul.mubr.bf16.gmra.mrb[0].mxu0 %v502
        %v1263 = vpop.f32.mrb[0].mxu0
        %v1264 = vadd.f32 %v336, %v1263
        %v1265 = vpop.f32.mrb[0].mxu0
        %v1266 = vadd.f32 %v340, %v1265
        %v1267 = vpop.f32.mrb[0].mxu0
        %v1268 = vadd.f32 %v336, %v1267
        %v1269 = vpop.f32.mrb[0].mxu0
        %v1270 = vadd.f32 %v340, %v1269
        %1271 = vmatprep.mubr.bf16.mxu0 0
        %1272 = vmatmul.mubr.bf16.gmra.mrb[0].mxu0 %v505
        %v1273 = vpop.f32.mrb[0].mxu0
        %v1274 = vadd.f32 %v336, %v1273
        %v1275 = vpop.f32.mrb[0].mxu0
        %v1276 = vadd.f32 %v340, %v1275
        %v1277 = vpop.f32.mrb[0].mxu0
        %v1278 = vadd.f32 %v336, %v1277
        %v1279 = vpop.f32.mrb[0].mxu0
        %v1280 = vadd.f32 %v340, %v1279
        %1281 = vmatprep.mubr.bf16.mxu0 0
        %1282 = vmatmul.mubr.bf16.gmra.mrb[0].mxu0 %v508
        %v1283 = vpop.f32.mrb[0].mxu0
        %v1284 = vadd.f32 %v336, %v1283
        %v1285 = vpop.f32.mrb[0].mxu0
        %v1286 = vadd.f32 %v340, %v1285
        %v1287 = vpop.f32.mrb[0].mxu0
        %v1288 = vadd.f32 %v336, %v1287
        %v1289 = vpop.f32.mrb[0].mxu0
        %v1290 = vadd.f32 %v340, %v1289
        %1291 = vmatprep.mubr.bf16.mxu0 0
        %1292 = vmatmul.mubr.bf16.gmra.mrb[0].mxu0 %v511
        %v1293 = vpop.f32.mrb[0].mxu0
        %v1294 = vadd.f32 %v336, %v1293
        %v1295 = vpop.f32.mrb[0].mxu0
        %v1296 = vadd.f32 %v340, %v1295
        %v1297 = vpop.f32.mrb[0].mxu0
        %v1298 = vadd.f32 %v336, %v1297
        %v1299 = vpop.f32.mrb[0].mxu0
        %v1300 = vadd.f32 %v340, %v1299
        %1301 = vmatprep.mubr.bf16.mxu0 0
        %1302 = vmatmul.mubr.bf16.gmra.mrb[0].mxu0 %v514
        %v1303 = vpop.f32.mrb[0].mxu0
        %v1304 = vadd.f32 %v336, %v1303
        %v1305 = vpop.f32.mrb[0].mxu0
        %v1306 = vadd.f32 %v340, %v1305
        %v1307 = vpop.f32.mrb[0].mxu0
        %v1308 = vadd.f32 %v336, %v1307
        %v1309 = vpop.f32.mrb[0].mxu0
        %v1310 = vadd.f32 %v340, %v1309
        %1311 = vmatprep.mubr.bf16.mxu0 0
        %1312 = vmatmul.mubr.bf16.gmra.mrb[0].mxu0 %v517
        %v1313 = vpop.f32.mrb[0].mxu0
        %v1314 = vadd.f32 %v336, %v1313
        %v1315 = vpop.f32.mrb[0].mxu0
        %v1316 = vadd.f32 %v340, %v1315
        %v1317 = vpop.f32.mrb[0].mxu0
        %v1318 = vadd.f32 %v336, %v1317
        %v1319 = vpop.f32.mrb[0].mxu0
        %v1320 = vadd.f32 %v340, %v1319
        %1321 = vmatprep.mubr.bf16.mxu0 0
        %1322 = vmatmul.mubr.bf16.gmra.mrb[0].mxu0 %v520
        %v1323 = vpop.f32.mrb[0].mxu0
        %v1324 = vadd.f32 %v336, %v1323
        %v1325 = vpop.f32.mrb[0].mxu0
        %v1326 = vadd.f32 %v340, %v1325
        %v1327 = vpop.f32.mrb[0].mxu0
        %v1328 = vadd.f32 %v336, %v1327
        %v1329 = vpop.f32.mrb[0].mxu0
        %v1330 = vadd.f32 %v340, %v1329
        %1331 = vmatprep.mubr.bf16.mxu0 0
        %1332 = vmatmul.mubr.bf16.gmra.mrb[0].mxu0 %v523
        %v1333 = vpop.f32.mrb[0].mxu0
        %v1334 = vadd.f32 %v336, %v1333
        %v1335 = vpop.f32.mrb[0].mxu0
        %v1336 = vadd.f32 %v340, %v1335
        %v1337 = vpop.f32.mrb[0].mxu0
        %v1338 = vadd.f32 %v336, %v1337
        %v1339 = vpop.f32.mrb[0].mxu0
        %v1340 = vadd.f32 %v340, %v1339
        %1341 = vmatprep.mubr.bf16.mxu0 0
        %1342 = vmatmul.mubr.bf16.gmra.mrb[0].mxu0 %v526
        %v1343 = vpop.f32.mrb[0].mxu0
        %v1344 = vadd.f32 %v336, %v1343
        %v1345 = vpop.f32.mrb[0].mxu0
        %v1346 = vadd.f32 %v340, %v1345
        %v1347 = vpop.f32.mrb[0].mxu0
        %v1348 = vadd.f32 %v336, %v1347
        %v1349 = vpop.f32.mrb[0].mxu0
        %v1350 = vadd.f32 %v340, %v1349
        %1351 = vmatprep.mubr.bf16.mxu0 0
        %1352 = vmatmul.mubr.bf16.gmra.mrb[0].mxu0 %v529
        %v1353 = vpop.f32.mrb[0].mxu0
        %v1354 = vadd.f32 %v336, %v1353
        %v1355 = vpop.f32.mrb[0].mxu0
        %v1356 = vadd.f32 %v340, %v1355
        %v1357 = vpop.f32.mrb[0].mxu0
        %v1358 = vadd.f32 %v336, %v1357
        %v1359 = vpop.f32.mrb[0].mxu0
        %v1360 = vadd.f32 %v340, %v1359
        %1361 = vmatprep.mubr.bf16.mxu0 0
        %1362 = vmatmul.mubr.bf16.gmra.mrb[0].mxu0 %v532
        %v1363 = vpop.f32.mrb[0].mxu0
        %v1364 = vadd.f32 %v336, %v1363
        %v1365 = vpop.f32.mrb[0].mxu0
        %v1366 = vadd.f32 %v340, %v1365
        %v1367 = vpop.f32.mrb[0].mxu0
        %v1368 = vadd.f32 %v336, %v1367
        %v1369 = vpop.f32.mrb[0].mxu0
        %v1370 = vadd.f32 %v340, %v1369
        %1371 = vmatprep.mubr.bf16.mxu0 0
        %1372 = vmatmul.mubr.bf16.gmra.mrb[0].mxu0 %v535
        %v1373 = vpop.f32.mrb[0].mxu0
        %v1374 = vadd.f32 %v336, %v1373
        %v1375 = vpop.f32.mrb[0].mxu0
        %v1376 = vadd.f32 %v340, %v1375
        %v1377 = vpop.f32.mrb[0].mxu0
        %v1378 = vadd.f32 %v336, %v1377
        %v1379 = vpop.f32.mrb[0].mxu0
        %v1380 = vadd.f32 %v340, %v1379
        %1381 = vmatprep.mubr.bf16.mxu0 0
        %1382 = vmatmul.mubr.bf16.gmra.mrb[0].mxu0 %v538
        %v1383 = vpop.f32.mrb[0].mxu0
        %v1384 = vadd.f32 %v336, %v1383
        %v1385 = vpop.f32.mrb[0].mxu0
        %v1386 = vadd.f32 %v340, %v1385
        %v1387 = vpop.f32.mrb[0].mxu0
        %v1388 = vadd.f32 %v336, %v1387
        %v1389 = vpop.f32.mrb[0].mxu0
        %v1390 = vadd.f32 %v340, %v1389
        %1391 = vmatprep.mubr.bf16.mxu0 0
        %1392 = vmatmul.mubr.bf16.gmra.mrb[0].mxu0 %v541
        %v1393 = vpop.f32.mrb[0].mxu0
        %v1394 = vadd.f32 %v336, %v1393
        %v1395 = vpop.f32.mrb[0].mxu0
        %v1396 = vadd.f32 %v340, %v1395
        %v1397 = vpop.f32.mrb[0].mxu0
        %v1398 = vadd.f32 %v336, %v1397
        %v1399 = vpop.f32.mrb[0].mxu0
        %v1400 = vadd.f32 %v340, %v1399
        %1401 = vmatprep.mubr.bf16.mxu0 0
        %1402 = vmatmul.mubr.bf16.gmra.mrb[0].mxu0 %v544
        %v1403 = vpop.f32.mrb[0].mxu0
        %v1404 = vadd.f32 %v336, %v1403
        %v1405 = vpop.f32.mrb[0].mxu0
        %v1406 = vadd.f32 %v340, %v1405
        %v1407 = vpop.f32.mrb[0].mxu0
        %v1408 = vadd.f32 %v336, %v1407
        %v1409 = vpop.f32.mrb[0].mxu0
        %v1410 = vadd.f32 %v340, %v1409
        %1411 = vmatprep.mubr.bf16.mxu0 0
        %1412 = vmatmul.mubr.bf16.gmra.mrb[0].mxu0 %v547
        %v1413 = vpop.f32.mrb[0].mxu0
        %v1414 = vadd.f32 %v336, %v1413
        %v1415 = vpop.f32.mrb[0].mxu0
        %v1416 = vadd.f32 %v340, %v1415
        %v1417 = vpop.f32.mrb[0].mxu0
        %v1418 = vadd.f32 %v336, %v1417
        %v1419 = vpop.f32.mrb[0].mxu0
        %v1420 = vadd.f32 %v340, %v1419
        %1421 = vmatprep.mubr.bf16.mxu0 0
        %1422 = vmatmul.mubr.bf16.gmra.mrb[0].mxu0 %v550
        %v1423 = vpop.f32.mrb[0].mxu0
        %v1424 = vadd.f32 %v336, %v1423
        %v1425 = vpop.f32.mrb[0].mxu0
        %v1426 = vadd.f32 %v340, %v1425
        %v1427 = vpop.f32.mrb[0].mxu0
        %v1428 = vadd.f32 %v336, %v1427
        %v1429 = vpop.f32.mrb[0].mxu0
        %v1430 = vadd.f32 %v340, %v1429
        %1431 = vdwg.mxu0
        %1432 = vmatprep.subr.bf16.mxu0 %v575
        %1433 = vmatpush1.bf16.msra.mxu0 %v572
        %1434 = vmatprep.subr.bf16.mxu0 0
        %1435 = vmatpush1.bf16.msra.mxu0 0
        %1436 = vmatprep.subr.bf16.mxu0 0
        %1437 = vmatpush1.bf16.msra.mxu0 0
        %1438 = vmatprep.subr.bf16.mxu0 0
        %1439 = vmatpush1.bf16.msra.mxu0 0
        %1440 = vmatprep.subr.bf16.mxu0 0
        %1441 = vmatpush1.bf16.msra.mxu0 0
        %1442 = vmatprep.subr.bf16.mxu0 0
        %1443 = vmatpush1.bf16.msra.mxu0 0
        %1444 = vmatprep.subr.bf16.mxu0 0
        %1445 = vmatpush1.bf16.msra.mxu0 0
        %1446 = vmatprep.subr.bf16.mxu0 0
        %1447 = vmatpush1.bf16.msra.mxu0 0
        %1448 = vmatprep.subr.bf16.mxu0 0
        %1449 = vmatpush1.bf16.msra.mxu0 0
        %1450 = vmatprep.subr.bf16.mxu0 0
        %1451 = vmatpush1.bf16.msra.mxu0 0
        %1452 = vmatprep.subr.bf16.mxu0 0
        %1453 = vmatpush1.bf16.msra.mxu0 0
        %1454 = vmatprep.subr.bf16.mxu0 0
        %1455 = vmatpush1.bf16.msra.mxu0 0
        %1456 = vmatprep.subr.bf16.mxu0 0
        %1457 = vmatpush1.bf16.msra.mxu0 0
        %1458 = vmatprep.subr.bf16.mxu0 0
        %1459 = vmatpush1.bf16.msra.mxu0 0
        %1460 = vmatprep.subr.bf16.mxu0 0
        %1461 = vmatpush1.bf16.msra.mxu0 0
        %1462 = vmatprep.subr.bf16.mxu0 0
        %1463 = vmatpush1.bf16.msra.mxu0 0
        %1464 = vmatprep.mubr.bf16.mxu0 0
        %1465 = vmatmul.mubr.bf16.gmra.mrb[0].mxu0 %v478
        %v1466 = vpop.f32.mrb[0].mxu0
        %v1467 = vadd.f32 %v344, %v1466
        %v1468 = vpop.f32.mrb[0].mxu0
        %v1469 = vadd.f32 %v348, %v1468
        %v1470 = vpop.f32.mrb[0].mxu0
        %v1471 = vadd.f32 %v344, %v1470
        %v1472 = vpop.f32.mrb[0].mxu0
        %v1473 = vadd.f32 %v348, %v1472
        %1474 = vmatprep.mubr.bf16.mxu0 0
        %1475 = vmatmul.mubr.bf16.gmra.mrb[0].mxu0 %v481
        %v1476 = vpop.f32.mrb[0].mxu0
        %v1477 = vadd.f32 %v344, %v1476
        %v1478 = vpop.f32.mrb[0].mxu0
        %v1479 = vadd.f32 %v348, %v1478
        %v1480 = vpop.f32.mrb[0].mxu0
        %v1481 = vadd.f32 %v344, %v1480
        %v1482 = vpop.f32.mrb[0].mxu0
        %v1483 = vadd.f32 %v348, %v1482
        %1484 = vmatprep.mubr.bf16.mxu0 0
        %1485 = vmatmul.mubr.bf16.gmra.mrb[0].mxu0 %v484
        %v1486 = vpop.f32.mrb[0].mxu0
        %v1487 = vadd.f32 %v344, %v1486
        %v1488 = vpop.f32.mrb[0].mxu0
        %v1489 = vadd.f32 %v348, %v1488
        %v1490 = vpop.f32.mrb[0].mxu0
        %v1491 = vadd.f32 %v344, %v1490
        %v1492 = vpop.f32.mrb[0].mxu0
        %v1493 = vadd.f32 %v348, %v1492
        %1494 = vmatprep.mubr.bf16.mxu0 0
        %1495 = vmatmul.mubr.bf16.gmra.mrb[0].mxu0 %v487
        %v1496 = vpop.f32.mrb[0].mxu0
        %v1497 = vadd.f32 %v344, %v1496
        %v1498 = vpop.f32.mrb[0].mxu0
        %v1499 = vadd.f32 %v348, %v1498
        %v1500 = vpop.f32.mrb[0].mxu0
        %v1501 = vadd.f32 %v344, %v1500
        %v1502 = vpop.f32.mrb[0].mxu0
        %v1503 = vadd.f32 %v348, %v1502
        %1504 = vmatprep.mubr.bf16.mxu0 0
        %1505 = vmatmul.mubr.bf16.gmra.mrb[0].mxu0 %v490
        %v1506 = vpop.f32.mrb[0].mxu0
        %v1507 = vadd.f32 %v344, %v1506
        %v1508 = vpop.f32.mrb[0].mxu0
        %v1509 = vadd.f32 %v348, %v1508
        %v1510 = vpop.f32.mrb[0].mxu0
        %v1511 = vadd.f32 %v344, %v1510
        %v1512 = vpop.f32.mrb[0].mxu0
        %v1513 = vadd.f32 %v348, %v1512
        %1514 = vmatprep.mubr.bf16.mxu0 0
        %1515 = vmatmul.mubr.bf16.gmra.mrb[0].mxu0 %v493
        %v1516 = vpop.f32.mrb[0].mxu0
        %v1517 = vadd.f32 %v344, %v1516
        %v1518 = vpop.f32.mrb[0].mxu0
        %v1519 = vadd.f32 %v348, %v1518
        %v1520 = vpop.f32.mrb[0].mxu0
        %v1521 = vadd.f32 %v344, %v1520
        %v1522 = vpop.f32.mrb[0].mxu0
        %v1523 = vadd.f32 %v348, %v1522
        %1524 = vmatprep.mubr.bf16.mxu0 0
        %1525 = vmatmul.mubr.bf16.gmra.mrb[0].mxu0 %v496
        %v1526 = vpop.f32.mrb[0].mxu0
        %v1527 = vadd.f32 %v344, %v1526
        %v1528 = vpop.f32.mrb[0].mxu0
        %v1529 = vadd.f32 %v348, %v1528
        %v1530 = vpop.f32.mrb[0].mxu0
        %v1531 = vadd.f32 %v344, %v1530
        %v1532 = vpop.f32.mrb[0].mxu0
        %v1533 = vadd.f32 %v348, %v1532
        %1534 = vmatprep.mubr.bf16.mxu0 0
        %1535 = vmatmul.mubr.bf16.gmra.mrb[0].mxu0 %v499
        %v1536 = vpop.f32.mrb[0].mxu0
        %v1537 = vadd.f32 %v344, %v1536
        %v1538 = vpop.f32.mrb[0].mxu0
        %v1539 = vadd.f32 %v348, %v1538
        %v1540 = vpop.f32.mrb[0].mxu0
        %v1541 = vadd.f32 %v344, %v1540
        %v1542 = vpop.f32.mrb[0].mxu0
        %v1543 = vadd.f32 %v348, %v1542
        %1544 = vmatprep.mubr.bf16.mxu0 0
        %1545 = vmatmul.mubr.bf16.gmra.mrb[0].mxu0 %v502
        %v1546 = vpop.f32.mrb[0].mxu0
        %v1547 = vadd.f32 %v344, %v1546
        %v1548 = vpop.f32.mrb[0].mxu0
        %v1549 = vadd.f32 %v348, %v1548
        %v1550 = vpop.f32.mrb[0].mxu0
        %v1551 = vadd.f32 %v344, %v1550
        %v1552 = vpop.f32.mrb[0].mxu0
        %v1553 = vadd.f32 %v348, %v1552
        %1554 = vmatprep.mubr.bf16.mxu0 0
        %1555 = vmatmul.mubr.bf16.gmra.mrb[0].mxu0 %v505
        %v1556 = vpop.f32.mrb[0].mxu0
        %v1557 = vadd.f32 %v344, %v1556
        %v1558 = vpop.f32.mrb[0].mxu0
        %v1559 = vadd.f32 %v348, %v1558
        %v1560 = vpop.f32.mrb[0].mxu0
        %v1561 = vadd.f32 %v344, %v1560
        %v1562 = vpop.f32.mrb[0].mxu0
        %v1563 = vadd.f32 %v348, %v1562
        %1564 = vmatprep.mubr.bf16.mxu0 0
        %1565 = vmatmul.mubr.bf16.gmra.mrb[0].mxu0 %v508
        %v1566 = vpop.f32.mrb[0].mxu0
        %v1567 = vadd.f32 %v344, %v1566
        %v1568 = vpop.f32.mrb[0].mxu0
        %v1569 = vadd.f32 %v348, %v1568
        %v1570 = vpop.f32.mrb[0].mxu0
        %v1571 = vadd.f32 %v344, %v1570
        %v1572 = vpop.f32.mrb[0].mxu0
        %v1573 = vadd.f32 %v348, %v1572
        %1574 = vmatprep.mubr.bf16.mxu0 0
        %1575 = vmatmul.mubr.bf16.gmra.mrb[0].mxu0 %v511
        %v1576 = vpop.f32.mrb[0].mxu0
        %v1577 = vadd.f32 %v344, %v1576
        %v1578 = vpop.f32.mrb[0].mxu0
        %v1579 = vadd.f32 %v348, %v1578
        %v1580 = vpop.f32.mrb[0].mxu0
        %v1581 = vadd.f32 %v344, %v1580
        %v1582 = vpop.f32.mrb[0].mxu0
        %v1583 = vadd.f32 %v348, %v1582
        %1584 = vmatprep.mubr.bf16.mxu0 0
        %1585 = vmatmul.mubr.bf16.gmra.mrb[0].mxu0 %v514
        %v1586 = vpop.f32.mrb[0].mxu0
        %v1587 = vadd.f32 %v344, %v1586
        %v1588 = vpop.f32.mrb[0].mxu0
        %v1589 = vadd.f32 %v348, %v1588
        %v1590 = vpop.f32.mrb[0].mxu0
        %v1591 = vadd.f32 %v344, %v1590
        %v1592 = vpop.f32.mrb[0].mxu0
        %v1593 = vadd.f32 %v348, %v1592
        %1594 = vmatprep.mubr.bf16.mxu0 0
        %1595 = vmatmul.mubr.bf16.gmra.mrb[0].mxu0 %v517
        %v1596 = vpop.f32.mrb[0].mxu0
        %v1597 = vadd.f32 %v344, %v1596
        %v1598 = vpop.f32.mrb[0].mxu0
        %v1599 = vadd.f32 %v348, %v1598
        %v1600 = vpop.f32.mrb[0].mxu0
        %v1601 = vadd.f32 %v344, %v1600
        %v1602 = vpop.f32.mrb[0].mxu0
        %v1603 = vadd.f32 %v348, %v1602
        %1604 = vmatprep.mubr.bf16.mxu0 0
        %1605 = vmatmul.mubr.bf16.gmra.mrb[0].mxu0 %v520
        %v1606 = vpop.f32.mrb[0].mxu0
        %v1607 = vadd.f32 %v344, %v1606
        %v1608 = vpop.f32.mrb[0].mxu0
        %v1609 = vadd.f32 %v348, %v1608
        %v1610 = vpop.f32.mrb[0].mxu0
        %v1611 = vadd.f32 %v344, %v1610
        %v1612 = vpop.f32.mrb[0].mxu0
        %v1613 = vadd.f32 %v348, %v1612
        %1614 = vmatprep.mubr.bf16.mxu0 0
        %1615 = vmatmul.mubr.bf16.gmra.mrb[0].mxu0 %v523
        %v1616 = vpop.f32.mrb[0].mxu0
        %v1617 = vadd.f32 %v344, %v1616
        %v1618 = vpop.f32.mrb[0].mxu0
        %v1619 = vadd.f32 %v348, %v1618
        %v1620 = vpop.f32.mrb[0].mxu0
        %v1621 = vadd.f32 %v344, %v1620
        %v1622 = vpop.f32.mrb[0].mxu0
        %v1623 = vadd.f32 %v348, %v1622
        %1624 = vmatprep.mubr.bf16.mxu0 0
        %1625 = vmatmul.mubr.bf16.gmra.mrb[0].mxu0 %v526
        %v1626 = vpop.f32.mrb[0].mxu0
        %v1627 = vadd.f32 %v344, %v1626
        %v1628 = vpop.f32.mrb[0].mxu0
        %v1629 = vadd.f32 %v348, %v1628
        %v1630 = vpop.f32.mrb[0].mxu0
        %v1631 = vadd.f32 %v344, %v1630
        %v1632 = vpop.f32.mrb[0].mxu0
        %v1633 = vadd.f32 %v348, %v1632
        %1634 = vmatprep.mubr.bf16.mxu0 0
        %1635 = vmatmul.mubr.bf16.gmra.mrb[0].mxu0 %v529
        %v1636 = vpop.f32.mrb[0].mxu0
        %v1637 = vadd.f32 %v344, %v1636
        %v1638 = vpop.f32.mrb[0].mxu0
        %v1639 = vadd.f32 %v348, %v1638
        %v1640 = vpop.f32.mrb[0].mxu0
        %v1641 = vadd.f32 %v344, %v1640
        %v1642 = vpop.f32.mrb[0].mxu0
        %v1643 = vadd.f32 %v348, %v1642
        %1644 = vmatprep.mubr.bf16.mxu0 0
        %1645 = vmatmul.mubr.bf16.gmra.mrb[0].mxu0 %v532
        %v1646 = vpop.f32.mrb[0].mxu0
        %v1647 = vadd.f32 %v344, %v1646
        %v1648 = vpop.f32.mrb[0].mxu0
        %v1649 = vadd.f32 %v348, %v1648
        %v1650 = vpop.f32.mrb[0].mxu0
        %v1651 = vadd.f32 %v344, %v1650
        %v1652 = vpop.f32.mrb[0].mxu0
        %v1653 = vadd.f32 %v348, %v1652
        %1654 = vmatprep.mubr.bf16.mxu0 0
        %1655 = vmatmul.mubr.bf16.gmra.mrb[0].mxu0 %v535
        %v1656 = vpop.f32.mrb[0].mxu0
        %v1657 = vadd.f32 %v344, %v1656
        %v1658 = vpop.f32.mrb[0].mxu0
        %v1659 = vadd.f32 %v348, %v1658
        %v1660 = vpop.f32.mrb[0].mxu0
        %v1661 = vadd.f32 %v344, %v1660
        %v1662 = vpop.f32.mrb[0].mxu0
        %v1663 = vadd.f32 %v348, %v1662
        %1664 = vmatprep.mubr.bf16.mxu0 0
        %1665 = vmatmul.mubr.bf16.gmra.mrb[0].mxu0 %v538
        %v1666 = vpop.f32.mrb[0].mxu0
        %v1667 = vadd.f32 %v344, %v1666
        %v1668 = vpop.f32.mrb[0].mxu0
        %v1669 = vadd.f32 %v348, %v1668
        %v1670 = vpop.f32.mrb[0].mxu0
        %v1671 = vadd.f32 %v344, %v1670
        %v1672 = vpop.f32.mrb[0].mxu0
        %v1673 = vadd.f32 %v348, %v1672
        %1674 = vmatprep.mubr.bf16.mxu0 0
        %1675 = vmatmul.mubr.bf16.gmra.mrb[0].mxu0 %v541
        %v1676 = vpop.f32.mrb[0].mxu0
        %v1677 = vadd.f32 %v344, %v1676
        %v1678 = vpop.f32.mrb[0].mxu0
        %v1679 = vadd.f32 %v348, %v1678
        %v1680 = vpop.f32.mrb[0].mxu0
        %v1681 = vadd.f32 %v344, %v1680
        %v1682 = vpop.f32.mrb[0].mxu0
        %v1683 = vadd.f32 %v348, %v1682
        %1684 = vmatprep.mubr.bf16.mxu0 0
        %1685 = vmatmul.mubr.bf16.gmra.mrb[0].mxu0 %v544
        %v1686 = vpop.f32.mrb[0].mxu0
        %v1687 = vadd.f32 %v344, %v1686
        %v1688 = vpop.f32.mrb[0].mxu0
        %v1689 = vadd.f32 %v348, %v1688
        %v1690 = vpop.f32.mrb[0].mxu0
        %v1691 = vadd.f32 %v344, %v1690
        %v1692 = vpop.f32.mrb[0].mxu0
        %v1693 = vadd.f32 %v348, %v1692
        %1694 = vmatprep.mubr.bf16.mxu0 0
        %1695 = vmatmul.mubr.bf16.gmra.mrb[0].mxu0 %v547
        %v1696 = vpop.f32.mrb[0].mxu0
        %v1697 = vadd.f32 %v344, %v1696
        %v1698 = vpop.f32.mrb[0].mxu0
        %v1699 = vadd.f32 %v348, %v1698
        %v1700 = vpop.f32.mrb[0].mxu0
        %v1701 = vadd.f32 %v344, %v1700
        %v1702 = vpop.f32.mrb[0].mxu0
        %v1703 = vadd.f32 %v348, %v1702
        %1704 = vmatprep.mubr.bf16.mxu0 0
        %1705 = vmatmul.mubr.bf16.gmra.mrb[0].mxu0 %v550
        %v1706 = vpop.f32.mrb[0].mxu0
        %v1707 = vadd.f32 %v344, %v1706
        %v1708 = vpop.f32.mrb[0].mxu0
        %v1709 = vadd.f32 %v348, %v1708
        %v1710 = vpop.f32.mrb[0].mxu0
        %v1711 = vadd.f32 %v344, %v1710
        %v1712 = vpop.f32.mrb[0].mxu0
        %v1713 = vadd.f32 %v348, %v1712
        %1714 = vdwg.mxu0
        %1715 = vmatprep.subr.bf16.mxu0 %v581
        %1716 = vmatpush1.bf16.msra.mxu0 %v578
        %1717 = vmatprep.subr.bf16.mxu0 0
        %1718 = vmatpush1.bf16.msra.mxu0 0
        %1719 = vmatprep.subr.bf16.mxu0 0
        %1720 = vmatpush1.bf16.msra.mxu0 0
        %1721 = vmatprep.subr.bf16.mxu0 0
        %1722 = vmatpush1.bf16.msra.mxu0 0
        %1723 = vmatprep.subr.bf16.mxu0 0
        %1724 = vmatpush1.bf16.msra.mxu0 0
        %1725 = vmatprep.subr.bf16.mxu0 0
        %1726 = vmatpush1.bf16.msra.mxu0 0
        %1727 = vmatprep.subr.bf16.mxu0 0
        %1728 = vmatpush1.bf16.msra.mxu0 0
        %1729 = vmatprep.subr.bf16.mxu0 0
        %1730 = vmatpush1.bf16.msra.mxu0 0
        %1731 = vmatprep.subr.bf16.mxu0 0
        %1732 = vmatpush1.bf16.msra.mxu0 0
        %1733 = vmatprep.subr.bf16.mxu0 0
        %1734 = vmatpush1.bf16.msra.mxu0 0
        %1735 = vmatprep.subr.bf16.mxu0 0
        %1736 = vmatpush1.bf16.msra.mxu0 0
        %1737 = vmatprep.subr.bf16.mxu0 0
        %1738 = vmatpush1.bf16.msra.mxu0 0
        %1739 = vmatprep.subr.bf16.mxu0 0
        %1740 = vmatpush1.bf16.msra.mxu0 0
        %1741 = vmatprep.subr.bf16.mxu0 0
        %1742 = vmatpush1.bf16.msra.mxu0 0
        %1743 = vmatprep.subr.bf16.mxu0 0
        %1744 = vmatpush1.bf16.msra.mxu0 0
        %1745 = vmatprep.subr.bf16.mxu0 0
        %1746 = vmatpush1.bf16.msra.mxu0 0
        %1747 = vmatprep.mubr.bf16.mxu0 0
        %1748 = vmatmul.mubr.bf16.gmra.mrb[0].mxu0 %v478
        %v1749 = vpop.f32.mrb[0].mxu0
        %v1750 = vadd.f32 %v352, %v1749
        %v1751 = vpop.f32.mrb[0].mxu0
        %v1752 = vadd.f32 %v356, %v1751
        %v1753 = vpop.f32.mrb[0].mxu0
        %v1754 = vadd.f32 %v352, %v1753
        %v1755 = vpop.f32.mrb[0].mxu0
        %v1756 = vadd.f32 %v356, %v1755
        %1757 = vmatprep.mubr.bf16.mxu0 0
        %1758 = vmatmul.mubr.bf16.gmra.mrb[0].mxu0 %v481
        %v1759 = vpop.f32.mrb[0].mxu0
        %v1760 = vadd.f32 %v352, %v1759
        %v1761 = vpop.f32.mrb[0].mxu0
        %v1762 = vadd.f32 %v356, %v1761
        %v1763 = vpop.f32.mrb[0].mxu0
        %v1764 = vadd.f32 %v352, %v1763
        %v1765 = vpop.f32.mrb[0].mxu0
        %v1766 = vadd.f32 %v356, %v1765
        %1767 = vmatprep.mubr.bf16.mxu0 0
        %1768 = vmatmul.mubr.bf16.gmra.mrb[0].mxu0 %v484
        %v1769 = vpop.f32.mrb[0].mxu0
        %v1770 = vadd.f32 %v352, %v1769
        %v1771 = vpop.f32.mrb[0].mxu0
        %v1772 = vadd.f32 %v356, %v1771
        %v1773 = vpop.f32.mrb[0].mxu0
        %v1774 = vadd.f32 %v352, %v1773
        %v1775 = vpop.f32.mrb[0].mxu0
        %v1776 = vadd.f32 %v356, %v1775
        %1777 = vmatprep.mubr.bf16.mxu0 0
        %1778 = vmatmul.mubr.bf16.gmra.mrb[0].mxu0 %v487
        %v1779 = vpop.f32.mrb[0].mxu0
        %v1780 = vadd.f32 %v352, %v1779
        %v1781 = vpop.f32.mrb[0].mxu0
        %v1782 = vadd.f32 %v356, %v1781
        %v1783 = vpop.f32.mrb[0].mxu0
        %v1784 = vadd.f32 %v352, %v1783
        %v1785 = vpop.f32.mrb[0].mxu0
        %v1786 = vadd.f32 %v356, %v1785
        %1787 = vmatprep.mubr.bf16.mxu0 0
        %1788 = vmatmul.mubr.bf16.gmra.mrb[0].mxu0 %v490
        %v1789 = vpop.f32.mrb[0].mxu0
        %v1790 = vadd.f32 %v352, %v1789
        %v1791 = vpop.f32.mrb[0].mxu0
        %v1792 = vadd.f32 %v356, %v1791
        %v1793 = vpop.f32.mrb[0].mxu0
        %v1794 = vadd.f32 %v352, %v1793
        %v1795 = vpop.f32.mrb[0].mxu0
        %v1796 = vadd.f32 %v356, %v1795
        %1797 = vmatprep.mubr.bf16.mxu0 0
        %1798 = vmatmul.mubr.bf16.gmra.mrb[0].mxu0 %v493
        %v1799 = vpop.f32.mrb[0].mxu0
        %v1800 = vadd.f32 %v352, %v1799
        %v1801 = vpop.f32.mrb[0].mxu0
        %v1802 = vadd.f32 %v356, %v1801
        %v1803 = vpop.f32.mrb[0].mxu0
        %v1804 = vadd.f32 %v352, %v1803
        %v1805 = vpop.f32.mrb[0].mxu0
        %v1806 = vadd.f32 %v356, %v1805
        %1807 = vmatprep.mubr.bf16.mxu0 0
        %1808 = vmatmul.mubr.bf16.gmra.mrb[0].mxu0 %v496
        %v1809 = vpop.f32.mrb[0].mxu0
        %v1810 = vadd.f32 %v352, %v1809
        %v1811 = vpop.f32.mrb[0].mxu0
        %v1812 = vadd.f32 %v356, %v1811
        %v1813 = vpop.f32.mrb[0].mxu0
        %v1814 = vadd.f32 %v352, %v1813
        %v1815 = vpop.f32.mrb[0].mxu0
        %v1816 = vadd.f32 %v356, %v1815
        %1817 = vmatprep.mubr.bf16.mxu0 0
        %1818 = vmatmul.mubr.bf16.gmra.mrb[0].mxu0 %v499
        %v1819 = vpop.f32.mrb[0].mxu0
        %v1820 = vadd.f32 %v352, %v1819
        %v1821 = vpop.f32.mrb[0].mxu0
        %v1822 = vadd.f32 %v356, %v1821
        %v1823 = vpop.f32.mrb[0].mxu0
        %v1824 = vadd.f32 %v352, %v1823
        %v1825 = vpop.f32.mrb[0].mxu0
        %v1826 = vadd.f32 %v356, %v1825
        %1827 = vmatprep.mubr.bf16.mxu0 0
        %1828 = vmatmul.mubr.bf16.gmra.mrb[0].mxu0 %v502
        %v1829 = vpop.f32.mrb[0].mxu0
        %v1830 = vadd.f32 %v352, %v1829
        %v1831 = vpop.f32.mrb[0].mxu0
        %v1832 = vadd.f32 %v356, %v1831
        %v1833 = vpop.f32.mrb[0].mxu0
        %v1834 = vadd.f32 %v352, %v1833
        %v1835 = vpop.f32.mrb[0].mxu0
        %v1836 = vadd.f32 %v356, %v1835
        %1837 = vmatprep.mubr.bf16.mxu0 0
        %1838 = vmatmul.mubr.bf16.gmra.mrb[0].mxu0 %v505
        %v1839 = vpop.f32.mrb[0].mxu0
        %v1840 = vadd.f32 %v352, %v1839
        %v1841 = vpop.f32.mrb[0].mxu0
        %v1842 = vadd.f32 %v356, %v1841
        %v1843 = vpop.f32.mrb[0].mxu0
        %v1844 = vadd.f32 %v352, %v1843
        %v1845 = vpop.f32.mrb[0].mxu0
        %v1846 = vadd.f32 %v356, %v1845
        %1847 = vmatprep.mubr.bf16.mxu0 0
        %1848 = vmatmul.mubr.bf16.gmra.mrb[0].mxu0 %v508
        %v1849 = vpop.f32.mrb[0].mxu0
        %v1850 = vadd.f32 %v352, %v1849
        %v1851 = vpop.f32.mrb[0].mxu0
        %v1852 = vadd.f32 %v356, %v1851
        %v1853 = vpop.f32.mrb[0].mxu0
        %v1854 = vadd.f32 %v352, %v1853
        %v1855 = vpop.f32.mrb[0].mxu0
        %v1856 = vadd.f32 %v356, %v1855
        %1857 = vmatprep.mubr.bf16.mxu0 0
        %1858 = vmatmul.mubr.bf16.gmra.mrb[0].mxu0 %v511
        %v1859 = vpop.f32.mrb[0].mxu0
        %v1860 = vadd.f32 %v352, %v1859
        %v1861 = vpop.f32.mrb[0].mxu0
        %v1862 = vadd.f32 %v356, %v1861
        %v1863 = vpop.f32.mrb[0].mxu0
        %v1864 = vadd.f32 %v352, %v1863
        %v1865 = vpop.f32.mrb[0].mxu0
        %v1866 = vadd.f32 %v356, %v1865
        %1867 = vmatprep.mubr.bf16.mxu0 0
        %1868 = vmatmul.mubr.bf16.gmra.mrb[0].mxu0 %v514
        %v1869 = vpop.f32.mrb[0].mxu0
        %v1870 = vadd.f32 %v352, %v1869
        %v1871 = vpop.f32.mrb[0].mxu0
        %v1872 = vadd.f32 %v356, %v1871
        %v1873 = vpop.f32.mrb[0].mxu0
        %v1874 = vadd.f32 %v352, %v1873
        %v1875 = vpop.f32.mrb[0].mxu0
        %v1876 = vadd.f32 %v356, %v1875
        %1877 = vmatprep.mubr.bf16.mxu0 0
        %1878 = vmatmul.mubr.bf16.gmra.mrb[0].mxu0 %v517
        %v1879 = vpop.f32.mrb[0].mxu0
        %v1880 = vadd.f32 %v352, %v1879
        %v1881 = vpop.f32.mrb[0].mxu0
        %v1882 = vadd.f32 %v356, %v1881
        %v1883 = vpop.f32.mrb[0].mxu0
        %v1884 = vadd.f32 %v352, %v1883
        %v1885 = vpop.f32.mrb[0].mxu0
        %v1886 = vadd.f32 %v356, %v1885
        %1887 = vmatprep.mubr.bf16.mxu0 0
        %1888 = vmatmul.mubr.bf16.gmra.mrb[0].mxu0 %v520
        %v1889 = vpop.f32.mrb[0].mxu0
        %v1890 = vadd.f32 %v352, %v1889
        %v1891 = vpop.f32.mrb[0].mxu0
        %v1892 = vadd.f32 %v356, %v1891
        %v1893 = vpop.f32.mrb[0].mxu0
        %v1894 = vadd.f32 %v352, %v1893
        %v1895 = vpop.f32.mrb[0].mxu0
        %v1896 = vadd.f32 %v356, %v1895
        %1897 = vmatprep.mubr.bf16.mxu0 0
        %1898 = vmatmul.mubr.bf16.gmra.mrb[0].mxu0 %v523
        %v1899 = vpop.f32.mrb[0].mxu0
        %v1900 = vadd.f32 %v352, %v1899
        %v1901 = vpop.f32.mrb[0].mxu0
        %v1902 = vadd.f32 %v356, %v1901
        %v1903 = vpop.f32.mrb[0].mxu0
        %v1904 = vadd.f32 %v352, %v1903
        %v1905 = vpop.f32.mrb[0].mxu0
        %v1906 = vadd.f32 %v356, %v1905
        %1907 = vmatprep.mubr.bf16.mxu0 0
        %1908 = vmatmul.mubr.bf16.gmra.mrb[0].mxu0 %v526
        %v1909 = vpop.f32.mrb[0].mxu0
        %v1910 = vadd.f32 %v352, %v1909
        %v1911 = vpop.f32.mrb[0].mxu0
        %v1912 = vadd.f32 %v356, %v1911
        %v1913 = vpop.f32.mrb[0].mxu0
        %v1914 = vadd.f32 %v352, %v1913
        %v1915 = vpop.f32.mrb[0].mxu0
        %v1916 = vadd.f32 %v356, %v1915
        %1917 = vmatprep.mubr.bf16.mxu0 0
        %1918 = vmatmul.mubr.bf16.gmra.mrb[0].mxu0 %v529
        %v1919 = vpop.f32.mrb[0].mxu0
        %v1920 = vadd.f32 %v352, %v1919
        %v1921 = vpop.f32.mrb[0].mxu0
        %v1922 = vadd.f32 %v356, %v1921
        %v1923 = vpop.f32.mrb[0].mxu0
        %v1924 = vadd.f32 %v352, %v1923
        %v1925 = vpop.f32.mrb[0].mxu0
        %v1926 = vadd.f32 %v356, %v1925
        %1927 = vmatprep.mubr.bf16.mxu0 0
        %1928 = vmatmul.mubr.bf16.gmra.mrb[0].mxu0 %v532
        %v1929 = vpop.f32.mrb[0].mxu0
        %v1930 = vadd.f32 %v352, %v1929
        %v1931 = vpop.f32.mrb[0].mxu0
        %v1932 = vadd.f32 %v356, %v1931
        %v1933 = vpop.f32.mrb[0].mxu0
        %v1934 = vadd.f32 %v352, %v1933
        %v1935 = vpop.f32.mrb[0].mxu0
        %v1936 = vadd.f32 %v356, %v1935
        %1937 = vmatprep.mubr.bf16.mxu0 0
        %1938 = vmatmul.mubr.bf16.gmra.mrb[0].mxu0 %v535
        %v1939 = vpop.f32.mrb[0].mxu0
        %v1940 = vadd.f32 %v352, %v1939
        %v1941 = vpop.f32.mrb[0].mxu0
        %v1942 = vadd.f32 %v356, %v1941
        %v1943 = vpop.f32.mrb[0].mxu0
        %v1944 = vadd.f32 %v352, %v1943
        %v1945 = vpop.f32.mrb[0].mxu0
        %v1946 = vadd.f32 %v356, %v1945
        %1947 = vmatprep.mubr.bf16.mxu0 0
        %1948 = vmatmul.mubr.bf16.gmra.mrb[0].mxu0 %v538
        %v1949 = vpop.f32.mrb[0].mxu0
        %v1950 = vadd.f32 %v352, %v1949
        %v1951 = vpop.f32.mrb[0].mxu0
        %v1952 = vadd.f32 %v356, %v1951
        %v1953 = vpop.f32.mrb[0].mxu0
        %v1954 = vadd.f32 %v352, %v1953
        %v1955 = vpop.f32.mrb[0].mxu0
        %v1956 = vadd.f32 %v356, %v1955
        %1957 = vmatprep.mubr.bf16.mxu0 0
        %1958 = vmatmul.mubr.bf16.gmra.mrb[0].mxu0 %v541
        %v1959 = vpop.f32.mrb[0].mxu0
        %v1960 = vadd.f32 %v352, %v1959
        %v1961 = vpop.f32.mrb[0].mxu0
        %v1962 = vadd.f32 %v356, %v1961
        %v1963 = vpop.f32.mrb[0].mxu0
        %v1964 = vadd.f32 %v352, %v1963
        %v1965 = vpop.f32.mrb[0].mxu0
        %v1966 = vadd.f32 %v356, %v1965
        %1967 = vmatprep.mubr.bf16.mxu0 0
        %1968 = vmatmul.mubr.bf16.gmra.mrb[0].mxu0 %v544
        %v1969 = vpop.f32.mrb[0].mxu0
        %v1970 = vadd.f32 %v352, %v1969
        %v1971 = vpop.f32.mrb[0].mxu0
        %v1972 = vadd.f32 %v356, %v1971
        %v1973 = vpop.f32.mrb[0].mxu0
        %v1974 = vadd.f32 %v352, %v1973
        %v1975 = vpop.f32.mrb[0].mxu0
        %v1976 = vadd.f32 %v356, %v1975
        %1977 = vmatprep.mubr.bf16.mxu0 0
        %1978 = vmatmul.mubr.bf16.gmra.mrb[0].mxu0 %v547
        %v1979 = vpop.f32.mrb[0].mxu0
        %v1980 = vadd.f32 %v352, %v1979
        %v1981 = vpop.f32.mrb[0].mxu0
        %v1982 = vadd.f32 %v356, %v1981
        %v1983 = vpop.f32.mrb[0].mxu0
        %v1984 = vadd.f32 %v352, %v1983
        %v1985 = vpop.f32.mrb[0].mxu0
        %v1986 = vadd.f32 %v356, %v1985
        %1987 = vmatprep.mubr.bf16.mxu0 0
        %1988 = vmatmul.mubr.bf16.gmra.mrb[0].mxu0 %v550
        %v1989 = vpop.f32.mrb[0].mxu0
        %v1990 = vadd.f32 %v352, %v1989
        %v1991 = vpop.f32.mrb[0].mxu0
        %v1992 = vadd.f32 %v356, %v1991
        %v1993 = vpop.f32.mrb[0].mxu0
        %v1994 = vadd.f32 %v352, %v1993
        %v1995 = vpop.f32.mrb[0].mxu0
        %v1996 = vadd.f32 %v356, %v1995
        %1997 = vdwg.mxu0
        %v1998 = vmul.f32 %v618, 0.5
        %v1999 = vmul.f32 %v620, 0.5
        %v2000 = vmul.f32 %v901, 0.5
        %v2001 = vmul.f32 %v903, 0.5
        %v2002 = vmul.f32 %v1184, 0.5
        %v2003 = vmul.f32 %v1186, 0.5
        %v2004 = vmul.f32 %v1467, 0.5
        %v2005 = vmul.f32 %v1469, 0.5
        %v2006 = vmul.f32 %v1750, 0.5
        %v2007 = vmul.f32 %v1752, 0.5
        %v2008 = vmul.f32 %v622, 0.5
        %v2009 = vmul.f32 %v624, 0.5
        %v2010 = vmul.f32 %v905, 0.5
        %v2011 = vmul.f32 %v907, 0.5
        %v2012 = vmul.f32 %v1188, 0.5
        %v2013 = vmul.f32 %v1190, 0.5
        %v2014 = vmul.f32 %v1471, 0.5
        %v2015 = vmul.f32 %v1473, 0.5
        %v2016 = vmul.f32 %v1754, 0.5
        %v2017 = vmul.f32 %v1756, 0.5
        %v2018 = vmul.f32 %v628, 0.5
        %v2019 = vmul.f32 %v630, 0.5
        %v2020 = vmul.f32 %v911, 0.5
        %v2021 = vmul.f32 %v913, 0.5
        %v2022 = vmul.f32 %v1194, 0.5
        %v2023 = vmul.f32 %v1196, 0.5
        %v2024 = vmul.f32 %v1477, 0.5
        %v2025 = vmul.f32 %v1479, 0.5
        %v2026 = vmul.f32 %v1760, 0.5
        %v2027 = vmul.f32 %v1762, 0.5
        %v2028 = vmul.f32 %v632, 0.5
        %v2029 = vmul.f32 %v634, 0.5
        %v2030 = vmul.f32 %v915, 0.5
        %v2031 = vmul.f32 %v917, 0.5
        %v2032 = vmul.f32 %v1198, 0.5
        %v2033 = vmul.f32 %v1200, 0.5
        %v2034 = vmul.f32 %v1481, 0.5
        %v2035 = vmul.f32 %v1483, 0.5
        %v2036 = vmul.f32 %v1764, 0.5
        %v2037 = vmul.f32 %v1766, 0.5
        %v2038 = vmul.f32 %v638, 0.5
        %v2039 = vmul.f32 %v640, 0.5
        %v2040 = vmul.f32 %v921, 0.5
        %v2041 = vmul.f32 %v923, 0.5
        %v2042 = vmul.f32 %v1204, 0.5
        %v2043 = vmul.f32 %v1206, 0.5
        %v2044 = vmul.f32 %v1487, 0.5
        %v2045 = vmul.f32 %v1489, 0.5
        %v2046 = vmul.f32 %v1770, 0.5
        %v2047 = vmul.f32 %v1772, 0.5
        %v2048 = vmul.f32 %v642, 0.5
        %v2049 = vmul.f32 %v644, 0.5
        %v2050 = vmul.f32 %v925, 0.5
        %v2051 = vmul.f32 %v927, 0.5
        %v2052 = vmul.f32 %v1208, 0.5
        %v2053 = vmul.f32 %v1210, 0.5
        %v2054 = vmul.f32 %v1491, 0.5
        %v2055 = vmul.f32 %v1493, 0.5
        %v2056 = vmul.f32 %v1774, 0.5
        %v2057 = vmul.f32 %v1776, 0.5
        %v2058 = vmul.f32 %v648, 0.5
        %v2059 = vmul.f32 %v650, 0.5
        %v2060 = vmul.f32 %v931, 0.5
        %v2061 = vmul.f32 %v933, 0.5
        %v2062 = vmul.f32 %v1214, 0.5
        %v2063 = vmul.f32 %v1216, 0.5
        %v2064 = vmul.f32 %v1497, 0.5
        %v2065 = vmul.f32 %v1499, 0.5
        %v2066 = vmul.f32 %v1780, 0.5
        %v2067 = vmul.f32 %v1782, 0.5
        %v2068 = vmul.f32 %v652, 0.5
        %v2069 = vmul.f32 %v654, 0.5
        %v2070 = vmul.f32 %v935, 0.5
        %v2071 = vmul.f32 %v937, 0.5
        %v2072 = vmul.f32 %v1218, 0.5
        %v2073 = vmul.f32 %v1220, 0.5
        %v2074 = vmul.f32 %v1501, 0.5
        %v2075 = vmul.f32 %v1503, 0.5
        %v2076 = vmul.f32 %v1784, 0.5
        %v2077 = vmul.f32 %v1786, 0.5
        %v2078 = vmul.f32 %v658, 0.5
        %v2079 = vmul.f32 %v660, 0.5
        %v2080 = vmul.f32 %v941, 0.5
        %v2081 = vmul.f32 %v943, 0.5
        %v2082 = vmul.f32 %v1224, 0.5
        %v2083 = vmul.f32 %v1226, 0.5
        %v2084 = vmul.f32 %v1507, 0.5
        %v2085 = vmul.f32 %v1509, 0.5
        %v2086 = vmul.f32 %v1790, 0.5
        %v2087 = vmul.f32 %v1792, 0.5
        %v2088 = vmul.f32 %v662, 0.5
        %v2089 = vmul.f32 %v664, 0.5
        %v2090 = vmul.f32 %v945, 0.5
        %v2091 = vmul.f32 %v947, 0.5
        %v2092 = vmul.f32 %v1228, 0.5
        %v2093 = vmul.f32 %v1230, 0.5
        %v2094 = vmul.f32 %v1511, 0.5
        %v2095 = vmul.f32 %v1513, 0.5
        %v2096 = vmul.f32 %v1794, 0.5
        %v2097 = vmul.f32 %v1796, 0.5
        %v2098 = vmul.f32 %v668, 0.5
        %v2099 = vmul.f32 %v670, 0.5
        %v2100 = vmul.f32 %v951, 0.5
        %v2101 = vmul.f32 %v953, 0.5
        %v2102 = vmul.f32 %v1234, 0.5
        %v2103 = vmul.f32 %v1236, 0.5
        %v2104 = vmul.f32 %v1517, 0.5
        %v2105 = vmul.f32 %v1519, 0.5
        %v2106 = vmul.f32 %v1800, 0.5
        %v2107 = vmul.f32 %v1802, 0.5
        %v2108 = vmul.f32 %v672, 0.5
        %v2109 = vmul.f32 %v674, 0.5
        %v2110 = vmul.f32 %v955, 0.5
        %v2111 = vmul.f32 %v957, 0.5
        %v2112 = vmul.f32 %v1238, 0.5
        %v2113 = vmul.f32 %v1240, 0.5
        %v2114 = vmul.f32 %v1521, 0.5
        %v2115 = vmul.f32 %v1523, 0.5
        %v2116 = vmul.f32 %v1804, 0.5
        %v2117 = vmul.f32 %v1806, 0.5
        %v2118 = vmul.f32 %v678, 0.5
        %v2119 = vmul.f32 %v680, 0.5
        %v2120 = vmul.f32 %v961, 0.5
        %v2121 = vmul.f32 %v963, 0.5
        %v2122 = vmul.f32 %v1244, 0.5
        %v2123 = vmul.f32 %v1246, 0.5
        %v2124 = vmul.f32 %v1527, 0.5
        %v2125 = vmul.f32 %v1529, 0.5
        %v2126 = vmul.f32 %v1810, 0.5
        %v2127 = vmul.f32 %v1812, 0.5
        %v2128 = vmul.f32 %v682, 0.5
        %v2129 = vmul.f32 %v684, 0.5
        %v2130 = vmul.f32 %v965, 0.5
        %v2131 = vmul.f32 %v967, 0.5
        %v2132 = vmul.f32 %v1248, 0.5
        %v2133 = vmul.f32 %v1250, 0.5
        %v2134 = vmul.f32 %v1531, 0.5
        %v2135 = vmul.f32 %v1533, 0.5
        %v2136 = vmul.f32 %v1814, 0.5
        %v2137 = vmul.f32 %v1816, 0.5
        %v2138 = vmul.f32 %v688, 0.5
        %v2139 = vmul.f32 %v690, 0.5
        %v2140 = vmul.f32 %v971, 0.5
        %v2141 = vmul.f32 %v973, 0.5
        %v2142 = vmul.f32 %v1254, 0.5
        %v2143 = vmul.f32 %v1256, 0.5
        %v2144 = vmul.f32 %v1537, 0.5
        %v2145 = vmul.f32 %v1539, 0.5
        %v2146 = vmul.f32 %v1820, 0.5
        %v2147 = vmul.f32 %v1822, 0.5
        %v2148 = vmul.f32 %v692, 0.5
        %v2149 = vmul.f32 %v694, 0.5
        %v2150 = vmul.f32 %v975, 0.5
        %v2151 = vmul.f32 %v977, 0.5
        %v2152 = vmul.f32 %v1258, 0.5
        %v2153 = vmul.f32 %v1260, 0.5
        %v2154 = vmul.f32 %v1541, 0.5
        %v2155 = vmul.f32 %v1543, 0.5
        %v2156 = vmul.f32 %v1824, 0.5
        %v2157 = vmul.f32 %v1826, 0.5
        %v2158 = vmul.f32 %v698, 0.5
        %v2159 = vmul.f32 %v700, 0.5
        %v2160 = vmul.f32 %v981, 0.5
        %v2161 = vmul.f32 %v983, 0.5
        %v2162 = vmul.f32 %v1264, 0.5
        %v2163 = vmul.f32 %v1266, 0.5
        %v2164 = vmul.f32 %v1547, 0.5
        %v2165 = vmul.f32 %v1549, 0.5
        %v2166 = vmul.f32 %v1830, 0.5
        %v2167 = vmul.f32 %v1832, 0.5
        %v2168 = vmul.f32 %v702, 0.5
        %v2169 = vmul.f32 %v704, 0.5
        %v2170 = vmul.f32 %v985, 0.5
        %v2171 = vmul.f32 %v987, 0.5
        %v2172 = vmul.f32 %v1268, 0.5
        %v2173 = vmul.f32 %v1270, 0.5
        %v2174 = vmul.f32 %v1551, 0.5
        %v2175 = vmul.f32 %v1553, 0.5
        %v2176 = vmul.f32 %v1834, 0.5
        %v2177 = vmul.f32 %v1836, 0.5
        %v2178 = vmul.f32 %v708, 0.5
        %v2179 = vmul.f32 %v710, 0.5
        %v2180 = vmul.f32 %v991, 0.5
        %v2181 = vmul.f32 %v993, 0.5
        %v2182 = vmul.f32 %v1274, 0.5
        %v2183 = vmul.f32 %v1276, 0.5
        %v2184 = vmul.f32 %v1557, 0.5
        %v2185 = vmul.f32 %v1559, 0.5
        %v2186 = vmul.f32 %v1840, 0.5
        %v2187 = vmul.f32 %v1842, 0.5
        %v2188 = vmul.f32 %v712, 0.5
        %v2189 = vmul.f32 %v714, 0.5
        %v2190 = vmul.f32 %v995, 0.5
        %v2191 = vmul.f32 %v997, 0.5
        %v2192 = vmul.f32 %v1278, 0.5
        %v2193 = vmul.f32 %v1280, 0.5
        %v2194 = vmul.f32 %v1561, 0.5
        %v2195 = vmul.f32 %v1563, 0.5
        %v2196 = vmul.f32 %v1844, 0.5
        %v2197 = vmul.f32 %v1846, 0.5
        %v2198 = vmul.f32 %v718, 0.5
        %v2199 = vmul.f32 %v720, 0.5
        %v2200 = vmul.f32 %v1001, 0.5
        %v2201 = vmul.f32 %v1003, 0.5
        %v2202 = vmul.f32 %v1284, 0.5
        %v2203 = vmul.f32 %v1286, 0.5
        %v2204 = vmul.f32 %v1567, 0.5
        %v2205 = vmul.f32 %v1569, 0.5
        %v2206 = vmul.f32 %v1850, 0.5
        %v2207 = vmul.f32 %v1852, 0.5
        %v2208 = vmul.f32 %v722, 0.5
        %v2209 = vmul.f32 %v724, 0.5
        %v2210 = vmul.f32 %v1005, 0.5
        %v2211 = vmul.f32 %v1007, 0.5
        %v2212 = vmul.f32 %v1288, 0.5
        %v2213 = vmul.f32 %v1290, 0.5
        %v2214 = vmul.f32 %v1571, 0.5
        %v2215 = vmul.f32 %v1573, 0.5
        %v2216 = vmul.f32 %v1854, 0.5
        %v2217 = vmul.f32 %v1856, 0.5
        %v2218 = vmul.f32 %v728, 0.5
        %v2219 = vmul.f32 %v730, 0.5
        %v2220 = vmul.f32 %v1011, 0.5
        %v2221 = vmul.f32 %v1013, 0.5
        %v2222 = vmul.f32 %v1294, 0.5
        %v2223 = vmul.f32 %v1296, 0.5
        %v2224 = vmul.f32 %v1577, 0.5
        %v2225 = vmul.f32 %v1579, 0.5
        %v2226 = vmul.f32 %v1860, 0.5
        %v2227 = vmul.f32 %v1862, 0.5
        %v2228 = vmul.f32 %v732, 0.5
        %v2229 = vmul.f32 %v734, 0.5
        %v2230 = vmul.f32 %v1015, 0.5
        %v2231 = vmul.f32 %v1017, 0.5
        %v2232 = vmul.f32 %v1298, 0.5
        %v2233 = vmul.f32 %v1300, 0.5
        %v2234 = vmul.f32 %v1581, 0.5
        %v2235 = vmul.f32 %v1583, 0.5
        %v2236 = vmul.f32 %v1864, 0.5
        %v2237 = vmul.f32 %v1866, 0.5
        %v2238 = vmul.f32 %v738, 0.5
        %v2239 = vmul.f32 %v740, 0.5
        %v2240 = vmul.f32 %v1021, 0.5
        %v2241 = vmul.f32 %v1023, 0.5
        %v2242 = vmul.f32 %v1304, 0.5
        %v2243 = vmul.f32 %v1306, 0.5
        %v2244 = vmul.f32 %v1587, 0.5
        %v2245 = vmul.f32 %v1589, 0.5
        %v2246 = vmul.f32 %v1870, 0.5
        %v2247 = vmul.f32 %v1872, 0.5
        %v2248 = vmul.f32 %v742, 0.5
        %v2249 = vmul.f32 %v744, 0.5
        %v2250 = vmul.f32 %v1025, 0.5
        %v2251 = vmul.f32 %v1027, 0.5
        %v2252 = vmul.f32 %v1308, 0.5
        %v2253 = vmul.f32 %v1310, 0.5
        %v2254 = vmul.f32 %v1591, 0.5
        %v2255 = vmul.f32 %v1593, 0.5
        %v2256 = vmul.f32 %v1874, 0.5
        %v2257 = vmul.f32 %v1876, 0.5
        %v2258 = vmul.f32 %v748, 0.5
        %v2259 = vmul.f32 %v750, 0.5
        %v2260 = vmul.f32 %v1031, 0.5
        %v2261 = vmul.f32 %v1033, 0.5
        %v2262 = vmul.f32 %v1314, 0.5
        %v2263 = vmul.f32 %v1316, 0.5
        %v2264 = vmul.f32 %v1597, 0.5
        %v2265 = vmul.f32 %v1599, 0.5
        %v2266 = vmul.f32 %v1880, 0.5
        %v2267 = vmul.f32 %v1882, 0.5
        %v2268 = vmul.f32 %v752, 0.5
        %v2269 = vmul.f32 %v754, 0.5
        %v2270 = vmul.f32 %v1035, 0.5
        %v2271 = vmul.f32 %v1037, 0.5
        %v2272 = vmul.f32 %v1318, 0.5
        %v2273 = vmul.f32 %v1320, 0.5
        %v2274 = vmul.f32 %v1601, 0.5
        %v2275 = vmul.f32 %v1603, 0.5
        %v2276 = vmul.f32 %v1884, 0.5
        %v2277 = vmul.f32 %v1886, 0.5
        %v2278 = vmul.f32 %v758, 0.5
        %v2279 = vmul.f32 %v760, 0.5
        %v2280 = vmul.f32 %v1041, 0.5
        %v2281 = vmul.f32 %v1043, 0.5
        %v2282 = vmul.f32 %v1324, 0.5
        %v2283 = vmul.f32 %v1326, 0.5
        %v2284 = vmul.f32 %v1607, 0.5
        %v2285 = vmul.f32 %v1609, 0.5
        %v2286 = vmul.f32 %v1890, 0.5
        %v2287 = vmul.f32 %v1892, 0.5
        %v2288 = vmul.f32 %v762, 0.5
        %v2289 = vmul.f32 %v764, 0.5
        %v2290 = vmul.f32 %v1045, 0.5
        %v2291 = vmul.f32 %v1047, 0.5
        %v2292 = vmul.f32 %v1328, 0.5
        %v2293 = vmul.f32 %v1330, 0.5
        %v2294 = vmul.f32 %v1611, 0.5
        %v2295 = vmul.f32 %v1613, 0.5
        %v2296 = vmul.f32 %v1894, 0.5
        %v2297 = vmul.f32 %v1896, 0.5
        %v2298 = vmul.f32 %v768, 0.5
        %v2299 = vmul.f32 %v770, 0.5
        %v2300 = vmul.f32 %v1051, 0.5
        %v2301 = vmul.f32 %v1053, 0.5
        %v2302 = vmul.f32 %v1334, 0.5
        %v2303 = vmul.f32 %v1336, 0.5
        %v2304 = vmul.f32 %v1617, 0.5
        %v2305 = vmul.f32 %v1619, 0.5
        %v2306 = vmul.f32 %v1900, 0.5
        %v2307 = vmul.f32 %v1902, 0.5
        %v2308 = vmul.f32 %v772, 0.5
        %v2309 = vmul.f32 %v774, 0.5
        %v2310 = vmul.f32 %v1055, 0.5
        %v2311 = vmul.f32 %v1057, 0.5
        %v2312 = vmul.f32 %v1338, 0.5
        %v2313 = vmul.f32 %v1340, 0.5
        %v2314 = vmul.f32 %v1621, 0.5
        %v2315 = vmul.f32 %v1623, 0.5
        %v2316 = vmul.f32 %v1904, 0.5
        %v2317 = vmul.f32 %v1906, 0.5
        %v2318 = vmul.f32 %v778, 0.5
        %v2319 = vmul.f32 %v780, 0.5
        %v2320 = vmul.f32 %v1061, 0.5
        %v2321 = vmul.f32 %v1063, 0.5
        %v2322 = vmul.f32 %v1344, 0.5
        %v2323 = vmul.f32 %v1346, 0.5
        %v2324 = vmul.f32 %v1627, 0.5
        %v2325 = vmul.f32 %v1629, 0.5
        %v2326 = vmul.f32 %v1910, 0.5
        %v2327 = vmul.f32 %v1912, 0.5
        %v2328 = vmul.f32 %v782, 0.5
        %v2329 = vmul.f32 %v784, 0.5
        %v2330 = vmul.f32 %v1065, 0.5
        %v2331 = vmul.f32 %v1067, 0.5
        %v2332 = vmul.f32 %v1348, 0.5
        %v2333 = vmul.f32 %v1350, 0.5
        %v2334 = vmul.f32 %v1631, 0.5
        %v2335 = vmul.f32 %v1633, 0.5
        %v2336 = vmul.f32 %v1914, 0.5
        %v2337 = vmul.f32 %v1916, 0.5
        %v2338 = vmul.f32 %v788, 0.5
        %v2339 = vmul.f32 %v790, 0.5
        %v2340 = vmul.f32 %v1071, 0.5
        %v2341 = vmul.f32 %v1073, 0.5
        %v2342 = vmul.f32 %v1354, 0.5
        %v2343 = vmul.f32 %v1356, 0.5
        %v2344 = vmul.f32 %v1637, 0.5
        %v2345 = vmul.f32 %v1639, 0.5
        %v2346 = vmul.f32 %v1920, 0.5
        %v2347 = vmul.f32 %v1922, 0.5
        %v2348 = vmul.f32 %v792, 0.5
        %v2349 = vmul.f32 %v794, 0.5
        %v2350 = vmul.f32 %v1075, 0.5
        %v2351 = vmul.f32 %v1077, 0.5
        %v2352 = vmul.f32 %v1358, 0.5
        %v2353 = vmul.f32 %v1360, 0.5
        %v2354 = vmul.f32 %v1641, 0.5
        %v2355 = vmul.f32 %v1643, 0.5
        %v2356 = vmul.f32 %v1924, 0.5
        %v2357 = vmul.f32 %v1926, 0.5
        %v2358 = vmul.f32 %v798, 0.5
        %v2359 = vmul.f32 %v800, 0.5
        %v2360 = vmul.f32 %v1081, 0.5
        %v2361 = vmul.f32 %v1083, 0.5
        %v2362 = vmul.f32 %v1364, 0.5
        %v2363 = vmul.f32 %v1366, 0.5
        %v2364 = vmul.f32 %v1647, 0.5
        %v2365 = vmul.f32 %v1649, 0.5
        %v2366 = vmul.f32 %v1930, 0.5
        %v2367 = vmul.f32 %v1932, 0.5
        %v2368 = vmul.f32 %v802, 0.5
        %v2369 = vmul.f32 %v804, 0.5
        %v2370 = vmul.f32 %v1085, 0.5
        %v2371 = vmul.f32 %v1087, 0.5
        %v2372 = vmul.f32 %v1368, 0.5
        %v2373 = vmul.f32 %v1370, 0.5
        %v2374 = vmul.f32 %v1651, 0.5
        %v2375 = vmul.f32 %v1653, 0.5
        %v2376 = vmul.f32 %v1934, 0.5
        %v2377 = vmul.f32 %v1936, 0.5
        %v2378 = vmul.f32 %v808, 0.5
        %v2379 = vmul.f32 %v810, 0.5
        %v2380 = vmul.f32 %v1091, 0.5
        %v2381 = vmul.f32 %v1093, 0.5
        %v2382 = vmul.f32 %v1374, 0.5
        %v2383 = vmul.f32 %v1376, 0.5
        %v2384 = vmul.f32 %v1657, 0.5
        %v2385 = vmul.f32 %v1659, 0.5
        %v2386 = vmul.f32 %v1940, 0.5
        %v2387 = vmul.f32 %v1942, 0.5
        %v2388 = vmul.f32 %v812, 0.5
        %v2389 = vmul.f32 %v814, 0.5
        %v2390 = vmul.f32 %v1095, 0.5
        %v2391 = vmul.f32 %v1097, 0.5
        %v2392 = vmul.f32 %v1378, 0.5
        %v2393 = vmul.f32 %v1380, 0.5
        %v2394 = vmul.f32 %v1661, 0.5
        %v2395 = vmul.f32 %v1663, 0.5
        %v2396 = vmul.f32 %v1944, 0.5
        %v2397 = vmul.f32 %v1946, 0.5
        %v2398 = vmul.f32 %v818, 0.5
        %v2399 = vmul.f32 %v820, 0.5
        %v2400 = vmul.f32 %v1101, 0.5
        %v2401 = vmul.f32 %v1103, 0.5
        %v2402 = vmul.f32 %v1384, 0.5
        %v2403 = vmul.f32 %v1386, 0.5
        %v2404 = vmul.f32 %v1667, 0.5
        %v2405 = vmul.f32 %v1669, 0.5
        %v2406 = vmul.f32 %v1950, 0.5
        %v2407 = vmul.f32 %v1952, 0.5
        %v2408 = vmul.f32 %v822, 0.5
        %v2409 = vmul.f32 %v824, 0.5
        %v2410 = vmul.f32 %v1105, 0.5
        %v2411 = vmul.f32 %v1107, 0.5
        %v2412 = vmul.f32 %v1388, 0.5
        %v2413 = vmul.f32 %v1390, 0.5
        %v2414 = vmul.f32 %v1671, 0.5
        %v2415 = vmul.f32 %v1673, 0.5
        %v2416 = vmul.f32 %v1954, 0.5
        %v2417 = vmul.f32 %v1956, 0.5
        %v2418 = vmul.f32 %v828, 0.5
        %v2419 = vmul.f32 %v830, 0.5
        %v2420 = vmul.f32 %v1111, 0.5
        %v2421 = vmul.f32 %v1113, 0.5
        %v2422 = vmul.f32 %v1394, 0.5
        %v2423 = vmul.f32 %v1396, 0.5
        %v2424 = vmul.f32 %v1677, 0.5
        %v2425 = vmul.f32 %v1679, 0.5
        %v2426 = vmul.f32 %v1960, 0.5
        %v2427 = vmul.f32 %v1962, 0.5
        %v2428 = vmul.f32 %v832, 0.5
        %v2429 = vmul.f32 %v834, 0.5
        %v2430 = vmul.f32 %v1115, 0.5
        %v2431 = vmul.f32 %v1117, 0.5
        %v2432 = vmul.f32 %v1398, 0.5
        %v2433 = vmul.f32 %v1400, 0.5
        %v2434 = vmul.f32 %v1681, 0.5
        %v2435 = vmul.f32 %v1683, 0.5
        %v2436 = vmul.f32 %v1964, 0.5
        %v2437 = vmul.f32 %v1966, 0.5
        %v2438 = vmul.f32 %v838, 0.5
        %v2439 = vmul.f32 %v840, 0.5
        %v2440 = vmul.f32 %v1121, 0.5
        %v2441 = vmul.f32 %v1123, 0.5
        %v2442 = vmul.f32 %v1404, 0.5
        %v2443 = vmul.f32 %v1406, 0.5
        %v2444 = vmul.f32 %v1687, 0.5
        %v2445 = vmul.f32 %v1689, 0.5
        %v2446 = vmul.f32 %v1970, 0.5
        %v2447 = vmul.f32 %v1972, 0.5
        %v2448 = vmul.f32 %v842, 0.5
        %v2449 = vmul.f32 %v844, 0.5
        %v2450 = vmul.f32 %v1125, 0.5
        %v2451 = vmul.f32 %v1127, 0.5
        %v2452 = vmul.f32 %v1408, 0.5
        %v2453 = vmul.f32 %v1410, 0.5
        %v2454 = vmul.f32 %v1691, 0.5
        %v2455 = vmul.f32 %v1693, 0.5
        %v2456 = vmul.f32 %v1974, 0.5
        %v2457 = vmul.f32 %v1976, 0.5
        %v2458 = vmul.f32 %v848, 0.5
        %v2459 = vmul.f32 %v850, 0.5
        %v2460 = vmul.f32 %v1131, 0.5
        %v2461 = vmul.f32 %v1133, 0.5
        %v2462 = vmul.f32 %v1414, 0.5
        %v2463 = vmul.f32 %v1416, 0.5
        %v2464 = vmul.f32 %v1697, 0.5
        %v2465 = vmul.f32 %v1699, 0.5
        %v2466 = vmul.f32 %v1980, 0.5
        %v2467 = vmul.f32 %v1982, 0.5
        %v2468 = vmul.f32 %v852, 0.5
        %v2469 = vmul.f32 %v854, 0.5
        %v2470 = vmul.f32 %v1135, 0.5
        %v2471 = vmul.f32 %v1137, 0.5
        %v2472 = vmul.f32 %v1418, 0.5
        %v2473 = vmul.f32 %v1420, 0.5
        %v2474 = vmul.f32 %v1701, 0.5
        %v2475 = vmul.f32 %v1703, 0.5
        %v2476 = vmul.f32 %v1984, 0.5
        %v2477 = vmul.f32 %v1986, 0.5
        %v2478 = vmul.f32 %v858, 0.5
        %v2479 = vmul.f32 %v860, 0.5
        %v2480 = vmul.f32 %v1141, 0.5
        %v2481 = vmul.f32 %v1143, 0.5
        %v2482 = vmul.f32 %v1424, 0.5
        %v2483 = vmul.f32 %v1426, 0.5
        %v2484 = vmul.f32 %v1707, 0.5
        %v2485 = vmul.f32 %v1709, 0.5
        %v2486 = vmul.f32 %v1990, 0.5
        %v2487 = vmul.f32 %v1992, 0.5
        %v2488 = vmul.f32 %v862, 0.5
        %v2489 = vmul.f32 %v864, 0.5
        %v2490 = vmul.f32 %v1145, 0.5
        %v2491 = vmul.f32 %v1147, 0.5
        %v2492 = vmul.f32 %v1428, 0.5
        %v2493 = vmul.f32 %v1430, 0.5
        %v2494 = vmul.f32 %v1711, 0.5
        %v2495 = vmul.f32 %v1713, 0.5
        %v2496 = vmul.f32 %v1994, 0.5
        %v2497 = vmul.f32 %v1996, 0.5
        %v2498 = vtanh.pop %v1998
        %v2499 = vtanh.pop %v1999
        %v2500 = vtanh.pop %v2000
        %v2501 = vtanh.pop %v2001
        %v2502 = vtanh.pop %v2002
        %v2503 = vtanh.pop %v2003
        %v2504 = vtanh.pop %v2004
        %v2505 = vtanh.pop %v2005
        %v2506 = vtanh.pop %v2006
        %v2507 = vtanh.pop %v2007
        %v2508 = vtanh.pop %v2008
        %v2509 = vtanh.pop %v2009
        %v2510 = vtanh.pop %v2010
        %v2511 = vtanh.pop %v2011
        %v2512 = vtanh.pop %v2012
        %v2513 = vtanh.pop %v2013
        %v2514 = vtanh.pop %v2014
        %v2515 = vtanh.pop %v2015
        %v2516 = vtanh.pop %v2016
        %v2517 = vtanh.pop %v2017
        %v2518 = vtanh.pop %v2018
        %v2519 = vtanh.pop %v2019
        %v2520 = vtanh.pop %v2020
        %v2521 = vtanh.pop %v2021
        %v2522 = vtanh.pop %v2022
        %v2523 = vtanh.pop %v2023
        %v2524 = vtanh.pop %v2024
        %v2525 = vtanh.pop %v2025
        %v2526 = vtanh.pop %v2026
        %v2527 = vtanh.pop %v2027
        %v2528 = vtanh.pop %v2028
        %v2529 = vtanh.pop %v2029
        %v2530 = vtanh.pop %v2030
        %v2531 = vtanh.pop %v2031
        %v2532 = vtanh.pop %v2032
        %v2533 = vtanh.pop %v2033
        %v2534 = vtanh.pop %v2034
        %v2535 = vtanh.pop %v2035
        %v2536 = vtanh.pop %v2036
        %v2537 = vtanh.pop %v2037
        %v2538 = vtanh.pop %v2038
        %v2539 = vtanh.pop %v2039
        %v2540 = vtanh.pop %v2040
        %v2541 = vtanh.pop %v2041
        %v2542 = vtanh.pop %v2042
        %v2543 = vtanh.pop %v2043
        %v2544 = vtanh.pop %v2044
        %v2545 = vtanh.pop %v2045
        %v2546 = vtanh.pop %v2046
        %v2547 = vtanh.pop %v2047
        %v2548 = vtanh.pop %v2048
        %v2549 = vtanh.pop %v2049
        %v2550 = vtanh.pop %v2050
        %v2551 = vtanh.pop %v2051
        %v2552 = vtanh.pop %v2052
        %v2553 = vtanh.pop %v2053
        %v2554 = vtanh.pop %v2054
        %v2555 = vtanh.pop %v2055
        %v2556 = vtanh.pop %v2056
        %v2557 = vtanh.pop %v2057
        %v2558 = vtanh.pop %v2058
        %v2559 = vtanh.pop %v2059
        %v2560 = vtanh.pop %v2060
        %v2561 = vtanh.pop %v2061
        %v2562 = vtanh.pop %v2062
        %v2563 = vtanh.pop %v2063
        %v2564 = vtanh.pop %v2064
        %v2565 = vtanh.pop %v2065
        %v2566 = vtanh.pop %v2066
        %v2567 = vtanh.pop %v2067
        %v2568 = vtanh.pop %v2068
        %v2569 = vtanh.pop %v2069
        %v2570 = vtanh.pop %v2070
        %v2571 = vtanh.pop %v2071
        %v2572 = vtanh.pop %v2072
        %v2573 = vtanh.pop %v2073
        %v2574 = vtanh.pop %v2074
        %v2575 = vtanh.pop %v2075
        %v2576 = vtanh.pop %v2076
        %v2577 = vtanh.pop %v2077
        %v2578 = vtanh.pop %v2078
        %v2579 = vtanh.pop %v2079
        %v2580 = vtanh.pop %v2080
        %v2581 = vtanh.pop %v2081
        %v2582 = vtanh.pop %v2082
        %v2583 = vtanh.pop %v2083
        %v2584 = vtanh.pop %v2084
        %v2585 = vtanh.pop %v2085
        %v2586 = vtanh.pop %v2086
        %v2587 = vtanh.pop %v2087
        %v2588 = vtanh.pop %v2088
        %v2589 = vtanh.pop %v2089
        %v2590 = vtanh.pop %v2090
        %v2591 = vtanh.pop %v2091
        %v2592 = vtanh.pop %v2092
        %v2593 = vtanh.pop %v2093
        %v2594 = vtanh.pop %v2094
        %v2595 = vtanh.pop %v2095
        %v2596 = vtanh.pop %v2096
        %v2597 = vtanh.pop %v2097
        %v2598 = vtanh.pop %v2098
        %v2599 = vtanh.pop %v2099
        %v2600 = vtanh.pop %v2100
        %v2601 = vtanh.pop %v2101
        %v2602 = vtanh.pop %v2102
        %v2603 = vtanh.pop %v2103
        %v2604 = vtanh.pop %v2104
        %v2605 = vtanh.pop %v2105
        %v2606 = vtanh.pop %v2106
        %v2607 = vtanh.pop %v2107
        %v2608 = vtanh.pop %v2108
        %v2609 = vtanh.pop %v2109
        %v2610 = vtanh.pop %v2110
        %v2611 = vtanh.pop %v2111
        %v2612 = vtanh.pop %v2112
        %v2613 = vtanh.pop %v2113
        %v2614 = vtanh.pop %v2114
        %v2615 = vtanh.pop %v2115
        %v2616 = vtanh.pop %v2116
        %v2617 = vtanh.pop %v2117
        %v2618 = vtanh.pop %v2118
        %v2619 = vtanh.pop %v2119
        %v2620 = vtanh.pop %v2120
        %v2621 = vtanh.pop %v2121
        %v2622 = vtanh.pop %v2122
        %v2623 = vtanh.pop %v2123
        %v2624 = vtanh.pop %v2124
        %v2625 = vtanh.pop %v2125
        %v2626 = vtanh.pop %v2126
        %v2627 = vtanh.pop %v2127
        %v2628 = vtanh.pop %v2128
        %v2629 = vtanh.pop %v2129
        %v2630 = vtanh.pop %v2130
        %v2631 = vtanh.pop %v2131
        %v2632 = vtanh.pop %v2132
        %v2633 = vtanh.pop %v2133
        %v2634 = vtanh.pop %v2134
        %v2635 = vtanh.pop %v2135
        %v2636 = vtanh.pop %v2136
        %v2637 = vtanh.pop %v2137
        %v2638 = vtanh.pop %v2138
        %v2639 = vtanh.pop %v2139
        %v2640 = vtanh.pop %v2140
        %v2641 = vtanh.pop %v2141
        %v2642 = vtanh.pop %v2142
        %v2643 = vtanh.pop %v2143
        %v2644 = vtanh.pop %v2144
        %v2645 = vtanh.pop %v2145
        %v2646 = vtanh.pop %v2146
        %v2647 = vtanh.pop %v2147
        %v2648 = vtanh.pop %v2148
        %v2649 = vtanh.pop %v2149
        %v2650 = vtanh.pop %v2150
        %v2651 = vtanh.pop %v2151
        %v2652 = vtanh.pop %v2152
        %v2653 = vtanh.pop %v2153
        %v2654 = vtanh.pop %v2154
        %v2655 = vtanh.pop %v2155
        %v2656 = vtanh.pop %v2156
        %v2657 = vtanh.pop %v2157
        %v2658 = vtanh.pop %v2158
        %v2659 = vtanh.pop %v2159
        %v2660 = vtanh.pop %v2160
        %v2661 = vtanh.pop %v2161
        %v2662 = vtanh.pop %v2162
        %v2663 = vtanh.pop %v2163
        %v2664 = vtanh.pop %v2164
        %v2665 = vtanh.pop %v2165
        %v2666 = vtanh.pop %v2166
        %v2667 = vtanh.pop %v2167
        %v2668 = vtanh.pop %v2168
        %v2669 = vtanh.pop %v2169
        %v2670 = vtanh.pop %v2170
        %v2671 = vtanh.pop %v2171
        %v2672 = vtanh.pop %v2172
        %v2673 = vtanh.pop %v2173
        %v2674 = vtanh.pop %v2174
        %v2675 = vtanh.pop %v2175
        %v2676 = vtanh.pop %v2176
        %v2677 = vtanh.pop %v2177
        %v2678 = vtanh.pop %v2178
        %v2679 = vtanh.pop %v2179
        %v2680 = vtanh.pop %v2180
        %v2681 = vtanh.pop %v2181
        %v2682 = vtanh.pop %v2182
        %v2683 = vtanh.pop %v2183
        %v2684 = vtanh.pop %v2184
        %v2685 = vtanh.pop %v2185
        %v2686 = vtanh.pop %v2186
        %v2687 = vtanh.pop %v2187
        %v2688 = vtanh.pop %v2188
        %v2689 = vtanh.pop %v2189
        %v2690 = vtanh.pop %v2190
        %v2691 = vtanh.pop %v2191
        %v2692 = vtanh.pop %v2192
        %v2693 = vtanh.pop %v2193
        %v2694 = vtanh.pop %v2194
        %v2695 = vtanh.pop %v2195
        %v2696 = vtanh.pop %v2196
        %v2697 = vtanh.pop %v2197
        %v2698 = vtanh.pop %v2198
        %v2699 = vtanh.pop %v2199
        %v2700 = vtanh.pop %v2200
        %v2701 = vtanh.pop %v2201
        %v2702 = vtanh.pop %v2202
        %v2703 = vtanh.pop %v2203
        %v2704 = vtanh.pop %v2204
        %v2705 = vtanh.pop %v2205
        %v2706 = vtanh.pop %v2206
        %v2707 = vtanh.pop %v2207
        %v2708 = vtanh.pop %v2208
        %v2709 = vtanh.pop %v2209
        %v2710 = vtanh.pop %v2210
        %v2711 = vtanh.pop %v2211
        %v2712 = vtanh.pop %v2212
        %v2713 = vtanh.pop %v2213
        %v2714 = vtanh.pop %v2214
        %v2715 = vtanh.pop %v2215
        %v2716 = vtanh.pop %v2216
        %v2717 = vtanh.pop %v2217
        %v2718 = vtanh.pop %v2218
        %v2719 = vtanh.pop %v2219
        %v2720 = vtanh.pop %v2220
        %v2721 = vtanh.pop %v2221
        %v2722 = vtanh.pop %v2222
        %v2723 = vtanh.pop %v2223
        %v2724 = vtanh.pop %v2224
        %v2725 = vtanh.pop %v2225
        %v2726 = vtanh.pop %v2226
        %v2727 = vtanh.pop %v2227
        %v2728 = vtanh.pop %v2228
        %v2729 = vtanh.pop %v2229
        %v2730 = vtanh.pop %v2230
        %v2731 = vtanh.pop %v2231
        %v2732 = vtanh.pop %v2232
        %v2733 = vtanh.pop %v2233
        %v2734 = vtanh.pop %v2234
        %v2735 = vtanh.pop %v2235
        %v2736 = vtanh.pop %v2236
        %v2737 = vtanh.pop %v2237
        %v2738 = vtanh.pop %v2238
        %v2739 = vtanh.pop %v2239
        %v2740 = vtanh.pop %v2240
        %v2741 = vtanh.pop %v2241
        %v2742 = vtanh.pop %v2242
        %v2743 = vtanh.pop %v2243
        %v2744 = vtanh.pop %v2244
        %v2745 = vtanh.pop %v2245
        %v2746 = vtanh.pop %v2246
        %v2747 = vtanh.pop %v2247
        %v2748 = vtanh.pop %v2248
        %v2749 = vtanh.pop %v2249
        %v2750 = vtanh.pop %v2250
        %v2751 = vtanh.pop %v2251
        %v2752 = vtanh.pop %v2252
        %v2753 = vtanh.pop %v2253
        %v2754 = vtanh.pop %v2254
        %v2755 = vtanh.pop %v2255
        %v2756 = vtanh.pop %v2256
        %v2757 = vtanh.pop %v2257
        %v2758 = vtanh.pop %v2258
        %v2759 = vtanh.pop %v2259
        %v2760 = vtanh.pop %v2260
        %v2761 = vtanh.pop %v2261
        %v2762 = vtanh.pop %v2262
        %v2763 = vtanh.pop %v2263
        %v2764 = vtanh.pop %v2264
        %v2765 = vtanh.pop %v2265
        %v2766 = vtanh.pop %v2266
        %v2767 = vtanh.pop %v2267
        %v2768 = vtanh.pop %v2268
        %v2769 = vtanh.pop %v2269
        %v2770 = vtanh.pop %v2270
        %v2771 = vtanh.pop %v2271
        %v2772 = vtanh.pop %v2272
        %v2773 = vtanh.pop %v2273
        %v2774 = vtanh.pop %v2274
        %v2775 = vtanh.pop %v2275
        %v2776 = vtanh.pop %v2276
        %v2777 = vtanh.pop %v2277
        %v2778 = vtanh.pop %v2278
        %v2779 = vtanh.pop %v2279
        %v2780 = vtanh.pop %v2280
        %v2781 = vtanh.pop %v2281
        %v2782 = vtanh.pop %v2282
        %v2783 = vtanh.pop %v2283
        %v2784 = vtanh.pop %v2284
        %v2785 = vtanh.pop %v2285
        %v2786 = vtanh.pop %v2286
        %v2787 = vtanh.pop %v2287
        %v2788 = vtanh.pop %v2288
        %v2789 = vtanh.pop %v2289
        %v2790 = vtanh.pop %v2290
        %v2791 = vtanh.pop %v2291
        %v2792 = vtanh.pop %v2292
        %v2793 = vtanh.pop %v2293
        %v2794 = vtanh.pop %v2294
        %v2795 = vtanh.pop %v2295
        %v2796 = vtanh.pop %v2296
        %v2797 = vtanh.pop %v2297
        %v2798 = vtanh.pop %v2298
        %v2799 = vtanh.pop %v2299
        %v2800 = vtanh.pop %v2300
        %v2801 = vtanh.pop %v2301
        %v2802 = vtanh.pop %v2302
        %v2803 = vtanh.pop %v2303
        %v2804 = vtanh.pop %v2304
        %v2805 = vtanh.pop %v2305
        %v2806 = vtanh.pop %v2306
        %v2807 = vtanh.pop %v2307
        %v2808 = vtanh.pop %v2308
        %v2809 = vtanh.pop %v2309
        %v2810 = vtanh.pop %v2310
        %v2811 = vtanh.pop %v2311
        %v2812 = vtanh.pop %v2312
        %v2813 = vtanh.pop %v2313
        %v2814 = vtanh.pop %v2314
        %v2815 = vtanh.pop %v2315
        %v2816 = vtanh.pop %v2316
        %v2817 = vtanh.pop %v2317
        %v2818 = vtanh.pop %v2318
        %v2819 = vtanh.pop %v2319
        %v2820 = vtanh.pop %v2320
        %v2821 = vtanh.pop %v2321
        %v2822 = vtanh.pop %v2322
        %v2823 = vtanh.pop %v2323
        %v2824 = vtanh.pop %v2324
        %v2825 = vtanh.pop %v2325
        %v2826 = vtanh.pop %v2326
        %v2827 = vtanh.pop %v2327
        %v2828 = vtanh.pop %v2328
        %v2829 = vtanh.pop %v2329
        %v2830 = vtanh.pop %v2330
        %v2831 = vtanh.pop %v2331
        %v2832 = vtanh.pop %v2332
        %v2833 = vtanh.pop %v2333
        %v2834 = vtanh.pop %v2334
        %v2835 = vtanh.pop %v2335
        %v2836 = vtanh.pop %v2336
        %v2837 = vtanh.pop %v2337
        %v2838 = vtanh.pop %v2338
        %v2839 = vtanh.pop %v2339
        %v2840 = vtanh.pop %v2340
        %v2841 = vtanh.pop %v2341
        %v2842 = vtanh.pop %v2342
        %v2843 = vtanh.pop %v2343
        %v2844 = vtanh.pop %v2344
        %v2845 = vtanh.pop %v2345
        %v2846 = vtanh.pop %v2346
        %v2847 = vtanh.pop %v2347
        %v2848 = vtanh.pop %v2348
        %v2849 = vtanh.pop %v2349
        %v2850 = vtanh.pop %v2350
        %v2851 = vtanh.pop %v2351
        %v2852 = vtanh.pop %v2352
        %v2853 = vtanh.pop %v2353
        %v2854 = vtanh.pop %v2354
        %v2855 = vtanh.pop %v2355
        %v2856 = vtanh.pop %v2356
        %v2857 = vtanh.pop %v2357
        %v2858 = vtanh.pop %v2358
        %v2859 = vtanh.pop %v2359
        %v2860 = vtanh.pop %v2360
        %v2861 = vtanh.pop %v2361
        %v2862 = vtanh.pop %v2362
        %v2863 = vtanh.pop %v2363
        %v2864 = vtanh.pop %v2364
        %v2865 = vtanh.pop %v2365
        %v2866 = vtanh.pop %v2366
        %v2867 = vtanh.pop %v2367
        %v2868 = vtanh.pop %v2368
        %v2869 = vtanh.pop %v2369
        %v2870 = vtanh.pop %v2370
        %v2871 = vtanh.pop %v2371
        %v2872 = vtanh.pop %v2372
        %v2873 = vtanh.pop %v2373
        %v2874 = vtanh.pop %v2374
        %v2875 = vtanh.pop %v2375
        %v2876 = vtanh.pop %v2376
        %v2877 = vtanh.pop %v2377
        %v2878 = vtanh.pop %v2378
        %v2879 = vtanh.pop %v2379
        %v2880 = vtanh.pop %v2380
        %v2881 = vtanh.pop %v2381
        %v2882 = vtanh.pop %v2382
        %v2883 = vtanh.pop %v2383
        %v2884 = vtanh.pop %v2384
        %v2885 = vtanh.pop %v2385
        %v2886 = vtanh.pop %v2386
        %v2887 = vtanh.pop %v2387
        %v2888 = vtanh.pop %v2388
        %v2889 = vtanh.pop %v2389
        %v2890 = vtanh.pop %v2390
        %v2891 = vtanh.pop %v2391
        %v2892 = vtanh.pop %v2392
        %v2893 = vtanh.pop %v2393
        %v2894 = vtanh.pop %v2394
        %v2895 = vtanh.pop %v2395
        %v2896 = vtanh.pop %v2396
        %v2897 = vtanh.pop %v2397
        %v2898 = vtanh.pop %v2398
        %v2899 = vtanh.pop %v2399
        %v2900 = vtanh.pop %v2400
        %v2901 = vtanh.pop %v2401
        %v2902 = vtanh.pop %v2402
        %v2903 = vtanh.pop %v2403
        %v2904 = vtanh.pop %v2404
        %v2905 = vtanh.pop %v2405
        %v2906 = vtanh.pop %v2406
        %v2907 = vtanh.pop %v2407
        %v2908 = vtanh.pop %v2408
        %v2909 = vtanh.pop %v2409
        %v2910 = vtanh.pop %v2410
        %v2911 = vtanh.pop %v2411
        %v2912 = vtanh.pop %v2412
        %v2913 = vtanh.pop %v2413
        %v2914 = vtanh.pop %v2414
        %v2915 = vtanh.pop %v2415
        %v2916 = vtanh.pop %v2416
        %v2917 = vtanh.pop %v2417
        %v2918 = vtanh.pop %v2418
        %v2919 = vtanh.pop %v2419
        %v2920 = vtanh.pop %v2420
        %v2921 = vtanh.pop %v2421
        %v2922 = vtanh.pop %v2422
        %v2923 = vtanh.pop %v2423
        %v2924 = vtanh.pop %v2424
        %v2925 = vtanh.pop %v2425
        %v2926 = vtanh.pop %v2426
        %v2927 = vtanh.pop %v2427
        %v2928 = vtanh.pop %v2428
        %v2929 = vtanh.pop %v2429
        %v2930 = vtanh.pop %v2430
        %v2931 = vtanh.pop %v2431
        %v2932 = vtanh.pop %v2432
        %v2933 = vtanh.pop %v2433
        %v2934 = vtanh.pop %v2434
        %v2935 = vtanh.pop %v2435
        %v2936 = vtanh.pop %v2436
        %v2937 = vtanh.pop %v2437
        %v2938 = vtanh.pop %v2438
        %v2939 = vtanh.pop %v2439
        %v2940 = vtanh.pop %v2440
        %v2941 = vtanh.pop %v2441
        %v2942 = vtanh.pop %v2442
        %v2943 = vtanh.pop %v2443
        %v2944 = vtanh.pop %v2444
        %v2945 = vtanh.pop %v2445
        %v2946 = vtanh.pop %v2446
        %v2947 = vtanh.pop %v2447
        %v2948 = vtanh.pop %v2448
        %v2949 = vtanh.pop %v2449
        %v2950 = vtanh.pop %v2450
        %v2951 = vtanh.pop %v2451
        %v2952 = vtanh.pop %v2452
        %v2953 = vtanh.pop %v2453
        %v2954 = vtanh.pop %v2454
        %v2955 = vtanh.pop %v2455
        %v2956 = vtanh.pop %v2456
        %v2957 = vtanh.pop %v2457
        %v2958 = vtanh.pop %v2458
        %v2959 = vtanh.pop %v2459
        %v2960 = vtanh.pop %v2460
        %v2961 = vtanh.pop %v2461
        %v2962 = vtanh.pop %v2462
        %v2963 = vtanh.pop %v2463
        %v2964 = vtanh.pop %v2464
        %v2965 = vtanh.pop %v2465
        %v2966 = vtanh.pop %v2466
        %v2967 = vtanh.pop %v2467
        %v2968 = vtanh.pop %v2468
        %v2969 = vtanh.pop %v2469
        %v2970 = vtanh.pop %v2470
        %v2971 = vtanh.pop %v2471
        %v2972 = vtanh.pop %v2472
        %v2973 = vtanh.pop %v2473
        %v2974 = vtanh.pop %v2474
        %v2975 = vtanh.pop %v2475
        %v2976 = vtanh.pop %v2476
        %v2977 = vtanh.pop %v2477
        %v2978 = vtanh.pop %v2478
        %v2979 = vtanh.pop %v2479
        %v2980 = vtanh.pop %v2480
        %v2981 = vtanh.pop %v2481
        %v2982 = vtanh.pop %v2482
        %v2983 = vtanh.pop %v2483
        %v2984 = vtanh.pop %v2484
        %v2985 = vtanh.pop %v2485
        %v2986 = vtanh.pop %v2486
        %v2987 = vtanh.pop %v2487
        %v2988 = vtanh.pop %v2488
        %v2989 = vtanh.pop %v2489
        %v2990 = vtanh.pop %v2490
        %v2991 = vtanh.pop %v2491
        %v2992 = vtanh.pop %v2492
        %v2993 = vtanh.pop %v2493
        %v2994 = vtanh.pop %v2494
        %v2995 = vtanh.pop %v2495
        %v2996 = vtanh.pop %v2496
        %v2997 = vtanh.pop %v2497
        %v2998 = vadd.f32 %v2498, 1.0
        %v2999 = vadd.f32 %v2499, 1.0
        %v3000 = vadd.f32 %v2500, 1.0
        %v3001 = vadd.f32 %v2501, 1.0
        %v3002 = vadd.f32 %v2502, 1.0
        %v3003 = vadd.f32 %v2503, 1.0
        %v3004 = vadd.f32 %v2504, 1.0
        %v3005 = vadd.f32 %v2505, 1.0
        %v3006 = vadd.f32 %v2506, 1.0
        %v3007 = vadd.f32 %v2507, 1.0
        %v3008 = vadd.f32 %v2508, 1.0
        %v3009 = vadd.f32 %v2509, 1.0
        %v3010 = vadd.f32 %v2510, 1.0
        %v3011 = vadd.f32 %v2511, 1.0
        %v3012 = vadd.f32 %v2512, 1.0
        %v3013 = vadd.f32 %v2513, 1.0
        %v3014 = vadd.f32 %v2514, 1.0
        %v3015 = vadd.f32 %v2515, 1.0
        %v3016 = vadd.f32 %v2516, 1.0
        %v3017 = vadd.f32 %v2517, 1.0
        %v3018 = vadd.f32 %v2518, 1.0
        %v3019 = vadd.f32 %v2519, 1.0
        %v3020 = vadd.f32 %v2520, 1.0
        %v3021 = vadd.f32 %v2521, 1.0
        %v3022 = vadd.f32 %v2522, 1.0
        %v3023 = vadd.f32 %v2523, 1.0
        %v3024 = vadd.f32 %v2524, 1.0
        %v3025 = vadd.f32 %v2525, 1.0
        %v3026 = vadd.f32 %v2526, 1.0
        %v3027 = vadd.f32 %v2527, 1.0
        %v3028 = vadd.f32 %v2528, 1.0
        %v3029 = vadd.f32 %v2529, 1.0
        %v3030 = vadd.f32 %v2530, 1.0
        %v3031 = vadd.f32 %v2531, 1.0
        %v3032 = vadd.f32 %v2532, 1.0
        %v3033 = vadd.f32 %v2533, 1.0
        %v3034 = vadd.f32 %v2534, 1.0
        %v3035 = vadd.f32 %v2535, 1.0
        %v3036 = vadd.f32 %v2536, 1.0
        %v3037 = vadd.f32 %v2537, 1.0
        %v3038 = vadd.f32 %v2538, 1.0
        %v3039 = vadd.f32 %v2539, 1.0
        %v3040 = vadd.f32 %v2540, 1.0
        %v3041 = vadd.f32 %v2541, 1.0
        %v3042 = vadd.f32 %v2542, 1.0
        %v3043 = vadd.f32 %v2543, 1.0
        %v3044 = vadd.f32 %v2544, 1.0
        %v3045 = vadd.f32 %v2545, 1.0
        %v3046 = vadd.f32 %v2546, 1.0
        %v3047 = vadd.f32 %v2547, 1.0
        %v3048 = vadd.f32 %v2548, 1.0
        %v3049 = vadd.f32 %v2549, 1.0
        %v3050 = vadd.f32 %v2550, 1.0
        %v3051 = vadd.f32 %v2551, 1.0
        %v3052 = vadd.f32 %v2552, 1.0
        %v3053 = vadd.f32 %v2553, 1.0
        %v3054 = vadd.f32 %v2554, 1.0
        %v3055 = vadd.f32 %v2555, 1.0
        %v3056 = vadd.f32 %v2556, 1.0
        %v3057 = vadd.f32 %v2557, 1.0
        %v3058 = vadd.f32 %v2558, 1.0
        %v3059 = vadd.f32 %v2559, 1.0
        %v3060 = vadd.f32 %v2560, 1.0
        %v3061 = vadd.f32 %v2561, 1.0
        %v3062 = vadd.f32 %v2562, 1.0
        %v3063 = vadd.f32 %v2563, 1.0
        %v3064 = vadd.f32 %v2564, 1.0
        %v3065 = vadd.f32 %v2565, 1.0
        %v3066 = vadd.f32 %v2566, 1.0
        %v3067 = vadd.f32 %v2567, 1.0
        %v3068 = vadd.f32 %v2568, 1.0
        %v3069 = vadd.f32 %v2569, 1.0
        %v3070 = vadd.f32 %v2570, 1.0
        %v3071 = vadd.f32 %v2571, 1.0
        %v3072 = vadd.f32 %v2572, 1.0
        %v3073 = vadd.f32 %v2573, 1.0
        %v3074 = vadd.f32 %v2574, 1.0
        %v3075 = vadd.f32 %v2575, 1.0
        %v3076 = vadd.f32 %v2576, 1.0
        %v3077 = vadd.f32 %v2577, 1.0
        %v3078 = vadd.f32 %v2578, 1.0
        %v3079 = vadd.f32 %v2579, 1.0
        %v3080 = vadd.f32 %v2580, 1.0
        %v3081 = vadd.f32 %v2581, 1.0
        %v3082 = vadd.f32 %v2582, 1.0
        %v3083 = vadd.f32 %v2583, 1.0
        %v3084 = vadd.f32 %v2584, 1.0
        %v3085 = vadd.f32 %v2585, 1.0
        %v3086 = vadd.f32 %v2586, 1.0
        %v3087 = vadd.f32 %v2587, 1.0
        %v3088 = vadd.f32 %v2588, 1.0
        %v3089 = vadd.f32 %v2589, 1.0
        %v3090 = vadd.f32 %v2590, 1.0
        %v3091 = vadd.f32 %v2591, 1.0
        %v3092 = vadd.f32 %v2592, 1.0
        %v3093 = vadd.f32 %v2593, 1.0
        %v3094 = vadd.f32 %v2594, 1.0
        %v3095 = vadd.f32 %v2595, 1.0
        %v3096 = vadd.f32 %v2596, 1.0
        %v3097 = vadd.f32 %v2597, 1.0
        %v3098 = vadd.f32 %v2598, 1.0
        %v3099 = vadd.f32 %v2599, 1.0
        %v3100 = vadd.f32 %v2600, 1.0
        %v3101 = vadd.f32 %v2601, 1.0
        %v3102 = vadd.f32 %v2602, 1.0
        %v3103 = vadd.f32 %v2603, 1.0
        %v3104 = vadd.f32 %v2604, 1.0
        %v3105 = vadd.f32 %v2605, 1.0
        %v3106 = vadd.f32 %v2606, 1.0
        %v3107 = vadd.f32 %v2607, 1.0
        %v3108 = vadd.f32 %v2608, 1.0
        %v3109 = vadd.f32 %v2609, 1.0
        %v3110 = vadd.f32 %v2610, 1.0
        %v3111 = vadd.f32 %v2611, 1.0
        %v3112 = vadd.f32 %v2612, 1.0
        %v3113 = vadd.f32 %v2613, 1.0
        %v3114 = vadd.f32 %v2614, 1.0
        %v3115 = vadd.f32 %v2615, 1.0
        %v3116 = vadd.f32 %v2616, 1.0
        %v3117 = vadd.f32 %v2617, 1.0
        %v3118 = vadd.f32 %v2618, 1.0
        %v3119 = vadd.f32 %v2619, 1.0
        %v3120 = vadd.f32 %v2620, 1.0
        %v3121 = vadd.f32 %v2621, 1.0
        %v3122 = vadd.f32 %v2622, 1.0
        %v3123 = vadd.f32 %v2623, 1.0
        %v3124 = vadd.f32 %v2624, 1.0
        %v3125 = vadd.f32 %v2625, 1.0
        %v3126 = vadd.f32 %v2626, 1.0
        %v3127 = vadd.f32 %v2627, 1.0
        %v3128 = vadd.f32 %v2628, 1.0
        %v3129 = vadd.f32 %v2629, 1.0
        %v3130 = vadd.f32 %v2630, 1.0
        %v3131 = vadd.f32 %v2631, 1.0
        %v3132 = vadd.f32 %v2632, 1.0
        %v3133 = vadd.f32 %v2633, 1.0
        %v3134 = vadd.f32 %v2634, 1.0
        %v3135 = vadd.f32 %v2635, 1.0
        %v3136 = vadd.f32 %v2636, 1.0
        %v3137 = vadd.f32 %v2637, 1.0
        %v3138 = vadd.f32 %v2638, 1.0
        %v3139 = vadd.f32 %v2639, 1.0
        %v3140 = vadd.f32 %v2640, 1.0
        %v3141 = vadd.f32 %v2641, 1.0
        %v3142 = vadd.f32 %v2642, 1.0
        %v3143 = vadd.f32 %v2643, 1.0
        %v3144 = vadd.f32 %v2644, 1.0
        %v3145 = vadd.f32 %v2645, 1.0
        %v3146 = vadd.f32 %v2646, 1.0
        %v3147 = vadd.f32 %v2647, 1.0
        %v3148 = vadd.f32 %v2648, 1.0
        %v3149 = vadd.f32 %v2649, 1.0
        %v3150 = vadd.f32 %v2650, 1.0
        %v3151 = vadd.f32 %v2651, 1.0
        %v3152 = vadd.f32 %v2652, 1.0
        %v3153 = vadd.f32 %v2653, 1.0
        %v3154 = vadd.f32 %v2654, 1.0
        %v3155 = vadd.f32 %v2655, 1.0
        %v3156 = vadd.f32 %v2656, 1.0
        %v3157 = vadd.f32 %v2657, 1.0
        %v3158 = vadd.f32 %v2658, 1.0
        %v3159 = vadd.f32 %v2659, 1.0
        %v3160 = vadd.f32 %v2660, 1.0
        %v3161 = vadd.f32 %v2661, 1.0
        %v3162 = vadd.f32 %v2662, 1.0
        %v3163 = vadd.f32 %v2663, 1.0
        %v3164 = vadd.f32 %v2664, 1.0
        %v3165 = vadd.f32 %v2665, 1.0
        %v3166 = vadd.f32 %v2666, 1.0
        %v3167 = vadd.f32 %v2667, 1.0
        %v3168 = vadd.f32 %v2668, 1.0
        %v3169 = vadd.f32 %v2669, 1.0
        %v3170 = vadd.f32 %v2670, 1.0
        %v3171 = vadd.f32 %v2671, 1.0
        %v3172 = vadd.f32 %v2672, 1.0
        %v3173 = vadd.f32 %v2673, 1.0
        %v3174 = vadd.f32 %v2674, 1.0
        %v3175 = vadd.f32 %v2675, 1.0
        %v3176 = vadd.f32 %v2676, 1.0
        %v3177 = vadd.f32 %v2677, 1.0
        %v3178 = vadd.f32 %v2678, 1.0
        %v3179 = vadd.f32 %v2679, 1.0
        %v3180 = vadd.f32 %v2680, 1.0
        %v3181 = vadd.f32 %v2681, 1.0
        %v3182 = vadd.f32 %v2682, 1.0
        %v3183 = vadd.f32 %v2683, 1.0
        %v3184 = vadd.f32 %v2684, 1.0
        %v3185 = vadd.f32 %v2685, 1.0
        %v3186 = vadd.f32 %v2686, 1.0
        %v3187 = vadd.f32 %v2687, 1.0
        %v3188 = vadd.f32 %v2688, 1.0
        %v3189 = vadd.f32 %v2689, 1.0
        %v3190 = vadd.f32 %v2690, 1.0
        %v3191 = vadd.f32 %v2691, 1.0
        %v3192 = vadd.f32 %v2692, 1.0
        %v3193 = vadd.f32 %v2693, 1.0
        %v3194 = vadd.f32 %v2694, 1.0
        %v3195 = vadd.f32 %v2695, 1.0
        %v3196 = vadd.f32 %v2696, 1.0
        %v3197 = vadd.f32 %v2697, 1.0
        %v3198 = vadd.f32 %v2698, 1.0
        %v3199 = vadd.f32 %v2699, 1.0
        %v3200 = vadd.f32 %v2700, 1.0
        %v3201 = vadd.f32 %v2701, 1.0
        %v3202 = vadd.f32 %v2702, 1.0
        %v3203 = vadd.f32 %v2703, 1.0
        %v3204 = vadd.f32 %v2704, 1.0
        %v3205 = vadd.f32 %v2705, 1.0
        %v3206 = vadd.f32 %v2706, 1.0
        %v3207 = vadd.f32 %v2707, 1.0
        %v3208 = vadd.f32 %v2708, 1.0
        %v3209 = vadd.f32 %v2709, 1.0
        %v3210 = vadd.f32 %v2710, 1.0
        %v3211 = vadd.f32 %v2711, 1.0
        %v3212 = vadd.f32 %v2712, 1.0
        %v3213 = vadd.f32 %v2713, 1.0
        %v3214 = vadd.f32 %v2714, 1.0
        %v3215 = vadd.f32 %v2715, 1.0
        %v3216 = vadd.f32 %v2716, 1.0
        %v3217 = vadd.f32 %v2717, 1.0
        %v3218 = vadd.f32 %v2718, 1.0
        %v3219 = vadd.f32 %v2719, 1.0
        %v3220 = vadd.f32 %v2720, 1.0
        %v3221 = vadd.f32 %v2721, 1.0
        %v3222 = vadd.f32 %v2722, 1.0
        %v3223 = vadd.f32 %v2723, 1.0
        %v3224 = vadd.f32 %v2724, 1.0
        %v3225 = vadd.f32 %v2725, 1.0
        %v3226 = vadd.f32 %v2726, 1.0
        %v3227 = vadd.f32 %v2727, 1.0
        %v3228 = vadd.f32 %v2728, 1.0
        %v3229 = vadd.f32 %v2729, 1.0
        %v3230 = vadd.f32 %v2730, 1.0
        %v3231 = vadd.f32 %v2731, 1.0
        %v3232 = vadd.f32 %v2732, 1.0
        %v3233 = vadd.f32 %v2733, 1.0
        %v3234 = vadd.f32 %v2734, 1.0
        %v3235 = vadd.f32 %v2735, 1.0
        %v3236 = vadd.f32 %v2736, 1.0
        %v3237 = vadd.f32 %v2737, 1.0
        %v3238 = vadd.f32 %v2738, 1.0
        %v3239 = vadd.f32 %v2739, 1.0
        %v3240 = vadd.f32 %v2740, 1.0
        %v3241 = vadd.f32 %v2741, 1.0
        %v3242 = vadd.f32 %v2742, 1.0
        %v3243 = vadd.f32 %v2743, 1.0
        %v3244 = vadd.f32 %v2744, 1.0
        %v3245 = vadd.f32 %v2745, 1.0
        %v3246 = vadd.f32 %v2746, 1.0
        %v3247 = vadd.f32 %v2747, 1.0
        %v3248 = vadd.f32 %v2748, 1.0
        %v3249 = vadd.f32 %v2749, 1.0
        %v3250 = vadd.f32 %v2750, 1.0
        %v3251 = vadd.f32 %v2751, 1.0
        %v3252 = vadd.f32 %v2752, 1.0
        %v3253 = vadd.f32 %v2753, 1.0
        %v3254 = vadd.f32 %v2754, 1.0
        %v3255 = vadd.f32 %v2755, 1.0
        %v3256 = vadd.f32 %v2756, 1.0
        %v3257 = vadd.f32 %v2757, 1.0
        %v3258 = vadd.f32 %v2758, 1.0
        %v3259 = vadd.f32 %v2759, 1.0
        %v3260 = vadd.f32 %v2760, 1.0
        %v3261 = vadd.f32 %v2761, 1.0
        %v3262 = vadd.f32 %v2762, 1.0
        %v3263 = vadd.f32 %v2763, 1.0
        %v3264 = vadd.f32 %v2764, 1.0
        %v3265 = vadd.f32 %v2765, 1.0
        %v3266 = vadd.f32 %v2766, 1.0
        %v3267 = vadd.f32 %v2767, 1.0
        %v3268 = vadd.f32 %v2768, 1.0
        %v3269 = vadd.f32 %v2769, 1.0
        %v3270 = vadd.f32 %v2770, 1.0
        %v3271 = vadd.f32 %v2771, 1.0
        %v3272 = vadd.f32 %v2772, 1.0
        %v3273 = vadd.f32 %v2773, 1.0
        %v3274 = vadd.f32 %v2774, 1.0
        %v3275 = vadd.f32 %v2775, 1.0
        %v3276 = vadd.f32 %v2776, 1.0
        %v3277 = vadd.f32 %v2777, 1.0
        %v3278 = vadd.f32 %v2778, 1.0
        %v3279 = vadd.f32 %v2779, 1.0
        %v3280 = vadd.f32 %v2780, 1.0
        %v3281 = vadd.f32 %v2781, 1.0
        %v3282 = vadd.f32 %v2782, 1.0
        %v3283 = vadd.f32 %v2783, 1.0
        %v3284 = vadd.f32 %v2784, 1.0
        %v3285 = vadd.f32 %v2785, 1.0
        %v3286 = vadd.f32 %v2786, 1.0
        %v3287 = vadd.f32 %v2787, 1.0
        %v3288 = vadd.f32 %v2788, 1.0
        %v3289 = vadd.f32 %v2789, 1.0
        %v3290 = vadd.f32 %v2790, 1.0
        %v3291 = vadd.f32 %v2791, 1.0
        %v3292 = vadd.f32 %v2792, 1.0
        %v3293 = vadd.f32 %v2793, 1.0
        %v3294 = vadd.f32 %v2794, 1.0
        %v3295 = vadd.f32 %v2795, 1.0
        %v3296 = vadd.f32 %v2796, 1.0
        %v3297 = vadd.f32 %v2797, 1.0
        %v3298 = vadd.f32 %v2798, 1.0
        %v3299 = vadd.f32 %v2799, 1.0
        %v3300 = vadd.f32 %v2800, 1.0
        %v3301 = vadd.f32 %v2801, 1.0
        %v3302 = vadd.f32 %v2802, 1.0
        %v3303 = vadd.f32 %v2803, 1.0
        %v3304 = vadd.f32 %v2804, 1.0
        %v3305 = vadd.f32 %v2805, 1.0
        %v3306 = vadd.f32 %v2806, 1.0
        %v3307 = vadd.f32 %v2807, 1.0
        %v3308 = vadd.f32 %v2808, 1.0
        %v3309 = vadd.f32 %v2809, 1.0
        %v3310 = vadd.f32 %v2810, 1.0
        %v3311 = vadd.f32 %v2811, 1.0
        %v3312 = vadd.f32 %v2812, 1.0
        %v3313 = vadd.f32 %v2813, 1.0
        %v3314 = vadd.f32 %v2814, 1.0
        %v3315 = vadd.f32 %v2815, 1.0
        %v3316 = vadd.f32 %v2816, 1.0
        %v3317 = vadd.f32 %v2817, 1.0
        %v3318 = vadd.f32 %v2818, 1.0
        %v3319 = vadd.f32 %v2819, 1.0
        %v3320 = vadd.f32 %v2820, 1.0
        %v3321 = vadd.f32 %v2821, 1.0
        %v3322 = vadd.f32 %v2822, 1.0
        %v3323 = vadd.f32 %v2823, 1.0
        %v3324 = vadd.f32 %v2824, 1.0
        %v3325 = vadd.f32 %v2825, 1.0
        %v3326 = vadd.f32 %v2826, 1.0
        %v3327 = vadd.f32 %v2827, 1.0
        %v3328 = vadd.f32 %v2828, 1.0
        %v3329 = vadd.f32 %v2829, 1.0
        %v3330 = vadd.f32 %v2830, 1.0
        %v3331 = vadd.f32 %v2831, 1.0
        %v3332 = vadd.f32 %v2832, 1.0
        %v3333 = vadd.f32 %v2833, 1.0
        %v3334 = vadd.f32 %v2834, 1.0
        %v3335 = vadd.f32 %v2835, 1.0
        %v3336 = vadd.f32 %v2836, 1.0
        %v3337 = vadd.f32 %v2837, 1.0
        %v3338 = vadd.f32 %v2838, 1.0
        %v3339 = vadd.f32 %v2839, 1.0
        %v3340 = vadd.f32 %v2840, 1.0
        %v3341 = vadd.f32 %v2841, 1.0
        %v3342 = vadd.f32 %v2842, 1.0
        %v3343 = vadd.f32 %v2843, 1.0
        %v3344 = vadd.f32 %v2844, 1.0
        %v3345 = vadd.f32 %v2845, 1.0
        %v3346 = vadd.f32 %v2846, 1.0
        %v3347 = vadd.f32 %v2847, 1.0
        %v3348 = vadd.f32 %v2848, 1.0
        %v3349 = vadd.f32 %v2849, 1.0
        %v3350 = vadd.f32 %v2850, 1.0
        %v3351 = vadd.f32 %v2851, 1.0
        %v3352 = vadd.f32 %v2852, 1.0
        %v3353 = vadd.f32 %v2853, 1.0
        %v3354 = vadd.f32 %v2854, 1.0
        %v3355 = vadd.f32 %v2855, 1.0
        %v3356 = vadd.f32 %v2856, 1.0
        %v3357 = vadd.f32 %v2857, 1.0
        %v3358 = vadd.f32 %v2858, 1.0
        %v3359 = vadd.f32 %v2859, 1.0
        %v3360 = vadd.f32 %v2860, 1.0
        %v3361 = vadd.f32 %v2861, 1.0
        %v3362 = vadd.f32 %v2862, 1.0
        %v3363 = vadd.f32 %v2863, 1.0
        %v3364 = vadd.f32 %v2864, 1.0
        %v3365 = vadd.f32 %v2865, 1.0
        %v3366 = vadd.f32 %v2866, 1.0
        %v3367 = vadd.f32 %v2867, 1.0
        %v3368 = vadd.f32 %v2868, 1.0
        %v3369 = vadd.f32 %v2869, 1.0
        %v3370 = vadd.f32 %v2870, 1.0
        %v3371 = vadd.f32 %v2871, 1.0
        %v3372 = vadd.f32 %v2872, 1.0
        %v3373 = vadd.f32 %v2873, 1.0
        %v3374 = vadd.f32 %v2874, 1.0
        %v3375 = vadd.f32 %v2875, 1.0
        %v3376 = vadd.f32 %v2876, 1.0
        %v3377 = vadd.f32 %v2877, 1.0
        %v3378 = vadd.f32 %v2878, 1.0
        %v3379 = vadd.f32 %v2879, 1.0
        %v3380 = vadd.f32 %v2880, 1.0
        %v3381 = vadd.f32 %v2881, 1.0
        %v3382 = vadd.f32 %v2882, 1.0
        %v3383 = vadd.f32 %v2883, 1.0
        %v3384 = vadd.f32 %v2884, 1.0
        %v3385 = vadd.f32 %v2885, 1.0
        %v3386 = vadd.f32 %v2886, 1.0
        %v3387 = vadd.f32 %v2887, 1.0
        %v3388 = vadd.f32 %v2888, 1.0
        %v3389 = vadd.f32 %v2889, 1.0
        %v3390 = vadd.f32 %v2890, 1.0
        %v3391 = vadd.f32 %v2891, 1.0
        %v3392 = vadd.f32 %v2892, 1.0
        %v3393 = vadd.f32 %v2893, 1.0
        %v3394 = vadd.f32 %v2894, 1.0
        %v3395 = vadd.f32 %v2895, 1.0
        %v3396 = vadd.f32 %v2896, 1.0
        %v3397 = vadd.f32 %v2897, 1.0
        %v3398 = vadd.f32 %v2898, 1.0
        %v3399 = vadd.f32 %v2899, 1.0
        %v3400 = vadd.f32 %v2900, 1.0
        %v3401 = vadd.f32 %v2901, 1.0
        %v3402 = vadd.f32 %v2902, 1.0
        %v3403 = vadd.f32 %v2903, 1.0
        %v3404 = vadd.f32 %v2904, 1.0
        %v3405 = vadd.f32 %v2905, 1.0
        %v3406 = vadd.f32 %v2906, 1.0
        %v3407 = vadd.f32 %v2907, 1.0
        %v3408 = vadd.f32 %v2908, 1.0
        %v3409 = vadd.f32 %v2909, 1.0
        %v3410 = vadd.f32 %v2910, 1.0
        %v3411 = vadd.f32 %v2911, 1.0
        %v3412 = vadd.f32 %v2912, 1.0
        %v3413 = vadd.f32 %v2913, 1.0
        %v3414 = vadd.f32 %v2914, 1.0
        %v3415 = vadd.f32 %v2915, 1.0
        %v3416 = vadd.f32 %v2916, 1.0
        %v3417 = vadd.f32 %v2917, 1.0
        %v3418 = vadd.f32 %v2918, 1.0
        %v3419 = vadd.f32 %v2919, 1.0
        %v3420 = vadd.f32 %v2920, 1.0
        %v3421 = vadd.f32 %v2921, 1.0
        %v3422 = vadd.f32 %v2922, 1.0
        %v3423 = vadd.f32 %v2923, 1.0
        %v3424 = vadd.f32 %v2924, 1.0
        %v3425 = vadd.f32 %v2925, 1.0
        %v3426 = vadd.f32 %v2926, 1.0
        %v3427 = vadd.f32 %v2927, 1.0
        %v3428 = vadd.f32 %v2928, 1.0
        %v3429 = vadd.f32 %v2929, 1.0
        %v3430 = vadd.f32 %v2930, 1.0
        %v3431 = vadd.f32 %v2931, 1.0
        %v3432 = vadd.f32 %v2932, 1.0
        %v3433 = vadd.f32 %v2933, 1.0
        %v3434 = vadd.f32 %v2934, 1.0
        %v3435 = vadd.f32 %v2935, 1.0
        %v3436 = vadd.f32 %v2936, 1.0
        %v3437 = vadd.f32 %v2937, 1.0
        %v3438 = vadd.f32 %v2938, 1.0
        %v3439 = vadd.f32 %v2939, 1.0
        %v3440 = vadd.f32 %v2940, 1.0
        %v3441 = vadd.f32 %v2941, 1.0
        %v3442 = vadd.f32 %v2942, 1.0
        %v3443 = vadd.f32 %v2943, 1.0
        %v3444 = vadd.f32 %v2944, 1.0
        %v3445 = vadd.f32 %v2945, 1.0
        %v3446 = vadd.f32 %v2946, 1.0
        %v3447 = vadd.f32 %v2947, 1.0
        %v3448 = vadd.f32 %v2948, 1.0
        %v3449 = vadd.f32 %v2949, 1.0
        %v3450 = vadd.f32 %v2950, 1.0
        %v3451 = vadd.f32 %v2951, 1.0
        %v3452 = vadd.f32 %v2952, 1.0
        %v3453 = vadd.f32 %v2953, 1.0
        %v3454 = vadd.f32 %v2954, 1.0
        %v3455 = vadd.f32 %v2955, 1.0
        %v3456 = vadd.f32 %v2956, 1.0
        %v3457 = vadd.f32 %v2957, 1.0
        %v3458 = vadd.f32 %v2958, 1.0
        %v3459 = vadd.f32 %v2959, 1.0
        %v3460 = vadd.f32 %v2960, 1.0
        %v3461 = vadd.f32 %v2961, 1.0
        %v3462 = vadd.f32 %v2962, 1.0
        %v3463 = vadd.f32 %v2963, 1.0
        %v3464 = vadd.f32 %v2964, 1.0
        %v3465 = vadd.f32 %v2965, 1.0
        %v3466 = vadd.f32 %v2966, 1.0
        %v3467 = vadd.f32 %v2967, 1.0
        %v3468 = vadd.f32 %v2968, 1.0
        %v3469 = vadd.f32 %v2969, 1.0
        %v3470 = vadd.f32 %v2970, 1.0
        %v3471 = vadd.f32 %v2971, 1.0
        %v3472 = vadd.f32 %v2972, 1.0
        %v3473 = vadd.f32 %v2973, 1.0
        %v3474 = vadd.f32 %v2974, 1.0
        %v3475 = vadd.f32 %v2975, 1.0
        %v3476 = vadd.f32 %v2976, 1.0
        %v3477 = vadd.f32 %v2977, 1.0
        %v3478 = vadd.f32 %v2978, 1.0
        %v3479 = vadd.f32 %v2979, 1.0
        %v3480 = vadd.f32 %v2980, 1.0
        %v3481 = vadd.f32 %v2981, 1.0
        %v3482 = vadd.f32 %v2982, 1.0
        %v3483 = vadd.f32 %v2983, 1.0
        %v3484 = vadd.f32 %v2984, 1.0
        %v3485 = vadd.f32 %v2985, 1.0
        %v3486 = vadd.f32 %v2986, 1.0
        %v3487 = vadd.f32 %v2987, 1.0
        %v3488 = vadd.f32 %v2988, 1.0
        %v3489 = vadd.f32 %v2989, 1.0
        %v3490 = vadd.f32 %v2990, 1.0
        %v3491 = vadd.f32 %v2991, 1.0
        %v3492 = vadd.f32 %v2992, 1.0
        %v3493 = vadd.f32 %v2993, 1.0
        %v3494 = vadd.f32 %v2994, 1.0
        %v3495 = vadd.f32 %v2995, 1.0
        %v3496 = vadd.f32 %v2996, 1.0
        %v3497 = vadd.f32 %v2997, 1.0
        %v3498 = vmul.f32 %v1998, %v2998
        %v3499 = vmul.f32 %v1999, %v2999
        %v3500 = vmul.f32 %v2000, %v3000
        %v3501 = vmul.f32 %v2001, %v3001
        %v3502 = vmul.f32 %v2002, %v3002
        %v3503 = vmul.f32 %v2003, %v3003
        %v3504 = vmul.f32 %v2004, %v3004
        %v3505 = vmul.f32 %v2005, %v3005
        %v3506 = vmul.f32 %v2006, %v3006
        %v3507 = vmul.f32 %v2007, %v3007
        %v3508 = vmul.f32 %v2008, %v3008
        %v3509 = vmul.f32 %v2009, %v3009
        %v3510 = vmul.f32 %v2010, %v3010
        %v3511 = vmul.f32 %v2011, %v3011
        %v3512 = vmul.f32 %v2012, %v3012
        %v3513 = vmul.f32 %v2013, %v3013
        %v3514 = vmul.f32 %v2014, %v3014
        %v3515 = vmul.f32 %v2015, %v3015
        %v3516 = vmul.f32 %v2016, %v3016
        %v3517 = vmul.f32 %v2017, %v3017
        %v3518 = vmul.f32 %v2018, %v3018
        %v3519 = vmul.f32 %v2019, %v3019
        %v3520 = vmul.f32 %v2020, %v3020
        %v3521 = vmul.f32 %v2021, %v3021
        %v3522 = vmul.f32 %v2022, %v3022
        %v3523 = vmul.f32 %v2023, %v3023
        %v3524 = vmul.f32 %v2024, %v3024
        %v3525 = vmul.f32 %v2025, %v3025
        %v3526 = vmul.f32 %v2026, %v3026
        %v3527 = vmul.f32 %v2027, %v3027
        %v3528 = vmul.f32 %v2028, %v3028
        %v3529 = vmul.f32 %v2029, %v3029
        %v3530 = vmul.f32 %v2030, %v3030
        %v3531 = vmul.f32 %v2031, %v3031
        %v3532 = vmul.f32 %v2032, %v3032
        %v3533 = vmul.f32 %v2033, %v3033
        %v3534 = vmul.f32 %v2034, %v3034
        %v3535 = vmul.f32 %v2035, %v3035
        %v3536 = vmul.f32 %v2036, %v3036
        %v3537 = vmul.f32 %v2037, %v3037
        %v3538 = vmul.f32 %v2038, %v3038
        %v3539 = vmul.f32 %v2039, %v3039
        %v3540 = vmul.f32 %v2040, %v3040
        %v3541 = vmul.f32 %v2041, %v3041
        %v3542 = vmul.f32 %v2042, %v3042
        %v3543 = vmul.f32 %v2043, %v3043
        %v3544 = vmul.f32 %v2044, %v3044
        %v3545 = vmul.f32 %v2045, %v3045
        %v3546 = vmul.f32 %v2046, %v3046
        %v3547 = vmul.f32 %v2047, %v3047
        %v3548 = vmul.f32 %v2048, %v3048
        %v3549 = vmul.f32 %v2049, %v3049
        %v3550 = vmul.f32 %v2050, %v3050
        %v3551 = vmul.f32 %v2051, %v3051
        %v3552 = vmul.f32 %v2052, %v3052
        %v3553 = vmul.f32 %v2053, %v3053
        %v3554 = vmul.f32 %v2054, %v3054
        %v3555 = vmul.f32 %v2055, %v3055
        %v3556 = vmul.f32 %v2056, %v3056
        %v3557 = vmul.f32 %v2057, %v3057
        %v3558 = vmul.f32 %v2058, %v3058
        %v3559 = vmul.f32 %v2059, %v3059
        %v3560 = vmul.f32 %v2060, %v3060
        %v3561 = vmul.f32 %v2061, %v3061
        %v3562 = vmul.f32 %v2062, %v3062
        %v3563 = vmul.f32 %v2063, %v3063
        %v3564 = vmul.f32 %v2064, %v3064
        %v3565 = vmul.f32 %v2065, %v3065
        %v3566 = vmul.f32 %v2066, %v3066
        %v3567 = vmul.f32 %v2067, %v3067
        %v3568 = vmul.f32 %v2068, %v3068
        %v3569 = vmul.f32 %v2069, %v3069
        %v3570 = vmul.f32 %v2070, %v3070
        %v3571 = vmul.f32 %v2071, %v3071
        %v3572 = vmul.f32 %v2072, %v3072
        %v3573 = vmul.f32 %v2073, %v3073
        %v3574 = vmul.f32 %v2074, %v3074
        %v3575 = vmul.f32 %v2075, %v3075
        %v3576 = vmul.f32 %v2076, %v3076
        %v3577 = vmul.f32 %v2077, %v3077
        %v3578 = vmul.f32 %v2078, %v3078
        %v3579 = vmul.f32 %v2079, %v3079
        %v3580 = vmul.f32 %v2080, %v3080
        %v3581 = vmul.f32 %v2081, %v3081
        %v3582 = vmul.f32 %v2082, %v3082
        %v3583 = vmul.f32 %v2083, %v3083
        %v3584 = vmul.f32 %v2084, %v3084
        %v3585 = vmul.f32 %v2085, %v3085
        %v3586 = vmul.f32 %v2086, %v3086
        %v3587 = vmul.f32 %v2087, %v3087
        %v3588 = vmul.f32 %v2088, %v3088
        %v3589 = vmul.f32 %v2089, %v3089
        %v3590 = vmul.f32 %v2090, %v3090
        %v3591 = vmul.f32 %v2091, %v3091
        %v3592 = vmul.f32 %v2092, %v3092
        %v3593 = vmul.f32 %v2093, %v3093
        %v3594 = vmul.f32 %v2094, %v3094
        %v3595 = vmul.f32 %v2095, %v3095
        %v3596 = vmul.f32 %v2096, %v3096
        %v3597 = vmul.f32 %v2097, %v3097
        %v3598 = vmul.f32 %v2098, %v3098
        %v3599 = vmul.f32 %v2099, %v3099
        %v3600 = vmul.f32 %v2100, %v3100
        %v3601 = vmul.f32 %v2101, %v3101
        %v3602 = vmul.f32 %v2102, %v3102
        %v3603 = vmul.f32 %v2103, %v3103
        %v3604 = vmul.f32 %v2104, %v3104
        %v3605 = vmul.f32 %v2105, %v3105
        %v3606 = vmul.f32 %v2106, %v3106
        %v3607 = vmul.f32 %v2107, %v3107
        %v3608 = vmul.f32 %v2108, %v3108
        %v3609 = vmul.f32 %v2109, %v3109
        %v3610 = vmul.f32 %v2110, %v3110
        %v3611 = vmul.f32 %v2111, %v3111
        %v3612 = vmul.f32 %v2112, %v3112
        %v3613 = vmul.f32 %v2113, %v3113
        %v3614 = vmul.f32 %v2114, %v3114
        %v3615 = vmul.f32 %v2115, %v3115
        %v3616 = vmul.f32 %v2116, %v3116
        %v3617 = vmul.f32 %v2117, %v3117
        %v3618 = vmul.f32 %v2118, %v3118
        %v3619 = vmul.f32 %v2119, %v3119
        %v3620 = vmul.f32 %v2120, %v3120
        %v3621 = vmul.f32 %v2121, %v3121
        %v3622 = vmul.f32 %v2122, %v3122
        %v3623 = vmul.f32 %v2123, %v3123
        %v3624 = vmul.f32 %v2124, %v3124
        %v3625 = vmul.f32 %v2125, %v3125
        %v3626 = vmul.f32 %v2126, %v3126
        %v3627 = vmul.f32 %v2127, %v3127
        %v3628 = vmul.f32 %v2128, %v3128
        %v3629 = vmul.f32 %v2129, %v3129
        %v3630 = vmul.f32 %v2130, %v3130
        %v3631 = vmul.f32 %v2131, %v3131
        %v3632 = vmul.f32 %v2132, %v3132
        %v3633 = vmul.f32 %v2133, %v3133
        %v3634 = vmul.f32 %v2134, %v3134
        %v3635 = vmul.f32 %v2135, %v3135
        %v3636 = vmul.f32 %v2136, %v3136
        %v3637 = vmul.f32 %v2137, %v3137
        %v3638 = vmul.f32 %v2138, %v3138
        %v3639 = vmul.f32 %v2139, %v3139
        %v3640 = vmul.f32 %v2140, %v3140
        %v3641 = vmul.f32 %v2141, %v3141
        %v3642 = vmul.f32 %v2142, %v3142
        %v3643 = vmul.f32 %v2143, %v3143
        %v3644 = vmul.f32 %v2144, %v3144
        %v3645 = vmul.f32 %v2145, %v3145
        %v3646 = vmul.f32 %v2146, %v3146
        %v3647 = vmul.f32 %v2147, %v3147
        %v3648 = vmul.f32 %v2148, %v3148
        %v3649 = vmul.f32 %v2149, %v3149
        %v3650 = vmul.f32 %v2150, %v3150
        %v3651 = vmul.f32 %v2151, %v3151
        %v3652 = vmul.f32 %v2152, %v3152
        %v3653 = vmul.f32 %v2153, %v3153
        %v3654 = vmul.f32 %v2154, %v3154
        %v3655 = vmul.f32 %v2155, %v3155
        %v3656 = vmul.f32 %v2156, %v3156
        %v3657 = vmul.f32 %v2157, %v3157
        %v3658 = vmul.f32 %v2158, %v3158
        %v3659 = vmul.f32 %v2159, %v3159
        %v3660 = vmul.f32 %v2160, %v3160
        %v3661 = vmul.f32 %v2161, %v3161
        %v3662 = vmul.f32 %v2162, %v3162
        %v3663 = vmul.f32 %v2163, %v3163
        %v3664 = vmul.f32 %v2164, %v3164
        %v3665 = vmul.f32 %v2165, %v3165
        %v3666 = vmul.f32 %v2166, %v3166
        %v3667 = vmul.f32 %v2167, %v3167
        %v3668 = vmul.f32 %v2168, %v3168
        %v3669 = vmul.f32 %v2169, %v3169
        %v3670 = vmul.f32 %v2170, %v3170
        %v3671 = vmul.f32 %v2171, %v3171
        %v3672 = vmul.f32 %v2172, %v3172
        %v3673 = vmul.f32 %v2173, %v3173
        %v3674 = vmul.f32 %v2174, %v3174
        %v3675 = vmul.f32 %v2175, %v3175
        %v3676 = vmul.f32 %v2176, %v3176
        %v3677 = vmul.f32 %v2177, %v3177
        %v3678 = vmul.f32 %v2178, %v3178
        %v3679 = vmul.f32 %v2179, %v3179
        %v3680 = vmul.f32 %v2180, %v3180
        %v3681 = vmul.f32 %v2181, %v3181
        %v3682 = vmul.f32 %v2182, %v3182
        %v3683 = vmul.f32 %v2183, %v3183
        %v3684 = vmul.f32 %v2184, %v3184
        %v3685 = vmul.f32 %v2185, %v3185
        %v3686 = vmul.f32 %v2186, %v3186
        %v3687 = vmul.f32 %v2187, %v3187
        %v3688 = vmul.f32 %v2188, %v3188
        %v3689 = vmul.f32 %v2189, %v3189
        %v3690 = vmul.f32 %v2190, %v3190
        %v3691 = vmul.f32 %v2191, %v3191
        %v3692 = vmul.f32 %v2192, %v3192
        %v3693 = vmul.f32 %v2193, %v3193
        %v3694 = vmul.f32 %v2194, %v3194
        %v3695 = vmul.f32 %v2195, %v3195
        %v3696 = vmul.f32 %v2196, %v3196
        %v3697 = vmul.f32 %v2197, %v3197
        %v3698 = vmul.f32 %v2198, %v3198
        %v3699 = vmul.f32 %v2199, %v3199
        %v3700 = vmul.f32 %v2200, %v3200
        %v3701 = vmul.f32 %v2201, %v3201
        %v3702 = vmul.f32 %v2202, %v3202
        %v3703 = vmul.f32 %v2203, %v3203
        %v3704 = vmul.f32 %v2204, %v3204
        %v3705 = vmul.f32 %v2205, %v3205
        %v3706 = vmul.f32 %v2206, %v3206
        %v3707 = vmul.f32 %v2207, %v3207
        %v3708 = vmul.f32 %v2208, %v3208
        %v3709 = vmul.f32 %v2209, %v3209
        %v3710 = vmul.f32 %v2210, %v3210
        %v3711 = vmul.f32 %v2211, %v3211
        %v3712 = vmul.f32 %v2212, %v3212
        %v3713 = vmul.f32 %v2213, %v3213
        %v3714 = vmul.f32 %v2214, %v3214
        %v3715 = vmul.f32 %v2215, %v3215
        %v3716 = vmul.f32 %v2216, %v3216
        %v3717 = vmul.f32 %v2217, %v3217
        %v3718 = vmul.f32 %v2218, %v3218
        %v3719 = vmul.f32 %v2219, %v3219
        %v3720 = vmul.f32 %v2220, %v3220
        %v3721 = vmul.f32 %v2221, %v3221
        %v3722 = vmul.f32 %v2222, %v3222
        %v3723 = vmul.f32 %v2223, %v3223
        %v3724 = vmul.f32 %v2224, %v3224
        %v3725 = vmul.f32 %v2225, %v3225
        %v3726 = vmul.f32 %v2226, %v3226
        %v3727 = vmul.f32 %v2227, %v3227
        %v3728 = vmul.f32 %v2228, %v3228
        %v3729 = vmul.f32 %v2229, %v3229
        %v3730 = vmul.f32 %v2230, %v3230
        %v3731 = vmul.f32 %v2231, %v3231
        %v3732 = vmul.f32 %v2232, %v3232
        %v3733 = vmul.f32 %v2233, %v3233
        %v3734 = vmul.f32 %v2234, %v3234
        %v3735 = vmul.f32 %v2235, %v3235
        %v3736 = vmul.f32 %v2236, %v3236
        %v3737 = vmul.f32 %v2237, %v3237
        %v3738 = vmul.f32 %v2238, %v3238
        %v3739 = vmul.f32 %v2239, %v3239
        %v3740 = vmul.f32 %v2240, %v3240
        %v3741 = vmul.f32 %v2241, %v3241
        %v3742 = vmul.f32 %v2242, %v3242
        %v3743 = vmul.f32 %v2243, %v3243
        %v3744 = vmul.f32 %v2244, %v3244
        %v3745 = vmul.f32 %v2245, %v3245
        %v3746 = vmul.f32 %v2246, %v3246
        %v3747 = vmul.f32 %v2247, %v3247
        %v3748 = vmul.f32 %v2248, %v3248
        %v3749 = vmul.f32 %v2249, %v3249
        %v3750 = vmul.f32 %v2250, %v3250
        %v3751 = vmul.f32 %v2251, %v3251
        %v3752 = vmul.f32 %v2252, %v3252
        %v3753 = vmul.f32 %v2253, %v3253
        %v3754 = vmul.f32 %v2254, %v3254
        %v3755 = vmul.f32 %v2255, %v3255
        %v3756 = vmul.f32 %v2256, %v3256
        %v3757 = vmul.f32 %v2257, %v3257
        %v3758 = vmul.f32 %v2258, %v3258
        %v3759 = vmul.f32 %v2259, %v3259
        %v3760 = vmul.f32 %v2260, %v3260
        %v3761 = vmul.f32 %v2261, %v3261
        %v3762 = vmul.f32 %v2262, %v3262
        %v3763 = vmul.f32 %v2263, %v3263
        %v3764 = vmul.f32 %v2264, %v3264
        %v3765 = vmul.f32 %v2265, %v3265
        %v3766 = vmul.f32 %v2266, %v3266
        %v3767 = vmul.f32 %v2267, %v3267
        %v3768 = vmul.f32 %v2268, %v3268
        %v3769 = vmul.f32 %v2269, %v3269
        %v3770 = vmul.f32 %v2270, %v3270
        %v3771 = vmul.f32 %v2271, %v3271
        %v3772 = vmul.f32 %v2272, %v3272
        %v3773 = vmul.f32 %v2273, %v3273
        %v3774 = vmul.f32 %v2274, %v3274
        %v3775 = vmul.f32 %v2275, %v3275
        %v3776 = vmul.f32 %v2276, %v3276
        %v3777 = vmul.f32 %v2277, %v3277
        %v3778 = vmul.f32 %v2278, %v3278
        %v3779 = vmul.f32 %v2279, %v3279
        %v3780 = vmul.f32 %v2280, %v3280
        %v3781 = vmul.f32 %v2281, %v3281
        %v3782 = vmul.f32 %v2282, %v3282
        %v3783 = vmul.f32 %v2283, %v3283
        %v3784 = vmul.f32 %v2284, %v3284
        %v3785 = vmul.f32 %v2285, %v3285
        %v3786 = vmul.f32 %v2286, %v3286
        %v3787 = vmul.f32 %v2287, %v3287
        %v3788 = vmul.f32 %v2288, %v3288
        %v3789 = vmul.f32 %v2289, %v3289
        %v3790 = vmul.f32 %v2290, %v3290
        %v3791 = vmul.f32 %v2291, %v3291
        %v3792 = vmul.f32 %v2292, %v3292
        %v3793 = vmul.f32 %v2293, %v3293
        %v3794 = vmul.f32 %v2294, %v3294
        %v3795 = vmul.f32 %v2295, %v3295
        %v3796 = vmul.f32 %v2296, %v3296
        %v3797 = vmul.f32 %v2297, %v3297
        %v3798 = vmul.f32 %v2298, %v3298
        %v3799 = vmul.f32 %v2299, %v3299
        %v3800 = vmul.f32 %v2300, %v3300
        %v3801 = vmul.f32 %v2301, %v3301
        %v3802 = vmul.f32 %v2302, %v3302
        %v3803 = vmul.f32 %v2303, %v3303
        %v3804 = vmul.f32 %v2304, %v3304
        %v3805 = vmul.f32 %v2305, %v3305
        %v3806 = vmul.f32 %v2306, %v3306
        %v3807 = vmul.f32 %v2307, %v3307
        %v3808 = vmul.f32 %v2308, %v3308
        %v3809 = vmul.f32 %v2309, %v3309
        %v3810 = vmul.f32 %v2310, %v3310
        %v3811 = vmul.f32 %v2311, %v3311
        %v3812 = vmul.f32 %v2312, %v3312
        %v3813 = vmul.f32 %v2313, %v3313
        %v3814 = vmul.f32 %v2314, %v3314
        %v3815 = vmul.f32 %v2315, %v3315
        %v3816 = vmul.f32 %v2316, %v3316
        %v3817 = vmul.f32 %v2317, %v3317
        %v3818 = vmul.f32 %v2318, %v3318
        %v3819 = vmul.f32 %v2319, %v3319
        %v3820 = vmul.f32 %v2320, %v3320
        %v3821 = vmul.f32 %v2321, %v3321
        %v3822 = vmul.f32 %v2322, %v3322
        %v3823 = vmul.f32 %v2323, %v3323
        %v3824 = vmul.f32 %v2324, %v3324
        %v3825 = vmul.f32 %v2325, %v3325
        %v3826 = vmul.f32 %v2326, %v3326
        %v3827 = vmul.f32 %v2327, %v3327
        %v3828 = vmul.f32 %v2328, %v3328
        %v3829 = vmul.f32 %v2329, %v3329
        %v3830 = vmul.f32 %v2330, %v3330
        %v3831 = vmul.f32 %v2331, %v3331
        %v3832 = vmul.f32 %v2332, %v3332
        %v3833 = vmul.f32 %v2333, %v3333
        %v3834 = vmul.f32 %v2334, %v3334
        %v3835 = vmul.f32 %v2335, %v3335
        %v3836 = vmul.f32 %v2336, %v3336
        %v3837 = vmul.f32 %v2337, %v3337
        %v3838 = vmul.f32 %v2338, %v3338
        %v3839 = vmul.f32 %v2339, %v3339
        %v3840 = vmul.f32 %v2340, %v3340
        %v3841 = vmul.f32 %v2341, %v3341
        %v3842 = vmul.f32 %v2342, %v3342
        %v3843 = vmul.f32 %v2343, %v3343
        %v3844 = vmul.f32 %v2344, %v3344
        %v3845 = vmul.f32 %v2345, %v3345
        %v3846 = vmul.f32 %v2346, %v3346
        %v3847 = vmul.f32 %v2347, %v3347
        %v3848 = vmul.f32 %v2348, %v3348
        %v3849 = vmul.f32 %v2349, %v3349
        %v3850 = vmul.f32 %v2350, %v3350
        %v3851 = vmul.f32 %v2351, %v3351
        %v3852 = vmul.f32 %v2352, %v3352
        %v3853 = vmul.f32 %v2353, %v3353
        %v3854 = vmul.f32 %v2354, %v3354
        %v3855 = vmul.f32 %v2355, %v3355
        %v3856 = vmul.f32 %v2356, %v3356
        %v3857 = vmul.f32 %v2357, %v3357
        %v3858 = vmul.f32 %v2358, %v3358
        %v3859 = vmul.f32 %v2359, %v3359
        %v3860 = vmul.f32 %v2360, %v3360
        %v3861 = vmul.f32 %v2361, %v3361
        %v3862 = vmul.f32 %v2362, %v3362
        %v3863 = vmul.f32 %v2363, %v3363
        %v3864 = vmul.f32 %v2364, %v3364
        %v3865 = vmul.f32 %v2365, %v3365
        %v3866 = vmul.f32 %v2366, %v3366
        %v3867 = vmul.f32 %v2367, %v3367
        %v3868 = vmul.f32 %v2368, %v3368
        %v3869 = vmul.f32 %v2369, %v3369
        %v3870 = vmul.f32 %v2370, %v3370
        %v3871 = vmul.f32 %v2371, %v3371
        %v3872 = vmul.f32 %v2372, %v3372
        %v3873 = vmul.f32 %v2373, %v3373
        %v3874 = vmul.f32 %v2374, %v3374
        %v3875 = vmul.f32 %v2375, %v3375
        %v3876 = vmul.f32 %v2376, %v3376
        %v3877 = vmul.f32 %v2377, %v3377
        %v3878 = vmul.f32 %v2378, %v3378
        %v3879 = vmul.f32 %v2379, %v3379
        %v3880 = vmul.f32 %v2380, %v3380
        %v3881 = vmul.f32 %v2381, %v3381
        %v3882 = vmul.f32 %v2382, %v3382
        %v3883 = vmul.f32 %v2383, %v3383
        %v3884 = vmul.f32 %v2384, %v3384
        %v3885 = vmul.f32 %v2385, %v3385
        %v3886 = vmul.f32 %v2386, %v3386
        %v3887 = vmul.f32 %v2387, %v3387
        %v3888 = vmul.f32 %v2388, %v3388
        %v3889 = vmul.f32 %v2389, %v3389
        %v3890 = vmul.f32 %v2390, %v3390
        %v3891 = vmul.f32 %v2391, %v3391
        %v3892 = vmul.f32 %v2392, %v3392
        %v3893 = vmul.f32 %v2393, %v3393
        %v3894 = vmul.f32 %v2394, %v3394
        %v3895 = vmul.f32 %v2395, %v3395
        %v3896 = vmul.f32 %v2396, %v3396
        %v3897 = vmul.f32 %v2397, %v3397
        %v3898 = vmul.f32 %v2398, %v3398
        %v3899 = vmul.f32 %v2399, %v3399
        %v3900 = vmul.f32 %v2400, %v3400
        %v3901 = vmul.f32 %v2401, %v3401
        %v3902 = vmul.f32 %v2402, %v3402
        %v3903 = vmul.f32 %v2403, %v3403
        %v3904 = vmul.f32 %v2404, %v3404
        %v3905 = vmul.f32 %v2405, %v3405
        %v3906 = vmul.f32 %v2406, %v3406
        %v3907 = vmul.f32 %v2407, %v3407
        %v3908 = vmul.f32 %v2408, %v3408
        %v3909 = vmul.f32 %v2409, %v3409
        %v3910 = vmul.f32 %v2410, %v3410
        %v3911 = vmul.f32 %v2411, %v3411
        %v3912 = vmul.f32 %v2412, %v3412
        %v3913 = vmul.f32 %v2413, %v3413
        %v3914 = vmul.f32 %v2414, %v3414
        %v3915 = vmul.f32 %v2415, %v3415
        %v3916 = vmul.f32 %v2416, %v3416
        %v3917 = vmul.f32 %v2417, %v3417
        %v3918 = vmul.f32 %v2418, %v3418
        %v3919 = vmul.f32 %v2419, %v3419
        %v3920 = vmul.f32 %v2420, %v3420
        %v3921 = vmul.f32 %v2421, %v3421
        %v3922 = vmul.f32 %v2422, %v3422
        %v3923 = vmul.f32 %v2423, %v3423
        %v3924 = vmul.f32 %v2424, %v3424
        %v3925 = vmul.f32 %v2425, %v3425
        %v3926 = vmul.f32 %v2426, %v3426
        %v3927 = vmul.f32 %v2427, %v3427
        %v3928 = vmul.f32 %v2428, %v3428
        %v3929 = vmul.f32 %v2429, %v3429
        %v3930 = vmul.f32 %v2430, %v3430
        %v3931 = vmul.f32 %v2431, %v3431
        %v3932 = vmul.f32 %v2432, %v3432
        %v3933 = vmul.f32 %v2433, %v3433
        %v3934 = vmul.f32 %v2434, %v3434
        %v3935 = vmul.f32 %v2435, %v3435
        %v3936 = vmul.f32 %v2436, %v3436
        %v3937 = vmul.f32 %v2437, %v3437
        %v3938 = vmul.f32 %v2438, %v3438
        %v3939 = vmul.f32 %v2439, %v3439
        %v3940 = vmul.f32 %v2440, %v3440
        %v3941 = vmul.f32 %v2441, %v3441
        %v3942 = vmul.f32 %v2442, %v3442
        %v3943 = vmul.f32 %v2443, %v3443
        %v3944 = vmul.f32 %v2444, %v3444
        %v3945 = vmul.f32 %v2445, %v3445
        %v3946 = vmul.f32 %v2446, %v3446
        %v3947 = vmul.f32 %v2447, %v3447
        %v3948 = vmul.f32 %v2448, %v3448
        %v3949 = vmul.f32 %v2449, %v3449
        %v3950 = vmul.f32 %v2450, %v3450
        %v3951 = vmul.f32 %v2451, %v3451
        %v3952 = vmul.f32 %v2452, %v3452
        %v3953 = vmul.f32 %v2453, %v3453
        %v3954 = vmul.f32 %v2454, %v3454
        %v3955 = vmul.f32 %v2455, %v3455
        %v3956 = vmul.f32 %v2456, %v3456
        %v3957 = vmul.f32 %v2457, %v3457
        %v3958 = vmul.f32 %v2458, %v3458
        %v3959 = vmul.f32 %v2459, %v3459
        %v3960 = vmul.f32 %v2460, %v3460
        %v3961 = vmul.f32 %v2461, %v3461
        %v3962 = vmul.f32 %v2462, %v3462
        %v3963 = vmul.f32 %v2463, %v3463
        %v3964 = vmul.f32 %v2464, %v3464
        %v3965 = vmul.f32 %v2465, %v3465
        %v3966 = vmul.f32 %v2466, %v3466
        %v3967 = vmul.f32 %v2467, %v3467
        %v3968 = vmul.f32 %v2468, %v3468
        %v3969 = vmul.f32 %v2469, %v3469
        %v3970 = vmul.f32 %v2470, %v3470
        %v3971 = vmul.f32 %v2471, %v3471
        %v3972 = vmul.f32 %v2472, %v3472
        %v3973 = vmul.f32 %v2473, %v3473
        %v3974 = vmul.f32 %v2474, %v3474
        %v3975 = vmul.f32 %v2475, %v3475
        %v3976 = vmul.f32 %v2476, %v3476
        %v3977 = vmul.f32 %v2477, %v3477
        %v3978 = vmul.f32 %v2478, %v3478
        %v3979 = vmul.f32 %v2479, %v3479
        %v3980 = vmul.f32 %v2480, %v3480
        %v3981 = vmul.f32 %v2481, %v3481
        %v3982 = vmul.f32 %v2482, %v3482
        %v3983 = vmul.f32 %v2483, %v3483
        %v3984 = vmul.f32 %v2484, %v3484
        %v3985 = vmul.f32 %v2485, %v3485
        %v3986 = vmul.f32 %v2486, %v3486
        %v3987 = vmul.f32 %v2487, %v3487
        %v3988 = vmul.f32 %v2488, %v3488
        %v3989 = vmul.f32 %v2489, %v3489
        %v3990 = vmul.f32 %v2490, %v3490
        %v3991 = vmul.f32 %v2491, %v3491
        %v3992 = vmul.f32 %v2492, %v3492
        %v3993 = vmul.f32 %v2493, %v3493
        %v3994 = vmul.f32 %v2494, %v3494
        %v3995 = vmul.f32 %v2495, %v3495
        %v3996 = vmul.f32 %v2496, %v3496
        %v3997 = vmul.f32 %v2497, %v3497
        %v3998 = vld [vmem:[#allocation2] sm:$0xff]
        %v3999 = vld [vmem:[#allocation2 + $0x8] sm:$0x3]
        %v4000 = vadd.f32 %v3498, %v3508
        %v4001 = vadd.f32 %v4000, %v3518
        %v4002 = vadd.f32 %v4001, %v3528
        %v4003 = vadd.f32 %v4002, %v3538
        %v4004 = vadd.f32 %v4003, %v3548
        %v4005 = vadd.f32 %v4004, %v3558
        %v4006 = vadd.f32 %v4005, %v3568
        %v4007 = vadd.f32 %v4006, %v3578
        %v4008 = vadd.f32 %v4007, %v3588
        %v4009 = vadd.f32 %v4008, %v3598
        %v4010 = vadd.f32 %v4009, %v3608
        %v4011 = vadd.f32 %v4010, %v3618
        %v4012 = vadd.f32 %v4011, %v3628
        %v4013 = vadd.f32 %v4012, %v3638
        %v4014 = vadd.f32 %v4013, %v3648
        %v4015 = vadd.f32 %v4014, %v3658
        %v4016 = vadd.f32 %v4015, %v3668
        %v4017 = vadd.f32 %v4016, %v3678
        %v4018 = vadd.f32 %v4017, %v3688
        %v4019 = vadd.f32 %v4018, %v3698
        %v4020 = vadd.f32 %v4019, %v3708
        %v4021 = vadd.f32 %v4020, %v3718
        %v4022 = vadd.f32 %v4021, %v3728
        %v4023 = vadd.f32 %v4022, %v3738
        %v4024 = vadd.f32 %v4023, %v3748
        %v4025 = vadd.f32 %v4024, %v3758
        %v4026 = vadd.f32 %v4025, %v3768
        %v4027 = vadd.f32 %v4026, %v3778
        %v4028 = vadd.f32 %v4027, %v3788
        %v4029 = vadd.f32 %v4028, %v3798
        %v4030 = vadd.f32 %v4029, %v3808
        %v4031 = vadd.f32 %v4030, %v3818
        %v4032 = vadd.f32 %v4031, %v3828
        %v4033 = vadd.f32 %v4032, %v3838
        %v4034 = vadd.f32 %v4033, %v3848
        %v4035 = vadd.f32 %v4034, %v3858
        %v4036 = vadd.f32 %v4035, %v3868
        %v4037 = vadd.f32 %v4036, %v3878
        %v4038 = vadd.f32 %v4037, %v3888
        %v4039 = vadd.f32 %v4038, %v3898
        %v4040 = vadd.f32 %v4039, %v3908
        %v4041 = vadd.f32 %v4040, %v3918
        %v4042 = vadd.f32 %v4041, %v3928
        %v4043 = vadd.f32 %v4042, %v3938
        %v4044 = vadd.f32 %v4043, %v3948
        %v4045 = vadd.f32 %v4044, %v3958
        %v4046 = vadd.f32 %v4045, %v3968
        %v4047 = vadd.f32 %v4046, %v3978
        %v4048 = vadd.f32 %v4047, %v3988
        %v4049 = vrot.slane %v4048, 4
        %v4050 = vadd.f32 %v4048, %v4049
        %v4051 = vrot.slane %v4050, 2
        %v4052 = vadd.f32 %v4050, %v4051
        %v4053 = vrot.slane %v4052, 1
        %v4054 = vadd.f32 %v4052, %v4053
        %v4055 = vadd.f32 %v3499, %v3509
        %v4056 = vadd.f32 %v4055, %v3519
        %v4057 = vadd.f32 %v4056, %v3529
        %v4058 = vadd.f32 %v4057, %v3539
        %v4059 = vadd.f32 %v4058, %v3549
        %v4060 = vadd.f32 %v4059, %v3559
        %v4061 = vadd.f32 %v4060, %v3569
        %v4062 = vadd.f32 %v4061, %v3579
        %v4063 = vadd.f32 %v4062, %v3589
        %v4064 = vadd.f32 %v4063, %v3599
        %v4065 = vadd.f32 %v4064, %v3609
        %v4066 = vadd.f32 %v4065, %v3619
        %v4067 = vadd.f32 %v4066, %v3629
        %v4068 = vadd.f32 %v4067, %v3639
        %v4069 = vadd.f32 %v4068, %v3649
        %v4070 = vadd.f32 %v4069, %v3659
        %v4071 = vadd.f32 %v4070, %v3669
        %v4072 = vadd.f32 %v4071, %v3679
        %v4073 = vadd.f32 %v4072, %v3689
        %v4074 = vadd.f32 %v4073, %v3699
        %v4075 = vadd.f32 %v4074, %v3709
        %v4076 = vadd.f32 %v4075, %v3719
        %v4077 = vadd.f32 %v4076, %v3729
        %v4078 = vadd.f32 %v4077, %v3739
        %v4079 = vadd.f32 %v4078, %v3749
        %v4080 = vadd.f32 %v4079, %v3759
        %v4081 = vadd.f32 %v4080, %v3769
        %v4082 = vadd.f32 %v4081, %v3779
        %v4083 = vadd.f32 %v4082, %v3789
        %v4084 = vadd.f32 %v4083, %v3799
        %v4085 = vadd.f32 %v4084, %v3809
        %v4086 = vadd.f32 %v4085, %v3819
        %v4087 = vadd.f32 %v4086, %v3829
        %v4088 = vadd.f32 %v4087, %v3839
        %v4089 = vadd.f32 %v4088, %v3849
        %v4090 = vadd.f32 %v4089, %v3859
        %v4091 = vadd.f32 %v4090, %v3869
        %v4092 = vadd.f32 %v4091, %v3879
        %v4093 = vadd.f32 %v4092, %v3889
        %v4094 = vadd.f32 %v4093, %v3899
        %v4095 = vadd.f32 %v4094, %v3909
        %v4096 = vadd.f32 %v4095, %v3919
        %v4097 = vadd.f32 %v4096, %v3929
        %v4098 = vadd.f32 %v4097, %v3939
        %v4099 = vadd.f32 %v4098, %v3949
        %v4100 = vadd.f32 %v4099, %v3959
        %v4101 = vadd.f32 %v4100, %v3969
        %v4102 = vadd.f32 %v4101, %v3979
        %v4103 = vadd.f32 %v4102, %v3989
        %v4104 = vrot.slane %v4103, 4
        %v4105 = vadd.f32 %v4103, %v4104
        %v4106 = vrot.slane %v4105, 2
        %v4107 = vadd.f32 %v4105, %v4106
        %v4108 = vrot.slane %v4107, 1
        %v4109 = vadd.f32 %v4107, %v4108
        %v4110 = vadd.f32 %v3500, %v3510
        %v4111 = vadd.f32 %v4110, %v3520
        %v4112 = vadd.f32 %v4111, %v3530
        %v4113 = vadd.f32 %v4112, %v3540
        %v4114 = vadd.f32 %v4113, %v3550
        %v4115 = vadd.f32 %v4114, %v3560
        %v4116 = vadd.f32 %v4115, %v3570
        %v4117 = vadd.f32 %v4116, %v3580
        %v4118 = vadd.f32 %v4117, %v3590
        %v4119 = vadd.f32 %v4118, %v3600
        %v4120 = vadd.f32 %v4119, %v3610
        %v4121 = vadd.f32 %v4120, %v3620
        %v4122 = vadd.f32 %v4121, %v3630
        %v4123 = vadd.f32 %v4122, %v3640
        %v4124 = vadd.f32 %v4123, %v3650
        %v4125 = vadd.f32 %v4124, %v3660
        %v4126 = vadd.f32 %v4125, %v3670
        %v4127 = vadd.f32 %v4126, %v3680
        %v4128 = vadd.f32 %v4127, %v3690
        %v4129 = vadd.f32 %v4128, %v3700
        %v4130 = vadd.f32 %v4129, %v3710
        %v4131 = vadd.f32 %v4130, %v3720
        %v4132 = vadd.f32 %v4131, %v3730
        %v4133 = vadd.f32 %v4132, %v3740
        %v4134 = vadd.f32 %v4133, %v3750
        %v4135 = vadd.f32 %v4134, %v3760
        %v4136 = vadd.f32 %v4135, %v3770
        %v4137 = vadd.f32 %v4136, %v3780
        %v4138 = vadd.f32 %v4137, %v3790
        %v4139 = vadd.f32 %v4138, %v3800
        %v4140 = vadd.f32 %v4139, %v3810
        %v4141 = vadd.f32 %v4140, %v3820
        %v4142 = vadd.f32 %v4141, %v3830
        %v4143 = vadd.f32 %v4142, %v3840
        %v4144 = vadd.f32 %v4143, %v3850
        %v4145 = vadd.f32 %v4144, %v3860
        %v4146 = vadd.f32 %v4145, %v3870
        %v4147 = vadd.f32 %v4146, %v3880
        %v4148 = vadd.f32 %v4147, %v3890
        %v4149 = vadd.f32 %v4148, %v3900
        %v4150 = vadd.f32 %v4149, %v3910
        %v4151 = vadd.f32 %v4150, %v3920
        %v4152 = vadd.f32 %v4151, %v3930
        %v4153 = vadd.f32 %v4152, %v3940
        %v4154 = vadd.f32 %v4153, %v3950
        %v4155 = vadd.f32 %v4154, %v3960
        %v4156 = vadd.f32 %v4155, %v3970
        %v4157 = vadd.f32 %v4156, %v3980
        %v4158 = vadd.f32 %v4157, %v3990
        %v4159 = vrot.slane %v4158, 4
        %v4160 = vadd.f32 %v4158, %v4159
        %v4161 = vrot.slane %v4160, 2
        %v4162 = vadd.f32 %v4160, %v4161
        %v4163 = vrot.slane %v4162, 1
        %v4164 = vadd.f32 %v4162, %v4163
        %v4165 = vadd.f32 %v3501, %v3511
        %v4166 = vadd.f32 %v4165, %v3521
        %v4167 = vadd.f32 %v4166, %v3531
        %v4168 = vadd.f32 %v4167, %v3541
        %v4169 = vadd.f32 %v4168, %v3551
        %v4170 = vadd.f32 %v4169, %v3561
        %v4171 = vadd.f32 %v4170, %v3571
        %v4172 = vadd.f32 %v4171, %v3581
        %v4173 = vadd.f32 %v4172, %v3591
        %v4174 = vadd.f32 %v4173, %v3601
        %v4175 = vadd.f32 %v4174, %v3611
        %v4176 = vadd.f32 %v4175, %v3621
        %v4177 = vadd.f32 %v4176, %v3631
        %v4178 = vadd.f32 %v4177, %v3641
        %v4179 = vadd.f32 %v4178, %v3651
        %v4180 = vadd.f32 %v4179, %v3661
        %v4181 = vadd.f32 %v4180, %v3671
        %v4182 = vadd.f32 %v4181, %v3681
        %v4183 = vadd.f32 %v4182, %v3691
        %v4184 = vadd.f32 %v4183, %v3701
        %v4185 = vadd.f32 %v4184, %v3711
        %v4186 = vadd.f32 %v4185, %v3721
        %v4187 = vadd.f32 %v4186, %v3731
        %v4188 = vadd.f32 %v4187, %v3741
        %v4189 = vadd.f32 %v4188, %v3751
        %v4190 = vadd.f32 %v4189, %v3761
        %v4191 = vadd.f32 %v4190, %v3771
        %v4192 = vadd.f32 %v4191, %v3781
        %v4193 = vadd.f32 %v4192, %v3791
        %v4194 = vadd.f32 %v4193, %v3801
        %v4195 = vadd.f32 %v4194, %v3811
        %v4196 = vadd.f32 %v4195, %v3821
        %v4197 = vadd.f32 %v4196, %v3831
        %v4198 = vadd.f32 %v4197, %v3841
        %v4199 = vadd.f32 %v4198, %v3851
        %v4200 = vadd.f32 %v4199, %v3861
        %v4201 = vadd.f32 %v4200, %v3871
        %v4202 = vadd.f32 %v4201, %v3881
        %v4203 = vadd.f32 %v4202, %v3891
        %v4204 = vadd.f32 %v4203, %v3901
        %v4205 = vadd.f32 %v4204, %v3911
        %v4206 = vadd.f32 %v4205, %v3921
        %v4207 = vadd.f32 %v4206, %v3931
        %v4208 = vadd.f32 %v4207, %v3941
        %v4209 = vadd.f32 %v4208, %v3951
        %v4210 = vadd.f32 %v4209, %v3961
        %v4211 = vadd.f32 %v4210, %v3971
        %v4212 = vadd.f32 %v4211, %v3981
        %v4213 = vadd.f32 %v4212, %v3991
        %v4214 = vrot.slane %v4213, 4
        %v4215 = vadd.f32 %v4213, %v4214
        %v4216 = vrot.slane %v4215, 2
        %v4217 = vadd.f32 %v4215, %v4216
        %v4218 = vrot.slane %v4217, 1
        %v4219 = vadd.f32 %v4217, %v4218
        %v4220 = vadd.f32 %v3502, %v3512
        %v4221 = vadd.f32 %v4220, %v3522
        %v4222 = vadd.f32 %v4221, %v3532
        %v4223 = vadd.f32 %v4222, %v3542
        %v4224 = vadd.f32 %v4223, %v3552
        %v4225 = vadd.f32 %v4224, %v3562
        %v4226 = vadd.f32 %v4225, %v3572
        %v4227 = vadd.f32 %v4226, %v3582
        %v4228 = vadd.f32 %v4227, %v3592
        %v4229 = vadd.f32 %v4228, %v3602
        %v4230 = vadd.f32 %v4229, %v3612
        %v4231 = vadd.f32 %v4230, %v3622
        %v4232 = vadd.f32 %v4231, %v3632
        %v4233 = vadd.f32 %v4232, %v3642
        %v4234 = vadd.f32 %v4233, %v3652
        %v4235 = vadd.f32 %v4234, %v3662
        %v4236 = vadd.f32 %v4235, %v3672
        %v4237 = vadd.f32 %v4236, %v3682
        %v4238 = vadd.f32 %v4237, %v3692
        %v4239 = vadd.f32 %v4238, %v3702
        %v4240 = vadd.f32 %v4239, %v3712
        %v4241 = vadd.f32 %v4240, %v3722
        %v4242 = vadd.f32 %v4241, %v3732
        %v4243 = vadd.f32 %v4242, %v3742
        %v4244 = vadd.f32 %v4243, %v3752
        %v4245 = vadd.f32 %v4244, %v3762
        %v4246 = vadd.f32 %v4245, %v3772
        %v4247 = vadd.f32 %v4246, %v3782
        %v4248 = vadd.f32 %v4247, %v3792
        %v4249 = vadd.f32 %v4248, %v3802
        %v4250 = vadd.f32 %v4249, %v3812
        %v4251 = vadd.f32 %v4250, %v3822
        %v4252 = vadd.f32 %v4251, %v3832
        %v4253 = vadd.f32 %v4252, %v3842
        %v4254 = vadd.f32 %v4253, %v3852
        %v4255 = vadd.f32 %v4254, %v3862
        %v4256 = vadd.f32 %v4255, %v3872
        %v4257 = vadd.f32 %v4256, %v3882
        %v4258 = vadd.f32 %v4257, %v3892
        %v4259 = vadd.f32 %v4258, %v3902
        %v4260 = vadd.f32 %v4259, %v3912
        %v4261 = vadd.f32 %v4260, %v3922
        %v4262 = vadd.f32 %v4261, %v3932
        %v4263 = vadd.f32 %v4262, %v3942
        %v4264 = vadd.f32 %v4263, %v3952
        %v4265 = vadd.f32 %v4264, %v3962
        %v4266 = vadd.f32 %v4265, %v3972
        %v4267 = vadd.f32 %v4266, %v3982
        %v4268 = vadd.f32 %v4267, %v3992
        %v4269 = vrot.slane %v4268, 4
        %v4270 = vadd.f32 %v4268, %v4269
        %v4271 = vrot.slane %v4270, 2
        %v4272 = vadd.f32 %v4270, %v4271
        %v4273 = vrot.slane %v4272, 1
        %v4274 = vadd.f32 %v4272, %v4273
        %v4275 = vadd.f32 %v3503, %v3513
        %v4276 = vadd.f32 %v4275, %v3523
        %v4277 = vadd.f32 %v4276, %v3533
        %v4278 = vadd.f32 %v4277, %v3543
        %v4279 = vadd.f32 %v4278, %v3553
        %v4280 = vadd.f32 %v4279, %v3563
        %v4281 = vadd.f32 %v4280, %v3573
        %v4282 = vadd.f32 %v4281, %v3583
        %v4283 = vadd.f32 %v4282, %v3593
        %v4284 = vadd.f32 %v4283, %v3603
        %v4285 = vadd.f32 %v4284, %v3613
        %v4286 = vadd.f32 %v4285, %v3623
        %v4287 = vadd.f32 %v4286, %v3633
        %v4288 = vadd.f32 %v4287, %v3643
        %v4289 = vadd.f32 %v4288, %v3653
        %v4290 = vadd.f32 %v4289, %v3663
        %v4291 = vadd.f32 %v4290, %v3673
        %v4292 = vadd.f32 %v4291, %v3683
        %v4293 = vadd.f32 %v4292, %v3693
        %v4294 = vadd.f32 %v4293, %v3703
        %v4295 = vadd.f32 %v4294, %v3713
        %v4296 = vadd.f32 %v4295, %v3723
        %v4297 = vadd.f32 %v4296, %v3733
        %v4298 = vadd.f32 %v4297, %v3743
        %v4299 = vadd.f32 %v4298, %v3753
        %v4300 = vadd.f32 %v4299, %v3763
        %v4301 = vadd.f32 %v4300, %v3773
        %v4302 = vadd.f32 %v4301, %v3783
        %v4303 = vadd.f32 %v4302, %v3793
        %v4304 = vadd.f32 %v4303, %v3803
        %v4305 = vadd.f32 %v4304, %v3813
        %v4306 = vadd.f32 %v4305, %v3823
        %v4307 = vadd.f32 %v4306, %v3833
        %v4308 = vadd.f32 %v4307, %v3843
        %v4309 = vadd.f32 %v4308, %v3853
        %v4310 = vadd.f32 %v4309, %v3863
        %v4311 = vadd.f32 %v4310, %v3873
        %v4312 = vadd.f32 %v4311, %v3883
        %v4313 = vadd.f32 %v4312, %v3893
        %v4314 = vadd.f32 %v4313, %v3903
        %v4315 = vadd.f32 %v4314, %v3913
        %v4316 = vadd.f32 %v4315, %v3923
        %v4317 = vadd.f32 %v4316, %v3933
        %v4318 = vadd.f32 %v4317, %v3943
        %v4319 = vadd.f32 %v4318, %v3953
        %v4320 = vadd.f32 %v4319, %v3963
        %v4321 = vadd.f32 %v4320, %v3973
        %v4322 = vadd.f32 %v4321, %v3983
        %v4323 = vadd.f32 %v4322, %v3993
        %v4324 = vrot.slane %v4323, 4
        %v4325 = vadd.f32 %v4323, %v4324
        %v4326 = vrot.slane %v4325, 2
        %v4327 = vadd.f32 %v4325, %v4326
        %v4328 = vrot.slane %v4327, 1
        %v4329 = vadd.f32 %v4327, %v4328
        %v4330 = vadd.f32 %v3504, %v3514
        %v4331 = vadd.f32 %v4330, %v3524
        %v4332 = vadd.f32 %v4331, %v3534
        %v4333 = vadd.f32 %v4332, %v3544
        %v4334 = vadd.f32 %v4333, %v3554
        %v4335 = vadd.f32 %v4334, %v3564
        %v4336 = vadd.f32 %v4335, %v3574
        %v4337 = vadd.f32 %v4336, %v3584
        %v4338 = vadd.f32 %v4337, %v3594
        %v4339 = vadd.f32 %v4338, %v3604
        %v4340 = vadd.f32 %v4339, %v3614
        %v4341 = vadd.f32 %v4340, %v3624
        %v4342 = vadd.f32 %v4341, %v3634
        %v4343 = vadd.f32 %v4342, %v3644
        %v4344 = vadd.f32 %v4343, %v3654
        %v4345 = vadd.f32 %v4344, %v3664
        %v4346 = vadd.f32 %v4345, %v3674
        %v4347 = vadd.f32 %v4346, %v3684
        %v4348 = vadd.f32 %v4347, %v3694
        %v4349 = vadd.f32 %v4348, %v3704
        %v4350 = vadd.f32 %v4349, %v3714
        %v4351 = vadd.f32 %v4350, %v3724
        %v4352 = vadd.f32 %v4351, %v3734
        %v4353 = vadd.f32 %v4352, %v3744
        %v4354 = vadd.f32 %v4353, %v3754
        %v4355 = vadd.f32 %v4354, %v3764
        %v4356 = vadd.f32 %v4355, %v3774
        %v4357 = vadd.f32 %v4356, %v3784
        %v4358 = vadd.f32 %v4357, %v3794
        %v4359 = vadd.f32 %v4358, %v3804
        %v4360 = vadd.f32 %v4359, %v3814
        %v4361 = vadd.f32 %v4360, %v3824
        %v4362 = vadd.f32 %v4361, %v3834
        %v4363 = vadd.f32 %v4362, %v3844
        %v4364 = vadd.f32 %v4363, %v3854
        %v4365 = vadd.f32 %v4364, %v3864
        %v4366 = vadd.f32 %v4365, %v3874
        %v4367 = vadd.f32 %v4366, %v3884
        %v4368 = vadd.f32 %v4367, %v3894
        %v4369 = vadd.f32 %v4368, %v3904
        %v4370 = vadd.f32 %v4369, %v3914
        %v4371 = vadd.f32 %v4370, %v3924
        %v4372 = vadd.f32 %v4371, %v3934
        %v4373 = vadd.f32 %v4372, %v3944
        %v4374 = vadd.f32 %v4373, %v3954
        %v4375 = vadd.f32 %v4374, %v3964
        %v4376 = vadd.f32 %v4375, %v3974
        %v4377 = vadd.f32 %v4376, %v3984
        %v4378 = vadd.f32 %v4377, %v3994
        %v4379 = vrot.slane %v4378, 4
        %v4380 = vadd.f32 %v4378, %v4379
        %v4381 = vrot.slane %v4380, 2
        %v4382 = vadd.f32 %v4380, %v4381
        %v4383 = vrot.slane %v4382, 1
        %v4384 = vadd.f32 %v4382, %v4383
        %v4385 = vadd.f32 %v3505, %v3515
        %v4386 = vadd.f32 %v4385, %v3525
        %v4387 = vadd.f32 %v4386, %v3535
        %v4388 = vadd.f32 %v4387, %v3545
        %v4389 = vadd.f32 %v4388, %v3555
        %v4390 = vadd.f32 %v4389, %v3565
        %v4391 = vadd.f32 %v4390, %v3575
        %v4392 = vadd.f32 %v4391, %v3585
        %v4393 = vadd.f32 %v4392, %v3595
        %v4394 = vadd.f32 %v4393, %v3605
        %v4395 = vadd.f32 %v4394, %v3615
        %v4396 = vadd.f32 %v4395, %v3625
        %v4397 = vadd.f32 %v4396, %v3635
        %v4398 = vadd.f32 %v4397, %v3645
        %v4399 = vadd.f32 %v4398, %v3655
        %v4400 = vadd.f32 %v4399, %v3665
        %v4401 = vadd.f32 %v4400, %v3675
        %v4402 = vadd.f32 %v4401, %v3685
        %v4403 = vadd.f32 %v4402, %v3695
        %v4404 = vadd.f32 %v4403, %v3705
        %v4405 = vadd.f32 %v4404, %v3715
        %v4406 = vadd.f32 %v4405, %v3725
        %v4407 = vadd.f32 %v4406, %v3735
        %v4408 = vadd.f32 %v4407, %v3745
        %v4409 = vadd.f32 %v4408, %v3755
        %v4410 = vadd.f32 %v4409, %v3765
        %v4411 = vadd.f32 %v4410, %v3775
        %v4412 = vadd.f32 %v4411, %v3785
        %v4413 = vadd.f32 %v4412, %v3795
        %v4414 = vadd.f32 %v4413, %v3805
        %v4415 = vadd.f32 %v4414, %v3815
        %v4416 = vadd.f32 %v4415, %v3825
        %v4417 = vadd.f32 %v4416, %v3835
        %v4418 = vadd.f32 %v4417, %v3845
        %v4419 = vadd.f32 %v4418, %v3855
        %v4420 = vadd.f32 %v4419, %v3865
        %v4421 = vadd.f32 %v4420, %v3875
        %v4422 = vadd.f32 %v4421, %v3885
        %v4423 = vadd.f32 %v4422, %v3895
        %v4424 = vadd.f32 %v4423, %v3905
        %v4425 = vadd.f32 %v4424, %v3915
        %v4426 = vadd.f32 %v4425, %v3925
        %v4427 = vadd.f32 %v4426, %v3935
        %v4428 = vadd.f32 %v4427, %v3945
        %v4429 = vadd.f32 %v4428, %v3955
        %v4430 = vadd.f32 %v4429, %v3965
        %v4431 = vadd.f32 %v4430, %v3975
        %v4432 = vadd.f32 %v4431, %v3985
        %v4433 = vadd.f32 %v4432, %v3995
        %v4434 = vrot.slane %v4433, 4
        %v4435 = vadd.f32 %v4433, %v4434
        %v4436 = vrot.slane %v4435, 2
        %v4437 = vadd.f32 %v4435, %v4436
        %v4438 = vrot.slane %v4437, 1
        %v4439 = vadd.f32 %v4437, %v4438
        %v4440 = vadd.f32 %v3506, %v3516
        %v4441 = vadd.f32 %v4440, %v3526
        %v4442 = vadd.f32 %v4441, %v3536
        %v4443 = vadd.f32 %v4442, %v3546
        %v4444 = vadd.f32 %v4443, %v3556
        %v4445 = vadd.f32 %v4444, %v3566
        %v4446 = vadd.f32 %v4445, %v3576
        %v4447 = vadd.f32 %v4446, %v3586
        %v4448 = vadd.f32 %v4447, %v3596
        %v4449 = vadd.f32 %v4448, %v3606
        %v4450 = vadd.f32 %v4449, %v3616
        %v4451 = vadd.f32 %v4450, %v3626
        %v4452 = vadd.f32 %v4451, %v3636
        %v4453 = vadd.f32 %v4452, %v3646
        %v4454 = vadd.f32 %v4453, %v3656
        %v4455 = vadd.f32 %v4454, %v3666
        %v4456 = vadd.f32 %v4455, %v3676
        %v4457 = vadd.f32 %v4456, %v3686
        %v4458 = vadd.f32 %v4457, %v3696
        %v4459 = vadd.f32 %v4458, %v3706
        %v4460 = vadd.f32 %v4459, %v3716
        %v4461 = vadd.f32 %v4460, %v3726
        %v4462 = vadd.f32 %v4461, %v3736
        %v4463 = vadd.f32 %v4462, %v3746
        %v4464 = vadd.f32 %v4463, %v3756
        %v4465 = vadd.f32 %v4464, %v3766
        %v4466 = vadd.f32 %v4465, %v3776
        %v4467 = vadd.f32 %v4466, %v3786
        %v4468 = vadd.f32 %v4467, %v3796
        %v4469 = vadd.f32 %v4468, %v3806
        %v4470 = vadd.f32 %v4469, %v3816
        %v4471 = vadd.f32 %v4470, %v3826
        %v4472 = vadd.f32 %v4471, %v3836
        %v4473 = vadd.f32 %v4472, %v3846
        %v4474 = vadd.f32 %v4473, %v3856
        %v4475 = vadd.f32 %v4474, %v3866
        %v4476 = vadd.f32 %v4475, %v3876
        %v4477 = vadd.f32 %v4476, %v3886
        %v4478 = vadd.f32 %v4477, %v3896
        %v4479 = vadd.f32 %v4478, %v3906
        %v4480 = vadd.f32 %v4479, %v3916
        %v4481 = vadd.f32 %v4480, %v3926
        %v4482 = vadd.f32 %v4481, %v3936
        %v4483 = vadd.f32 %v4482, %v3946
        %v4484 = vadd.f32 %v4483, %v3956
        %v4485 = vadd.f32 %v4484, %v3966
        %v4486 = vadd.f32 %v4485, %v3976
        %v4487 = vadd.f32 %v4486, %v3986
        %v4488 = vadd.f32 %v4487, %v3996
        %v4489 = vrot.slane %v4488, 4
        %v4490 = vadd.f32 %v4488, %v4489
        %v4491 = vrot.slane %v4490, 2
        %v4492 = vadd.f32 %v4490, %v4491
        %v4493 = vrot.slane %v4492, 1
        %v4494 = vadd.f32 %v4492, %v4493
        %v4495 = vadd.f32 %v3507, %v3517
        %v4496 = vadd.f32 %v4495, %v3527
        %v4497 = vadd.f32 %v4496, %v3537
        %v4498 = vadd.f32 %v4497, %v3547
        %v4499 = vadd.f32 %v4498, %v3557
        %v4500 = vadd.f32 %v4499, %v3567
        %v4501 = vadd.f32 %v4500, %v3577
        %v4502 = vadd.f32 %v4501, %v3587
        %v4503 = vadd.f32 %v4502, %v3597
        %v4504 = vadd.f32 %v4503, %v3607
        %v4505 = vadd.f32 %v4504, %v3617
        %v4506 = vadd.f32 %v4505, %v3627
        %v4507 = vadd.f32 %v4506, %v3637
        %v4508 = vadd.f32 %v4507, %v3647
        %v4509 = vadd.f32 %v4508, %v3657
        %v4510 = vadd.f32 %v4509, %v3667
        %v4511 = vadd.f32 %v4510, %v3677
        %v4512 = vadd.f32 %v4511, %v3687
        %v4513 = vadd.f32 %v4512, %v3697
        %v4514 = vadd.f32 %v4513, %v3707
        %v4515 = vadd.f32 %v4514, %v3717
        %v4516 = vadd.f32 %v4515, %v3727
        %v4517 = vadd.f32 %v4516, %v3737
        %v4518 = vadd.f32 %v4517, %v3747
        %v4519 = vadd.f32 %v4518, %v3757
        %v4520 = vadd.f32 %v4519, %v3767
        %v4521 = vadd.f32 %v4520, %v3777
        %v4522 = vadd.f32 %v4521, %v3787
        %v4523 = vadd.f32 %v4522, %v3797
        %v4524 = vadd.f32 %v4523, %v3807
        %v4525 = vadd.f32 %v4524, %v3817
        %v4526 = vadd.f32 %v4525, %v3827
        %v4527 = vadd.f32 %v4526, %v3837
        %v4528 = vadd.f32 %v4527, %v3847
        %v4529 = vadd.f32 %v4528, %v3857
        %v4530 = vadd.f32 %v4529, %v3867
        %v4531 = vadd.f32 %v4530, %v3877
        %v4532 = vadd.f32 %v4531, %v3887
        %v4533 = vadd.f32 %v4532, %v3897
        %v4534 = vadd.f32 %v4533, %v3907
        %v4535 = vadd.f32 %v4534, %v3917
        %v4536 = vadd.f32 %v4535, %v3927
        %v4537 = vadd.f32 %v4536, %v3937
        %v4538 = vadd.f32 %v4537, %v3947
        %v4539 = vadd.f32 %v4538, %v3957
        %v4540 = vadd.f32 %v4539, %v3967
        %v4541 = vadd.f32 %v4540, %v3977
        %v4542 = vadd.f32 %v4541, %v3987
        %v4543 = vadd.f32 %v4542, %v3997
        %v4544 = vrot.slane %v4543, 4
        %v4545 = vadd.f32 %v4543, %v4544
        %v4546 = vrot.slane %v4545, 2
        %v4547 = vadd.f32 %v4545, %v4546
        %v4548 = vrot.slane %v4547, 1
        %v4549 = vadd.f32 %v4547, %v4548
        %v4560 = vcombine.low %v4054, %v4109
        %v4561 = vcombine.low %v4164, %v4219
        %v4562 = vcombine.low %v4274, %v4329
        %v4563 = vcombine.low %v4384, %v4439
        %v4565 = vunpack.c.l.s4 1966171168
        %v4566 = vunpack.c.0.s8 %v4565
        %v4567 = vlaneseq
        %v4568 = vshrl.u32 %v4567, 7
        %v4569 = vsub.s32 %v4566, %v4568
        %v4570 = vrot.slane %v4560, %v4569
        %v4572 = vunpack.c.l.s4 1966171168
        %v4573 = vunpack.c.0.s8 %v4572
        %v4574 = vlaneseq
        %v4575 = vshrl.u32 %v4574, 7
        %v4576 = vsub.s32 %v4573, %v4575
        %v4577 = vrot.slane %v4561, %v4576
        %v4579 = vunpack.c.l.s4 1966171168
        %v4580 = vunpack.c.0.s8 %v4579
        %v4581 = vlaneseq
        %v4582 = vshrl.u32 %v4581, 7
        %v4583 = vsub.s32 %v4580, %v4582
        %v4584 = vrot.slane %v4562, %v4583
        %v4586 = vunpack.c.l.s4 1966171168
        %v4587 = vunpack.c.0.s8 %v4586
        %v4588 = vlaneseq
        %v4589 = vshrl.u32 %v4588, 7
        %v4590 = vsub.s32 %v4587, %v4589
        %v4591 = vrot.slane %v4563, %v4590
        %v4592 = vcombine.low %v4570, %v4577
        %v4593 = vcombine.low %v4584, %v4591
        %v4595 = vunpack.c.l.s4 1966171168
        %v4596 = vunpack.c.0.s8 %v4595
        %v4597 = vlaneseq
        %v4598 = vshrl.u32 %v4597, 7
        %v4599 = vsub.s32 %v4596, %v4598
        %v4600 = vrot.slane %v4592, %v4599
        %v4602 = vunpack.c.l.s4 1966171168
        %v4603 = vunpack.c.0.s8 %v4602
        %v4604 = vlaneseq
        %v4605 = vshrl.u32 %v4604, 7
        %v4606 = vsub.s32 %v4603, %v4605
        %v4607 = vrot.slane %v4593, %v4606
        %v4608 = vcombine.low %v4600, %v4607
        %v4609 = vcombine.low %v4494, %v4549
        %v4611 = vunpack.c.l.s4 1966171168
        %v4612 = vunpack.c.0.s8 %v4611
        %v4613 = vlaneseq
        %v4614 = vshrl.u32 %v4613, 7
        %v4615 = vsub.s32 %v4612, %v4614
        %v4616 = vrot.slane %v4609, %v4615
        %v4618 = vunpack.c.l.s4 1966171168
        %v4619 = vunpack.c.0.s8 %v4618
        %v4620 = vlaneseq
        %v4621 = vshrl.u32 %v4620, 7
        %v4622 = vsub.s32 %v4619, %v4621
        %v4623 = vrot.slane %v4616, %v4622
        %v4626 = vadd.f32 %v3998, %v4608
        %v4627 = vadd.f32 %v3999, %v4623
        %4628 = vst [vmem:[#allocation2] sm:$0xff] %v4626
        %v4629 = vlaneseq
        %vm4630 = vcmp.ge.s32.totalorder %v4629, 0
        %vm4631 = vcmp.lt.s32.totalorder %v4629, 256
        %vm4632 = vmand %vm4630, %vm4631
        %4633 = vst.msk [vmem:[#allocation2 + $0x8] sm:$0x3] %vm4632, %v4627
        // Predicated region
        $region45: #{tpu_custom_call.1} parent=39 // pred_check
          %p4634 = pneg %p288
        $region46: #{tpu_custom_call.1} parent=39 // pred_check_branch
          %4636 = sbr.rel (%p4634) target = $region48
        $region47: #{tpu_custom_call.1} parent=39 // pred_region
          %v4637 = vld [vmem:[#allocation2] sm:$0xff]
          %v4638 = vld [vmem:[#allocation2 + $0x8] sm:$0x3]
          %v4639 = vmul.f32 %v4637, 0.0025
          %v4640 = vmul.f32 %v4638, 0.0025
          %v4643 = vlaneseq
          %v4644 = vshrl.u32 %v4643, 7
          %v4645 = vsub.s32 0, %v4644
          %v4646 = vrot.slane %v4639, %v4645
          %v4647 = vlaneseq
          %v4648 = vshrl.u32 %v4647, 7
          %v4649 = vsub.s32 1, %v4648
          %v4650 = vrot.slane %v4639, %v4649
          %v4651 = vlaneseq
          %v4652 = vshrl.u32 %v4651, 7
          %v4653 = vsub.s32 2, %v4652
          %v4654 = vrot.slane %v4639, %v4653
          %v4655 = vlaneseq
          %v4656 = vshrl.u32 %v4655, 7
          %v4657 = vsub.s32 3, %v4656
          %v4658 = vrot.slane %v4639, %v4657
          %v4659 = vlaneseq
          %v4660 = vshrl.u32 %v4659, 7
          %v4661 = vsub.s32 4, %v4660
          %v4662 = vrot.slane %v4639, %v4661
          %v4663 = vlaneseq
          %v4664 = vshrl.u32 %v4663, 7
          %v4665 = vsub.s32 5, %v4664
          %v4666 = vrot.slane %v4639, %v4665
          %v4667 = vlaneseq
          %v4668 = vshrl.u32 %v4667, 7
          %v4669 = vsub.s32 6, %v4668
          %v4670 = vrot.slane %v4639, %v4669
          %v4671 = vlaneseq
          %v4672 = vshrl.u32 %v4671, 7
          %v4673 = vsub.s32 7, %v4672
          %v4674 = vrot.slane %v4639, %v4673
          %v4675 = vlaneseq
          %v4676 = vshrl.u32 %v4675, 7
          %v4677 = vsub.s32 0, %v4676
          %v4678 = vrot.slane %v4640, %v4677
          %v4679 = vlaneseq
          %v4680 = vshrl.u32 %v4679, 7
          %v4681 = vsub.s32 1, %v4680
          %v4682 = vrot.slane %v4640, %v4681
          %v4693 = vpack.c.bf16 %v4646, %v4646
          %v4694 = vpack.c.bf16 %v4650, %v4650
          %v4695 = vpack.c.bf16 %v4654, %v4654
          %v4696 = vpack.c.bf16 %v4658, %v4658
          %v4697 = vpack.c.bf16 %v4662, %v4662
          %v4698 = vpack.c.bf16 %v4666, %v4666
          %v4699 = vpack.c.bf16 %v4670, %v4670
          %v4700 = vpack.c.bf16 %v4674, %v4674
          %v4701 = vpack.c.bf16 %v4678, %v4678
          %v4702 = vpack.c.bf16 %v4682, %v4682
          %v4703 = vld [vmem:[%s3] sm:$0xf]
          %v4704 = vld [vmem:[%s3 + $0x4] sm:$0xf]
          %v4705 = vld [vmem:[%s3 + $0x8] sm:$0xf]
          %v4706 = vld [vmem:[%s3 + $0xc] sm:$0xf]
          %v4707 = vld [vmem:[%s3 + $0x10] sm:$0xf]
          %v4708 = vld [vmem:[%s3 + $0x14] sm:$0xf]
          %v4709 = vld [vmem:[%s3 + $0x18] sm:$0xf]
          %v4710 = vld [vmem:[%s3 + $0x1c] sm:$0xf]
          %v4711 = vld [vmem:[%s3 + $0x20] sm:$0xf]
          %v4712 = vld [vmem:[%s3 + $0x24] sm:$0xf]
          %v4713 = vld [vmem:[%s3 + $0x28] sm:$0xf]
          %v4714 = vld [vmem:[%s3 + $0x2c] sm:$0xf]
          %v4715 = vld [vmem:[%s3 + $0x30] sm:$0xf]
          %v4716 = vld [vmem:[%s3 + $0x34] sm:$0xf]
          %v4717 = vld [vmem:[%s3 + $0x38] sm:$0xf]
          %v4718 = vld [vmem:[%s3 + $0x3c] sm:$0xf]
          %v4719 = vld [vmem:[%s3 + $0x40] sm:$0xf]
          %v4720 = vld [vmem:[%s3 + $0x44] sm:$0xf]
          %v4721 = vld [vmem:[%s3 + $0x48] sm:$0xf]
          %v4722 = vld [vmem:[%s3 + $0x4c] sm:$0xf]
          %v4723 = vld [vmem:[%s3 + $0x50] sm:$0xf]
          %v4724 = vld [vmem:[%s3 + $0x54] sm:$0xf]
          %v4725 = vld [vmem:[%s3 + $0x58] sm:$0xf]
          %v4726 = vld [vmem:[%s3 + $0x5c] sm:$0xf]
          %v4727 = vld [vmem:[%s3 + $0x60] sm:$0xf]
          %v4728 = vld [vmem:[%s3 + $0x64] sm:$0xf]
          %v4729 = vld [vmem:[%s3 + $0x68] sm:$0xf]
          %v4730 = vld [vmem:[%s3 + $0x6c] sm:$0xf]
          %v4731 = vld [vmem:[%s3 + $0x70] sm:$0xf]
          %v4732 = vld [vmem:[%s3 + $0x74] sm:$0xf]
          %v4733 = vld [vmem:[%s3 + $0x78] sm:$0xf]
          %v4734 = vld [vmem:[%s3 + $0x7c] sm:$0xf]
          %v4735 = vld [vmem:[%s3 + $0x80] sm:$0xf]
          %v4736 = vld [vmem:[%s3 + $0x84] sm:$0xf]
          %v4737 = vld [vmem:[%s3 + $0x88] sm:$0xf]
          %v4738 = vld [vmem:[%s3 + $0x8c] sm:$0xf]
          %v4739 = vld [vmem:[%s3 + $0x90] sm:$0xf]
          %v4740 = vld [vmem:[%s3 + $0x94] sm:$0xf]
          %v4741 = vld [vmem:[%s3 + $0x98] sm:$0xf]
          %v4742 = vld [vmem:[%s3 + $0x9c] sm:$0xf]
          %v4743 = vld [vmem:[%s3 + $0xa0] sm:$0xf]
          %v4744 = vld [vmem:[%s3 + $0xa4] sm:$0xf]
          %v4745 = vld [vmem:[%s3 + $0xa8] sm:$0xf]
          %v4746 = vld [vmem:[%s3 + $0xac] sm:$0xf]
          %v4747 = vld [vmem:[%s3 + $0xb0] sm:$0xf]
          %v4748 = vld [vmem:[%s3 + $0xb4] sm:$0xf]
          %v4749 = vld [vmem:[%s3 + $0xb8] sm:$0xf]
          %v4750 = vld [vmem:[%s3 + $0xbc] sm:$0xf]
          %v4751 = vld [vmem:[%s3 + $0xc0] sm:$0xf]
          %v4752 = vld [vmem:[%s3 + $0xc4] sm:$0xf]
          %v4753 = vld [vmem:[%s3 + $0xc8] sm:$0xf]
          %v4754 = vld [vmem:[%s3 + $0xcc] sm:$0xf]
          %v4755 = vld [vmem:[%s3 + $0xd0] sm:$0xf]
          %v4756 = vld [vmem:[%s3 + $0xd4] sm:$0xf]
          %v4757 = vld [vmem:[%s3 + $0xd8] sm:$0xf]
          %v4758 = vld [vmem:[%s3 + $0xdc] sm:$0xf]
          %v4759 = vld [vmem:[%s3 + $0xe0] sm:$0xf]
          %v4760 = vld [vmem:[%s3 + $0xe4] sm:$0xf]
          %v4761 = vld [vmem:[%s3 + $0xe8] sm:$0xf]
          %v4762 = vld [vmem:[%s3 + $0xec] sm:$0xf]
          %v4763 = vld [vmem:[%s3 + $0xf0] sm:$0xf]
          %v4764 = vld [vmem:[%s3 + $0xf4] sm:$0xf]
          %v4765 = vld [vmem:[%s3 + $0xf8] sm:$0xf]
          %v4766 = vld [vmem:[%s3 + $0xfc] sm:$0xf]
          %v4767 = vld [vmem:[%s3 + $0x100] sm:$0xf]
          %v4768 = vld [vmem:[%s3 + $0x104] sm:$0xf]
          %v4769 = vld [vmem:[%s3 + $0x108] sm:$0xf]
          %v4770 = vld [vmem:[%s3 + $0x10c] sm:$0xf]
          %v4771 = vld [vmem:[%s3 + $0x110] sm:$0xf]
          %v4772 = vld [vmem:[%s3 + $0x114] sm:$0xf]
          %v4773 = vld [vmem:[%s3 + $0x118] sm:$0xf]
          %v4774 = vld [vmem:[%s3 + $0x11c] sm:$0xf]
          %v4775 = vld [vmem:[%s3 + $0x120] sm:$0xf]
          %v4776 = vld [vmem:[%s3 + $0x124] sm:$0xf]
          %v4777 = vld [vmem:[%s3 + $0x128] sm:$0xf]
          %v4778 = vld [vmem:[%s3 + $0x12c] sm:$0xf]
          %v4779 = vld [vmem:[%s3 + $0x130] sm:$0xf]
          %v4780 = vld [vmem:[%s3 + $0x134] sm:$0xf]
          %v4781 = vld [vmem:[%s3 + $0x138] sm:$0xf]
          %v4782 = vld [vmem:[%s3 + $0x13c] sm:$0xf]
          %v4783 = vld [vmem:[%s3 + $0x140] sm:$0xf]
          %v4784 = vld [vmem:[%s3 + $0x144] sm:$0xf]
          %v4785 = vld [vmem:[%s3 + $0x148] sm:$0xf]
          %v4786 = vld [vmem:[%s3 + $0x14c] sm:$0xf]
          %v4787 = vld [vmem:[%s3 + $0x150] sm:$0xf]
          %v4788 = vld [vmem:[%s3 + $0x154] sm:$0xf]
          %v4789 = vld [vmem:[%s3 + $0x158] sm:$0xf]
          %v4790 = vld [vmem:[%s3 + $0x15c] sm:$0xf]
          %v4791 = vld [vmem:[%s3 + $0x160] sm:$0xf]
          %v4792 = vld [vmem:[%s3 + $0x164] sm:$0xf]
          %v4793 = vld [vmem:[%s3 + $0x168] sm:$0xf]
          %v4794 = vld [vmem:[%s3 + $0x16c] sm:$0xf]
          %v4795 = vld [vmem:[%s3 + $0x170] sm:$0xf]
          %v4796 = vld [vmem:[%s3 + $0x174] sm:$0xf]
          %v4797 = vld [vmem:[%s3 + $0x178] sm:$0xf]
          %v4798 = vld [vmem:[%s3 + $0x17c] sm:$0xf]
          %v4799 = vld [vmem:[%s3 + $0x180] sm:$0xf]
          %v4800 = vld [vmem:[%s3 + $0x184] sm:$0xf]
          %v4801 = vld [vmem:[%s3 + $0x188] sm:$0xf]
          %v4802 = vld [vmem:[%s3 + $0x18c] sm:$0xf]
          %v4803 = vld [vmem:[%s3 + $0x190] sm:$0xf]
          %v4804 = vld [vmem:[%s3 + $0x194] sm:$0xf]
          %v4805 = vld [vmem:[%s3 + $0x198] sm:$0xf]
          %v4806 = vld [vmem:[%s3 + $0x19c] sm:$0xf]
          %v4807 = vld [vmem:[%s3 + $0x1a0] sm:$0xf]
          %v4808 = vld [vmem:[%s3 + $0x1a4] sm:$0xf]
          %v4809 = vld [vmem:[%s3 + $0x1a8] sm:$0xf]
          %v4810 = vld [vmem:[%s3 + $0x1ac] sm:$0xf]
          %v4811 = vld [vmem:[%s3 + $0x1b0] sm:$0xf]
          %v4812 = vld [vmem:[%s3 + $0x1b4] sm:$0xf]
          %v4813 = vld [vmem:[%s3 + $0x1b8] sm:$0xf]
          %v4814 = vld [vmem:[%s3 + $0x1bc] sm:$0xf]
          %v4815 = vld [vmem:[%s3 + $0x1c0] sm:$0xf]
          %v4816 = vld [vmem:[%s3 + $0x1c4] sm:$0xf]
          %v4817 = vld [vmem:[%s3 + $0x1c8] sm:$0xf]
          %v4818 = vld [vmem:[%s3 + $0x1cc] sm:$0xf]
          %v4819 = vld [vmem:[%s3 + $0x1d0] sm:$0xf]
          %v4820 = vld [vmem:[%s3 + $0x1d4] sm:$0xf]
          %v4821 = vld [vmem:[%s3 + $0x1d8] sm:$0xf]
          %v4822 = vld [vmem:[%s3 + $0x1dc] sm:$0xf]
          %v4823 = vld [vmem:[%s3 + $0x1e0] sm:$0xf]
          %v4824 = vld [vmem:[%s3 + $0x1e4] sm:$0xf]
          %v4825 = vld [vmem:[%s3 + $0x1e8] sm:$0xf]
          %v4826 = vld [vmem:[%s3 + $0x1ec] sm:$0xf]
          %v4827 = vld [vmem:[%s3 + $0x1f0] sm:$0xf]
          %v4828 = vld [vmem:[%s3 + $0x1f4] sm:$0xf]
          %v4829 = vld [vmem:[%s3 + $0x1f8] sm:$0xf]
          %v4830 = vld [vmem:[%s3 + $0x1fc] sm:$0xf]
          %v4831 = vld [vmem:[%s3 + $0x200] sm:$0xf]
          %v4832 = vld [vmem:[%s3 + $0x204] sm:$0xf]
          %v4833 = vld [vmem:[%s3 + $0x208] sm:$0xf]
          %v4834 = vld [vmem:[%s3 + $0x20c] sm:$0xf]
          %v4835 = vld [vmem:[%s3 + $0x210] sm:$0xf]
          %v4836 = vld [vmem:[%s3 + $0x214] sm:$0xf]
          %v4837 = vld [vmem:[%s3 + $0x218] sm:$0xf]
          %v4838 = vld [vmem:[%s3 + $0x21c] sm:$0xf]
          %v4839 = vld [vmem:[%s3 + $0x220] sm:$0xf]
          %v4840 = vld [vmem:[%s3 + $0x224] sm:$0xf]
          %v4841 = vld [vmem:[%s3 + $0x228] sm:$0xf]
          %v4842 = vld [vmem:[%s3 + $0x22c] sm:$0xf]
          %v4843 = vld [vmem:[%s3 + $0x230] sm:$0xf]
          %v4844 = vld [vmem:[%s3 + $0x234] sm:$0xf]
          %v4845 = vld [vmem:[%s3 + $0x238] sm:$0xf]
          %v4846 = vld [vmem:[%s3 + $0x23c] sm:$0xf]
          %v4847 = vld [vmem:[%s3 + $0x240] sm:$0xf]
          %v4848 = vld [vmem:[%s3 + $0x244] sm:$0xf]
          %v4849 = vld [vmem:[%s3 + $0x248] sm:$0xf]
          %v4850 = vld [vmem:[%s3 + $0x24c] sm:$0xf]
          %v4851 = vld [vmem:[%s3 + $0x250] sm:$0xf]
          %v4852 = vld [vmem:[%s3 + $0x254] sm:$0xf]
          %v4853 = vld [vmem:[%s3 + $0x258] sm:$0xf]
          %v4854 = vld [vmem:[%s3 + $0x25c] sm:$0xf]
          %v4855 = vld [vmem:[%s3 + $0x260] sm:$0xf]
          %v4856 = vld [vmem:[%s3 + $0x264] sm:$0xf]
          %v4857 = vld [vmem:[%s3 + $0x268] sm:$0xf]
          %v4858 = vld [vmem:[%s3 + $0x26c] sm:$0xf]
          %v4859 = vld [vmem:[%s3 + $0x270] sm:$0xf]
          %v4860 = vld [vmem:[%s3 + $0x274] sm:$0xf]
          %v4861 = vld [vmem:[%s3 + $0x278] sm:$0xf]
          %v4862 = vld [vmem:[%s3 + $0x27c] sm:$0xf]
          %v4863 = vld [vmem:[%s4] sm:$0x1]
          %v5024 = vunpack.c.l.b16 %v4703
          %v5025 = vunpack.c.l.b16 %v4704
          %v5026 = vunpack.c.l.b16 %v4705
          %v5027 = vunpack.c.l.b16 %v4706
          %v5028 = vunpack.c.l.b16 %v4707
          %v5029 = vunpack.c.l.b16 %v4708
          %v5030 = vunpack.c.l.b16 %v4709
          %v5031 = vunpack.c.l.b16 %v4710
          %v5032 = vunpack.c.l.b16 %v4711
          %v5033 = vunpack.c.l.b16 %v4712
          %v5034 = vunpack.c.l.b16 %v4713
          %v5035 = vunpack.c.l.b16 %v4714
          %v5036 = vunpack.c.l.b16 %v4715
          %v5037 = vunpack.c.l.b16 %v4716
          %v5038 = vunpack.c.l.b16 %v4717
          %v5039 = vunpack.c.l.b16 %v4718
          %v5040 = vunpack.c.l.b16 %v4719
          %v5041 = vunpack.c.l.b16 %v4720
          %v5042 = vunpack.c.l.b16 %v4721
          %v5043 = vunpack.c.l.b16 %v4722
          %v5044 = vunpack.c.l.b16 %v4723
          %v5045 = vunpack.c.l.b16 %v4724
          %v5046 = vunpack.c.l.b16 %v4725
          %v5047 = vunpack.c.l.b16 %v4726
          %v5048 = vunpack.c.l.b16 %v4727
          %v5049 = vunpack.c.l.b16 %v4728
          %v5050 = vunpack.c.l.b16 %v4729
          %v5051 = vunpack.c.l.b16 %v4730
          %v5052 = vunpack.c.l.b16 %v4731
          %v5053 = vunpack.c.l.b16 %v4732
          %v5054 = vunpack.c.l.b16 %v4733
          %v5055 = vunpack.c.l.b16 %v4734
          %v5056 = vunpack.c.l.b16 %v4735
          %v5057 = vunpack.c.l.b16 %v4736
          %v5058 = vunpack.c.l.b16 %v4737
          %v5059 = vunpack.c.l.b16 %v4738
          %v5060 = vunpack.c.l.b16 %v4739
          %v5061 = vunpack.c.l.b16 %v4740
          %v5062 = vunpack.c.l.b16 %v4741
          %v5063 = vunpack.c.l.b16 %v4742
          %v5064 = vunpack.c.l.b16 %v4743
          %v5065 = vunpack.c.l.b16 %v4744
          %v5066 = vunpack.c.l.b16 %v4745
          %v5067 = vunpack.c.l.b16 %v4746
          %v5068 = vunpack.c.l.b16 %v4747
          %v5069 = vunpack.c.l.b16 %v4748
          %v5070 = vunpack.c.l.b16 %v4749
          %v5071 = vunpack.c.l.b16 %v4750
          %v5072 = vunpack.c.l.b16 %v4751
          %v5073 = vunpack.c.l.b16 %v4752
          %v5074 = vunpack.c.l.b16 %v4753
          %v5075 = vunpack.c.l.b16 %v4754
          %v5076 = vunpack.c.l.b16 %v4755
          %v5077 = vunpack.c.l.b16 %v4756
          %v5078 = vunpack.c.l.b16 %v4757
          %v5079 = vunpack.c.l.b16 %v4758
          %v5080 = vunpack.c.l.b16 %v4759
          %v5081 = vunpack.c.l.b16 %v4760
          %v5082 = vunpack.c.l.b16 %v4761
          %v5083 = vunpack.c.l.b16 %v4762
          %v5084 = vunpack.c.l.b16 %v4763
          %v5085 = vunpack.c.l.b16 %v4764
          %v5086 = vunpack.c.l.b16 %v4765
          %v5087 = vunpack.c.l.b16 %v4766
          %v5088 = vunpack.c.l.b16 %v4767
          %v5089 = vunpack.c.l.b16 %v4768
          %v5090 = vunpack.c.l.b16 %v4769
          %v5091 = vunpack.c.l.b16 %v4770
          %v5092 = vunpack.c.l.b16 %v4771
          %v5093 = vunpack.c.l.b16 %v4772
          %v5094 = vunpack.c.l.b16 %v4773
          %v5095 = vunpack.c.l.b16 %v4774
          %v5096 = vunpack.c.l.b16 %v4775
          %v5097 = vunpack.c.l.b16 %v4776
          %v5098 = vunpack.c.l.b16 %v4777
          %v5099 = vunpack.c.l.b16 %v4778
          %v5100 = vunpack.c.l.b16 %v4779
          %v5101 = vunpack.c.l.b16 %v4780
          %v5102 = vunpack.c.l.b16 %v4781
          %v5103 = vunpack.c.l.b16 %v4782
          %v5104 = vunpack.c.l.b16 %v4783
          %v5105 = vunpack.c.l.b16 %v4784
          %v5106 = vunpack.c.l.b16 %v4785
          %v5107 = vunpack.c.l.b16 %v4786
          %v5108 = vunpack.c.l.b16 %v4787
          %v5109 = vunpack.c.l.b16 %v4788
          %v5110 = vunpack.c.l.b16 %v4789
          %v5111 = vunpack.c.l.b16 %v4790
          %v5112 = vunpack.c.l.b16 %v4791
          %v5113 = vunpack.c.l.b16 %v4792
          %v5114 = vunpack.c.l.b16 %v4793
          %v5115 = vunpack.c.l.b16 %v4794
          %v5116 = vunpack.c.l.b16 %v4795
          %v5117 = vunpack.c.l.b16 %v4796
          %v5118 = vunpack.c.l.b16 %v4797
          %v5119 = vunpack.c.l.b16 %v4798
          %v5120 = vunpack.c.l.b16 %v4799
          %v5121 = vunpack.c.l.b16 %v4800
          %v5122 = vunpack.c.l.b16 %v4801
          %v5123 = vunpack.c.l.b16 %v4802
          %v5124 = vunpack.c.l.b16 %v4803
          %v5125 = vunpack.c.l.b16 %v4804
          %v5126 = vunpack.c.l.b16 %v4805
          %v5127 = vunpack.c.l.b16 %v4806
          %v5128 = vunpack.c.l.b16 %v4807
          %v5129 = vunpack.c.l.b16 %v4808
          %v5130 = vunpack.c.l.b16 %v4809
          %v5131 = vunpack.c.l.b16 %v4810
          %v5132 = vunpack.c.l.b16 %v4811
          %v5133 = vunpack.c.l.b16 %v4812
          %v5134 = vunpack.c.l.b16 %v4813
          %v5135 = vunpack.c.l.b16 %v4814
          %v5136 = vunpack.c.l.b16 %v4815
          %v5137 = vunpack.c.l.b16 %v4816
          %v5138 = vunpack.c.l.b16 %v4817
          %v5139 = vunpack.c.l.b16 %v4818
          %v5140 = vunpack.c.l.b16 %v4819
          %v5141 = vunpack.c.l.b16 %v4820
          %v5142 = vunpack.c.l.b16 %v4821
          %v5143 = vunpack.c.l.b16 %v4822
          %v5144 = vunpack.c.l.b16 %v4823
          %v5145 = vunpack.c.l.b16 %v4824
          %v5146 = vunpack.c.l.b16 %v4825
          %v5147 = vunpack.c.l.b16 %v4826
          %v5148 = vunpack.c.l.b16 %v4827
          %v5149 = vunpack.c.l.b16 %v4828
          %v5150 = vunpack.c.l.b16 %v4829
          %v5151 = vunpack.c.l.b16 %v4830
          %v5152 = vunpack.c.l.b16 %v4831
          %v5153 = vunpack.c.l.b16 %v4832
          %v5154 = vunpack.c.l.b16 %v4833
          %v5155 = vunpack.c.l.b16 %v4834
          %v5156 = vunpack.c.l.b16 %v4835
          %v5157 = vunpack.c.l.b16 %v4836
          %v5158 = vunpack.c.l.b16 %v4837
          %v5159 = vunpack.c.l.b16 %v4838
          %v5160 = vunpack.c.l.b16 %v4839
          %v5161 = vunpack.c.l.b16 %v4840
          %v5162 = vunpack.c.l.b16 %v4841
          %v5163 = vunpack.c.l.b16 %v4842
          %v5164 = vunpack.c.l.b16 %v4843
          %v5165 = vunpack.c.l.b16 %v4844
          %v5166 = vunpack.c.l.b16 %v4845
          %v5167 = vunpack.c.l.b16 %v4846
          %v5168 = vunpack.c.l.b16 %v4847
          %v5169 = vunpack.c.l.b16 %v4848
          %v5170 = vunpack.c.l.b16 %v4849
          %v5171 = vunpack.c.l.b16 %v4850
          %v5172 = vunpack.c.l.b16 %v4851
          %v5173 = vunpack.c.l.b16 %v4852
          %v5174 = vunpack.c.l.b16 %v4853
          %v5175 = vunpack.c.l.b16 %v4854
          %v5176 = vunpack.c.l.b16 %v4855
          %v5177 = vunpack.c.l.b16 %v4856
          %v5178 = vunpack.c.l.b16 %v4857
          %v5179 = vunpack.c.l.b16 %v4858
          %v5180 = vunpack.c.l.b16 %v4859
          %v5181 = vunpack.c.l.b16 %v4860
          %v5182 = vunpack.c.l.b16 %v4861
          %v5183 = vunpack.c.l.b16 %v4862
          %v5184 = vpack.c.b16 %v5025, %v5024
          %v5185 = vpack.c.b16 %v5027, %v5026
          %v5186 = vpack.c.b16 %v5029, %v5028
          %v5187 = vpack.c.b16 %v5031, %v5030
          %v5188 = vpack.c.b16 %v5033, %v5032
          %v5189 = vpack.c.b16 %v5035, %v5034
          %v5190 = vpack.c.b16 %v5037, %v5036
          %v5191 = vpack.c.b16 %v5039, %v5038
          %v5192 = vpack.c.b16 %v5041, %v5040
          %v5193 = vpack.c.b16 %v5043, %v5042
          %v5194 = vpack.c.b16 %v5045, %v5044
          %v5195 = vpack.c.b16 %v5047, %v5046
          %v5196 = vpack.c.b16 %v5049, %v5048
          %v5197 = vpack.c.b16 %v5051, %v5050
          %v5198 = vpack.c.b16 %v5053, %v5052
          %v5199 = vpack.c.b16 %v5055, %v5054
          %v5200 = vpack.c.b16 %v5057, %v5056
          %v5201 = vpack.c.b16 %v5059, %v5058
          %v5202 = vpack.c.b16 %v5061, %v5060
          %v5203 = vpack.c.b16 %v5063, %v5062
          %v5204 = vpack.c.b16 %v5065, %v5064
          %v5205 = vpack.c.b16 %v5067, %v5066
          %v5206 = vpack.c.b16 %v5069, %v5068
          %v5207 = vpack.c.b16 %v5071, %v5070
          %v5208 = vpack.c.b16 %v5073, %v5072
          %v5209 = vpack.c.b16 %v5075, %v5074
          %v5210 = vpack.c.b16 %v5077, %v5076
          %v5211 = vpack.c.b16 %v5079, %v5078
          %v5212 = vpack.c.b16 %v5081, %v5080
          %v5213 = vpack.c.b16 %v5083, %v5082
          %v5214 = vpack.c.b16 %v5085, %v5084
          %v5215 = vpack.c.b16 %v5087, %v5086
          %v5216 = vpack.c.b16 %v5089, %v5088
          %v5217 = vpack.c.b16 %v5091, %v5090
          %v5218 = vpack.c.b16 %v5093, %v5092
          %v5219 = vpack.c.b16 %v5095, %v5094
          %v5220 = vpack.c.b16 %v5097, %v5096
          %v5221 = vpack.c.b16 %v5099, %v5098
          %v5222 = vpack.c.b16 %v5101, %v5100
          %v5223 = vpack.c.b16 %v5103, %v5102
          %v5224 = vpack.c.b16 %v5105, %v5104
          %v5225 = vpack.c.b16 %v5107, %v5106
          %v5226 = vpack.c.b16 %v5109, %v5108
          %v5227 = vpack.c.b16 %v5111, %v5110
          %v5228 = vpack.c.b16 %v5113, %v5112
          %v5229 = vpack.c.b16 %v5115, %v5114
          %v5230 = vpack.c.b16 %v5117, %v5116
          %v5231 = vpack.c.b16 %v5119, %v5118
          %v5232 = vpack.c.b16 %v5121, %v5120
          %v5233 = vpack.c.b16 %v5123, %v5122
          %v5234 = vpack.c.b16 %v5125, %v5124
          %v5235 = vpack.c.b16 %v5127, %v5126
          %v5236 = vpack.c.b16 %v5129, %v5128
          %v5237 = vpack.c.b16 %v5131, %v5130
          %v5238 = vpack.c.b16 %v5133, %v5132
          %v5239 = vpack.c.b16 %v5135, %v5134
          %v5240 = vpack.c.b16 %v5137, %v5136
          %v5241 = vpack.c.b16 %v5139, %v5138
          %v5242 = vpack.c.b16 %v5141, %v5140
          %v5243 = vpack.c.b16 %v5143, %v5142
          %v5244 = vpack.c.b16 %v5145, %v5144
          %v5245 = vpack.c.b16 %v5147, %v5146
          %v5246 = vpack.c.b16 %v5149, %v5148
          %v5247 = vpack.c.b16 %v5151, %v5150
          %v5248 = vpack.c.b16 %v5153, %v5152
          %v5249 = vpack.c.b16 %v5155, %v5154
          %v5250 = vpack.c.b16 %v5157, %v5156
          %v5251 = vpack.c.b16 %v5159, %v5158
          %v5252 = vpack.c.b16 %v5161, %v5160
          %v5253 = vpack.c.b16 %v5163, %v5162
          %v5254 = vpack.c.b16 %v5165, %v5164
          %v5255 = vpack.c.b16 %v5167, %v5166
          %v5256 = vpack.c.b16 %v5169, %v5168
          %v5257 = vpack.c.b16 %v5171, %v5170
          %v5258 = vpack.c.b16 %v5173, %v5172
          %v5259 = vpack.c.b16 %v5175, %v5174
          %v5260 = vpack.c.b16 %v5177, %v5176
          %v5261 = vpack.c.b16 %v5179, %v5178
          %v5262 = vpack.c.b16 %v5181, %v5180
          %v5263 = vpack.c.b16 %v5183, %v5182
          %5344 = vmatprep.subr.bf16.mxu0 0
          %5345 = vmatpush1.bf16.msra.mxu0 %v5184
          %5346 = vmatprep.subr.bf16.mxu0 0
          %5347 = vmatpush1.bf16.msra.mxu0 %v5185
          %5348 = vmatprep.subr.bf16.mxu0 0
          %5349 = vmatpush1.bf16.msra.mxu0 %v5186
          %5350 = vmatprep.subr.bf16.mxu0 0
          %5351 = vmatpush1.bf16.msra.mxu0 %v5187
          %5352 = vmatprep.subr.bf16.mxu0 0
          %5353 = vmatpush1.bf16.msra.mxu0 %v5188
          %5354 = vmatprep.subr.bf16.mxu0 0
          %5355 = vmatpush1.bf16.msra.mxu0 %v5189
          %5356 = vmatprep.subr.bf16.mxu0 0
          %5357 = vmatpush1.bf16.msra.mxu0 %v5190
          %5358 = vmatprep.subr.bf16.mxu0 0
          %5359 = vmatpush1.bf16.msra.mxu0 %v5191
          %5360 = vmatprep.subr.bf16.mxu0 0
          %5361 = vmatpush1.bf16.msra.mxu0 %v5192
          %5362 = vmatprep.subr.bf16.mxu0 0
          %5363 = vmatpush1.bf16.msra.mxu0 %v5193
          %5364 = vmatprep.subr.bf16.mxu0 0
          %5365 = vmatpush1.bf16.msra.mxu0 %v5194
          %5366 = vmatprep.subr.bf16.mxu0 0
          %5367 = vmatpush1.bf16.msra.mxu0 %v5195
          %5368 = vmatprep.subr.bf16.mxu0 0
          %5369 = vmatpush1.bf16.msra.mxu0 %v5196
          %5370 = vmatprep.subr.bf16.mxu0 0
          %5371 = vmatpush1.bf16.msra.mxu0 %v5197
          %5372 = vmatprep.subr.bf16.mxu0 0
          %5373 = vmatpush1.bf16.msra.mxu0 %v5198
          %5374 = vmatprep.subr.bf16.mxu0 0
          %5375 = vmatpush1.bf16.msra.mxu0 %v5199
          %5376 = vmatprep.mubr.bf16.mxu0 %v4694
          %5377 = vmatmul.mubr.bf16.gmra.mrb[0].mxu0 %v4693
          %v5378 = vpop.f32.mrb[0].mxu0
          %v5379 = vadd.f32 %v4863, %v5378
          %v5380 = vpop.f32.mrb[0].mxu0
          %v5381 = vpop.f32.mrb[0].mxu0
          %v5382 = vpop.f32.mrb[0].mxu0
          %5383 = vdwg.mxu0
          %5384 = vmatprep.subr.bf16.mxu0 0
          %5385 = vmatpush1.bf16.msra.mxu0 %v5200
          %5386 = vmatprep.subr.bf16.mxu0 0
          %5387 = vmatpush1.bf16.msra.mxu0 %v5201
          %5388 = vmatprep.subr.bf16.mxu0 0
          %5389 = vmatpush1.bf16.msra.mxu0 %v5202
          %5390 = vmatprep.subr.bf16.mxu0 0
          %5391 = vmatpush1.bf16.msra.mxu0 %v5203
          %5392 = vmatprep.subr.bf16.mxu0 0
          %5393 = vmatpush1.bf16.msra.mxu0 %v5204
          %5394 = vmatprep.subr.bf16.mxu0 0
          %5395 = vmatpush1.bf16.msra.mxu0 %v5205
          %5396 = vmatprep.subr.bf16.mxu0 0
          %5397 = vmatpush1.bf16.msra.mxu0 %v5206
          %5398 = vmatprep.subr.bf16.mxu0 0
          %5399 = vmatpush1.bf16.msra.mxu0 %v5207
          %5400 = vmatprep.subr.bf16.mxu0 0
          %5401 = vmatpush1.bf16.msra.mxu0 %v5208
          %5402 = vmatprep.subr.bf16.mxu0 0
          %5403 = vmatpush1.bf16.msra.mxu0 %v5209
          %5404 = vmatprep.subr.bf16.mxu0 0
          %5405 = vmatpush1.bf16.msra.mxu0 %v5210
          %5406 = vmatprep.subr.bf16.mxu0 0
          %5407 = vmatpush1.bf16.msra.mxu0 %v5211
          %5408 = vmatprep.subr.bf16.mxu0 0
          %5409 = vmatpush1.bf16.msra.mxu0 %v5212
          %5410 = vmatprep.subr.bf16.mxu0 0
          %5411 = vmatpush1.bf16.msra.mxu0 %v5213
          %5412 = vmatprep.subr.bf16.mxu0 0
          %5413 = vmatpush1.bf16.msra.mxu0 %v5214
          %5414 = vmatprep.subr.bf16.mxu0 0
          %5415 = vmatpush1.bf16.msra.mxu0 %v5215
          %5416 = vmatprep.mubr.bf16.mxu0 %v4696
          %5417 = vmatmul.mubr.bf16.gmra.mrb[0].mxu0 %v4695
          %v5418 = vpop.f32.mrb[0].mxu0
          %v5419 = vadd.f32 %v5379, %v5418
          %v5420 = vpop.f32.mrb[0].mxu0
          %v5421 = vpop.f32.mrb[0].mxu0
          %v5422 = vpop.f32.mrb[0].mxu0
          %5423 = vdwg.mxu0
          %5424 = vmatprep.subr.bf16.mxu0 0
          %5425 = vmatpush1.bf16.msra.mxu0 %v5216
          %5426 = vmatprep.subr.bf16.mxu0 0
          %5427 = vmatpush1.bf16.msra.mxu0 %v5217
          %5428 = vmatprep.subr.bf16.mxu0 0
          %5429 = vmatpush1.bf16.msra.mxu0 %v5218
          %5430 = vmatprep.subr.bf16.mxu0 0
          %5431 = vmatpush1.bf16.msra.mxu0 %v5219
          %5432 = vmatprep.subr.bf16.mxu0 0
          %5433 = vmatpush1.bf16.msra.mxu0 %v5220
          %5434 = vmatprep.subr.bf16.mxu0 0
          %5435 = vmatpush1.bf16.msra.mxu0 %v5221
          %5436 = vmatprep.subr.bf16.mxu0 0
          %5437 = vmatpush1.bf16.msra.mxu0 %v5222
          %5438 = vmatprep.subr.bf16.mxu0 0
          %5439 = vmatpush1.bf16.msra.mxu0 %v5223
          %5440 = vmatprep.subr.bf16.mxu0 0
          %5441 = vmatpush1.bf16.msra.mxu0 %v5224
          %5442 = vmatprep.subr.bf16.mxu0 0
          %5443 = vmatpush1.bf16.msra.mxu0 %v5225
          %5444 = vmatprep.subr.bf16.mxu0 0
          %5445 = vmatpush1.bf16.msra.mxu0 %v5226
          %5446 = vmatprep.subr.bf16.mxu0 0
          %5447 = vmatpush1.bf16.msra.mxu0 %v5227
          %5448 = vmatprep.subr.bf16.mxu0 0
          %5449 = vmatpush1.bf16.msra.mxu0 %v5228
          %5450 = vmatprep.subr.bf16.mxu0 0
          %5451 = vmatpush1.bf16.msra.mxu0 %v5229
          %5452 = vmatprep.subr.bf16.mxu0 0
          %5453 = vmatpush1.bf16.msra.mxu0 %v5230
          %5454 = vmatprep.subr.bf16.mxu0 0
          %5455 = vmatpush1.bf16.msra.mxu0 %v5231
          %5456 = vmatprep.mubr.bf16.mxu0 %v4698
          %5457 = vmatmul.mubr.bf16.gmra.mrb[0].mxu0 %v4697
          %v5458 = vpop.f32.mrb[0].mxu0
          %v5459 = vadd.f32 %v5419, %v5458
          %v5460 = vpop.f32.mrb[0].mxu0
          %v5461 = vpop.f32.mrb[0].mxu0
          %v5462 = vpop.f32.mrb[0].mxu0
          %5463 = vdwg.mxu0
          %5464 = vmatprep.subr.bf16.mxu0 0
          %5465 = vmatpush1.bf16.msra.mxu0 %v5232
          %5466 = vmatprep.subr.bf16.mxu0 0
          %5467 = vmatpush1.bf16.msra.mxu0 %v5233
          %5468 = vmatprep.subr.bf16.mxu0 0
          %5469 = vmatpush1.bf16.msra.mxu0 %v5234
          %5470 = vmatprep.subr.bf16.mxu0 0
          %5471 = vmatpush1.bf16.msra.mxu0 %v5235
          %5472 = vmatprep.subr.bf16.mxu0 0
          %5473 = vmatpush1.bf16.msra.mxu0 %v5236
          %5474 = vmatprep.subr.bf16.mxu0 0
          %5475 = vmatpush1.bf16.msra.mxu0 %v5237
          %5476 = vmatprep.subr.bf16.mxu0 0
          %5477 = vmatpush1.bf16.msra.mxu0 %v5238
          %5478 = vmatprep.subr.bf16.mxu0 0
          %5479 = vmatpush1.bf16.msra.mxu0 %v5239
          %5480 = vmatprep.subr.bf16.mxu0 0
          %5481 = vmatpush1.bf16.msra.mxu0 %v5240
          %5482 = vmatprep.subr.bf16.mxu0 0
          %5483 = vmatpush1.bf16.msra.mxu0 %v5241
          %5484 = vmatprep.subr.bf16.mxu0 0
          %5485 = vmatpush1.bf16.msra.mxu0 %v5242
          %5486 = vmatprep.subr.bf16.mxu0 0
          %5487 = vmatpush1.bf16.msra.mxu0 %v5243
          %5488 = vmatprep.subr.bf16.mxu0 0
          %5489 = vmatpush1.bf16.msra.mxu0 %v5244
          %5490 = vmatprep.subr.bf16.mxu0 0
          %5491 = vmatpush1.bf16.msra.mxu0 %v5245
          %5492 = vmatprep.subr.bf16.mxu0 0
          %5493 = vmatpush1.bf16.msra.mxu0 %v5246
          %5494 = vmatprep.subr.bf16.mxu0 0
          %5495 = vmatpush1.bf16.msra.mxu0 %v5247
          %5496 = vmatprep.mubr.bf16.mxu0 %v4700
          %5497 = vmatmul.mubr.bf16.gmra.mrb[0].mxu0 %v4699
          %v5498 = vpop.f32.mrb[0].mxu0
          %v5499 = vadd.f32 %v5459, %v5498
          %v5500 = vpop.f32.mrb[0].mxu0
          %v5501 = vpop.f32.mrb[0].mxu0
          %v5502 = vpop.f32.mrb[0].mxu0
          %5503 = vdwg.mxu0
          %5504 = vmatprep.subr.bf16.mxu0 0
          %5505 = vmatpush1.bf16.msra.mxu0 %v5248
          %5506 = vmatprep.subr.bf16.mxu0 0
          %5507 = vmatpush1.bf16.msra.mxu0 %v5249
          %5508 = vmatprep.subr.bf16.mxu0 0
          %5509 = vmatpush1.bf16.msra.mxu0 %v5250
          %5510 = vmatprep.subr.bf16.mxu0 0
          %5511 = vmatpush1.bf16.msra.mxu0 %v5251
          %5512 = vmatprep.subr.bf16.mxu0 0
          %5513 = vmatpush1.bf16.msra.mxu0 %v5252
          %5514 = vmatprep.subr.bf16.mxu0 0
          %5515 = vmatpush1.bf16.msra.mxu0 %v5253
          %5516 = vmatprep.subr.bf16.mxu0 0
          %5517 = vmatpush1.bf16.msra.mxu0 %v5254
          %5518 = vmatprep.subr.bf16.mxu0 0
          %5519 = vmatpush1.bf16.msra.mxu0 %v5255
          %5520 = vmatprep.subr.bf16.mxu0 0
          %5521 = vmatpush1.bf16.msra.mxu0 %v5256
          %5522 = vmatprep.subr.bf16.mxu0 0
          %5523 = vmatpush1.bf16.msra.mxu0 %v5257
          %5524 = vmatprep.subr.bf16.mxu0 0
          %5525 = vmatpush1.bf16.msra.mxu0 %v5258
          %5526 = vmatprep.subr.bf16.mxu0 0
          %5527 = vmatpush1.bf16.msra.mxu0 %v5259
          %5528 = vmatprep.subr.bf16.mxu0 0
          %5529 = vmatpush1.bf16.msra.mxu0 %v5260
          %5530 = vmatprep.subr.bf16.mxu0 0
          %5531 = vmatpush1.bf16.msra.mxu0 %v5261
          %5532 = vmatprep.subr.bf16.mxu0 0
          %5533 = vmatpush1.bf16.msra.mxu0 %v5262
          %5534 = vmatprep.subr.bf16.mxu0 0
          %5535 = vmatpush1.bf16.msra.mxu0 %v5263
          %5536 = vmatprep.mubr.bf16.mxu0 %v4702
          %5537 = vmatmul.mubr.bf16.gmra.mrb[0].mxu0 %v4701
          %v5538 = vpop.f32.mrb[0].mxu0
          %v5539 = vadd.f32 %v5499, %v5538
          %v5540 = vpop.f32.mrb[0].mxu0
          %v5541 = vpop.f32.mrb[0].mxu0
          %v5542 = vpop.f32.mrb[0].mxu0
          %5543 = vdwg.mxu0
          %vm5544 = vcmask 57344
          %v5545 = vsel %vm5544, %v5539, -inf
          %5546 = vmax.xlane.f32.xlu0 %v5545
          %v5547 = vpop.xlane.xlu0 %5546
          %v5548 = vsub.f32 %v5539, %v5547
          %v5549 = vmul.f32 %v5548, 1.442695
          %v5550 = vpow.pop %v5549
          %v5551 = vsel %vm5544, %v5550, 0.0
          %5552 = vadd.xlane.f32.xlu0 %v5551
          %v5553 = vpop.xlane.xlu0 %5552
          %v5554 = vrcp.pop %v5553
          %v5555 = vmul.f32 %v5550, %v5554
          %5556 = vst.msk [vmem:[%s276] sm:$0x1] %vm5544, %v5539
          %5557 = vst.msk [vmem:[%s270] sm:$0x1] %vm5544, %v5555
        $region48: #{tpu_custom_call.1} parent=39 // pred_fallthru
          _
        %s5558 = sand.u32 %s156, 1
        %s5559 = scalar_lea.sflag [#allocation4], %s5558
        %s5560 = sand.u32 %s156, 1
        %s5561 = scalar_lea.vmem [#allocation3], %s5560
        %s5562 = sand.u32 %s182, 1
        %s5563 = scalar_lea.sflag [#allocation6], %s5562
        %s5564 = sand.u32 %s182, 1
        %s5565 = scalar_lea.vmem [#allocation5], %s5564
        // Predicated region
        $region49: #{tpu_custom_call.1} parent=39 // pred_check
          %p5566 = pneg %p166
        $region50: #{tpu_custom_call.1} parent=39 // pred_check_branch
          %5568 = sbr.rel (%p5566) target = $region52
        $region51: #{tpu_custom_call.1} parent=39 // pred_region
          %s5570 = ssub.s32 16, 16
          %5571 = vsyncadd %s5559, %s5570
          %s5572 = smul.addr %s28, 16
          %s5573 = scalar_lea.hbm %s5, %s5572
          %s5575 = sshll.u32 %s5561, 4
          %s5576 = int_to_ptr.vmem [resolvable:$true] %s5575
          %5578 = dma.vmem_to_hbm [thread:$0]  %s5576, 16, %s5573, %s5559
        $region52: #{tpu_custom_call.1} parent=39 // pred_fallthru
          _
        // Predicated region
        $region53: #{tpu_custom_call.1} parent=39 // pred_check
          %p5579 = pneg %p192
        $region54: #{tpu_custom_call.1} parent=39 // pred_check_branch
          %5581 = sbr.rel (%p5579) target = $region56
        $region55: #{tpu_custom_call.1} parent=39 // pred_region
          %s5583 = ssub.s32 16, 16
          %5584 = vsyncadd %s5563, %s5583
          %s5585 = smul.addr %s28, 16
          %s5586 = scalar_lea.hbm %s6, %s5585
          %s5588 = sshll.u32 %s5565, 4
          %s5589 = int_to_ptr.vmem [resolvable:$true] %s5588
          %5591 = dma.vmem_to_hbm [thread:$0]  %s5589, 16, %s5586, %s5563
        $region56: #{tpu_custom_call.1} parent=39 // pred_fallthru
          _
      $region40: #{tpu_custom_call.1} parent=5 // pred_fallthru
        _
      %p5592 = scmp.le.s32.totalorder 2, %s19
      // Predicated region
      $region57: #{tpu_custom_call.1} parent=5 // pred_check
        %p5593 = pneg %p5592
      $region58: #{tpu_custom_call.1} parent=5 // pred_check_branch
        %5595 = sbr.rel (%p5593) target = $region60
      $region59: #{tpu_custom_call.1} parent=5 // pred_region
        %s5596 = ssub.s32 %s19, 2
        // Predicated region
        $region61: #{tpu_custom_call.1} parent=59 // pred_check
          %p5597 = pneg %p172
        $region62: #{tpu_custom_call.1} parent=59 // pred_check_branch
          %5599 = sbr.rel (%p5597) target = $region64
        $region63: #{tpu_custom_call.1} parent=59 // pred_region
          %s5600 = sand.u32 %s157, 1
          %s5601 = scalar_lea.sflag [#allocation4], %s5600
          %s5602 = sand.u32 %s157, 1
          %s5603 = scalar_lea.vmem [#allocation3], %s5602
          %5604 = dma.done %s5601, 16
        $region64: #{tpu_custom_call.1} parent=59 // pred_fallthru
          _
        // Predicated region
        $region65: #{tpu_custom_call.1} parent=59 // pred_check
          %p5605 = pneg %p198
        $region66: #{tpu_custom_call.1} parent=59 // pred_check_branch
          %5607 = sbr.rel (%p5605) target = $region68
        $region67: #{tpu_custom_call.1} parent=59 // pred_region
          %s5608 = sand.u32 %s183, 1
          %s5609 = scalar_lea.sflag [#allocation6], %s5608
          %s5610 = sand.u32 %s183, 1
          %s5611 = scalar_lea.vmem [#allocation5], %s5610
          %5612 = dma.done %s5609, 16
        $region68: #{tpu_custom_call.1} parent=59 // pred_fallthru
          _
      $region60: #{tpu_custom_call.1} parent=5 // pred_fallthru
        _
    $region6: #{tpu_custom_call.1} parent=1 // loop_footer
      %s23 = sadd.s32 1, %s19
    $region7: #{tpu_custom_call.1} parent=1 // loop_footer_branch
      %18 = sbr.rel target = $region3
    $region8: #{tpu_custom_call.1} parent=1 // loop_exit
      _
    %5613 = vsyncpa [#allocation4], 1
    %s5614 = scalar_lea.sflag [#allocation4], 1
    %5615 = vsyncpa %s5614, 1
    %5616 = vsyncpa [#allocation6], 1
    %s5617 = scalar_lea.sflag [#allocation6], 1
    %5618 = vsyncpa %s5617, 1

</llo_original>
